<compile_context>
chip_gen: v7x
topology: tpu7x:2x2x1
jax: 0.10.0
libtpu: 0.0.40
codegen_flags: <defaults>
</compile_context>

<pallas_src>
import functools

import jax
import jax.numpy as jnp
from jax.experimental import pallas as pl
from jax.experimental.pallas import tpu as pltpu


_WEIGHT_KEYS = ("sw1", "sb1", "sw2", "sb2", "sw3", "sb3",
                "fw1", "fb1", "fw2", "fb2", "fw3", "fb3",
                "cw1", "cb1", "cw2", "cb2", "cw3", "cb3")


def _round_up(x, m):
    return (x + m - 1) // m * m


# ---------------------------------------------------------------------------
# In-kernel helpers
# ---------------------------------------------------------------------------
def _merge_topk(buf, h, hiota, biota, topk):
    """Merge value block h (Tn, C) into the running per-column top-k buffer buf (topk, C)."""
    neg = jnp.float32(-jnp.inf)
    big_h = jnp.int32(h.shape[0])
    big_b = jnp.int32(buf.shape[0])
    cols = []
    for j in range(topk):
        mb = jnp.max(buf, axis=0, keepdims=True)          # (1, C)  -- tiny
        mh = jnp.max(h, axis=0, keepdims=True)            # (1, C)  -- big reduce
        cols.append(jnp.maximum(mb, mh))
        if j < topk - 1:
            from_h = mh >= mb                              # tie -> take from h (sum-equivalent)
            # knock out exactly one occurrence of the taken maximum (torch.topk sum semantics)
            firsth = jnp.min(jnp.where(h == mh, hiota, big_h), axis=0, keepdims=True)
            firsth = jnp.where(from_h, firsth, big_h)      # fold the from_h gate into (1, C)
            h = jnp.where(hiota == firsth, neg, h)
            firstb = jnp.min(jnp.where(buf == mb, biota, big_b), axis=0, keepdims=True)
            firstb = jnp.where(from_h, big_b, firstb)
            buf = jnp.where(biota == firstb, neg, buf)
    out = jnp.full_like(buf, neg)
    for j in range(topk):
        out = jnp.where(biota == j, cols[j], out)
    return out


# ---------------------------------------------------------------------------
# Fused kernel: STN3d + input transform + feat conv stack + max / top-k-sum
# ---------------------------------------------------------------------------
def _pointnetfeat_kernel(
        x_ref,
        sw1_ref, sb1_ref, sw2_ref, sb2_ref, sw3_ref, sb3_ref,
        fw1_ref, fb1_ref, fw2_ref, fb2_ref, fw3_ref, fb3_ref,
        cw1_ref, cb1_ref, cw2_ref, cb2_ref, cw3_ref, cb3_ref,
        glob_ref, trans_ref,
        *, topk, tile_n, n_tiles, n_real):
    f32 = jnp.float32
    bf16 = jnp.bfloat16
    neg_inf = f32(-jnp.inf)
    has_pad = (n_real != n_tiles * tile_n)

    # Hoisted weight loads (all blocks are VMEM-resident for the whole grid).
    sw1 = sw1_ref[...]; sb1 = sb1_ref[...]
    sw2 = sw2_ref[...]; sb2 = sb2_ref[...]
    sw3 = sw3_ref[...]; sb3 = sb3_ref[...]
    cw1 = cw1_ref[...]; cb1 = cb1_ref[...]
    cw2 = cw2_ref[...]; cb2 = cb2_ref[...]
    cw3 = cw3_ref[...]; cb3 = cb3_ref[...]

    def load_tile(t):
        # (tile_n, 3) slab: points on sublanes, xyz on lanes.
        if isinstance(t, int):
            start = t * tile_n
        else:
            start = pl.multiple_of(t * tile_n, tile_n)
        return x_ref[0, pl.ds(start, tile_n), :]

    def conv_stack(xt, w1rows, b1, w2, b2, w3, b3, relu3):
        # Layer 1 (K=3) on the VPU; layers 2/3 on the MXU (bf16 operands, f32 accumulation).
        h1 = jnp.maximum(xt[:, 0:1] * w1rows[0] + xt[:, 1:2] * w1rows[1]
                         + xt[:, 2:3] * w1rows[2] + b1, 0.0)                      # (Tn, 64)
        h2 = jnp.maximum(
            jnp.dot(h1.astype(bf16), w2, preferred_element_type=f32) + b2, 0.0)   # (Tn, 128)
        h3 = jnp.dot(h2.astype(bf16), w3, preferred_element_type=f32) + b3        # (Tn, 1024)
        if relu3:
            h3 = jnp.maximum(h3, 0.0)
        return h3

    def loop_tiles(n, body, init):
        if n <= 0:
            return init
        if n == 1:
            return body(0, init)
        unroll = True if n <= 8 else 2
        return jax.lax.fori_loop(0, n, body, init, unroll=unroll)

    # ---------------- STN3d: conv stack + running max over point tiles ----------------
    sw1rows = (sw1[0:1, :], sw1[1:2, :], sw1[2:3, :])

    def stn_tile(t, gmax):
        h3 = conv_stack(load_tile(t), sw1rows, sb1, sw2, sb2, sw3, sb3, relu3=True)
        return jnp.maximum(gmax, jnp.max(h3, axis=0, keepdims=True))

    g = loop_tiles(n_tiles, stn_tile, jnp.full((1, 1024), neg_inf, f32))           # (1, 1024)

    # ---------------- STN3d FC head (1024 -> 512 -> 256 -> 9, iden folded in) ---------
    g8 = jnp.broadcast_to(g, (8, 1024))        # pad M to a full sublane tile for the MXU
    hf = jnp.maximum(jnp.dot(g8.astype(bf16), fw1_ref[...], preferred_element_type=f32)
                     + fb1_ref[...], 0.0)
    hf = jnp.maximum(jnp.dot(hf.astype(bf16), fw2_ref[...], preferred_element_type=f32)
                     + fb2_ref[...], 0.0)
    t9 = (jnp.dot(hf.astype(bf16), fw3_ref[...], preferred_element_type=f32)
          + fb3_ref[...])[0:1, :]                                                  # (1, 128)
    trans_ref[...] = t9.reshape(1, 1, 128)     # lane-dense transform writeback

    # ---------------- Fold the 3x3 input transform into the first feat conv -----------
    # h1 = (x @ trans) @ W1^T + b1  ==  x @ (trans @ W1^T) + b1, with trans[r, c] = t9[3r + c].
    cw1rows = tuple(
        t9[0:1, 3 * r + 0:3 * r + 1] * cw1[0:1, :]
        + t9[0:1, 3 * r + 1:3 * r + 2] * cw1[1:2, :]
        + t9[0:1, 3 * r + 2:3 * r + 3] * cw1[2:3, :]
        for r in range(3))                                                          # 3 x (1, 64)

    # ---------------- Feat conv stack + streaming max / top-k over point tiles --------
    if topk == 1:
        # padding points are duplicates of point 0 -> no masking needed for max pooling
        def feat_tile(t, gmax):
            h3 = conv_stack(load_tile(t), cw1rows, cb1, cw2, cb2, cw3, cb3, relu3=False)
            return jnp.maximum(gmax, jnp.max(h3, axis=0, keepdims=True))

        glob = loop_tiles(n_tiles, feat_tile, jnp.full((1, 1024), neg_inf, f32))
    else:
        hiota = jax.lax.broadcasted_iota(jnp.int32, (tile_n, 1024), 0)   # hoisted
        biota = jax.lax.broadcasted_iota(jnp.int32, (topk, 1024), 0)     # hoisted

        def feat_tile(t, buf):
            h3 = conv_stack(load_tile(t), cw1rows, cb1, cw2, cb2, cw3, cb3, relu3=False)
            return _merge_topk(buf, h3, hiota, biota, topk)

        n_full = n_tiles - 1 if has_pad else n_tiles
        buf = loop_tiles(n_full, feat_tile, jnp.full((topk, 1024), neg_inf, f32))
        if has_pad:
            # Peeled last tile: the only place the padding mask runs.
            h3 = conv_stack(load_tile(n_tiles - 1), cw1rows, cb1, cw2, cb2, cw3, cb3,
                            relu3=False)
            h3 = jnp.where(hiota < (n_real - (n_tiles - 1) * tile_n), h3, neg_inf)
            buf = _merge_topk(buf, h3, hiota, biota, topk)
        glob = jnp.sum(buf, axis=0, keepdims=True)

    glob_ref[...] = glob.reshape(1, 1, 1024)   # lane-dense global-feature writeback


# ---------------------------------------------------------------------------
# Parameter setup (deterministic, synthetic) with eval-mode BN folding.
# Weights stored transposed (Cin, Cout); biases as (1, Cout) rows.
# ---------------------------------------------------------------------------
def init_params(key):
    it = iter(jax.random.split(key, 64))

    def lin(cout, cin):
        return (jax.random.normal(next(it), (cout, cin), jnp.float32) * 0.1,
                jax.random.normal(next(it), (cout,), jnp.float32) * 0.1)

    def bn(c):
        return (jax.random.uniform(next(it), (c,), jnp.float32, minval=0.5, maxval=1.5),
                jax.random.normal(next(it), (c,), jnp.float32) * 0.1,
                jax.random.normal(next(it), (c,), jnp.float32) * 0.1,
                jax.random.uniform(next(it), (c,), jnp.float32, minval=0.5, maxval=1.5))

    def fold_t(W, b, bnp=None, eps=1e-5):
        if bnp is not None:
            gamma, beta, mean, var = bnp
            scale = gamma / jnp.sqrt(var + eps)
            W = W * scale[:, None]
            b = (b - mean) * scale + beta
        return W.T, b[None, :]            # (Cin, Cout), (1, Cout)

    p = {}
    # ---- STN3d ----
    p["sw1"], p["sb1"] = fold_t(*lin(64, 3), bn(64))
    w, b = fold_t(*lin(128, 64), bn(128));    p["sw2"], p["sb2"] = w.astype(jnp.bfloat16), b
    w, b = fold_t(*lin(1024, 128), bn(1024)); p["sw3"], p["sb3"] = w.astype(jnp.bfloat16), b
    w, b = fold_t(*lin(512, 1024), bn(512));  p["fw1"], p["fb1"] = w.astype(jnp.bfloat16), b
    w, b = fold_t(*lin(256, 512), bn(256));   p["fw2"], p["fb2"] = w.astype(jnp.bfloat16), b
    w, b = lin(9, 256)                        # fc3 (no BN), padded to 128 output lanes
    iden = jnp.eye(3, dtype=jnp.float32).reshape(9)
    p["fw3"] = jnp.zeros((256, 128), jnp.float32).at[:, :9].set(w.T).astype(jnp.bfloat16)
    p["fb3"] = jnp.zeros((1, 128), jnp.float32).at[0, :9].set(b + iden)
    # ---- PointNetfeat convs ----
    p["cw1"], p["cb1"] = fold_t(*lin(64, 3), bn(64))
    w, b = fold_t(*lin(128, 64), bn(128));    p["cw2"], p["cb2"] = w.astype(jnp.bfloat16), b
    w, b = fold_t(*lin(1024, 128), bn(1024)); p["cw3"], p["cb3"] = w.astype(jnp.bfloat16), b
    return p


# ---------------------------------------------------------------------------
# Forward wrapper
# ---------------------------------------------------------------------------
def pointnetfeat_forward(x, params, topk=1, tile_n=None):
    """x: (B, 3, N) float32 (PyTorch NCW).  Returns (global_feat (B,1024), trans (B,3,3), None)."""
    B, C, N = x.shape
    assert C == 3
    topk = int(topk)
    assert 1 <= topk <= N

    if tile_n is None:
        tile_n = min(512, _round_up(N, 128))
    assert tile_n % 128 == 0
    n_pad = _round_up(N, tile_n)
    n_tiles = n_pad // tile_n

    # points-on-rows layout, padded with duplicates of point 0 (harmless for max pooling;
    # the topk>1 path masks them inside the kernel on the last tile only)
    xt = jnp.swapaxes(x.astype(jnp.float32), 1, 2)          # (B, N, 3)
    if n_pad != N:
        pad = jnp.broadcast_to(xt[:, 0:1, :], (B, n_pad - N, 3))
        xt = jnp.concatenate([xt, pad], axis=1)

    weights = tuple(params[k] for k in _WEIGHT_KEYS)
    kern = functools.partial(_pointnetfeat_kernel, topk=topk, tile_n=tile_n,
                             n_tiles=n_tiles, n_real=N)

    def _wspec(a):
        return pl.BlockSpec(a.shape, lambda b: (0,) * a.ndim)

    glob_c, trans_c = pl.pallas_call(
        kern,
        grid=(B,),
        in_specs=[pl.BlockSpec((1, n_pad, 3), lambda b: (b, 0, 0))]
                 + [_wspec(a) for a in weights],
        out_specs=[pl.BlockSpec((1, 1, 1024), lambda b: (b, 0, 0)),
                   pl.BlockSpec((1, 1, 128), lambda b: (b, 0, 0))],
        out_shape=[jax.ShapeDtypeStruct((B, 1, 1024), jnp.float32),
                   jax.ShapeDtypeStruct((B, 1, 128), jnp.float32)],
        compiler_params=pltpu.CompilerParams(
            dimension_semantics=("parallel",),
            vmem_limit_bytes=32 * 1024 * 1024),
    )(xt, *weights)

    glob = glob_c[:, 0, :]
    trans = trans_c[:, 0, :9].reshape(B, 3, 3)
    return glob, trans, None


# ---------------------------------------------------------------------------
# Pure-JAX reference (mirrors the kernel's bf16 matmul precision) for a sanity check
# ---------------------------------------------------------------------------
def _reference_forward(x, params, topk):
    p = params
    B = x.shape[0]
    hi = jax.lax.Precision.HIGHEST

    def conv_bf16(wt, brow, h):
        return jnp.einsum("io,bin->bon", wt, h.astype(jnp.bfloat16),
                          preferred_element_type=jnp.float32) + brow[0][None, :, None]

    def conv_f32(wt, brow, h):
        return jnp.einsum("io,bin->bon", wt, h, precision=hi) + brow[0][None, :, None]

    def fc_bf16(wt, brow, h):
        return jnp.einsum("io,bi->bo", wt, h.astype(jnp.bfloat16),
                          preferred_element_type=jnp.float32) + brow[0][None, :]

    # STN3d
    h1 = jnp.maximum(conv_f32(p["sw1"], p["sb1"], x), 0.0)
    h2 = jnp.maximum(conv_bf16(p["sw2"], p["sb2"], h1), 0.0)
    h3 = jnp.maximum(conv_bf16(p["sw3"], p["sb3"], h2), 0.0)
    g = jnp.max(h3, axis=2)
    f1 = jnp.maximum(fc_bf16(p["fw1"], p["fb1"], g), 0.0)
    f2 = jnp.maximum(fc_bf16(p["fw2"], p["fb2"], f1), 0.0)
    trans = fc_bf16(p["fw3"], p["fb3"], f2)[:, :9].reshape(B, 3, 3)
    # input transform + feat stack
    xt = jnp.einsum("bin,bij->bjn", x, trans, precision=hi)
    c1 = jnp.maximum(conv_f32(p["cw1"], p["cb1"], xt), 0.0)
    c2 = jnp.maximum(conv_bf16(p["cw2"], p["cb2"], c1), 0.0)
    c3 = conv_bf16(p["cw3"], p["cb3"], c2)
    if topk == 1:
        glob = jnp.max(c3, axis=2)
    else:
        glob = jax.lax.top_k(c3, topk)[0].sum(-1)
    return glob, trans


# ---------------------------------------------------------------------------
if __name__ == "__main__":
    key = jax.random.PRNGKey(0)
    pkey, xkey = jax.random.split(key)
    params = init_params(pkey)

    B, N = 2, 256
    x = jax.random.normal(xkey, (B, 3, N), jnp.float32)   # PyTorch-style (B, C=3, N_pts)

    # topk=1, single point tile, no padding
    glob, trans, trans_feat = pointnetfeat_forward(x, params, topk=1)
    glob = jax.block_until_ready(glob)
    trans = jax.block_until_ready(trans)
    assert glob.shape == (B, 1024) and trans.shape == (B, 3, 3) and trans_feat is None
    assert bool(jnp.isfinite(glob).all()) and bool(jnp.isfinite(trans).all())

    # topk=4, two point tiles (exercises the unrolled fori path + streaming top-k merge)
    glob2, trans2, _ = pointnetfeat_forward(x, params, topk=4, tile_n=128)
    glob2 = jax.block_until_ready(glob2)
    assert glob2.shape == (B, 1024) and bool(jnp.isfinite(glob2).all())

    # topk=3 with a ragged point count: duplicate-point padding + masked (peeled) last tile
    N3 = 200
    x3 = x[:, :, :N3]
    glob3, trans3, _ = pointnetfeat_forward(x3, params, topk=3, tile_n=128)
    glob3 = jax.block_until_ready(glob3)
    assert glob3.shape == (B, 1024) and bool(jnp.isfinite(glob3).all())

    # loose numerical sanity check against a pure-JAX reference with matching precision
    rg1, rt1 = _reference_forward(x, params, 1)
    rg2, _ = _reference_forward(x, params, 4)
    rg3, rt3 = _reference_forward(x3, params, 3)
    assert bool(jnp.allclose(glob, rg1, rtol=5e-2, atol=5e-2))
    assert bool(jnp.allclose(trans, rt1, rtol=5e-2, atol=5e-2))
    assert bool(jnp.allclose(glob2, rg2, rtol=5e-2, atol=5e-2))
    assert bool(jnp.allclose(glob3, rg3, rtol=5e-2, atol=5e-2))
    assert bool(jnp.allclose(trans3, rt3, rtol=5e-2, atol=5e-2))

    print("KERNEL_OK")
</pallas_src>

<mosaic_0001>
module attributes {stable_mosaic.version = 11 : i64} {
  func.func @_pointnetfeat_kernel(%arg0: i32, %arg1: memref<1x256x3xf32, #tpu.memory_space<vmem>>, %arg2: memref<3x64xf32, #tpu.memory_space<vmem>>, %arg3: memref<1x64xf32, #tpu.memory_space<vmem>>, %arg4: memref<64x128xbf16, #tpu.memory_space<vmem>>, %arg5: memref<1x128xf32, #tpu.memory_space<vmem>>, %arg6: memref<128x1024xbf16, #tpu.memory_space<vmem>>, %arg7: memref<1x1024xf32, #tpu.memory_space<vmem>>, %arg8: memref<1024x512xbf16, #tpu.memory_space<vmem>>, %arg9: memref<1x512xf32, #tpu.memory_space<vmem>>, %arg10: memref<512x256xbf16, #tpu.memory_space<vmem>>, %arg11: memref<1x256xf32, #tpu.memory_space<vmem>>, %arg12: memref<256x128xbf16, #tpu.memory_space<vmem>>, %arg13: memref<1x128xf32, #tpu.memory_space<vmem>>, %arg14: memref<3x64xf32, #tpu.memory_space<vmem>>, %arg15: memref<1x64xf32, #tpu.memory_space<vmem>>, %arg16: memref<64x128xbf16, #tpu.memory_space<vmem>>, %arg17: memref<1x128xf32, #tpu.memory_space<vmem>>, %arg18: memref<128x1024xbf16, #tpu.memory_space<vmem>>, %arg19: memref<1x1024xf32, #tpu.memory_space<vmem>>, %arg20: memref<1x1x1024xf32, #tpu.memory_space<vmem>>, %arg21: memref<1x1x128xf32, #tpu.memory_space<vmem>>) attributes {dimension_semantics = [#tpu.dimension_semantics<parallel>], iteration_bounds = array<i64: 2>, scalar_prefetch = 0 : i64, scratch_operands = 0 : i64, tpu.core_type = #tpu.core_type<tc>, window_params = [{transform_indices = @transform_0, window_bounds = array<i64: 1, 256, 3>}, {pipeline_mode = #tpu.pipeline_mode<synchronous>, transform_indices = @transform_1, window_bounds = array<i64: 3, 64>}, {pipeline_mode = #tpu.pipeline_mode<synchronous>, transform_indices = @transform_2, window_bounds = array<i64: 1, 64>}, {pipeline_mode = #tpu.pipeline_mode<synchronous>, transform_indices = @transform_3, window_bounds = array<i64: 64, 128>}, {pipeline_mode = #tpu.pipeline_mode<synchronous>, transform_indices = @transform_4, window_bounds = array<i64: 1, 128>}, {pipeline_mode = #tpu.pipeline_mode<synchronous>, transform_indices = @transform_5, window_bounds = array<i64: 128, 1024>}, {pipeline_mode = #tpu.pipeline_mode<synchronous>, transform_indices = @transform_6, window_bounds = array<i64: 1, 1024>}, {pipeline_mode = #tpu.pipeline_mode<synchronous>, transform_indices = @transform_7, window_bounds = array<i64: 1024, 512>}, {pipeline_mode = #tpu.pipeline_mode<synchronous>, transform_indices = @transform_8, window_bounds = array<i64: 1, 512>}, {pipeline_mode = #tpu.pipeline_mode<synchronous>, transform_indices = @transform_9, window_bounds = array<i64: 512, 256>}, {pipeline_mode = #tpu.pipeline_mode<synchronous>, transform_indices = @transform_10, window_bounds = array<i64: 1, 256>}, {pipeline_mode = #tpu.pipeline_mode<synchronous>, transform_indices = @transform_11, window_bounds = array<i64: 256, 128>}, {pipeline_mode = #tpu.pipeline_mode<synchronous>, transform_indices = @transform_12, window_bounds = array<i64: 1, 128>}, {pipeline_mode = #tpu.pipeline_mode<synchronous>, transform_indices = @transform_13, window_bounds = array<i64: 3, 64>}, {pipeline_mode = #tpu.pipeline_mode<synchronous>, transform_indices = @transform_14, window_bounds = array<i64: 1, 64>}, {pipeline_mode = #tpu.pipeline_mode<synchronous>, transform_indices = @transform_15, window_bounds = array<i64: 64, 128>}, {pipeline_mode = #tpu.pipeline_mode<synchronous>, transform_indices = @transform_16, window_bounds = array<i64: 1, 128>}, {pipeline_mode = #tpu.pipeline_mode<synchronous>, transform_indices = @transform_17, window_bounds = array<i64: 128, 1024>}, {pipeline_mode = #tpu.pipeline_mode<synchronous>, transform_indices = @transform_18, window_bounds = array<i64: 1, 1024>}, {transform_indices = @transform_19, window_bounds = array<i64: 1, 1, 1024>}, {transform_indices = @transform_20, window_bounds = array<i64: 1, 1, 128>}]} {
    %c0 = arith.constant 0 : index
    %c0_0 = arith.constant 0 : index
    %0 = vector.load %arg2[%c0, %c0_0] : memref<3x64xf32, #tpu.memory_space<vmem>>, vector<3x64xf32>
    %c0_1 = arith.constant 0 : index
    %c0_2 = arith.constant 0 : index
    %1 = vector.load %arg3[%c0_1, %c0_2] : memref<1x64xf32, #tpu.memory_space<vmem>>, vector<1x64xf32>
    %c0_3 = arith.constant 0 : index
    %c0_4 = arith.constant 0 : index
    %2 = vector.load %arg4[%c0_3, %c0_4] : memref<64x128xbf16, #tpu.memory_space<vmem>>, vector<64x128xbf16>
    %c0_5 = arith.constant 0 : index
    %c0_6 = arith.constant 0 : index
    %3 = vector.load %arg5[%c0_5, %c0_6] : memref<1x128xf32, #tpu.memory_space<vmem>>, vector<1x128xf32>
    %c0_7 = arith.constant 0 : index
    %c0_8 = arith.constant 0 : index
    %4 = vector.load %arg6[%c0_7, %c0_8] : memref<128x1024xbf16, #tpu.memory_space<vmem>>, vector<128x1024xbf16>
    %c0_9 = arith.constant 0 : index
    %c0_10 = arith.constant 0 : index
    %5 = vector.load %arg7[%c0_9, %c0_10] : memref<1x1024xf32, #tpu.memory_space<vmem>>, vector<1x1024xf32>
    %c0_11 = arith.constant 0 : index
    %c0_12 = arith.constant 0 : index
    %6 = vector.load %arg14[%c0_11, %c0_12] : memref<3x64xf32, #tpu.memory_space<vmem>>, vector<3x64xf32>
    %c0_13 = arith.constant 0 : index
    %c0_14 = arith.constant 0 : index
    %7 = vector.load %arg15[%c0_13, %c0_14] : memref<1x64xf32, #tpu.memory_space<vmem>>, vector<1x64xf32>
    %c0_15 = arith.constant 0 : index
    %c0_16 = arith.constant 0 : index
    %8 = vector.load %arg16[%c0_15, %c0_16] : memref<64x128xbf16, #tpu.memory_space<vmem>>, vector<64x128xbf16>
    %c0_17 = arith.constant 0 : index
    %c0_18 = arith.constant 0 : index
    %9 = vector.load %arg17[%c0_17, %c0_18] : memref<1x128xf32, #tpu.memory_space<vmem>>, vector<1x128xf32>
    %c0_19 = arith.constant 0 : index
    %c0_20 = arith.constant 0 : index
    %10 = vector.load %arg18[%c0_19, %c0_20] : memref<128x1024xbf16, #tpu.memory_space<vmem>>, vector<128x1024xbf16>
    %c0_21 = arith.constant 0 : index
    %c0_22 = arith.constant 0 : index
    %11 = vector.load %arg19[%c0_21, %c0_22] : memref<1x1024xf32, #tpu.memory_space<vmem>>, vector<1x1024xf32>
    %12 = vector.extract_strided_slice %0 {offsets = [0, 0], sizes = [1, 64], strides = [1, 1]} : vector<3x64xf32> to vector<1x64xf32>
    %13 = vector.extract_strided_slice %0 {offsets = [1, 0], sizes = [1, 64], strides = [1, 1]} : vector<3x64xf32> to vector<1x64xf32>
    %14 = vector.extract_strided_slice %0 {offsets = [2, 0], sizes = [1, 64], strides = [1, 1]} : vector<3x64xf32> to vector<1x64xf32>
    %cst = arith.constant 0xFF800000 : f32
    %15 = vector.broadcast %cst : f32 to vector<1x1024xf32>
    %c0_23 = arith.constant 0 : index
    %c0_24 = arith.constant 0 : index
    %c0_25 = arith.constant 0 : index
    %16 = vector.load %arg1[%c0_23, %c0_24, %c0_25] : memref<1x256x3xf32, #tpu.memory_space<vmem>>, vector<1x256x3xf32>
    %17 = vector.shape_cast %16 : vector<1x256x3xf32> to vector<256x3xf32>
    %18 = vector.extract_strided_slice %17 {offsets = [0, 0], sizes = [256, 1], strides = [1, 1]} : vector<256x3xf32> to vector<256x1xf32>
    %19 = vector.broadcast %18 : vector<256x1xf32> to vector<256x64xf32>
    %20 = vector.broadcast %12 : vector<1x64xf32> to vector<256x64xf32>
    %21 = arith.mulf %19, %20 : vector<256x64xf32>
    %22 = vector.extract_strided_slice %17 {offsets = [0, 1], sizes = [256, 1], strides = [1, 1]} : vector<256x3xf32> to vector<256x1xf32>
    %23 = vector.broadcast %22 : vector<256x1xf32> to vector<256x64xf32>
    %24 = vector.broadcast %13 : vector<1x64xf32> to vector<256x64xf32>
    %25 = arith.mulf %23, %24 : vector<256x64xf32>
    %26 = arith.addf %21, %25 : vector<256x64xf32>
    %27 = vector.extract_strided_slice %17 {offsets = [0, 2], sizes = [256, 1], strides = [1, 1]} : vector<256x3xf32> to vector<256x1xf32>
    %28 = vector.broadcast %27 : vector<256x1xf32> to vector<256x64xf32>
    %29 = vector.broadcast %14 : vector<1x64xf32> to vector<256x64xf32>
    %30 = arith.mulf %28, %29 : vector<256x64xf32>
    %31 = arith.addf %26, %30 : vector<256x64xf32>
    %32 = vector.broadcast %1 : vector<1x64xf32> to vector<256x64xf32>
    %33 = arith.addf %31, %32 : vector<256x64xf32>
    %cst_26 = arith.constant 0.000000e+00 : f32
    %34 = vector.broadcast %cst_26 : f32 to vector<256x64xf32>
    %35 = arith.maximumf %33, %34 : vector<256x64xf32>
    %36 = arith.truncf %35 : vector<256x64xf32> to vector<256x64xbf16>
    %cst_27 = arith.constant dense<0.000000e+00> : vector<256x128xf32>
    %37 = tpu.matmul %36, %2, %cst_27 {dimension_numbers = #tpu.dot_dimension_numbers<[1], [0], [0], [1], [0, 0, 1, 1], [], []>} : vector<256x64xbf16>, vector<64x128xbf16>, vector<256x128xf32> -> vector<256x128xf32>
    %38 = vector.broadcast %3 : vector<1x128xf32> to vector<256x128xf32>
    %39 = arith.addf %37, %38 : vector<256x128xf32>
    %cst_28 = arith.constant 0.000000e+00 : f32
    %40 = vector.broadcast %cst_28 : f32 to vector<256x128xf32>
    %41 = arith.maximumf %39, %40 : vector<256x128xf32>
    %42 = arith.truncf %41 : vector<256x128xf32> to vector<256x128xbf16>
    %cst_29 = arith.constant dense<0.000000e+00> : vector<256x1024xf32>
    %43 = tpu.matmul %42, %4, %cst_29 {dimension_numbers = #tpu.dot_dimension_numbers<[1], [0], [0], [1], [0, 0, 1, 1], [], []>} : vector<256x128xbf16>, vector<128x1024xbf16>, vector<256x1024xf32> -> vector<256x1024xf32>
    %44 = vector.broadcast %5 : vector<1x1024xf32> to vector<256x1024xf32>
    %45 = arith.addf %43, %44 : vector<256x1024xf32>
    %cst_30 = arith.constant 0.000000e+00 : f32
    %46 = vector.broadcast %cst_30 : f32 to vector<256x1024xf32>
    %47 = arith.maximumf %45, %46 : vector<256x1024xf32>
    %cst_31 = arith.constant dense<0xFF800000> : vector<1024xf32>
    %48 = vector.multi_reduction <maximumf>, %47, %cst_31 [0] : vector<256x1024xf32> to vector<1024xf32>
    %49 = vector.shape_cast %48 : vector<1024xf32> to vector<1x1024xf32>
    %50 = arith.maximumf %15, %49 : vector<1x1024xf32>
    %51 = vector.shape_cast %50 : vector<1x1024xf32> to vector<1x1024xf32>
    %52 = vector.broadcast %51 : vector<1x1024xf32> to vector<8x1024xf32>
    %53 = arith.truncf %52 : vector<8x1024xf32> to vector<8x1024xbf16>
    %c0_32 = arith.constant 0 : index
    %c0_33 = arith.constant 0 : index
    %54 = vector.load %arg8[%c0_32, %c0_33] : memref<1024x512xbf16, #tpu.memory_space<vmem>>, vector<1024x512xbf16>
    %cst_34 = arith.constant dense<0.000000e+00> : vector<8x512xf32>
    %55 = tpu.matmul %53, %54, %cst_34 {dimension_numbers = #tpu.dot_dimension_numbers<[1], [0], [0], [1], [0, 0, 1, 1], [], []>} : vector<8x1024xbf16>, vector<1024x512xbf16>, vector<8x512xf32> -> vector<8x512xf32>
    %c0_35 = arith.constant 0 : index
    %c0_36 = arith.constant 0 : index
    %56 = vector.load %arg9[%c0_35, %c0_36] : memref<1x512xf32, #tpu.memory_space<vmem>>, vector<1x512xf32>
    %57 = vector.broadcast %56 : vector<1x512xf32> to vector<8x512xf32>
    %58 = arith.addf %55, %57 : vector<8x512xf32>
    %cst_37 = arith.constant 0.000000e+00 : f32
    %59 = vector.broadcast %cst_37 : f32 to vector<8x512xf32>
    %60 = arith.maximumf %58, %59 : vector<8x512xf32>
    %61 = arith.truncf %60 : vector<8x512xf32> to vector<8x512xbf16>
    %c0_38 = arith.constant 0 : index
    %c0_39 = arith.constant 0 : index
    %62 = vector.load %arg10[%c0_38, %c0_39] : memref<512x256xbf16, #tpu.memory_space<vmem>>, vector<512x256xbf16>
    %cst_40 = arith.constant dense<0.000000e+00> : vector<8x256xf32>
    %63 = tpu.matmul %61, %62, %cst_40 {dimension_numbers = #tpu.dot_dimension_numbers<[1], [0], [0], [1], [0, 0, 1, 1], [], []>} : vector<8x512xbf16>, vector<512x256xbf16>, vector<8x256xf32> -> vector<8x256xf32>
    %c0_41 = arith.constant 0 : index
    %c0_42 = arith.constant 0 : index
    %64 = vector.load %arg11[%c0_41, %c0_42] : memref<1x256xf32, #tpu.memory_space<vmem>>, vector<1x256xf32>
    %65 = vector.broadcast %64 : vector<1x256xf32> to vector<8x256xf32>
    %66 = arith.addf %63, %65 : vector<8x256xf32>
    %cst_43 = arith.constant 0.000000e+00 : f32
    %67 = vector.broadcast %cst_43 : f32 to vector<8x256xf32>
    %68 = arith.maximumf %66, %67 : vector<8x256xf32>
    %69 = arith.truncf %68 : vector<8x256xf32> to vector<8x256xbf16>
    %c0_44 = arith.constant 0 : index
    %c0_45 = arith.constant 0 : index
    %70 = vector.load %arg12[%c0_44, %c0_45] : memref<256x128xbf16, #tpu.memory_space<vmem>>, vector<256x128xbf16>
    %cst_46 = arith.constant dense<0.000000e+00> : vector<8x128xf32>
    %71 = tpu.matmul %69, %70, %cst_46 {dimension_numbers = #tpu.dot_dimension_numbers<[1], [0], [0], [1], [0, 0, 1, 1], [], []>} : vector<8x256xbf16>, vector<256x128xbf16>, vector<8x128xf32> -> vector<8x128xf32>
    %c0_47 = arith.constant 0 : index
    %c0_48 = arith.constant 0 : index
    %72 = vector.load %arg13[%c0_47, %c0_48] : memref<1x128xf32, #tpu.memory_space<vmem>>, vector<1x128xf32>
    %73 = vector.broadcast %72 : vector<1x128xf32> to vector<8x128xf32>
    %74 = arith.addf %71, %73 : vector<8x128xf32>
    %75 = vector.extract_strided_slice %74 {offsets = [0, 0], sizes = [1, 128], strides = [1, 1]} : vector<8x128xf32> to vector<1x128xf32>
    %76 = vector.shape_cast %75 : vector<1x128xf32> to vector<1x1x128xf32>
    %c0_49 = arith.constant 0 : index
    %c0_50 = arith.constant 0 : index
    %c0_51 = arith.constant 0 : index
    %77 = vector.load %arg21[%c0_49, %c0_50, %c0_51] : memref<1x1x128xf32, #tpu.memory_space<vmem>>, vector<1x1x128xf32>
    tpu.vector_store %arg21[%c0_49, %c0_50, %c0_51], %76 {strides = array<i32>} : memref<1x1x128xf32, #tpu.memory_space<vmem>>, vector<1x1x128xf32>,
    %78 = vector.extract_strided_slice %75 {offsets = [0, 0], sizes = [1, 1], strides = [1, 1]} : vector<1x128xf32> to vector<1x1xf32>
    %79 = vector.extract_strided_slice %6 {offsets = [0, 0], sizes = [1, 64], strides = [1, 1]} : vector<3x64xf32> to vector<1x64xf32>
    %80 = vector.broadcast %78 : vector<1x1xf32> to vector<1x64xf32>
    %81 = arith.mulf %80, %79 : vector<1x64xf32>
    %82 = vector.extract_strided_slice %75 {offsets = [0, 1], sizes = [1, 1], strides = [1, 1]} : vector<1x128xf32> to vector<1x1xf32>
    %83 = vector.extract_strided_slice %6 {offsets = [1, 0], sizes = [1, 64], strides = [1, 1]} : vector<3x64xf32> to vector<1x64xf32>
    %84 = vector.broadcast %82 : vector<1x1xf32> to vector<1x64xf32>
    %85 = arith.mulf %84, %83 : vector<1x64xf32>
    %86 = arith.addf %81, %85 : vector<1x64xf32>
    %87 = vector.extract_strided_slice %75 {offsets = [0, 2], sizes = [1, 1], strides = [1, 1]} : vector<1x128xf32> to vector<1x1xf32>
    %88 = vector.extract_strided_slice %6 {offsets = [2, 0], sizes = [1, 64], strides = [1, 1]} : vector<3x64xf32> to vector<1x64xf32>
    %89 = vector.broadcast %87 : vector<1x1xf32> to vector<1x64xf32>
    %90 = arith.mulf %89, %88 : vector<1x64xf32>
    %91 = arith.addf %86, %90 : vector<1x64xf32>
    %92 = vector.extract_strided_slice %75 {offsets = [0, 3], sizes = [1, 1], strides = [1, 1]} : vector<1x128xf32> to vector<1x1xf32>
    %93 = vector.extract_strided_slice %6 {offsets = [0, 0], sizes = [1, 64], strides = [1, 1]} : vector<3x64xf32> to vector<1x64xf32>
    %94 = vector.broadcast %92 : vector<1x1xf32> to vector<1x64xf32>
    %95 = arith.mulf %94, %93 : vector<1x64xf32>
    %96 = vector.extract_strided_slice %75 {offsets = [0, 4], sizes = [1, 1], strides = [1, 1]} : vector<1x128xf32> to vector<1x1xf32>
    %97 = vector.extract_strided_slice %6 {offsets = [1, 0], sizes = [1, 64], strides = [1, 1]} : vector<3x64xf32> to vector<1x64xf32>
    %98 = vector.broadcast %96 : vector<1x1xf32> to vector<1x64xf32>
    %99 = arith.mulf %98, %97 : vector<1x64xf32>
    %100 = arith.addf %95, %99 : vector<1x64xf32>
    %101 = vector.extract_strided_slice %75 {offsets = [0, 5], sizes = [1, 1], strides = [1, 1]} : vector<1x128xf32> to vector<1x1xf32>
    %102 = vector.extract_strided_slice %6 {offsets = [2, 0], sizes = [1, 64], strides = [1, 1]} : vector<3x64xf32> to vector<1x64xf32>
    %103 = vector.broadcast %101 : vector<1x1xf32> to vector<1x64xf32>
    %104 = arith.mulf %103, %102 : vector<1x64xf32>
    %105 = arith.addf %100, %104 : vector<1x64xf32>
    %106 = vector.extract_strided_slice %75 {offsets = [0, 6], sizes = [1, 1], strides = [1, 1]} : vector<1x128xf32> to vector<1x1xf32>
    %107 = vector.extract_strided_slice %6 {offsets = [0, 0], sizes = [1, 64], strides = [1, 1]} : vector<3x64xf32> to vector<1x64xf32>
    %108 = vector.broadcast %106 : vector<1x1xf32> to vector<1x64xf32>
    %109 = arith.mulf %108, %107 : vector<1x64xf32>
    %110 = vector.extract_strided_slice %75 {offsets = [0, 7], sizes = [1, 1], strides = [1, 1]} : vector<1x128xf32> to vector<1x1xf32>
    %111 = vector.extract_strided_slice %6 {offsets = [1, 0], sizes = [1, 64], strides = [1, 1]} : vector<3x64xf32> to vector<1x64xf32>
    %112 = vector.broadcast %110 : vector<1x1xf32> to vector<1x64xf32>
    %113 = arith.mulf %112, %111 : vector<1x64xf32>
    %114 = arith.addf %109, %113 : vector<1x64xf32>
    %115 = vector.extract_strided_slice %75 {offsets = [0, 8], sizes = [1, 1], strides = [1, 1]} : vector<1x128xf32> to vector<1x1xf32>
    %116 = vector.extract_strided_slice %6 {offsets = [2, 0], sizes = [1, 64], strides = [1, 1]} : vector<3x64xf32> to vector<1x64xf32>
    %117 = vector.broadcast %115 : vector<1x1xf32> to vector<1x64xf32>
    %118 = arith.mulf %117, %116 : vector<1x64xf32>
    %119 = arith.addf %114, %118 : vector<1x64xf32>
    %cst_52 = arith.constant 0xFF800000 : f32
    %120 = vector.broadcast %cst_52 : f32 to vector<1x1024xf32>
    %c0_53 = arith.constant 0 : index
    %c0_54 = arith.constant 0 : index
    %c0_55 = arith.constant 0 : index
    %121 = vector.load %arg1[%c0_53, %c0_54, %c0_55] : memref<1x256x3xf32, #tpu.memory_space<vmem>>, vector<1x256x3xf32>
    %122 = vector.shape_cast %121 : vector<1x256x3xf32> to vector<256x3xf32>
    %123 = vector.extract_strided_slice %122 {offsets = [0, 0], sizes = [256, 1], strides = [1, 1]} : vector<256x3xf32> to vector<256x1xf32>
    %124 = vector.broadcast %123 : vector<256x1xf32> to vector<256x64xf32>
    %125 = vector.broadcast %91 : vector<1x64xf32> to vector<256x64xf32>
    %126 = arith.mulf %124, %125 : vector<256x64xf32>
    %127 = vector.extract_strided_slice %122 {offsets = [0, 1], sizes = [256, 1], strides = [1, 1]} : vector<256x3xf32> to vector<256x1xf32>
    %128 = vector.broadcast %127 : vector<256x1xf32> to vector<256x64xf32>
    %129 = vector.broadcast %105 : vector<1x64xf32> to vector<256x64xf32>
    %130 = arith.mulf %128, %129 : vector<256x64xf32>
    %131 = arith.addf %126, %130 : vector<256x64xf32>
    %132 = vector.extract_strided_slice %122 {offsets = [0, 2], sizes = [256, 1], strides = [1, 1]} : vector<256x3xf32> to vector<256x1xf32>
    %133 = vector.broadcast %132 : vector<256x1xf32> to vector<256x64xf32>
    %134 = vector.broadcast %119 : vector<1x64xf32> to vector<256x64xf32>
    %135 = arith.mulf %133, %134 : vector<256x64xf32>
    %136 = arith.addf %131, %135 : vector<256x64xf32>
    %137 = vector.broadcast %7 : vector<1x64xf32> to vector<256x64xf32>
    %138 = arith.addf %136, %137 : vector<256x64xf32>
    %cst_56 = arith.constant 0.000000e+00 : f32
    %139 = vector.broadcast %cst_56 : f32 to vector<256x64xf32>
    %140 = arith.maximumf %138, %139 : vector<256x64xf32>
    %141 = arith.truncf %140 : vector<256x64xf32> to vector<256x64xbf16>
    %cst_57 = arith.constant dense<0.000000e+00> : vector<256x128xf32>
    %142 = tpu.matmul %141, %8, %cst_57 {dimension_numbers = #tpu.dot_dimension_numbers<[1], [0], [0], [1], [0, 0, 1, 1], [], []>} : vector<256x64xbf16>, vector<64x128xbf16>, vector<256x128xf32> -> vector<256x128xf32>
    %143 = vector.broadcast %9 : vector<1x128xf32> to vector<256x128xf32>
    %144 = arith.addf %142, %143 : vector<256x128xf32>
    %cst_58 = arith.constant 0.000000e+00 : f32
    %145 = vector.broadcast %cst_58 : f32 to vector<256x128xf32>
    %146 = arith.maximumf %144, %145 : vector<256x128xf32>
    %147 = arith.truncf %146 : vector<256x128xf32> to vector<256x128xbf16>
    %cst_59 = arith.constant dense<0.000000e+00> : vector<256x1024xf32>
    %148 = tpu.matmul %147, %10, %cst_59 {dimension_numbers = #tpu.dot_dimension_numbers<[1], [0], [0], [1], [0, 0, 1, 1], [], []>} : vector<256x128xbf16>, vector<128x1024xbf16>, vector<256x1024xf32> -> vector<256x1024xf32>
    %149 = vector.broadcast %11 : vector<1x1024xf32> to vector<256x1024xf32>
    %150 = arith.addf %148, %149 : vector<256x1024xf32>
    %cst_60 = arith.constant dense<0xFF800000> : vector<1024xf32>
    %151 = vector.multi_reduction <maximumf>, %150, %cst_60 [0] : vector<256x1024xf32> to vector<1024xf32>
    %152 = vector.shape_cast %151 : vector<1024xf32> to vector<1x1024xf32>
    %153 = arith.maximumf %120, %152 : vector<1x1024xf32>
    %154 = vector.shape_cast %153 : vector<1x1024xf32> to vector<1x1x1024xf32>
    %c0_61 = arith.constant 0 : index
    %c0_62 = arith.constant 0 : index
    %c0_63 = arith.constant 0 : index
    %155 = vector.load %arg20[%c0_61, %c0_62, %c0_63] : memref<1x1x1024xf32, #tpu.memory_space<vmem>>, vector<1x1x1024xf32>
    tpu.vector_store %arg20[%c0_61, %c0_62, %c0_63], %154 {strides = array<i32>} : memref<1x1x1024xf32, #tpu.memory_space<vmem>>, vector<1x1x1024xf32>,
    return
  }
  func.func @transform_0(%arg0: i32) -> (i32, i32, i32) {
    %c0_i32 = arith.constant 0 : i32
    %c0_i32_0 = arith.constant 0 : i32
    %c0_i32_1 = arith.constant 0 : i32
    return %arg0, %c0_i32, %c0_i32_0 : i32, i32, i32
  }
  func.func @transform_1(%arg0: i32) -> (i32, i32) {
    %c0_i32 = arith.constant 0 : i32
    %c0_i32_0 = arith.constant 0 : i32
    %c0_i32_1 = arith.constant 0 : i32
    return %c0_i32, %c0_i32_0 : i32, i32
  }
  func.func @transform_2(%arg0: i32) -> (i32, i32) {
    %c0_i32 = arith.constant 0 : i32
    %c0_i32_0 = arith.constant 0 : i32
    %c0_i32_1 = arith.constant 0 : i32
    return %c0_i32, %c0_i32_0 : i32, i32
  }
  func.func @transform_3(%arg0: i32) -> (i32, i32) {
    %c0_i32 = arith.constant 0 : i32
    %c0_i32_0 = arith.constant 0 : i32
    %c0_i32_1 = arith.constant 0 : i32
    return %c0_i32, %c0_i32_0 : i32, i32
  }
  func.func @transform_4(%arg0: i32) -> (i32, i32) {
    %c0_i32 = arith.constant 0 : i32
    %c0_i32_0 = arith.constant 0 : i32
    %c0_i32_1 = arith.constant 0 : i32
    return %c0_i32, %c0_i32_0 : i32, i32
  }
  func.func @transform_5(%arg0: i32) -> (i32, i32) {
    %c0_i32 = arith.constant 0 : i32
    %c0_i32_0 = arith.constant 0 : i32
    %c0_i32_1 = arith.constant 0 : i32
    return %c0_i32, %c0_i32_0 : i32, i32
  }
  func.func @transform_6(%arg0: i32) -> (i32, i32) {
    %c0_i32 = arith.constant 0 : i32
    %c0_i32_0 = arith.constant 0 : i32
    %c0_i32_1 = arith.constant 0 : i32
    return %c0_i32, %c0_i32_0 : i32, i32
  }
  func.func @transform_7(%arg0: i32) -> (i32, i32) {
    %c0_i32 = arith.constant 0 : i32
    %c0_i32_0 = arith.constant 0 : i32
    %c0_i32_1 = arith.constant 0 : i32
    return %c0_i32, %c0_i32_0 : i32, i32
  }
  func.func @transform_8(%arg0: i32) -> (i32, i32) {
    %c0_i32 = arith.constant 0 : i32
    %c0_i32_0 = arith.constant 0 : i32
    %c0_i32_1 = arith.constant 0 : i32
    return %c0_i32, %c0_i32_0 : i32, i32
  }
  func.func @transform_9(%arg0: i32) -> (i32, i32) {
    %c0_i32 = arith.constant 0 : i32
    %c0_i32_0 = arith.constant 0 : i32
    %c0_i32_1 = arith.constant 0 : i32
    return %c0_i32, %c0_i32_0 : i32, i32
  }
  func.func @transform_10(%arg0: i32) -> (i32, i32) {
    %c0_i32 = arith.constant 0 : i32
    %c0_i32_0 = arith.constant 0 : i32
    %c0_i32_1 = arith.constant 0 : i32
    return %c0_i32, %c0_i32_0 : i32, i32
  }
  func.func @transform_11(%arg0: i32) -> (i32, i32) {
    %c0_i32 = arith.constant 0 : i32
    %c0_i32_0 = arith.constant 0 : i32
    %c0_i32_1 = arith.constant 0 : i32
    return %c0_i32, %c0_i32_0 : i32, i32
  }
  func.func @transform_12(%arg0: i32) -> (i32, i32) {
    %c0_i32 = arith.constant 0 : i32
    %c0_i32_0 = arith.constant 0 : i32
    %c0_i32_1 = arith.constant 0 : i32
    return %c0_i32, %c0_i32_0 : i32, i32
  }
  func.func @transform_13(%arg0: i32) -> (i32, i32) {
    %c0_i32 = arith.constant 0 : i32
    %c0_i32_0 = arith.constant 0 : i32
    %c0_i32_1 = arith.constant 0 : i32
    return %c0_i32, %c0_i32_0 : i32, i32
  }
  func.func @transform_14(%arg0: i32) -> (i32, i32) {
    %c0_i32 = arith.constant 0 : i32
    %c0_i32_0 = arith.constant 0 : i32
    %c0_i32_1 = arith.constant 0 : i32
    return %c0_i32, %c0_i32_0 : i32, i32
  }
  func.func @transform_15(%arg0: i32) -> (i32, i32) {
    %c0_i32 = arith.constant 0 : i32
    %c0_i32_0 = arith.constant 0 : i32
    %c0_i32_1 = arith.constant 0 : i32
    return %c0_i32, %c0_i32_0 : i32, i32
  }
  func.func @transform_16(%arg0: i32) -> (i32, i32) {
    %c0_i32 = arith.constant 0 : i32
    %c0_i32_0 = arith.constant 0 : i32
    %c0_i32_1 = arith.constant 0 : i32
    return %c0_i32, %c0_i32_0 : i32, i32
  }
  func.func @transform_17(%arg0: i32) -> (i32, i32) {
    %c0_i32 = arith.constant 0 : i32
    %c0_i32_0 = arith.constant 0 : i32
    %c0_i32_1 = arith.constant 0 : i32
    return %c0_i32, %c0_i32_0 : i32, i32
  }
  func.func @transform_18(%arg0: i32) -> (i32, i32) {
    %c0_i32 = arith.constant 0 : i32
    %c0_i32_0 = arith.constant 0 : i32
    %c0_i32_1 = arith.constant 0 : i32
    return %c0_i32, %c0_i32_0 : i32, i32
  }
  func.func @transform_19(%arg0: i32) -> (i32, i32, i32) {
    %c0_i32 = arith.constant 0 : i32
    %c0_i32_0 = arith.constant 0 : i32
    %c0_i32_1 = arith.constant 0 : i32
    return %arg0, %c0_i32, %c0_i32_0 : i32, i32, i32
  }
  func.func @transform_20(%arg0: i32) -> (i32, i32, i32) {
    %c0_i32 = arith.constant 0 : i32
    %c0_i32_0 = arith.constant 0 : i32
    %c0_i32_1 = arith.constant 0 : i32
    return %arg0, %c0_i32, %c0_i32_0 : i32, i32, i32
  }
}

</mosaic_0001>

<llo_original>
// kernel: tpu_custom_call.1
$region0: #{tpu_custom_call.1}
  #allocation0 [shape = 'u32[]', space=smem, size = 0x4, offset = 0x4, fixed_abs, tag = 'smem constant byte address 0x4 - core index']
  #allocation1 [shape = 'u32[144,128]{1,0:T(1,128)}', space=vmem, size = 0x12000, scoped, tag = 'internal scratch']
  %s0 = inlined_call_operand.vmem [shape: f32[2,256,3], index: 0, kind: input, shape index: {}]
  %s1 = inlined_call_operand.hbm [shape: f32[3,64], index: 1, kind: input, shape index: {}]
  %s2 = inlined_call_operand.hbm [shape: f32[1,64], index: 2, kind: input, shape index: {}]
  %s3 = inlined_call_operand.hbm [shape: bf16[64,128], index: 3, kind: input, shape index: {}]
  %s4 = inlined_call_operand.hbm [shape: f32[1,128], index: 4, kind: input, shape index: {}]
  %s5 = inlined_call_operand.vmem [shape: bf16[128,1024], index: 5, kind: input, shape index: {}]
  %s6 = inlined_call_operand.hbm [shape: f32[1,1024], index: 6, kind: input, shape index: {}]
  %s7 = inlined_call_operand.hbm [shape: bf16[1024,512], index: 7, kind: input, shape index: {}]
  %s8 = inlined_call_operand.hbm [shape: f32[1,512], index: 8, kind: input, shape index: {}]
  %s9 = inlined_call_operand.hbm [shape: bf16[512,256], index: 9, kind: input, shape index: {}]
  %s10 = inlined_call_operand.vmem [shape: f32[1,256], index: 10, kind: input, shape index: {}]
  %s11 = inlined_call_operand.hbm [shape: bf16[256,128], index: 11, kind: input, shape index: {}]
  %s12 = inlined_call_operand.vmem [shape: f32[1,128], index: 12, kind: input, shape index: {}]
  %s13 = inlined_call_operand.vmem [shape: f32[3,64], index: 13, kind: input, shape index: {}]
  %s14 = inlined_call_operand.vmem [shape: f32[1,64], index: 14, kind: input, shape index: {}]
  %s15 = inlined_call_operand.vmem [shape: bf16[64,128], index: 15, kind: input, shape index: {}]
  %s16 = inlined_call_operand.vmem [shape: f32[1,128], index: 16, kind: input, shape index: {}]
  %s17 = inlined_call_operand.hbm [shape: bf16[128,1024], index: 17, kind: input, shape index: {}]
  %s18 = inlined_call_operand.vmem [shape: f32[1,1024], index: 18, kind: input, shape index: {}]
  %s19 = inlined_call_operand.hbm [shape: f32[2,1,1024], index: 19, kind: output, shape index: {0}]
  %s20 = inlined_call_operand.hbm [shape: f32[2,1,128], index: 20, kind: output, shape index: {1}]
  %21 = xla_tuple %s19, %s20
  %s22 = sld [smem:[#allocation0]]
  $region157: #{tpu_custom_call.1} parent=0
    _
  %s24 = ssub.s32 1, %s22
  %s25 = scalar_select 0, %s24, %s22
  $region1: #{tpu_custom_call.1} parent=0
    #allocation2 [shape = 'u8[2048]{0}', space=vmem, size = 0x800, scoped, tag = 'input window, operand 1, single buffered']
    #allocation3 [shape = 's32[2]{0}', space=sflag, size = 0x8, scoped, tag = 'scoped memory for tpu_custom_call.1']
    #allocation4 [shape = 's32[2]{0}', space=sflag, size = 0x8, scoped, tag = 'scoped memory for tpu_custom_call.1']
    #allocation5 [shape = 'u8[512]{0}', space=vmem, size = 0x400, scoped, tag = 'input window, operand 2, single buffered']
    #allocation6 [shape = 's32[1]{0}', space=sflag, size = 0x4, scoped, tag = 'scoped memory for tpu_custom_call.1']
    #allocation7 [shape = 'u8[16384]{0}', space=vmem, size = 0x4000, scoped, tag = 'input window, operand 3, single buffered']
    #allocation8 [shape = 'u8[512]{0}', space=vmem, size = 0x400, scoped, tag = 'input window, operand 4, single buffered']
    #allocation9 [shape = 's32[1]{0}', space=sflag, size = 0x4, scoped, tag = 'scoped memory for tpu_custom_call.1']
    #allocation10 [shape = 'u8[4096]{0}', space=vmem, size = 0x1000, scoped, tag = 'input window, operand 6, single buffered']
    #allocation11 [shape = 'u8[1048576]{0}', space=vmem, size = 0x100000, scoped, tag = 'input window, operand 7, single buffered']
    #allocation12 [shape = 's32[1]{0}', space=sflag, size = 0x4, scoped, tag = 'scoped memory for tpu_custom_call.1']
    #allocation13 [shape = 'u8[2048]{0}', space=vmem, size = 0x800, scoped, tag = 'input window, operand 8, single buffered']
    #allocation14 [shape = 'u8[262144]{0}', space=vmem, size = 0x40000, scoped, tag = 'input window, operand 9, single buffered']
    #allocation15 [shape = 's32[1]{0}', space=sflag, size = 0x4, scoped, tag = 'scoped memory for tpu_custom_call.1']
    #allocation16 [shape = 'u8[65536]{0}', space=vmem, size = 0x10000, scoped, tag = 'input window, operand 11, single buffered']
    #allocation17 [shape = 'u8[262144]{0}', space=vmem, size = 0x40000, scoped, tag = 'input window, operand 17, single buffered']
    #allocation18 [shape = 's32[1]{0}', space=sflag, size = 0x4, scoped, tag = 'scoped memory for tpu_custom_call.1']
    #allocation19 [shape = 'u8[8192]{0}', space=vmem, size = 0x2000, scoped, tag = 'output window, operand 0']
    #allocation20 [shape = 'u8[1024]{0}', space=vmem, size = 0x400, scoped, tag = 'output window, operand 1']
    #allocation21 [shape = 's32[2]{0}', space=sflag, size = 0x8, scoped, tag = 'scoped memory for tpu_custom_call.1']
    %26 = vsyncpa [#allocation3], 0
    %27 = vsyncpa [#allocation6], 0
    %28 = vsyncpa [#allocation9], 0
    %29 = vsyncpa [#allocation12], 0
    %30 = vsyncpa [#allocation15], 0
    %31 = vsyncpa [#allocation18], 0
    %32 = vsyncpa [#allocation4], 0
    %s33 = scalar_lea.sflag [#allocation4], 1
    %34 = vsyncpa %s33, 0
    %35 = vsyncpa [#allocation21], 0
    %s36 = scalar_lea.sflag [#allocation21], 1
    %37 = vsyncpa %s36, 0
    loop: start=0, step=1, limit=4
    $region2: #{tpu_custom_call.1} parent=1 // loop_pre_header
      _
    $region3: #{tpu_custom_call.1} parent=1 // loop_header
      %s39 = sphi 0, %s43
      %p40 = scmp.ge.s32.totalorder %s39, 4
      %s49 = sphi 0, %s51
      %s52 = sphi 0, %s49
      %s53 = sphi 0, %s52
      %s69 = sphi 0, %s53
      %s73 = sphi 0, %s73
      %s75 = sphi 0, %s73
      %s76 = sphi 0, %s75
      %s90 = sphi 0, %s76
      %s94 = sphi 0, %s94
      %s96 = sphi 0, %s94
      %s97 = sphi 0, %s96
      %s111 = sphi 0, %s97
      %s115 = sphi 0, %s115
      %s117 = sphi 0, %s115
      %s118 = sphi 0, %s117
      %s132 = sphi 0, %s118
      %s136 = sphi 0, %s136
      %s138 = sphi 0, %s136
      %s139 = sphi 0, %s138
      %s153 = sphi 0, %s139
      %s157 = sphi 0, %s157
      %s159 = sphi 0, %s157
      %s160 = sphi 0, %s159
      %s174 = sphi 0, %s160
      %s178 = sphi 0, %s178
      %s180 = sphi 0, %s178
      %s181 = sphi 0, %s180
      %s195 = sphi 0, %s181
      %s199 = sphi 0, %s199
      %s201 = sphi 0, %s199
      %s202 = sphi 0, %s201
      %s216 = sphi 0, %s202
      %s220 = sphi 0, %s220
      %s222 = sphi 0, %s220
      %s223 = sphi 0, %s222
      %s237 = sphi 0, %s223
      %s241 = sphi 0, %s241
      %s243 = sphi 0, %s241
      %s244 = sphi 0, %s243
      %s258 = sphi 0, %s244
      %s262 = sphi 0, %s262
      %s264 = sphi 0, %s262
      %s265 = sphi 0, %s264
      %s279 = sphi 0, %s265
      %s283 = sphi 0, %s283
      %s285 = sphi 0, %s283
      %s286 = sphi 0, %s285
      %s300 = sphi 0, %s286
      %s304 = sphi 0, %s304
      %s306 = sphi 0, %s304
      %s307 = sphi 0, %s306
      %s321 = sphi 0, %s307
      %s325 = sphi 0, %s325
      %s327 = sphi 0, %s325
      %s328 = sphi 0, %s327
      %s342 = sphi 0, %s328
      %s346 = sphi 0, %s346
      %s348 = sphi 0, %s346
      %s349 = sphi 0, %s348
      %s363 = sphi 0, %s349
      %s367 = sphi 0, %s367
      %s369 = sphi 0, %s367
      %s370 = sphi 0, %s369
      %s384 = sphi 0, %s370
      %s388 = sphi 0, %s388
      %s390 = sphi 0, %s388
      %s391 = sphi 0, %s390
      %s405 = sphi 0, %s391
      %s409 = sphi 0, %s409
      %s411 = sphi 0, %s409
      %s412 = sphi 0, %s411
      %s426 = sphi 0, %s412
      %s430 = sphi 0, %s430
      %s432 = sphi 0, %s430
      %s433 = sphi 0, %s432
      %s447 = sphi 0, %s433
      %s453 = sphi 0, %s455
      %s456 = sphi 0, %s453
      %s457 = sphi 0, %s456
      %s473 = sphi 0, %s457
      %s479 = sphi 0, %s481
      %s482 = sphi 0, %s479
      %s483 = sphi 0, %s482
      %s499 = sphi 0, %s483
    $region4: #{tpu_custom_call.1} parent=1 // loop_header_branch
      %42 = sbr.rel (%p40) target = $region8
    $region5: #{tpu_custom_call.1} parent=1 // loop_body
      %s44 = ssub.s32 %s39, 1
      %s45 = ssub.s32 %s39, 2
      %s46 = sadd.s32 %s39, 1
      %s47 = ssub.s32 %s39, %s46
      %p48 = scmp.eq.s32.totalorder %s47, 0
      %s50 = sadd.s32 %s49, 1
      %s51 = scalar_select %p48, %s49, %s50
      %p54 = pneg %p48
      %p55 = scmp.eq.s32.totalorder %s39, 1
      %p56 = por %p54, %p55
      %p57 = scmp.ne.s32.totalorder %s49, %s52
      %p58 = scmp.eq.s32.totalorder %s39, 0
      %p59 = por %p57, %p58
      %p60 = scmp.ne.s32.totalorder %s49, %s52
      %p61 = scmp.eq.s32.totalorder %s44, 1
      %p62 = por %p60, %p61
      %p63 = scmp.ne.s32.totalorder %s52, %s53
      %p64 = scmp.eq.s32.totalorder %s44, 0
      %p65 = por %p63, %p64
      %p66 = scmp.ne.s32.totalorder %s52, %s53
      %p67 = scmp.eq.s32.totalorder %s45, 1
      %p68 = por %p66, %p67
      %p70 = scmp.ne.s32.totalorder %s53, %s69
      %p71 = scmp.eq.s32.totalorder %s45, 0
      %p72 = por %p70, %p71
      %s74 = sadd.s32 %s73, 1
      %p77 = scmp.eq.s32.totalorder %s39, 1
      %p78 = scmp.ne.s32.totalorder %s73, %s75
      %p79 = scmp.eq.s32.totalorder %s39, 0
      %p80 = por %p78, %p79
      %p81 = scmp.ne.s32.totalorder %s73, %s75
      %p82 = scmp.eq.s32.totalorder %s44, 1
      %p83 = por %p81, %p82
      %p84 = scmp.ne.s32.totalorder %s75, %s76
      %p85 = scmp.eq.s32.totalorder %s44, 0
      %p86 = por %p84, %p85
      %p87 = scmp.ne.s32.totalorder %s75, %s76
      %p88 = scmp.eq.s32.totalorder %s45, 1
      %p89 = por %p87, %p88
      %p91 = scmp.ne.s32.totalorder %s76, %s90
      %p92 = scmp.eq.s32.totalorder %s45, 0
      %p93 = por %p91, %p92
      %s95 = sadd.s32 %s94, 1
      %p98 = scmp.eq.s32.totalorder %s39, 1
      %p99 = scmp.ne.s32.totalorder %s94, %s96
      %p100 = scmp.eq.s32.totalorder %s39, 0
      %p101 = por %p99, %p100
      %p102 = scmp.ne.s32.totalorder %s94, %s96
      %p103 = scmp.eq.s32.totalorder %s44, 1
      %p104 = por %p102, %p103
      %p105 = scmp.ne.s32.totalorder %s96, %s97
      %p106 = scmp.eq.s32.totalorder %s44, 0
      %p107 = por %p105, %p106
      %p108 = scmp.ne.s32.totalorder %s96, %s97
      %p109 = scmp.eq.s32.totalorder %s45, 1
      %p110 = por %p108, %p109
      %p112 = scmp.ne.s32.totalorder %s97, %s111
      %p113 = scmp.eq.s32.totalorder %s45, 0
      %p114 = por %p112, %p113
      %s116 = sadd.s32 %s115, 1
      %p119 = scmp.eq.s32.totalorder %s39, 1
      %p120 = scmp.ne.s32.totalorder %s115, %s117
      %p121 = scmp.eq.s32.totalorder %s39, 0
      %p122 = por %p120, %p121
      %p123 = scmp.ne.s32.totalorder %s115, %s117
      %p124 = scmp.eq.s32.totalorder %s44, 1
      %p125 = por %p123, %p124
      %p126 = scmp.ne.s32.totalorder %s117, %s118
      %p127 = scmp.eq.s32.totalorder %s44, 0
      %p128 = por %p126, %p127
      %p129 = scmp.ne.s32.totalorder %s117, %s118
      %p130 = scmp.eq.s32.totalorder %s45, 1
      %p131 = por %p129, %p130
      %p133 = scmp.ne.s32.totalorder %s118, %s132
      %p134 = scmp.eq.s32.totalorder %s45, 0
      %p135 = por %p133, %p134
      %s137 = sadd.s32 %s136, 1
      %p140 = scmp.eq.s32.totalorder %s39, 1
      %p141 = scmp.ne.s32.totalorder %s136, %s138
      %p142 = scmp.eq.s32.totalorder %s39, 0
      %p143 = por %p141, %p142
      %p144 = scmp.ne.s32.totalorder %s136, %s138
      %p145 = scmp.eq.s32.totalorder %s44, 1
      %p146 = por %p144, %p145
      %p147 = scmp.ne.s32.totalorder %s138, %s139
      %p148 = scmp.eq.s32.totalorder %s44, 0
      %p149 = por %p147, %p148
      %p150 = scmp.ne.s32.totalorder %s138, %s139
      %p151 = scmp.eq.s32.totalorder %s45, 1
      %p152 = por %p150, %p151
      %p154 = scmp.ne.s32.totalorder %s139, %s153
      %p155 = scmp.eq.s32.totalorder %s45, 0
      %p156 = por %p154, %p155
      %s158 = sadd.s32 %s157, 1
      %p161 = scmp.eq.s32.totalorder %s39, 1
      %p162 = scmp.ne.s32.totalorder %s157, %s159
      %p163 = scmp.eq.s32.totalorder %s39, 0
      %p164 = por %p162, %p163
      %p165 = scmp.ne.s32.totalorder %s157, %s159
      %p166 = scmp.eq.s32.totalorder %s44, 1
      %p167 = por %p165, %p166
      %p168 = scmp.ne.s32.totalorder %s159, %s160
      %p169 = scmp.eq.s32.totalorder %s44, 0
      %p170 = por %p168, %p169
      %p171 = scmp.ne.s32.totalorder %s159, %s160
      %p172 = scmp.eq.s32.totalorder %s45, 1
      %p173 = por %p171, %p172
      %p175 = scmp.ne.s32.totalorder %s160, %s174
      %p176 = scmp.eq.s32.totalorder %s45, 0
      %p177 = por %p175, %p176
      %s179 = sadd.s32 %s178, 1
      %p182 = scmp.eq.s32.totalorder %s39, 1
      %p183 = scmp.ne.s32.totalorder %s178, %s180
      %p184 = scmp.eq.s32.totalorder %s39, 0
      %p185 = por %p183, %p184
      %p186 = scmp.ne.s32.totalorder %s178, %s180
      %p187 = scmp.eq.s32.totalorder %s44, 1
      %p188 = por %p186, %p187
      %p189 = scmp.ne.s32.totalorder %s180, %s181
      %p190 = scmp.eq.s32.totalorder %s44, 0
      %p191 = por %p189, %p190
      %p192 = scmp.ne.s32.totalorder %s180, %s181
      %p193 = scmp.eq.s32.totalorder %s45, 1
      %p194 = por %p192, %p193
      %p196 = scmp.ne.s32.totalorder %s181, %s195
      %p197 = scmp.eq.s32.totalorder %s45, 0
      %p198 = por %p196, %p197
      %s200 = sadd.s32 %s199, 1
      %p203 = scmp.eq.s32.totalorder %s39, 1
      %p204 = scmp.ne.s32.totalorder %s199, %s201
      %p205 = scmp.eq.s32.totalorder %s39, 0
      %p206 = por %p204, %p205
      %p207 = scmp.ne.s32.totalorder %s199, %s201
      %p208 = scmp.eq.s32.totalorder %s44, 1
      %p209 = por %p207, %p208
      %p210 = scmp.ne.s32.totalorder %s201, %s202
      %p211 = scmp.eq.s32.totalorder %s44, 0
      %p212 = por %p210, %p211
      %p213 = scmp.ne.s32.totalorder %s201, %s202
      %p214 = scmp.eq.s32.totalorder %s45, 1
      %p215 = por %p213, %p214
      %p217 = scmp.ne.s32.totalorder %s202, %s216
      %p218 = scmp.eq.s32.totalorder %s45, 0
      %p219 = por %p217, %p218
      %s221 = sadd.s32 %s220, 1
      %p224 = scmp.eq.s32.totalorder %s39, 1
      %p225 = scmp.ne.s32.totalorder %s220, %s222
      %p226 = scmp.eq.s32.totalorder %s39, 0
      %p227 = por %p225, %p226
      %p228 = scmp.ne.s32.totalorder %s220, %s222
      %p229 = scmp.eq.s32.totalorder %s44, 1
      %p230 = por %p228, %p229
      %p231 = scmp.ne.s32.totalorder %s222, %s223
      %p232 = scmp.eq.s32.totalorder %s44, 0
      %p233 = por %p231, %p232
      %p234 = scmp.ne.s32.totalorder %s222, %s223
      %p235 = scmp.eq.s32.totalorder %s45, 1
      %p236 = por %p234, %p235
      %p238 = scmp.ne.s32.totalorder %s223, %s237
      %p239 = scmp.eq.s32.totalorder %s45, 0
      %p240 = por %p238, %p239
      %s242 = sadd.s32 %s241, 1
      %p245 = scmp.eq.s32.totalorder %s39, 1
      %p246 = scmp.ne.s32.totalorder %s241, %s243
      %p247 = scmp.eq.s32.totalorder %s39, 0
      %p248 = por %p246, %p247
      %p249 = scmp.ne.s32.totalorder %s241, %s243
      %p250 = scmp.eq.s32.totalorder %s44, 1
      %p251 = por %p249, %p250
      %p252 = scmp.ne.s32.totalorder %s243, %s244
      %p253 = scmp.eq.s32.totalorder %s44, 0
      %p254 = por %p252, %p253
      %p255 = scmp.ne.s32.totalorder %s243, %s244
      %p256 = scmp.eq.s32.totalorder %s45, 1
      %p257 = por %p255, %p256
      %p259 = scmp.ne.s32.totalorder %s244, %s258
      %p260 = scmp.eq.s32.totalorder %s45, 0
      %p261 = por %p259, %p260
      %s263 = sadd.s32 %s262, 1
      %p266 = scmp.eq.s32.totalorder %s39, 1
      %p267 = scmp.ne.s32.totalorder %s262, %s264
      %p268 = scmp.eq.s32.totalorder %s39, 0
      %p269 = por %p267, %p268
      %p270 = scmp.ne.s32.totalorder %s262, %s264
      %p271 = scmp.eq.s32.totalorder %s44, 1
      %p272 = por %p270, %p271
      %p273 = scmp.ne.s32.totalorder %s264, %s265
      %p274 = scmp.eq.s32.totalorder %s44, 0
      %p275 = por %p273, %p274
      %p276 = scmp.ne.s32.totalorder %s264, %s265
      %p277 = scmp.eq.s32.totalorder %s45, 1
      %p278 = por %p276, %p277
      %p280 = scmp.ne.s32.totalorder %s265, %s279
      %p281 = scmp.eq.s32.totalorder %s45, 0
      %p282 = por %p280, %p281
      %s284 = sadd.s32 %s283, 1
      %p287 = scmp.eq.s32.totalorder %s39, 1
      %p288 = scmp.ne.s32.totalorder %s283, %s285
      %p289 = scmp.eq.s32.totalorder %s39, 0
      %p290 = por %p288, %p289
      %p291 = scmp.ne.s32.totalorder %s283, %s285
      %p292 = scmp.eq.s32.totalorder %s44, 1
      %p293 = por %p291, %p292
      %p294 = scmp.ne.s32.totalorder %s285, %s286
      %p295 = scmp.eq.s32.totalorder %s44, 0
      %p296 = por %p294, %p295
      %p297 = scmp.ne.s32.totalorder %s285, %s286
      %p298 = scmp.eq.s32.totalorder %s45, 1
      %p299 = por %p297, %p298
      %p301 = scmp.ne.s32.totalorder %s286, %s300
      %p302 = scmp.eq.s32.totalorder %s45, 0
      %p303 = por %p301, %p302
      %s305 = sadd.s32 %s304, 1
      %p308 = scmp.eq.s32.totalorder %s39, 1
      %p309 = scmp.ne.s32.totalorder %s304, %s306
      %p310 = scmp.eq.s32.totalorder %s39, 0
      %p311 = por %p309, %p310
      %p312 = scmp.ne.s32.totalorder %s304, %s306
      %p313 = scmp.eq.s32.totalorder %s44, 1
      %p314 = por %p312, %p313
      %p315 = scmp.ne.s32.totalorder %s306, %s307
      %p316 = scmp.eq.s32.totalorder %s44, 0
      %p317 = por %p315, %p316
      %p318 = scmp.ne.s32.totalorder %s306, %s307
      %p319 = scmp.eq.s32.totalorder %s45, 1
      %p320 = por %p318, %p319
      %p322 = scmp.ne.s32.totalorder %s307, %s321
      %p323 = scmp.eq.s32.totalorder %s45, 0
      %p324 = por %p322, %p323
      %s326 = sadd.s32 %s325, 1
      %p329 = scmp.eq.s32.totalorder %s39, 1
      %p330 = scmp.ne.s32.totalorder %s325, %s327
      %p331 = scmp.eq.s32.totalorder %s39, 0
      %p332 = por %p330, %p331
      %p333 = scmp.ne.s32.totalorder %s325, %s327
      %p334 = scmp.eq.s32.totalorder %s44, 1
      %p335 = por %p333, %p334
      %p336 = scmp.ne.s32.totalorder %s327, %s328
      %p337 = scmp.eq.s32.totalorder %s44, 0
      %p338 = por %p336, %p337
      %p339 = scmp.ne.s32.totalorder %s327, %s328
      %p340 = scmp.eq.s32.totalorder %s45, 1
      %p341 = por %p339, %p340
      %p343 = scmp.ne.s32.totalorder %s328, %s342
      %p344 = scmp.eq.s32.totalorder %s45, 0
      %p345 = por %p343, %p344
      %s347 = sadd.s32 %s346, 1
      %p350 = scmp.eq.s32.totalorder %s39, 1
      %p351 = scmp.ne.s32.totalorder %s346, %s348
      %p352 = scmp.eq.s32.totalorder %s39, 0
      %p353 = por %p351, %p352
      %p354 = scmp.ne.s32.totalorder %s346, %s348
      %p355 = scmp.eq.s32.totalorder %s44, 1
      %p356 = por %p354, %p355
      %p357 = scmp.ne.s32.totalorder %s348, %s349
      %p358 = scmp.eq.s32.totalorder %s44, 0
      %p359 = por %p357, %p358
      %p360 = scmp.ne.s32.totalorder %s348, %s349
      %p361 = scmp.eq.s32.totalorder %s45, 1
      %p362 = por %p360, %p361
      %p364 = scmp.ne.s32.totalorder %s349, %s363
      %p365 = scmp.eq.s32.totalorder %s45, 0
      %p366 = por %p364, %p365
      %s368 = sadd.s32 %s367, 1
      %p371 = scmp.eq.s32.totalorder %s39, 1
      %p372 = scmp.ne.s32.totalorder %s367, %s369
      %p373 = scmp.eq.s32.totalorder %s39, 0
      %p374 = por %p372, %p373
      %p375 = scmp.ne.s32.totalorder %s367, %s369
      %p376 = scmp.eq.s32.totalorder %s44, 1
      %p377 = por %p375, %p376
      %p378 = scmp.ne.s32.totalorder %s369, %s370
      %p379 = scmp.eq.s32.totalorder %s44, 0
      %p380 = por %p378, %p379
      %p381 = scmp.ne.s32.totalorder %s369, %s370
      %p382 = scmp.eq.s32.totalorder %s45, 1
      %p383 = por %p381, %p382
      %p385 = scmp.ne.s32.totalorder %s370, %s384
      %p386 = scmp.eq.s32.totalorder %s45, 0
      %p387 = por %p385, %p386
      %s389 = sadd.s32 %s388, 1
      %p392 = scmp.eq.s32.totalorder %s39, 1
      %p393 = scmp.ne.s32.totalorder %s388, %s390
      %p394 = scmp.eq.s32.totalorder %s39, 0
      %p395 = por %p393, %p394
      %p396 = scmp.ne.s32.totalorder %s388, %s390
      %p397 = scmp.eq.s32.totalorder %s44, 1
      %p398 = por %p396, %p397
      %p399 = scmp.ne.s32.totalorder %s390, %s391
      %p400 = scmp.eq.s32.totalorder %s44, 0
      %p401 = por %p399, %p400
      %p402 = scmp.ne.s32.totalorder %s390, %s391
      %p403 = scmp.eq.s32.totalorder %s45, 1
      %p404 = por %p402, %p403
      %p406 = scmp.ne.s32.totalorder %s391, %s405
      %p407 = scmp.eq.s32.totalorder %s45, 0
      %p408 = por %p406, %p407
      %s410 = sadd.s32 %s409, 1
      %p413 = scmp.eq.s32.totalorder %s39, 1
      %p414 = scmp.ne.s32.totalorder %s409, %s411
      %p415 = scmp.eq.s32.totalorder %s39, 0
      %p416 = por %p414, %p415
      %p417 = scmp.ne.s32.totalorder %s409, %s411
      %p418 = scmp.eq.s32.totalorder %s44, 1
      %p419 = por %p417, %p418
      %p420 = scmp.ne.s32.totalorder %s411, %s412
      %p421 = scmp.eq.s32.totalorder %s44, 0
      %p422 = por %p420, %p421
      %p423 = scmp.ne.s32.totalorder %s411, %s412
      %p424 = scmp.eq.s32.totalorder %s45, 1
      %p425 = por %p423, %p424
      %p427 = scmp.ne.s32.totalorder %s412, %s426
      %p428 = scmp.eq.s32.totalorder %s45, 0
      %p429 = por %p427, %p428
      %s431 = sadd.s32 %s430, 1
      %p434 = scmp.eq.s32.totalorder %s39, 1
      %p435 = scmp.ne.s32.totalorder %s430, %s432
      %p436 = scmp.eq.s32.totalorder %s39, 0
      %p437 = por %p435, %p436
      %p438 = scmp.ne.s32.totalorder %s430, %s432
      %p439 = scmp.eq.s32.totalorder %s44, 1
      %p440 = por %p438, %p439
      %p441 = scmp.ne.s32.totalorder %s432, %s433
      %p442 = scmp.eq.s32.totalorder %s44, 0
      %p443 = por %p441, %p442
      %p444 = scmp.ne.s32.totalorder %s432, %s433
      %p445 = scmp.eq.s32.totalorder %s45, 1
      %p446 = por %p444, %p445
      %p448 = scmp.ne.s32.totalorder %s433, %s447
      %p449 = scmp.eq.s32.totalorder %s45, 0
      %p450 = por %p448, %p449
      %s451 = ssub.s32 %s39, %s46
      %p452 = scmp.eq.s32.totalorder %s451, 0
      %s454 = sadd.s32 %s453, 1
      %s455 = scalar_select %p452, %s453, %s454
      %p458 = pneg %p452
      %p459 = scmp.eq.s32.totalorder %s39, 1
      %p460 = por %p458, %p459
      %p461 = scmp.ne.s32.totalorder %s453, %s456
      %p462 = scmp.eq.s32.totalorder %s39, 0
      %p463 = por %p461, %p462
      %p464 = scmp.ne.s32.totalorder %s453, %s456
      %p465 = scmp.eq.s32.totalorder %s44, 1
      %p466 = por %p464, %p465
      %p467 = scmp.ne.s32.totalorder %s456, %s457
      %p468 = scmp.eq.s32.totalorder %s44, 0
      %p469 = por %p467, %p468
      %p470 = scmp.ne.s32.totalorder %s456, %s457
      %p471 = scmp.eq.s32.totalorder %s45, 1
      %p472 = por %p470, %p471
      %p474 = scmp.ne.s32.totalorder %s457, %s473
      %p475 = scmp.eq.s32.totalorder %s45, 0
      %p476 = por %p474, %p475
      %s477 = ssub.s32 %s39, %s46
      %p478 = scmp.eq.s32.totalorder %s477, 0
      %s480 = sadd.s32 %s479, 1
      %s481 = scalar_select %p478, %s479, %s480
      %p484 = pneg %p478
      %p485 = scmp.eq.s32.totalorder %s39, 1
      %p486 = por %p484, %p485
      %p487 = scmp.ne.s32.totalorder %s479, %s482
      %p488 = scmp.eq.s32.totalorder %s39, 0
      %p489 = por %p487, %p488
      %p490 = scmp.ne.s32.totalorder %s479, %s482
      %p491 = scmp.eq.s32.totalorder %s44, 1
      %p492 = por %p490, %p491
      %p493 = scmp.ne.s32.totalorder %s482, %s483
      %p494 = scmp.eq.s32.totalorder %s44, 0
      %p495 = por %p493, %p494
      %p496 = scmp.ne.s32.totalorder %s482, %s483
      %p497 = scmp.eq.s32.totalorder %s45, 1
      %p498 = por %p496, %p497
      %p500 = scmp.ne.s32.totalorder %s483, %s499
      %p501 = scmp.eq.s32.totalorder %s45, 0
      %p502 = por %p500, %p501
      %p503 = scmp.le.s32.totalorder 1, %s39
      %p504 = scmp.lt.s32.totalorder %s39, 3
      %p505 = pnand %p503, %p504
      %p506 = pneg %p505
      // Predicated region
      $region9: #{tpu_custom_call.1} parent=5 // pred_check
        _
      $region10: #{tpu_custom_call.1} parent=5 // pred_check_branch
        %508 = sbr.rel (%p505) target = $region12
      $region11: #{tpu_custom_call.1} parent=5 // pred_region
        %s509 = ssub.s32 %s39, 1
        // Predicated region
        $region13: #{tpu_custom_call.1} parent=11 // pred_check
          %p510 = pneg %p86
        $region14: #{tpu_custom_call.1} parent=11 // pred_check_branch
          %512 = sbr.rel (%p510) target = $region16
        $region15: #{tpu_custom_call.1} parent=11 // pred_region
          %s514 = ssub.s32 64, 64
          %515 = vsyncadd [#allocation3], %s514
          %s517 = sshll.u32 [#allocation2], 4
          %s518 = int_to_ptr.vmem [resolvable:$true] %s517
          %520 = dma.hbm_to_vmem [thread:$0]  %s1, 64, %s518, [#allocation3]
        $region16: #{tpu_custom_call.1} parent=11 // pred_fallthru
          _
        // Predicated region
        $region17: #{tpu_custom_call.1} parent=11 // pred_check
          %p521 = pneg %p107
        $region18: #{tpu_custom_call.1} parent=11 // pred_check_branch
          %523 = sbr.rel (%p521) target = $region20
        $region19: #{tpu_custom_call.1} parent=11 // pred_region
          %s525 = ssub.s32 16, 16
          %526 = vsyncadd [#allocation6], %s525
          %s528 = sshll.u32 [#allocation5], 4
          %s529 = int_to_ptr.vmem [resolvable:$true] %s528
          %531 = dma.hbm_to_vmem [thread:$0]  %s2, 16, %s529, [#allocation6]
        $region20: #{tpu_custom_call.1} parent=11 // pred_fallthru
          _
        // Predicated region
        $region21: #{tpu_custom_call.1} parent=11 // pred_check
          %p532 = pneg %p128
        $region22: #{tpu_custom_call.1} parent=11 // pred_check_branch
          %534 = sbr.rel (%p532) target = $region24
        $region23: #{tpu_custom_call.1} parent=11 // pred_region
          %s536 = ssub.s32 512, 512
          %537 = vsyncadd [#allocation6], %s536
          %s538 = sshll.u32 [#allocation7], 4
          %s539 = int_to_ptr.vmem [resolvable:$true] %s538
          %544 = dma.hbm_to_vmem [thread:$0]  %s3, 512, %s539, [#allocation6], 64, 64, 4
        $region24: #{tpu_custom_call.1} parent=11 // pred_fallthru
          _
        // Predicated region
        $region25: #{tpu_custom_call.1} parent=11 // pred_check
          %p545 = pneg %p149
        $region26: #{tpu_custom_call.1} parent=11 // pred_check_branch
          %547 = sbr.rel (%p545) target = $region28
        $region27: #{tpu_custom_call.1} parent=11 // pred_region
          %s549 = ssub.s32 16, 16
          %550 = vsyncadd [#allocation9], %s549
          %s552 = sshll.u32 [#allocation8], 4
          %s553 = int_to_ptr.vmem [resolvable:$true] %s552
          %555 = dma.hbm_to_vmem [thread:$0]  %s4, 16, %s553, [#allocation9]
        $region28: #{tpu_custom_call.1} parent=11 // pred_fallthru
          _
        // Predicated region
        $region29: #{tpu_custom_call.1} parent=11 // pred_check
          %p556 = pneg %p170
        $region30: #{tpu_custom_call.1} parent=11 // pred_check_branch
          %558 = sbr.rel (%p556) target = $region32
        $region31: #{tpu_custom_call.1} parent=11 // pred_region
          _
        $region32: #{tpu_custom_call.1} parent=11 // pred_fallthru
          _
        // Predicated region
        $region33: #{tpu_custom_call.1} parent=11 // pred_check
          %p559 = pneg %p191
        $region34: #{tpu_custom_call.1} parent=11 // pred_check_branch
          %561 = sbr.rel (%p559) target = $region36
        $region35: #{tpu_custom_call.1} parent=11 // pred_region
          %s563 = ssub.s32 128, 128
          %564 = vsyncadd [#allocation9], %s563
          %s566 = sshll.u32 [#allocation10], 4
          %s567 = int_to_ptr.vmem [resolvable:$true] %s566
          %569 = dma.hbm_to_vmem [thread:$0]  %s6, 128, %s567, [#allocation9]
        $region36: #{tpu_custom_call.1} parent=11 // pred_fallthru
          _
        // Predicated region
        $region37: #{tpu_custom_call.1} parent=11 // pred_check
          %p570 = pneg %p212
        $region38: #{tpu_custom_call.1} parent=11 // pred_check_branch
          %572 = sbr.rel (%p570) target = $region40
        $region39: #{tpu_custom_call.1} parent=11 // pred_region
          %s574 = ssub.s32 32768, 32768
          %575 = vsyncadd [#allocation12], %s574
          %s576 = sshll.u32 [#allocation11], 4
          %s577 = int_to_ptr.vmem [resolvable:$true] %s576
          %582 = dma.hbm_to_vmem [thread:$0]  %s7, 32768, %s577, [#allocation12], 256, 256, 16
        $region40: #{tpu_custom_call.1} parent=11 // pred_fallthru
          _
        // Predicated region
        $region41: #{tpu_custom_call.1} parent=11 // pred_check
          %p583 = pneg %p233
        $region42: #{tpu_custom_call.1} parent=11 // pred_check_branch
          %585 = sbr.rel (%p583) target = $region44
        $region43: #{tpu_custom_call.1} parent=11 // pred_region
          %s587 = ssub.s32 64, 64
          %588 = vsyncadd [#allocation12], %s587
          %s590 = sshll.u32 [#allocation13], 4
          %s591 = int_to_ptr.vmem [resolvable:$true] %s590
          %593 = dma.hbm_to_vmem [thread:$0]  %s8, 64, %s591, [#allocation12]
        $region44: #{tpu_custom_call.1} parent=11 // pred_fallthru
          _
        // Predicated region
        $region45: #{tpu_custom_call.1} parent=11 // pred_check
          %p594 = pneg %p254
        $region46: #{tpu_custom_call.1} parent=11 // pred_check_branch
          %596 = sbr.rel (%p594) target = $region48
        $region47: #{tpu_custom_call.1} parent=11 // pred_region
          %s598 = ssub.s32 8192, 8192
          %599 = vsyncadd [#allocation15], %s598
          %s600 = sshll.u32 [#allocation14], 4
          %s601 = int_to_ptr.vmem [resolvable:$true] %s600
          %606 = dma.hbm_to_vmem [thread:$0]  %s9, 8192, %s601, [#allocation15], 128, 128, 8
        $region48: #{tpu_custom_call.1} parent=11 // pred_fallthru
          _
        // Predicated region
        $region49: #{tpu_custom_call.1} parent=11 // pred_check
          %p607 = pneg %p275
        $region50: #{tpu_custom_call.1} parent=11 // pred_check_branch
          %609 = sbr.rel (%p607) target = $region52
        $region51: #{tpu_custom_call.1} parent=11 // pred_region
          _
        $region52: #{tpu_custom_call.1} parent=11 // pred_fallthru
          _
        // Predicated region
        $region53: #{tpu_custom_call.1} parent=11 // pred_check
          %p610 = pneg %p296
        $region54: #{tpu_custom_call.1} parent=11 // pred_check_branch
          %612 = sbr.rel (%p610) target = $region56
        $region55: #{tpu_custom_call.1} parent=11 // pred_region
          %s614 = ssub.s32 2048, 2048
          %615 = vsyncadd [#allocation15], %s614
          %s616 = sshll.u32 [#allocation16], 4
          %s617 = int_to_ptr.vmem [resolvable:$true] %s616
          %622 = dma.hbm_to_vmem [thread:$0]  %s11, 2048, %s617, [#allocation15], 64, 64, 4
        $region56: #{tpu_custom_call.1} parent=11 // pred_fallthru
          _
        // Predicated region
        $region57: #{tpu_custom_call.1} parent=11 // pred_check
          %p623 = pneg %p317
        $region58: #{tpu_custom_call.1} parent=11 // pred_check_branch
          %625 = sbr.rel (%p623) target = $region60
        $region59: #{tpu_custom_call.1} parent=11 // pred_region
          _
        $region60: #{tpu_custom_call.1} parent=11 // pred_fallthru
          _
        // Predicated region
        $region61: #{tpu_custom_call.1} parent=11 // pred_check
          %p626 = pneg %p338
        $region62: #{tpu_custom_call.1} parent=11 // pred_check_branch
          %628 = sbr.rel (%p626) target = $region64
        $region63: #{tpu_custom_call.1} parent=11 // pred_region
          _
        $region64: #{tpu_custom_call.1} parent=11 // pred_fallthru
          _
        // Predicated region
        $region65: #{tpu_custom_call.1} parent=11 // pred_check
          %p629 = pneg %p359
        $region66: #{tpu_custom_call.1} parent=11 // pred_check_branch
          %631 = sbr.rel (%p629) target = $region68
        $region67: #{tpu_custom_call.1} parent=11 // pred_region
          _
        $region68: #{tpu_custom_call.1} parent=11 // pred_fallthru
          _
        // Predicated region
        $region69: #{tpu_custom_call.1} parent=11 // pred_check
          %p632 = pneg %p380
        $region70: #{tpu_custom_call.1} parent=11 // pred_check_branch
          %634 = sbr.rel (%p632) target = $region72
        $region71: #{tpu_custom_call.1} parent=11 // pred_region
          _
        $region72: #{tpu_custom_call.1} parent=11 // pred_fallthru
          _
        // Predicated region
        $region73: #{tpu_custom_call.1} parent=11 // pred_check
          %p635 = pneg %p401
        $region74: #{tpu_custom_call.1} parent=11 // pred_check_branch
          %637 = sbr.rel (%p635) target = $region76
        $region75: #{tpu_custom_call.1} parent=11 // pred_region
          _
        $region76: #{tpu_custom_call.1} parent=11 // pred_fallthru
          _
        // Predicated region
        $region77: #{tpu_custom_call.1} parent=11 // pred_check
          %p638 = pneg %p422
        $region78: #{tpu_custom_call.1} parent=11 // pred_check_branch
          %640 = sbr.rel (%p638) target = $region80
        $region79: #{tpu_custom_call.1} parent=11 // pred_region
          %s642 = ssub.s32 8192, 8192
          %643 = vsyncadd [#allocation18], %s642
          %s644 = sshll.u32 [#allocation17], 4
          %s645 = int_to_ptr.vmem [resolvable:$true] %s644
          %650 = dma.hbm_to_vmem [thread:$0]  %s17, 8192, %s645, [#allocation18], 512, 512, 32
        $region80: #{tpu_custom_call.1} parent=11 // pred_fallthru
          _
        // Predicated region
        $region81: #{tpu_custom_call.1} parent=11 // pred_check
          %p651 = pneg %p443
        $region82: #{tpu_custom_call.1} parent=11 // pred_check_branch
          %653 = sbr.rel (%p651) target = $region84
        $region83: #{tpu_custom_call.1} parent=11 // pred_region
          _
        $region84: #{tpu_custom_call.1} parent=11 // pred_fallthru
          _
      $region12: #{tpu_custom_call.1} parent=5 // pred_fallthru
        _
      %p654 = scmp.lt.s32.totalorder %s39, 2
      // Predicated region
      $region85: #{tpu_custom_call.1} parent=5 // pred_check
        %p655 = pneg %p654
      $region86: #{tpu_custom_call.1} parent=5 // pred_check_branch
        %657 = sbr.rel (%p655) target = $region88
      $region87: #{tpu_custom_call.1} parent=5 // pred_region
        // Predicated region
        $region89: #{tpu_custom_call.1} parent=87 // pred_check
          %p658 = pneg %p59
        $region90: #{tpu_custom_call.1} parent=87 // pred_check_branch
          %660 = sbr.rel (%p658) target = $region92
        $region91: #{tpu_custom_call.1} parent=87 // pred_region
          %p661 = scmp.lt.s32.totalorder %s39, 1
          %s662 = scalar_select %p661, %s39, 1
          %s663 = smul.addr %s662, 32
          %s664 = smul.addr %s663, 8
          %s665 = scalar_lea.vmem %s0, %s664
        $region92: #{tpu_custom_call.1} parent=87 // pred_fallthru
          _
      $region88: #{tpu_custom_call.1} parent=5 // pred_fallthru
        _
      %p666 = scmp.le.s32.totalorder 1, %s39
      %p667 = scmp.lt.s32.totalorder %s39, 3
      %p668 = pnand %p666, %p667
      %p669 = pneg %p668
      // Predicated region
      $region93: #{tpu_custom_call.1} parent=5 // pred_check
        _
      $region94: #{tpu_custom_call.1} parent=5 // pred_check_branch
        %671 = sbr.rel (%p668) target = $region96
      $region95: #{tpu_custom_call.1} parent=5 // pred_region
        %s672 = ssub.s32 %s39, 1
        // Predicated region
        $region97: #{tpu_custom_call.1} parent=95 // pred_check
          %p673 = pneg %p86
        $region98: #{tpu_custom_call.1} parent=95 // pred_check_branch
          %675 = sbr.rel (%p673) target = $region100
        $region99: #{tpu_custom_call.1} parent=95 // pred_region
          %676 = dma.done [#allocation3], 64
        $region100: #{tpu_custom_call.1} parent=95 // pred_fallthru
          _
        // Predicated region
        $region101: #{tpu_custom_call.1} parent=95 // pred_check
          %p677 = pneg %p107
        $region102: #{tpu_custom_call.1} parent=95 // pred_check_branch
          %679 = sbr.rel (%p677) target = $region104
        $region103: #{tpu_custom_call.1} parent=95 // pred_region
          %680 = dma.done [#allocation6], 16
        $region104: #{tpu_custom_call.1} parent=95 // pred_fallthru
          _
        // Predicated region
        $region105: #{tpu_custom_call.1} parent=95 // pred_check
          %p681 = pneg %p128
        $region106: #{tpu_custom_call.1} parent=95 // pred_check_branch
          %683 = sbr.rel (%p681) target = $region108
        $region107: #{tpu_custom_call.1} parent=95 // pred_region
          %684 = dma.done [#allocation6], 512
        $region108: #{tpu_custom_call.1} parent=95 // pred_fallthru
          _
        // Predicated region
        $region109: #{tpu_custom_call.1} parent=95 // pred_check
          %p685 = pneg %p149
        $region110: #{tpu_custom_call.1} parent=95 // pred_check_branch
          %687 = sbr.rel (%p685) target = $region112
        $region111: #{tpu_custom_call.1} parent=95 // pred_region
          %688 = dma.done [#allocation9], 16
        $region112: #{tpu_custom_call.1} parent=95 // pred_fallthru
          _
        // Predicated region
        $region113: #{tpu_custom_call.1} parent=95 // pred_check
          %p689 = pneg %p191
        $region114: #{tpu_custom_call.1} parent=95 // pred_check_branch
          %691 = sbr.rel (%p689) target = $region116
        $region115: #{tpu_custom_call.1} parent=95 // pred_region
          %692 = dma.done [#allocation9], 128
        $region116: #{tpu_custom_call.1} parent=95 // pred_fallthru
          _
        // Predicated region
        $region117: #{tpu_custom_call.1} parent=95 // pred_check
          %p693 = pneg %p212
        $region118: #{tpu_custom_call.1} parent=95 // pred_check_branch
          %695 = sbr.rel (%p693) target = $region120
        $region119: #{tpu_custom_call.1} parent=95 // pred_region
          %696 = dma.done [#allocation12], 32768
        $region120: #{tpu_custom_call.1} parent=95 // pred_fallthru
          _
        // Predicated region
        $region121: #{tpu_custom_call.1} parent=95 // pred_check
          %p697 = pneg %p233
        $region122: #{tpu_custom_call.1} parent=95 // pred_check_branch
          %699 = sbr.rel (%p697) target = $region124
        $region123: #{tpu_custom_call.1} parent=95 // pred_region
          %700 = dma.done [#allocation12], 64
        $region124: #{tpu_custom_call.1} parent=95 // pred_fallthru
          _
        // Predicated region
        $region125: #{tpu_custom_call.1} parent=95 // pred_check
          %p701 = pneg %p254
        $region126: #{tpu_custom_call.1} parent=95 // pred_check_branch
          %703 = sbr.rel (%p701) target = $region128
        $region127: #{tpu_custom_call.1} parent=95 // pred_region
          %704 = dma.done [#allocation15], 8192
        $region128: #{tpu_custom_call.1} parent=95 // pred_fallthru
          _
        // Predicated region
        $region129: #{tpu_custom_call.1} parent=95 // pred_check
          %p705 = pneg %p296
        $region130: #{tpu_custom_call.1} parent=95 // pred_check_branch
          %707 = sbr.rel (%p705) target = $region132
        $region131: #{tpu_custom_call.1} parent=95 // pred_region
          %708 = dma.done [#allocation15], 2048
        $region132: #{tpu_custom_call.1} parent=95 // pred_fallthru
          _
        // Predicated region
        $region133: #{tpu_custom_call.1} parent=95 // pred_check
          %p709 = pneg %p422
        $region134: #{tpu_custom_call.1} parent=95 // pred_check_branch
          %711 = sbr.rel (%p709) target = $region136
        $region135: #{tpu_custom_call.1} parent=95 // pred_region
          %712 = dma.done [#allocation18], 8192
        $region136: #{tpu_custom_call.1} parent=95 // pred_fallthru
          _
        %p713 = scmp.lt.s32.totalorder %s44, 1
        %s714 = scalar_select %p713, %s44, 1
        %s715 = smul.addr %s714, 32
        %s716 = smul.addr %s715, 8
        %s717 = scalar_lea.vmem %s0, %s716
        %p718 = pneg %p65
        %p719 = pneg %p62
        %p720 = pneg %p86
        %p721 = pneg %p83
        %p722 = pneg %p107
        %p723 = pneg %p104
        %p724 = pneg %p128
        %p725 = pneg %p125
        %p726 = pneg %p149
        %p727 = pneg %p146
        %p728 = pneg %p170
        %p729 = pneg %p167
        %p730 = pneg %p191
        %p731 = pneg %p188
        %p732 = pneg %p212
        %p733 = pneg %p209
        %p734 = pneg %p233
        %p735 = pneg %p230
        %p736 = pneg %p254
        %p737 = pneg %p251
        %p738 = pneg %p275
        %p739 = pneg %p272
        %p740 = pneg %p296
        %p741 = pneg %p293
        %p742 = pneg %p317
        %p743 = pneg %p314
        %p744 = pneg %p338
        %p745 = pneg %p335
        %p746 = pneg %p359
        %p747 = pneg %p356
        %p748 = pneg %p380
        %p749 = pneg %p377
        %p750 = pneg %p401
        %p751 = pneg %p398
        %p752 = pneg %p422
        %p753 = pneg %p419
        %p754 = pneg %p443
        %p755 = pneg %p440
        %p756 = pneg %p469
        %p757 = pneg %p466
        %s758 = sand.u32 %s456, 1
        %s759 = scalar_lea.sflag [#allocation4], %s758
        %s760 = sand.u32 %s456, 1
        %s761 = smul.addr %s760, 8
        %s762 = scalar_lea.vmem [#allocation19], %s761
        %p763 = pneg %p495
        %p764 = pneg %p492
        %s765 = sand.u32 %s482, 1
        %s766 = scalar_lea.sflag [#allocation21], %s765
        %s767 = sand.u32 %s482, 1
        %s768 = scalar_lea.vmem [#allocation20], %s767
        %p769 = scmp.lt.s32.totalorder %s44, 1
        %s770 = scalar_select %p769, %s44, 1
        %s771 = smul.addr %s770, 32
        %s772 = smul.addr %s771, 8
        %s773 = scalar_lea.vmem %s0, %s772
        %v775 = vld [vmem:[#allocation2] sm:$0x7]
        %v776 = vld [vmem:[#allocation5] sm:$0x1]
        %v777 = vld [vmem:[#allocation7] sm:$0xf]
        %v778 = vld [vmem:[#allocation7 + $0x4] sm:$0xf]
        %v779 = vld [vmem:[#allocation7 + $0x8] sm:$0xf]
        %v780 = vld [vmem:[#allocation7 + $0xc] sm:$0xf]
        %v781 = vld [vmem:[#allocation7 + $0x10] sm:$0xf]
        %v782 = vld [vmem:[#allocation7 + $0x14] sm:$0xf]
        %v783 = vld [vmem:[#allocation7 + $0x18] sm:$0xf]
        %v784 = vld [vmem:[#allocation7 + $0x1c] sm:$0xf]
        %v785 = vld [vmem:[#allocation8] sm:$0x1]
        %v786 = vld [vmem:[%s5] sm:$0xff]
        %v787 = vld [vmem:[%s5 + $0x8] sm:$0xff]
        %v788 = vld [vmem:[%s5 + $0x10] sm:$0xff]
        %v789 = vld [vmem:[%s5 + $0x18] sm:$0xff]
        %v790 = vld [vmem:[%s5 + $0x20] sm:$0xff]
        %v791 = vld [vmem:[%s5 + $0x28] sm:$0xff]
        %v792 = vld [vmem:[%s5 + $0x30] sm:$0xff]
        %v793 = vld [vmem:[%s5 + $0x38] sm:$0xff]
        %v794 = vld [vmem:[%s5 + $0x40] sm:$0xff]
        %v795 = vld [vmem:[%s5 + $0x48] sm:$0xff]
        %v796 = vld [vmem:[%s5 + $0x50] sm:$0xff]
        %v797 = vld [vmem:[%s5 + $0x58] sm:$0xff]
        %v798 = vld [vmem:[%s5 + $0x60] sm:$0xff]
        %v799 = vld [vmem:[%s5 + $0x68] sm:$0xff]
        %v800 = vld [vmem:[%s5 + $0x70] sm:$0xff]
        %v801 = vld [vmem:[%s5 + $0x78] sm:$0xff]
        %v802 = vld [vmem:[%s5 + $0x80] sm:$0xff]
        %v803 = vld [vmem:[%s5 + $0x88] sm:$0xff]
        %v804 = vld [vmem:[%s5 + $0x90] sm:$0xff]
        %v805 = vld [vmem:[%s5 + $0x98] sm:$0xff]
        %v806 = vld [vmem:[%s5 + $0xa0] sm:$0xff]
        %v807 = vld [vmem:[%s5 + $0xa8] sm:$0xff]
        %v808 = vld [vmem:[%s5 + $0xb0] sm:$0xff]
        %v809 = vld [vmem:[%s5 + $0xb8] sm:$0xff]
        %v810 = vld [vmem:[%s5 + $0xc0] sm:$0xff]
        %v811 = vld [vmem:[%s5 + $0xc8] sm:$0xff]
        %v812 = vld [vmem:[%s5 + $0xd0] sm:$0xff]
        %v813 = vld [vmem:[%s5 + $0xd8] sm:$0xff]
        %v814 = vld [vmem:[%s5 + $0xe0] sm:$0xff]
        %v815 = vld [vmem:[%s5 + $0xe8] sm:$0xff]
        %v816 = vld [vmem:[%s5 + $0xf0] sm:$0xff]
        %v817 = vld [vmem:[%s5 + $0xf8] sm:$0xff]
        %v818 = vld [vmem:[%s5 + $0x100] sm:$0xff]
        %v819 = vld [vmem:[%s5 + $0x108] sm:$0xff]
        %v820 = vld [vmem:[%s5 + $0x110] sm:$0xff]
        %v821 = vld [vmem:[%s5 + $0x118] sm:$0xff]
        %v822 = vld [vmem:[%s5 + $0x120] sm:$0xff]
        %v823 = vld [vmem:[%s5 + $0x128] sm:$0xff]
        %v824 = vld [vmem:[%s5 + $0x130] sm:$0xff]
        %v825 = vld [vmem:[%s5 + $0x138] sm:$0xff]
        %v826 = vld [vmem:[%s5 + $0x140] sm:$0xff]
        %v827 = vld [vmem:[%s5 + $0x148] sm:$0xff]
        %v828 = vld [vmem:[%s5 + $0x150] sm:$0xff]
        %v829 = vld [vmem:[%s5 + $0x158] sm:$0xff]
        %v830 = vld [vmem:[%s5 + $0x160] sm:$0xff]
        %v831 = vld [vmem:[%s5 + $0x168] sm:$0xff]
        %v832 = vld [vmem:[%s5 + $0x170] sm:$0xff]
        %v833 = vld [vmem:[%s5 + $0x178] sm:$0xff]
        %v834 = vld [vmem:[%s5 + $0x180] sm:$0xff]
        %v835 = vld [vmem:[%s5 + $0x188] sm:$0xff]
        %v836 = vld [vmem:[%s5 + $0x190] sm:$0xff]
        %v837 = vld [vmem:[%s5 + $0x198] sm:$0xff]
        %v838 = vld [vmem:[%s5 + $0x1a0] sm:$0xff]
        %v839 = vld [vmem:[%s5 + $0x1a8] sm:$0xff]
        %v840 = vld [vmem:[%s5 + $0x1b0] sm:$0xff]
        %v841 = vld [vmem:[%s5 + $0x1b8] sm:$0xff]
        %v842 = vld [vmem:[%s5 + $0x1c0] sm:$0xff]
        %v843 = vld [vmem:[%s5 + $0x1c8] sm:$0xff]
        %v844 = vld [vmem:[%s5 + $0x1d0] sm:$0xff]
        %v845 = vld [vmem:[%s5 + $0x1d8] sm:$0xff]
        %v846 = vld [vmem:[%s5 + $0x1e0] sm:$0xff]
        %v847 = vld [vmem:[%s5 + $0x1e8] sm:$0xff]
        %v848 = vld [vmem:[%s5 + $0x1f0] sm:$0xff]
        %v849 = vld [vmem:[%s5 + $0x1f8] sm:$0xff]
        %v850 = vld [vmem:[#allocation10] sm:$0xff]
        %v851 = vld [vmem:[%s13] sm:$0x7]
        %v852 = vld [vmem:[%s14] sm:$0x1]
        %v853 = vld [vmem:[%s15] sm:$0xf]
        %v854 = vld [vmem:[%s15 + $0x4] sm:$0xf]
        %v855 = vld [vmem:[%s15 + $0x8] sm:$0xf]
        %v856 = vld [vmem:[%s15 + $0xc] sm:$0xf]
        %v857 = vld [vmem:[%s15 + $0x10] sm:$0xf]
        %v858 = vld [vmem:[%s15 + $0x14] sm:$0xf]
        %v859 = vld [vmem:[%s15 + $0x18] sm:$0xf]
        %v860 = vld [vmem:[%s15 + $0x1c] sm:$0xf]
        %v861 = vld [vmem:[%s16] sm:$0x1]
        %v862 = vld [vmem:[#allocation17] sm:$0xff]
        %v863 = vld [vmem:[#allocation17 + $0x8] sm:$0xff]
        %v864 = vld [vmem:[#allocation17 + $0x10] sm:$0xff]
        %v865 = vld [vmem:[#allocation17 + $0x18] sm:$0xff]
        %v866 = vld [vmem:[#allocation17 + $0x20] sm:$0xff]
        %v867 = vld [vmem:[#allocation17 + $0x28] sm:$0xff]
        %v868 = vld [vmem:[#allocation17 + $0x30] sm:$0xff]
        %v869 = vld [vmem:[#allocation17 + $0x38] sm:$0xff]
        %v870 = vld [vmem:[#allocation17 + $0x40] sm:$0xff]
        %v871 = vld [vmem:[#allocation17 + $0x48] sm:$0xff]
        %v872 = vld [vmem:[#allocation17 + $0x50] sm:$0xff]
        %v873 = vld [vmem:[#allocation17 + $0x58] sm:$0xff]
        %v874 = vld [vmem:[#allocation17 + $0x60] sm:$0xff]
        %v875 = vld [vmem:[#allocation17 + $0x68] sm:$0xff]
        %v876 = vld [vmem:[#allocation17 + $0x70] sm:$0xff]
        %v877 = vld [vmem:[#allocation17 + $0x78] sm:$0xff]
        %v878 = vld [vmem:[#allocation17 + $0x80] sm:$0xff]
        %v879 = vld [vmem:[#allocation17 + $0x88] sm:$0xff]
        %v880 = vld [vmem:[#allocation17 + $0x90] sm:$0xff]
        %v881 = vld [vmem:[#allocation17 + $0x98] sm:$0xff]
        %v882 = vld [vmem:[#allocation17 + $0xa0] sm:$0xff]
        %v883 = vld [vmem:[#allocation17 + $0xa8] sm:$0xff]
        %v884 = vld [vmem:[#allocation17 + $0xb0] sm:$0xff]
        %v885 = vld [vmem:[#allocation17 + $0xb8] sm:$0xff]
        %v886 = vld [vmem:[#allocation17 + $0xc0] sm:$0xff]
        %v887 = vld [vmem:[#allocation17 + $0xc8] sm:$0xff]
        %v888 = vld [vmem:[#allocation17 + $0xd0] sm:$0xff]
        %v889 = vld [vmem:[#allocation17 + $0xd8] sm:$0xff]
        %v890 = vld [vmem:[#allocation17 + $0xe0] sm:$0xff]
        %v891 = vld [vmem:[#allocation17 + $0xe8] sm:$0xff]
        %v892 = vld [vmem:[#allocation17 + $0xf0] sm:$0xff]
        %v893 = vld [vmem:[#allocation17 + $0xf8] sm:$0xff]
        %v894 = vld [vmem:[#allocation17 + $0x100] sm:$0xff]
        %v895 = vld [vmem:[#allocation17 + $0x108] sm:$0xff]
        %v896 = vld [vmem:[#allocation17 + $0x110] sm:$0xff]
        %v897 = vld [vmem:[#allocation17 + $0x118] sm:$0xff]
        %v898 = vld [vmem:[#allocation17 + $0x120] sm:$0xff]
        %v899 = vld [vmem:[#allocation17 + $0x128] sm:$0xff]
        %v900 = vld [vmem:[#allocation17 + $0x130] sm:$0xff]
        %v901 = vld [vmem:[#allocation17 + $0x138] sm:$0xff]
        %v902 = vld [vmem:[#allocation17 + $0x140] sm:$0xff]
        %v903 = vld [vmem:[#allocation17 + $0x148] sm:$0xff]
        %v904 = vld [vmem:[#allocation17 + $0x150] sm:$0xff]
        %v905 = vld [vmem:[#allocation17 + $0x158] sm:$0xff]
        %v906 = vld [vmem:[#allocation17 + $0x160] sm:$0xff]
        %v907 = vld [vmem:[#allocation17 + $0x168] sm:$0xff]
        %v908 = vld [vmem:[#allocation17 + $0x170] sm:$0xff]
        %v909 = vld [vmem:[#allocation17 + $0x178] sm:$0xff]
        %v910 = vld [vmem:[#allocation17 + $0x180] sm:$0xff]
        %v911 = vld [vmem:[#allocation17 + $0x188] sm:$0xff]
        %v912 = vld [vmem:[#allocation17 + $0x190] sm:$0xff]
        %v913 = vld [vmem:[#allocation17 + $0x198] sm:$0xff]
        %v914 = vld [vmem:[#allocation17 + $0x1a0] sm:$0xff]
        %v915 = vld [vmem:[#allocation17 + $0x1a8] sm:$0xff]
        %v916 = vld [vmem:[#allocation17 + $0x1b0] sm:$0xff]
        %v917 = vld [vmem:[#allocation17 + $0x1b8] sm:$0xff]
        %v918 = vld [vmem:[#allocation17 + $0x1c0] sm:$0xff]
        %v919 = vld [vmem:[#allocation17 + $0x1c8] sm:$0xff]
        %v920 = vld [vmem:[#allocation17 + $0x1d0] sm:$0xff]
        %v921 = vld [vmem:[#allocation17 + $0x1d8] sm:$0xff]
        %v922 = vld [vmem:[#allocation17 + $0x1e0] sm:$0xff]
        %v923 = vld [vmem:[#allocation17 + $0x1e8] sm:$0xff]
        %v924 = vld [vmem:[#allocation17 + $0x1f0] sm:$0xff]
        %v925 = vld [vmem:[#allocation17 + $0x1f8] sm:$0xff]
        %v926 = vld [vmem:[%s18] sm:$0xff]
        %v927 = vld [vmem:[%s773] sm:$0xff]
        %v928 = vld [vmem:[%s773 + $0x8] sm:$0xff]
        %v929 = vld [vmem:[%s773 + $0x10] sm:$0xff]
        %v930 = vld [vmem:[%s773 + $0x18] sm:$0xff]
        %v931 = vld [vmem:[%s773 + $0x20] sm:$0xff]
        %v932 = vld [vmem:[%s773 + $0x28] sm:$0xff]
        %v933 = vld [vmem:[%s773 + $0x30] sm:$0xff]
        %v934 = vld [vmem:[%s773 + $0x38] sm:$0xff]
        %v935 = vld [vmem:[%s773 + $0x40] sm:$0xff]
        %v936 = vld [vmem:[%s773 + $0x48] sm:$0xff]
        %v937 = vld [vmem:[%s773 + $0x50] sm:$0xff]
        %v938 = vld [vmem:[%s773 + $0x58] sm:$0xff]
        %v939 = vld [vmem:[%s773 + $0x60] sm:$0xff]
        %v940 = vld [vmem:[%s773 + $0x68] sm:$0xff]
        %v941 = vld [vmem:[%s773 + $0x70] sm:$0xff]
        %v942 = vld [vmem:[%s773 + $0x78] sm:$0xff]
        %v943 = vld [vmem:[%s773 + $0x80] sm:$0xff]
        %v944 = vld [vmem:[%s773 + $0x88] sm:$0xff]
        %v945 = vld [vmem:[%s773 + $0x90] sm:$0xff]
        %v946 = vld [vmem:[%s773 + $0x98] sm:$0xff]
        %v947 = vld [vmem:[%s773 + $0xa0] sm:$0xff]
        %v948 = vld [vmem:[%s773 + $0xa8] sm:$0xff]
        %v949 = vld [vmem:[%s773 + $0xb0] sm:$0xff]
        %v950 = vld [vmem:[%s773 + $0xb8] sm:$0xff]
        %v951 = vld [vmem:[%s773 + $0xc0] sm:$0xff]
        %v952 = vld [vmem:[%s773 + $0xc8] sm:$0xff]
        %v953 = vld [vmem:[%s773 + $0xd0] sm:$0xff]
        %v954 = vld [vmem:[%s773 + $0xd8] sm:$0xff]
        %v955 = vld [vmem:[%s773 + $0xe0] sm:$0xff]
        %v956 = vld [vmem:[%s773 + $0xe8] sm:$0xff]
        %v957 = vld [vmem:[%s773 + $0xf0] sm:$0xff]
        %v958 = vld [vmem:[%s773 + $0xf8] sm:$0xff]
        %960 = vset.pattern.permute.xlu0 0
        %961 = vperm.xlu0 %960, %v927
        %v962 = vpop.permute.xlu0 %961
        %965 = vset.pattern.permute.xlu0 0
        %966 = vperm.xlu0 %965, %v928
        %v967 = vpop.permute.xlu0 %966
        %970 = vset.pattern.permute.xlu0 0
        %971 = vperm.xlu0 %970, %v929
        %v972 = vpop.permute.xlu0 %971
        %975 = vset.pattern.permute.xlu0 0
        %976 = vperm.xlu0 %975, %v930
        %v977 = vpop.permute.xlu0 %976
        %980 = vset.pattern.permute.xlu0 0
        %981 = vperm.xlu0 %980, %v931
        %v982 = vpop.permute.xlu0 %981
        %985 = vset.pattern.permute.xlu0 0
        %986 = vperm.xlu0 %985, %v932
        %v987 = vpop.permute.xlu0 %986
        %990 = vset.pattern.permute.xlu0 0
        %991 = vperm.xlu0 %990, %v933
        %v992 = vpop.permute.xlu0 %991
        %995 = vset.pattern.permute.xlu0 0
        %996 = vperm.xlu0 %995, %v934
        %v997 = vpop.permute.xlu0 %996
        %1000 = vset.pattern.permute.xlu0 0
        %1001 = vperm.xlu0 %1000, %v935
        %v1002 = vpop.permute.xlu0 %1001
        %1005 = vset.pattern.permute.xlu0 0
        %1006 = vperm.xlu0 %1005, %v936
        %v1007 = vpop.permute.xlu0 %1006
        %1010 = vset.pattern.permute.xlu0 0
        %1011 = vperm.xlu0 %1010, %v937
        %v1012 = vpop.permute.xlu0 %1011
        %1015 = vset.pattern.permute.xlu0 0
        %1016 = vperm.xlu0 %1015, %v938
        %v1017 = vpop.permute.xlu0 %1016
        %1020 = vset.pattern.permute.xlu0 0
        %1021 = vperm.xlu0 %1020, %v939
        %v1022 = vpop.permute.xlu0 %1021
        %1025 = vset.pattern.permute.xlu0 0
        %1026 = vperm.xlu0 %1025, %v940
        %v1027 = vpop.permute.xlu0 %1026
        %1030 = vset.pattern.permute.xlu0 0
        %1031 = vperm.xlu0 %1030, %v941
        %v1032 = vpop.permute.xlu0 %1031
        %1035 = vset.pattern.permute.xlu0 0
        %1036 = vperm.xlu0 %1035, %v942
        %v1037 = vpop.permute.xlu0 %1036
        %1040 = vset.pattern.permute.xlu0 0
        %1041 = vperm.xlu0 %1040, %v943
        %v1042 = vpop.permute.xlu0 %1041
        %1045 = vset.pattern.permute.xlu0 0
        %1046 = vperm.xlu0 %1045, %v944
        %v1047 = vpop.permute.xlu0 %1046
        %1050 = vset.pattern.permute.xlu0 0
        %1051 = vperm.xlu0 %1050, %v945
        %v1052 = vpop.permute.xlu0 %1051
        %1055 = vset.pattern.permute.xlu0 0
        %1056 = vperm.xlu0 %1055, %v946
        %v1057 = vpop.permute.xlu0 %1056
        %1060 = vset.pattern.permute.xlu0 0
        %1061 = vperm.xlu0 %1060, %v947
        %v1062 = vpop.permute.xlu0 %1061
        %1065 = vset.pattern.permute.xlu0 0
        %1066 = vperm.xlu0 %1065, %v948
        %v1067 = vpop.permute.xlu0 %1066
        %1070 = vset.pattern.permute.xlu0 0
        %1071 = vperm.xlu0 %1070, %v949
        %v1072 = vpop.permute.xlu0 %1071
        %1075 = vset.pattern.permute.xlu0 0
        %1076 = vperm.xlu0 %1075, %v950
        %v1077 = vpop.permute.xlu0 %1076
        %1080 = vset.pattern.permute.xlu0 0
        %1081 = vperm.xlu0 %1080, %v951
        %v1082 = vpop.permute.xlu0 %1081
        %1085 = vset.pattern.permute.xlu0 0
        %1086 = vperm.xlu0 %1085, %v952
        %v1087 = vpop.permute.xlu0 %1086
        %1090 = vset.pattern.permute.xlu0 0
        %1091 = vperm.xlu0 %1090, %v953
        %v1092 = vpop.permute.xlu0 %1091
        %1095 = vset.pattern.permute.xlu0 0
        %1096 = vperm.xlu0 %1095, %v954
        %v1097 = vpop.permute.xlu0 %1096
        %1100 = vset.pattern.permute.xlu0 0
        %1101 = vperm.xlu0 %1100, %v955
        %v1102 = vpop.permute.xlu0 %1101
        %1105 = vset.pattern.permute.xlu0 0
        %1106 = vperm.xlu0 %1105, %v956
        %v1107 = vpop.permute.xlu0 %1106
        %1110 = vset.pattern.permute.xlu0 0
        %1111 = vperm.xlu0 %1110, %v957
        %v1112 = vpop.permute.xlu0 %1111
        %1115 = vset.pattern.permute.xlu0 0
        %1116 = vperm.xlu0 %1115, %v958
        %v1117 = vpop.permute.xlu0 %1116
        %v1119 = vlaneseq
        %v1120 = vshrl.u32 %v1119, 7
        %v1121 = vsub.s32 0, %v1120
        %v1122 = vrot.slane %v775, %v1121
        %v1123 = vmul.f32 %v962, %v1122
        %v1124 = vmul.f32 %v967, %v1122
        %v1125 = vmul.f32 %v972, %v1122
        %v1126 = vmul.f32 %v977, %v1122
        %v1127 = vmul.f32 %v982, %v1122
        %v1128 = vmul.f32 %v987, %v1122
        %v1129 = vmul.f32 %v992, %v1122
        %v1130 = vmul.f32 %v997, %v1122
        %v1131 = vmul.f32 %v1002, %v1122
        %v1132 = vmul.f32 %v1007, %v1122
        %v1133 = vmul.f32 %v1012, %v1122
        %v1134 = vmul.f32 %v1017, %v1122
        %v1135 = vmul.f32 %v1022, %v1122
        %v1136 = vmul.f32 %v1027, %v1122
        %v1137 = vmul.f32 %v1032, %v1122
        %v1138 = vmul.f32 %v1037, %v1122
        %v1139 = vmul.f32 %v1042, %v1122
        %v1140 = vmul.f32 %v1047, %v1122
        %v1141 = vmul.f32 %v1052, %v1122
        %v1142 = vmul.f32 %v1057, %v1122
        %v1143 = vmul.f32 %v1062, %v1122
        %v1144 = vmul.f32 %v1067, %v1122
        %v1145 = vmul.f32 %v1072, %v1122
        %v1146 = vmul.f32 %v1077, %v1122
        %v1147 = vmul.f32 %v1082, %v1122
        %v1148 = vmul.f32 %v1087, %v1122
        %v1149 = vmul.f32 %v1092, %v1122
        %v1150 = vmul.f32 %v1097, %v1122
        %v1151 = vmul.f32 %v1102, %v1122
        %v1152 = vmul.f32 %v1107, %v1122
        %v1153 = vmul.f32 %v1112, %v1122
        %v1154 = vmul.f32 %v1117, %v1122
        %1155 = vset.pattern.permute.xlu0 1
        %1156 = vperm.xlu0 %1155, %v927
        %v1157 = vpop.permute.xlu0 %1156
        %1159 = vset.pattern.permute.xlu0 1
        %1160 = vperm.xlu0 %1159, %v928
        %v1161 = vpop.permute.xlu0 %1160
        %1163 = vset.pattern.permute.xlu0 1
        %1164 = vperm.xlu0 %1163, %v929
        %v1165 = vpop.permute.xlu0 %1164
        %1167 = vset.pattern.permute.xlu0 1
        %1168 = vperm.xlu0 %1167, %v930
        %v1169 = vpop.permute.xlu0 %1168
        %1171 = vset.pattern.permute.xlu0 1
        %1172 = vperm.xlu0 %1171, %v931
        %v1173 = vpop.permute.xlu0 %1172
        %1175 = vset.pattern.permute.xlu0 1
        %1176 = vperm.xlu0 %1175, %v932
        %v1177 = vpop.permute.xlu0 %1176
        %1179 = vset.pattern.permute.xlu0 1
        %1180 = vperm.xlu0 %1179, %v933
        %v1181 = vpop.permute.xlu0 %1180
        %1183 = vset.pattern.permute.xlu0 1
        %1184 = vperm.xlu0 %1183, %v934
        %v1185 = vpop.permute.xlu0 %1184
        %1187 = vset.pattern.permute.xlu0 1
        %1188 = vperm.xlu0 %1187, %v935
        %v1189 = vpop.permute.xlu0 %1188
        %1191 = vset.pattern.permute.xlu0 1
        %1192 = vperm.xlu0 %1191, %v936
        %v1193 = vpop.permute.xlu0 %1192
        %1195 = vset.pattern.permute.xlu0 1
        %1196 = vperm.xlu0 %1195, %v937
        %v1197 = vpop.permute.xlu0 %1196
        %1199 = vset.pattern.permute.xlu0 1
        %1200 = vperm.xlu0 %1199, %v938
        %v1201 = vpop.permute.xlu0 %1200
        %1203 = vset.pattern.permute.xlu0 1
        %1204 = vperm.xlu0 %1203, %v939
        %v1205 = vpop.permute.xlu0 %1204
        %1207 = vset.pattern.permute.xlu0 1
        %1208 = vperm.xlu0 %1207, %v940
        %v1209 = vpop.permute.xlu0 %1208
        %1211 = vset.pattern.permute.xlu0 1
        %1212 = vperm.xlu0 %1211, %v941
        %v1213 = vpop.permute.xlu0 %1212
        %1215 = vset.pattern.permute.xlu0 1
        %1216 = vperm.xlu0 %1215, %v942
        %v1217 = vpop.permute.xlu0 %1216
        %1219 = vset.pattern.permute.xlu0 1
        %1220 = vperm.xlu0 %1219, %v943
        %v1221 = vpop.permute.xlu0 %1220
        %1223 = vset.pattern.permute.xlu0 1
        %1224 = vperm.xlu0 %1223, %v944
        %v1225 = vpop.permute.xlu0 %1224
        %1227 = vset.pattern.permute.xlu0 1
        %1228 = vperm.xlu0 %1227, %v945
        %v1229 = vpop.permute.xlu0 %1228
        %1231 = vset.pattern.permute.xlu0 1
        %1232 = vperm.xlu0 %1231, %v946
        %v1233 = vpop.permute.xlu0 %1232
        %1235 = vset.pattern.permute.xlu0 1
        %1236 = vperm.xlu0 %1235, %v947
        %v1237 = vpop.permute.xlu0 %1236
        %1239 = vset.pattern.permute.xlu0 1
        %1240 = vperm.xlu0 %1239, %v948
        %v1241 = vpop.permute.xlu0 %1240
        %1243 = vset.pattern.permute.xlu0 1
        %1244 = vperm.xlu0 %1243, %v949
        %v1245 = vpop.permute.xlu0 %1244
        %1247 = vset.pattern.permute.xlu0 1
        %1248 = vperm.xlu0 %1247, %v950
        %v1249 = vpop.permute.xlu0 %1248
        %1251 = vset.pattern.permute.xlu0 1
        %1252 = vperm.xlu0 %1251, %v951
        %v1253 = vpop.permute.xlu0 %1252
        %1255 = vset.pattern.permute.xlu0 1
        %1256 = vperm.xlu0 %1255, %v952
        %v1257 = vpop.permute.xlu0 %1256
        %1259 = vset.pattern.permute.xlu0 1
        %1260 = vperm.xlu0 %1259, %v953
        %v1261 = vpop.permute.xlu0 %1260
        %1263 = vset.pattern.permute.xlu0 1
        %1264 = vperm.xlu0 %1263, %v954
        %v1265 = vpop.permute.xlu0 %1264
        %1267 = vset.pattern.permute.xlu0 1
        %1268 = vperm.xlu0 %1267, %v955
        %v1269 = vpop.permute.xlu0 %1268
        %1271 = vset.pattern.permute.xlu0 1
        %1272 = vperm.xlu0 %1271, %v956
        %v1273 = vpop.permute.xlu0 %1272
        %1275 = vset.pattern.permute.xlu0 1
        %1276 = vperm.xlu0 %1275, %v957
        %v1277 = vpop.permute.xlu0 %1276
        %1279 = vset.pattern.permute.xlu0 1
        %1280 = vperm.xlu0 %1279, %v958
        %v1281 = vpop.permute.xlu0 %1280
        %v1283 = vlaneseq
        %v1284 = vshrl.u32 %v1283, 7
        %v1285 = vsub.s32 1, %v1284
        %v1286 = vrot.slane %v775, %v1285
        %v1287 = vmul.f32 %v1157, %v1286
        %v1288 = vmul.f32 %v1161, %v1286
        %v1289 = vmul.f32 %v1165, %v1286
        %v1290 = vmul.f32 %v1169, %v1286
        %v1291 = vmul.f32 %v1173, %v1286
        %v1292 = vmul.f32 %v1177, %v1286
        %v1293 = vmul.f32 %v1181, %v1286
        %v1294 = vmul.f32 %v1185, %v1286
        %v1295 = vmul.f32 %v1189, %v1286
        %v1296 = vmul.f32 %v1193, %v1286
        %v1297 = vmul.f32 %v1197, %v1286
        %v1298 = vmul.f32 %v1201, %v1286
        %v1299 = vmul.f32 %v1205, %v1286
        %v1300 = vmul.f32 %v1209, %v1286
        %v1301 = vmul.f32 %v1213, %v1286
        %v1302 = vmul.f32 %v1217, %v1286
        %v1303 = vmul.f32 %v1221, %v1286
        %v1304 = vmul.f32 %v1225, %v1286
        %v1305 = vmul.f32 %v1229, %v1286
        %v1306 = vmul.f32 %v1233, %v1286
        %v1307 = vmul.f32 %v1237, %v1286
        %v1308 = vmul.f32 %v1241, %v1286
        %v1309 = vmul.f32 %v1245, %v1286
        %v1310 = vmul.f32 %v1249, %v1286
        %v1311 = vmul.f32 %v1253, %v1286
        %v1312 = vmul.f32 %v1257, %v1286
        %v1313 = vmul.f32 %v1261, %v1286
        %v1314 = vmul.f32 %v1265, %v1286
        %v1315 = vmul.f32 %v1269, %v1286
        %v1316 = vmul.f32 %v1273, %v1286
        %v1317 = vmul.f32 %v1277, %v1286
        %v1318 = vmul.f32 %v1281, %v1286
        %v1319 = vadd.f32 %v1123, %v1287
        %v1320 = vadd.f32 %v1124, %v1288
        %v1321 = vadd.f32 %v1125, %v1289
        %v1322 = vadd.f32 %v1126, %v1290
        %v1323 = vadd.f32 %v1127, %v1291
        %v1324 = vadd.f32 %v1128, %v1292
        %v1325 = vadd.f32 %v1129, %v1293
        %v1326 = vadd.f32 %v1130, %v1294
        %v1327 = vadd.f32 %v1131, %v1295
        %v1328 = vadd.f32 %v1132, %v1296
        %v1329 = vadd.f32 %v1133, %v1297
        %v1330 = vadd.f32 %v1134, %v1298
        %v1331 = vadd.f32 %v1135, %v1299
        %v1332 = vadd.f32 %v1136, %v1300
        %v1333 = vadd.f32 %v1137, %v1301
        %v1334 = vadd.f32 %v1138, %v1302
        %v1335 = vadd.f32 %v1139, %v1303
        %v1336 = vadd.f32 %v1140, %v1304
        %v1337 = vadd.f32 %v1141, %v1305
        %v1338 = vadd.f32 %v1142, %v1306
        %v1339 = vadd.f32 %v1143, %v1307
        %v1340 = vadd.f32 %v1144, %v1308
        %v1341 = vadd.f32 %v1145, %v1309
        %v1342 = vadd.f32 %v1146, %v1310
        %v1343 = vadd.f32 %v1147, %v1311
        %v1344 = vadd.f32 %v1148, %v1312
        %v1345 = vadd.f32 %v1149, %v1313
        %v1346 = vadd.f32 %v1150, %v1314
        %v1347 = vadd.f32 %v1151, %v1315
        %v1348 = vadd.f32 %v1152, %v1316
        %v1349 = vadd.f32 %v1153, %v1317
        %v1350 = vadd.f32 %v1154, %v1318
        %1351 = vset.pattern.permute.xlu0 2
        %1352 = vperm.xlu0 %1351, %v927
        %v1353 = vpop.permute.xlu0 %1352
        %1355 = vset.pattern.permute.xlu0 2
        %1356 = vperm.xlu0 %1355, %v928
        %v1357 = vpop.permute.xlu0 %1356
        %1359 = vset.pattern.permute.xlu0 2
        %1360 = vperm.xlu0 %1359, %v929
        %v1361 = vpop.permute.xlu0 %1360
        %1363 = vset.pattern.permute.xlu0 2
        %1364 = vperm.xlu0 %1363, %v930
        %v1365 = vpop.permute.xlu0 %1364
        %1367 = vset.pattern.permute.xlu0 2
        %1368 = vperm.xlu0 %1367, %v931
        %v1369 = vpop.permute.xlu0 %1368
        %1371 = vset.pattern.permute.xlu0 2
        %1372 = vperm.xlu0 %1371, %v932
        %v1373 = vpop.permute.xlu0 %1372
        %1375 = vset.pattern.permute.xlu0 2
        %1376 = vperm.xlu0 %1375, %v933
        %v1377 = vpop.permute.xlu0 %1376
        %1379 = vset.pattern.permute.xlu0 2
        %1380 = vperm.xlu0 %1379, %v934
        %v1381 = vpop.permute.xlu0 %1380
        %1383 = vset.pattern.permute.xlu0 2
        %1384 = vperm.xlu0 %1383, %v935
        %v1385 = vpop.permute.xlu0 %1384
        %1387 = vset.pattern.permute.xlu0 2
        %1388 = vperm.xlu0 %1387, %v936
        %v1389 = vpop.permute.xlu0 %1388
        %1391 = vset.pattern.permute.xlu0 2
        %1392 = vperm.xlu0 %1391, %v937
        %v1393 = vpop.permute.xlu0 %1392
        %1395 = vset.pattern.permute.xlu0 2
        %1396 = vperm.xlu0 %1395, %v938
        %v1397 = vpop.permute.xlu0 %1396
        %1399 = vset.pattern.permute.xlu0 2
        %1400 = vperm.xlu0 %1399, %v939
        %v1401 = vpop.permute.xlu0 %1400
        %1403 = vset.pattern.permute.xlu0 2
        %1404 = vperm.xlu0 %1403, %v940
        %v1405 = vpop.permute.xlu0 %1404
        %1407 = vset.pattern.permute.xlu0 2
        %1408 = vperm.xlu0 %1407, %v941
        %v1409 = vpop.permute.xlu0 %1408
        %1411 = vset.pattern.permute.xlu0 2
        %1412 = vperm.xlu0 %1411, %v942
        %v1413 = vpop.permute.xlu0 %1412
        %1415 = vset.pattern.permute.xlu0 2
        %1416 = vperm.xlu0 %1415, %v943
        %v1417 = vpop.permute.xlu0 %1416
        %1419 = vset.pattern.permute.xlu0 2
        %1420 = vperm.xlu0 %1419, %v944
        %v1421 = vpop.permute.xlu0 %1420
        %1423 = vset.pattern.permute.xlu0 2
        %1424 = vperm.xlu0 %1423, %v945
        %v1425 = vpop.permute.xlu0 %1424
        %1427 = vset.pattern.permute.xlu0 2
        %1428 = vperm.xlu0 %1427, %v946
        %v1429 = vpop.permute.xlu0 %1428
        %1431 = vset.pattern.permute.xlu0 2
        %1432 = vperm.xlu0 %1431, %v947
        %v1433 = vpop.permute.xlu0 %1432
        %1435 = vset.pattern.permute.xlu0 2
        %1436 = vperm.xlu0 %1435, %v948
        %v1437 = vpop.permute.xlu0 %1436
        %1439 = vset.pattern.permute.xlu0 2
        %1440 = vperm.xlu0 %1439, %v949
        %v1441 = vpop.permute.xlu0 %1440
        %1443 = vset.pattern.permute.xlu0 2
        %1444 = vperm.xlu0 %1443, %v950
        %v1445 = vpop.permute.xlu0 %1444
        %1447 = vset.pattern.permute.xlu0 2
        %1448 = vperm.xlu0 %1447, %v951
        %v1449 = vpop.permute.xlu0 %1448
        %1451 = vset.pattern.permute.xlu0 2
        %1452 = vperm.xlu0 %1451, %v952
        %v1453 = vpop.permute.xlu0 %1452
        %1455 = vset.pattern.permute.xlu0 2
        %1456 = vperm.xlu0 %1455, %v953
        %v1457 = vpop.permute.xlu0 %1456
        %1459 = vset.pattern.permute.xlu0 2
        %1460 = vperm.xlu0 %1459, %v954
        %v1461 = vpop.permute.xlu0 %1460
        %1463 = vset.pattern.permute.xlu0 2
        %1464 = vperm.xlu0 %1463, %v955
        %v1465 = vpop.permute.xlu0 %1464
        %1467 = vset.pattern.permute.xlu0 2
        %1468 = vperm.xlu0 %1467, %v956
        %v1469 = vpop.permute.xlu0 %1468
        %1471 = vset.pattern.permute.xlu0 2
        %1472 = vperm.xlu0 %1471, %v957
        %v1473 = vpop.permute.xlu0 %1472
        %1475 = vset.pattern.permute.xlu0 2
        %1476 = vperm.xlu0 %1475, %v958
        %v1477 = vpop.permute.xlu0 %1476
        %v1479 = vlaneseq
        %v1480 = vshrl.u32 %v1479, 7
        %v1481 = vsub.s32 2, %v1480
        %v1482 = vrot.slane %v775, %v1481
        %v1483 = vmul.f32 %v1353, %v1482
        %v1484 = vmul.f32 %v1357, %v1482
        %v1485 = vmul.f32 %v1361, %v1482
        %v1486 = vmul.f32 %v1365, %v1482
        %v1487 = vmul.f32 %v1369, %v1482
        %v1488 = vmul.f32 %v1373, %v1482
        %v1489 = vmul.f32 %v1377, %v1482
        %v1490 = vmul.f32 %v1381, %v1482
        %v1491 = vmul.f32 %v1385, %v1482
        %v1492 = vmul.f32 %v1389, %v1482
        %v1493 = vmul.f32 %v1393, %v1482
        %v1494 = vmul.f32 %v1397, %v1482
        %v1495 = vmul.f32 %v1401, %v1482
        %v1496 = vmul.f32 %v1405, %v1482
        %v1497 = vmul.f32 %v1409, %v1482
        %v1498 = vmul.f32 %v1413, %v1482
        %v1499 = vmul.f32 %v1417, %v1482
        %v1500 = vmul.f32 %v1421, %v1482
        %v1501 = vmul.f32 %v1425, %v1482
        %v1502 = vmul.f32 %v1429, %v1482
        %v1503 = vmul.f32 %v1433, %v1482
        %v1504 = vmul.f32 %v1437, %v1482
        %v1505 = vmul.f32 %v1441, %v1482
        %v1506 = vmul.f32 %v1445, %v1482
        %v1507 = vmul.f32 %v1449, %v1482
        %v1508 = vmul.f32 %v1453, %v1482
        %v1509 = vmul.f32 %v1457, %v1482
        %v1510 = vmul.f32 %v1461, %v1482
        %v1511 = vmul.f32 %v1465, %v1482
        %v1512 = vmul.f32 %v1469, %v1482
        %v1513 = vmul.f32 %v1473, %v1482
        %v1514 = vmul.f32 %v1477, %v1482
        %v1515 = vadd.f32 %v1319, %v1483
        %v1516 = vadd.f32 %v1320, %v1484
        %v1517 = vadd.f32 %v1321, %v1485
        %v1518 = vadd.f32 %v1322, %v1486
        %v1519 = vadd.f32 %v1323, %v1487
        %v1520 = vadd.f32 %v1324, %v1488
        %v1521 = vadd.f32 %v1325, %v1489
        %v1522 = vadd.f32 %v1326, %v1490
        %v1523 = vadd.f32 %v1327, %v1491
        %v1524 = vadd.f32 %v1328, %v1492
        %v1525 = vadd.f32 %v1329, %v1493
        %v1526 = vadd.f32 %v1330, %v1494
        %v1527 = vadd.f32 %v1331, %v1495
        %v1528 = vadd.f32 %v1332, %v1496
        %v1529 = vadd.f32 %v1333, %v1497
        %v1530 = vadd.f32 %v1334, %v1498
        %v1531 = vadd.f32 %v1335, %v1499
        %v1532 = vadd.f32 %v1336, %v1500
        %v1533 = vadd.f32 %v1337, %v1501
        %v1534 = vadd.f32 %v1338, %v1502
        %v1535 = vadd.f32 %v1339, %v1503
        %v1536 = vadd.f32 %v1340, %v1504
        %v1537 = vadd.f32 %v1341, %v1505
        %v1538 = vadd.f32 %v1342, %v1506
        %v1539 = vadd.f32 %v1343, %v1507
        %v1540 = vadd.f32 %v1344, %v1508
        %v1541 = vadd.f32 %v1345, %v1509
        %v1542 = vadd.f32 %v1346, %v1510
        %v1543 = vadd.f32 %v1347, %v1511
        %v1544 = vadd.f32 %v1348, %v1512
        %v1545 = vadd.f32 %v1349, %v1513
        %v1546 = vadd.f32 %v1350, %v1514
        %v1548 = vlaneseq
        %v1549 = vshrl.u32 %v1548, 7
        %v1550 = vsub.s32 0, %v1549
        %v1551 = vrot.slane %v776, %v1550
        %v1553 = vadd.f32 %v1515, %v1551
        %v1554 = vadd.f32 %v1516, %v1551
        %v1555 = vadd.f32 %v1517, %v1551
        %v1556 = vadd.f32 %v1518, %v1551
        %v1557 = vadd.f32 %v1519, %v1551
        %v1558 = vadd.f32 %v1520, %v1551
        %v1559 = vadd.f32 %v1521, %v1551
        %v1560 = vadd.f32 %v1522, %v1551
        %v1561 = vadd.f32 %v1523, %v1551
        %v1562 = vadd.f32 %v1524, %v1551
        %v1563 = vadd.f32 %v1525, %v1551
        %v1564 = vadd.f32 %v1526, %v1551
        %v1565 = vadd.f32 %v1527, %v1551
        %v1566 = vadd.f32 %v1528, %v1551
        %v1567 = vadd.f32 %v1529, %v1551
        %v1568 = vadd.f32 %v1530, %v1551
        %v1569 = vadd.f32 %v1531, %v1551
        %v1570 = vadd.f32 %v1532, %v1551
        %v1571 = vadd.f32 %v1533, %v1551
        %v1572 = vadd.f32 %v1534, %v1551
        %v1573 = vadd.f32 %v1535, %v1551
        %v1574 = vadd.f32 %v1536, %v1551
        %v1575 = vadd.f32 %v1537, %v1551
        %v1576 = vadd.f32 %v1538, %v1551
        %v1577 = vadd.f32 %v1539, %v1551
        %v1578 = vadd.f32 %v1540, %v1551
        %v1579 = vadd.f32 %v1541, %v1551
        %v1580 = vadd.f32 %v1542, %v1551
        %v1581 = vadd.f32 %v1543, %v1551
        %v1582 = vadd.f32 %v1544, %v1551
        %v1583 = vadd.f32 %v1545, %v1551
        %v1584 = vadd.f32 %v1546, %v1551
        %v1585 = vmax.f32 %v1553, 0.0
        %v1586 = vmax.f32 %v1554, 0.0
        %v1587 = vmax.f32 %v1555, 0.0
        %v1588 = vmax.f32 %v1556, 0.0
        %v1589 = vmax.f32 %v1557, 0.0
        %v1590 = vmax.f32 %v1558, 0.0
        %v1591 = vmax.f32 %v1559, 0.0
        %v1592 = vmax.f32 %v1560, 0.0
        %v1593 = vmax.f32 %v1561, 0.0
        %v1594 = vmax.f32 %v1562, 0.0
        %v1595 = vmax.f32 %v1563, 0.0
        %v1596 = vmax.f32 %v1564, 0.0
        %v1597 = vmax.f32 %v1565, 0.0
        %v1598 = vmax.f32 %v1566, 0.0
        %v1599 = vmax.f32 %v1567, 0.0
        %v1600 = vmax.f32 %v1568, 0.0
        %v1601 = vmax.f32 %v1569, 0.0
        %v1602 = vmax.f32 %v1570, 0.0
        %v1603 = vmax.f32 %v1571, 0.0
        %v1604 = vmax.f32 %v1572, 0.0
        %v1605 = vmax.f32 %v1573, 0.0
        %v1606 = vmax.f32 %v1574, 0.0
        %v1607 = vmax.f32 %v1575, 0.0
        %v1608 = vmax.f32 %v1576, 0.0
        %v1609 = vmax.f32 %v1577, 0.0
        %v1610 = vmax.f32 %v1578, 0.0
        %v1611 = vmax.f32 %v1579, 0.0
        %v1612 = vmax.f32 %v1580, 0.0
        %v1613 = vmax.f32 %v1581, 0.0
        %v1614 = vmax.f32 %v1582, 0.0
        %v1615 = vmax.f32 %v1583, 0.0
        %v1616 = vmax.f32 %v1584, 0.0
        %v1617 = vpack.c.bf16 %v1586, %v1585
        %v1618 = vpack.c.bf16 %v1588, %v1587
        %v1619 = vpack.c.bf16 %v1590, %v1589
        %v1620 = vpack.c.bf16 %v1592, %v1591
        %v1621 = vpack.c.bf16 %v1594, %v1593
        %v1622 = vpack.c.bf16 %v1596, %v1595
        %v1623 = vpack.c.bf16 %v1598, %v1597
        %v1624 = vpack.c.bf16 %v1600, %v1599
        %v1625 = vpack.c.bf16 %v1602, %v1601
        %v1626 = vpack.c.bf16 %v1604, %v1603
        %v1627 = vpack.c.bf16 %v1606, %v1605
        %v1628 = vpack.c.bf16 %v1608, %v1607
        %v1629 = vpack.c.bf16 %v1610, %v1609
        %v1630 = vpack.c.bf16 %v1612, %v1611
        %v1631 = vpack.c.bf16 %v1614, %v1613
        %v1632 = vpack.c.bf16 %v1616, %v1615
        %v1634 = vlaneseq
        %v1635 = vshrl.u32 %v1634, 7
        %v1636 = vsub.s32 0, %v1635
        %v1637 = vrot.slane %v785, %v1636
        %v1647 = vunpack.c.l.b16 %v777
        %v1648 = vunpack.c.l.b16 %v778
        %v1649 = vunpack.c.l.b16 %v779
        %v1650 = vunpack.c.l.b16 %v780
        %v1651 = vunpack.c.l.b16 %v781
        %v1652 = vunpack.c.l.b16 %v782
        %v1653 = vunpack.c.l.b16 %v783
        %v1654 = vunpack.c.l.b16 %v784
        %v1655 = vpack.c.b16 %v1648, %v1647
        %v1656 = vpack.c.b16 %v1650, %v1649
        %v1657 = vpack.c.b16 %v1652, %v1651
        %v1658 = vpack.c.b16 %v1654, %v1653
        %vm1663 = vcmask 523264
        %v1665 = vsel %vm1663, %v1617, 0
        %v1668 = vsel %vm1663, %v1618, 0
        %v1671 = vsel %vm1663, %v1619, 0
        %v1674 = vsel %vm1663, %v1620, 0
        %v1677 = vsel %vm1663, %v1621, 0
        %v1680 = vsel %vm1663, %v1622, 0
        %v1683 = vsel %vm1663, %v1623, 0
        %v1686 = vsel %vm1663, %v1624, 0
        %v1689 = vsel %vm1663, %v1625, 0
        %v1692 = vsel %vm1663, %v1626, 0
        %v1695 = vsel %vm1663, %v1627, 0
        %v1698 = vsel %vm1663, %v1628, 0
        %v1701 = vsel %vm1663, %v1629, 0
        %v1704 = vsel %vm1663, %v1630, 0
        %v1707 = vsel %vm1663, %v1631, 0
        %v1710 = vsel %vm1663, %v1632, 0
        %1712 = vmatprep.subr.bf16.mxu0 0
        %1713 = vmatpush1.bf16.msra.mxu0 %v1655
        %1714 = vmatprep.subr.bf16.mxu0 0
        %1715 = vmatpush1.bf16.msra.mxu0 %v1656
        %1716 = vmatprep.subr.bf16.mxu0 0
        %1717 = vmatpush1.bf16.msra.mxu0 %v1657
        %1718 = vmatprep.subr.bf16.mxu0 0
        %1719 = vmatpush1.bf16.msra.mxu0 %v1658
        %1720 = vmatprep.subr.bf16.mxu0 0
        %1721 = vmatpush1.bf16.msra.mxu0 0
        %1722 = vmatprep.subr.bf16.mxu0 0
        %1723 = vmatpush1.bf16.msra.mxu0 0
        %1724 = vmatprep.subr.bf16.mxu0 0
        %1725 = vmatpush1.bf16.msra.mxu0 0
        %1726 = vmatprep.subr.bf16.mxu0 0
        %1727 = vmatpush1.bf16.msra.mxu0 0
        %1728 = vmatprep.subr.bf16.mxu0 0
        %1729 = vmatpush1.bf16.msra.mxu0 0
        %1730 = vmatprep.subr.bf16.mxu0 0
        %1731 = vmatpush1.bf16.msra.mxu0 0
        %1732 = vmatprep.subr.bf16.mxu0 0
        %1733 = vmatpush1.bf16.msra.mxu0 0
        %1734 = vmatprep.subr.bf16.mxu0 0
        %1735 = vmatpush1.bf16.msra.mxu0 0
        %1736 = vmatprep.subr.bf16.mxu0 0
        %1737 = vmatpush1.bf16.msra.mxu0 0
        %1738 = vmatprep.subr.bf16.mxu0 0
        %1739 = vmatpush1.bf16.msra.mxu0 0
        %1740 = vmatprep.subr.bf16.mxu0 0
        %1741 = vmatpush1.bf16.msra.mxu0 0
        %1742 = vmatprep.subr.bf16.mxu0 0
        %1743 = vmatpush1.bf16.msra.mxu0 0
        %1744 = vmatprep.mubr.bf16.mxu0 0
        %1745 = vmatmul.mubr.bf16.gmra.mrb[0].mxu0 %v1665
        %v1746 = vpop.f32.mrb[0].mxu0
        %v1747 = vadd.f32 %v1637, %v1746
        %v1748 = vpop.f32.mrb[0].mxu0
        %v1749 = vpop.f32.mrb[0].mxu0
        %v1750 = vadd.f32 %v1637, %v1749
        %v1751 = vpop.f32.mrb[0].mxu0
        %1752 = vmatprep.mubr.bf16.mxu0 0
        %1753 = vmatmul.mubr.bf16.gmra.mrb[0].mxu0 %v1668
        %v1754 = vpop.f32.mrb[0].mxu0
        %v1755 = vadd.f32 %v1637, %v1754
        %v1756 = vpop.f32.mrb[0].mxu0
        %v1757 = vpop.f32.mrb[0].mxu0
        %v1758 = vadd.f32 %v1637, %v1757
        %v1759 = vpop.f32.mrb[0].mxu0
        %1760 = vmatprep.mubr.bf16.mxu0 0
        %1761 = vmatmul.mubr.bf16.gmra.mrb[0].mxu0 %v1671
        %v1762 = vpop.f32.mrb[0].mxu0
        %v1763 = vadd.f32 %v1637, %v1762
        %v1764 = vpop.f32.mrb[0].mxu0
        %v1765 = vpop.f32.mrb[0].mxu0
        %v1766 = vadd.f32 %v1637, %v1765
        %v1767 = vpop.f32.mrb[0].mxu0
        %1768 = vmatprep.mubr.bf16.mxu0 0
        %1769 = vmatmul.mubr.bf16.gmra.mrb[0].mxu0 %v1674
        %v1770 = vpop.f32.mrb[0].mxu0
        %v1771 = vadd.f32 %v1637, %v1770
        %v1772 = vpop.f32.mrb[0].mxu0
        %v1773 = vpop.f32.mrb[0].mxu0
        %v1774 = vadd.f32 %v1637, %v1773
        %v1775 = vpop.f32.mrb[0].mxu0
        %1776 = vmatprep.mubr.bf16.mxu0 0
        %1777 = vmatmul.mubr.bf16.gmra.mrb[0].mxu0 %v1677
        %v1778 = vpop.f32.mrb[0].mxu0
        %v1779 = vadd.f32 %v1637, %v1778
        %v1780 = vpop.f32.mrb[0].mxu0
        %v1781 = vpop.f32.mrb[0].mxu0
        %v1782 = vadd.f32 %v1637, %v1781
        %v1783 = vpop.f32.mrb[0].mxu0
        %1784 = vmatprep.mubr.bf16.mxu0 0
        %1785 = vmatmul.mubr.bf16.gmra.mrb[0].mxu0 %v1680
        %v1786 = vpop.f32.mrb[0].mxu0
        %v1787 = vadd.f32 %v1637, %v1786
        %v1788 = vpop.f32.mrb[0].mxu0
        %v1789 = vpop.f32.mrb[0].mxu0
        %v1790 = vadd.f32 %v1637, %v1789
        %v1791 = vpop.f32.mrb[0].mxu0
        %1792 = vmatprep.mubr.bf16.mxu0 0
        %1793 = vmatmul.mubr.bf16.gmra.mrb[0].mxu0 %v1683
        %v1794 = vpop.f32.mrb[0].mxu0
        %v1795 = vadd.f32 %v1637, %v1794
        %v1796 = vpop.f32.mrb[0].mxu0
        %v1797 = vpop.f32.mrb[0].mxu0
        %v1798 = vadd.f32 %v1637, %v1797
        %v1799 = vpop.f32.mrb[0].mxu0
        %1800 = vmatprep.mubr.bf16.mxu0 0
        %1801 = vmatmul.mubr.bf16.gmra.mrb[0].mxu0 %v1686
        %v1802 = vpop.f32.mrb[0].mxu0
        %v1803 = vadd.f32 %v1637, %v1802
        %v1804 = vpop.f32.mrb[0].mxu0
        %v1805 = vpop.f32.mrb[0].mxu0
        %v1806 = vadd.f32 %v1637, %v1805
        %v1807 = vpop.f32.mrb[0].mxu0
        %1808 = vmatprep.mubr.bf16.mxu0 0
        %1809 = vmatmul.mubr.bf16.gmra.mrb[0].mxu0 %v1689
        %v1810 = vpop.f32.mrb[0].mxu0
        %v1811 = vadd.f32 %v1637, %v1810
        %v1812 = vpop.f32.mrb[0].mxu0
        %v1813 = vpop.f32.mrb[0].mxu0
        %v1814 = vadd.f32 %v1637, %v1813
        %v1815 = vpop.f32.mrb[0].mxu0
        %1816 = vmatprep.mubr.bf16.mxu0 0
        %1817 = vmatmul.mubr.bf16.gmra.mrb[0].mxu0 %v1692
        %v1818 = vpop.f32.mrb[0].mxu0
        %v1819 = vadd.f32 %v1637, %v1818
        %v1820 = vpop.f32.mrb[0].mxu0
        %v1821 = vpop.f32.mrb[0].mxu0
        %v1822 = vadd.f32 %v1637, %v1821
        %v1823 = vpop.f32.mrb[0].mxu0
        %1824 = vmatprep.mubr.bf16.mxu0 0
        %1825 = vmatmul.mubr.bf16.gmra.mrb[0].mxu0 %v1695
        %v1826 = vpop.f32.mrb[0].mxu0
        %v1827 = vadd.f32 %v1637, %v1826
        %v1828 = vpop.f32.mrb[0].mxu0
        %v1829 = vpop.f32.mrb[0].mxu0
        %v1830 = vadd.f32 %v1637, %v1829
        %v1831 = vpop.f32.mrb[0].mxu0
        %1832 = vmatprep.mubr.bf16.mxu0 0
        %1833 = vmatmul.mubr.bf16.gmra.mrb[0].mxu0 %v1698
        %v1834 = vpop.f32.mrb[0].mxu0
        %v1835 = vadd.f32 %v1637, %v1834
        %v1836 = vpop.f32.mrb[0].mxu0
        %v1837 = vpop.f32.mrb[0].mxu0
        %v1838 = vadd.f32 %v1637, %v1837
        %v1839 = vpop.f32.mrb[0].mxu0
        %1840 = vmatprep.mubr.bf16.mxu0 0
        %1841 = vmatmul.mubr.bf16.gmra.mrb[0].mxu0 %v1701
        %v1842 = vpop.f32.mrb[0].mxu0
        %v1843 = vadd.f32 %v1637, %v1842
        %v1844 = vpop.f32.mrb[0].mxu0
        %v1845 = vpop.f32.mrb[0].mxu0
        %v1846 = vadd.f32 %v1637, %v1845
        %v1847 = vpop.f32.mrb[0].mxu0
        %1848 = vmatprep.mubr.bf16.mxu0 0
        %1849 = vmatmul.mubr.bf16.gmra.mrb[0].mxu0 %v1704
        %v1850 = vpop.f32.mrb[0].mxu0
        %v1851 = vadd.f32 %v1637, %v1850
        %v1852 = vpop.f32.mrb[0].mxu0
        %v1853 = vpop.f32.mrb[0].mxu0
        %v1854 = vadd.f32 %v1637, %v1853
        %v1855 = vpop.f32.mrb[0].mxu0
        %1856 = vmatprep.mubr.bf16.mxu0 0
        %1857 = vmatmul.mubr.bf16.gmra.mrb[0].mxu0 %v1707
        %v1858 = vpop.f32.mrb[0].mxu0
        %v1859 = vadd.f32 %v1637, %v1858
        %v1860 = vpop.f32.mrb[0].mxu0
        %v1861 = vpop.f32.mrb[0].mxu0
        %v1862 = vadd.f32 %v1637, %v1861
        %v1863 = vpop.f32.mrb[0].mxu0
        %1864 = vmatprep.mubr.bf16.mxu0 0
        %1865 = vmatmul.mubr.bf16.gmra.mrb[0].mxu0 %v1710
        %v1866 = vpop.f32.mrb[0].mxu0
        %v1867 = vadd.f32 %v1637, %v1866
        %v1868 = vpop.f32.mrb[0].mxu0
        %v1869 = vpop.f32.mrb[0].mxu0
        %v1870 = vadd.f32 %v1637, %v1869
        %v1871 = vpop.f32.mrb[0].mxu0
        %1872 = vdwg.mxu0
        %v1873 = vmax.f32 %v1747, 0.0
        %v1874 = vmax.f32 %v1750, 0.0
        %v1875 = vmax.f32 %v1755, 0.0
        %v1876 = vmax.f32 %v1758, 0.0
        %v1877 = vmax.f32 %v1763, 0.0
        %v1878 = vmax.f32 %v1766, 0.0
        %v1879 = vmax.f32 %v1771, 0.0
        %v1880 = vmax.f32 %v1774, 0.0
        %v1881 = vmax.f32 %v1779, 0.0
        %v1882 = vmax.f32 %v1782, 0.0
        %v1883 = vmax.f32 %v1787, 0.0
        %v1884 = vmax.f32 %v1790, 0.0
        %v1885 = vmax.f32 %v1795, 0.0
        %v1886 = vmax.f32 %v1798, 0.0
        %v1887 = vmax.f32 %v1803, 0.0
        %v1888 = vmax.f32 %v1806, 0.0
        %v1889 = vmax.f32 %v1811, 0.0
        %v1890 = vmax.f32 %v1814, 0.0
        %v1891 = vmax.f32 %v1819, 0.0
        %v1892 = vmax.f32 %v1822, 0.0
        %v1893 = vmax.f32 %v1827, 0.0
        %v1894 = vmax.f32 %v1830, 0.0
        %v1895 = vmax.f32 %v1835, 0.0
        %v1896 = vmax.f32 %v1838, 0.0
        %v1897 = vmax.f32 %v1843, 0.0
        %v1898 = vmax.f32 %v1846, 0.0
        %v1899 = vmax.f32 %v1851, 0.0
        %v1900 = vmax.f32 %v1854, 0.0
        %v1901 = vmax.f32 %v1859, 0.0
        %v1902 = vmax.f32 %v1862, 0.0
        %v1903 = vmax.f32 %v1867, 0.0
        %v1904 = vmax.f32 %v1870, 0.0
        %v1905 = vpack.c.bf16 %v1874, %v1873
        %v1906 = vpack.c.bf16 %v1876, %v1875
        %v1907 = vpack.c.bf16 %v1878, %v1877
        %v1908 = vpack.c.bf16 %v1880, %v1879
        %v1909 = vpack.c.bf16 %v1882, %v1881
        %v1910 = vpack.c.bf16 %v1884, %v1883
        %v1911 = vpack.c.bf16 %v1886, %v1885
        %v1912 = vpack.c.bf16 %v1888, %v1887
        %v1913 = vpack.c.bf16 %v1890, %v1889
        %v1914 = vpack.c.bf16 %v1892, %v1891
        %v1915 = vpack.c.bf16 %v1894, %v1893
        %v1916 = vpack.c.bf16 %v1896, %v1895
        %v1917 = vpack.c.bf16 %v1898, %v1897
        %v1918 = vpack.c.bf16 %v1900, %v1899
        %v1919 = vpack.c.bf16 %v1902, %v1901
        %v1920 = vpack.c.bf16 %v1904, %v1903
        %v1922 = vlaneseq
        %v1923 = vshrl.u32 %v1922, 7
        %v1924 = vsub.s32 0, %v1923
        %v1925 = vrot.slane %v850, %v1924
        %v1926 = vlaneseq
        %v1927 = vshrl.u32 %v1926, 7
        %v1928 = vsub.s32 1, %v1927
        %v1929 = vrot.slane %v850, %v1928
        %v1930 = vlaneseq
        %v1931 = vshrl.u32 %v1930, 7
        %v1932 = vsub.s32 2, %v1931
        %v1933 = vrot.slane %v850, %v1932
        %v1934 = vlaneseq
        %v1935 = vshrl.u32 %v1934, 7
        %v1936 = vsub.s32 3, %v1935
        %v1937 = vrot.slane %v850, %v1936
        %v1938 = vlaneseq
        %v1939 = vshrl.u32 %v1938, 7
        %v1940 = vsub.s32 4, %v1939
        %v1941 = vrot.slane %v850, %v1940
        %v1942 = vlaneseq
        %v1943 = vshrl.u32 %v1942, 7
        %v1944 = vsub.s32 5, %v1943
        %v1945 = vrot.slane %v850, %v1944
        %v1946 = vlaneseq
        %v1947 = vshrl.u32 %v1946, 7
        %v1948 = vsub.s32 6, %v1947
        %v1949 = vrot.slane %v850, %v1948
        %v1950 = vlaneseq
        %v1951 = vshrl.u32 %v1950, 7
        %v1952 = vsub.s32 7, %v1951
        %v1953 = vrot.slane %v850, %v1952
        %v2026 = vunpack.c.l.b16 %v786
        %v2027 = vunpack.c.h.b16 %v786
        %v2028 = vunpack.c.l.b16 %v787
        %v2029 = vunpack.c.h.b16 %v787
        %v2030 = vunpack.c.l.b16 %v788
        %v2031 = vunpack.c.h.b16 %v788
        %v2032 = vunpack.c.l.b16 %v789
        %v2033 = vunpack.c.h.b16 %v789
        %v2034 = vunpack.c.l.b16 %v790
        %v2035 = vunpack.c.h.b16 %v790
        %v2036 = vunpack.c.l.b16 %v791
        %v2037 = vunpack.c.h.b16 %v791
        %v2038 = vunpack.c.l.b16 %v792
        %v2039 = vunpack.c.h.b16 %v792
        %v2040 = vunpack.c.l.b16 %v793
        %v2041 = vunpack.c.h.b16 %v793
        %v2042 = vunpack.c.l.b16 %v794
        %v2043 = vunpack.c.h.b16 %v794
        %v2044 = vunpack.c.l.b16 %v795
        %v2045 = vunpack.c.h.b16 %v795
        %v2046 = vunpack.c.l.b16 %v796
        %v2047 = vunpack.c.h.b16 %v796
        %v2048 = vunpack.c.l.b16 %v797
        %v2049 = vunpack.c.h.b16 %v797
        %v2050 = vunpack.c.l.b16 %v798
        %v2051 = vunpack.c.h.b16 %v798
        %v2052 = vunpack.c.l.b16 %v799
        %v2053 = vunpack.c.h.b16 %v799
        %v2054 = vunpack.c.l.b16 %v800
        %v2055 = vunpack.c.h.b16 %v800
        %v2056 = vunpack.c.l.b16 %v801
        %v2057 = vunpack.c.h.b16 %v801
        %v2058 = vunpack.c.l.b16 %v802
        %v2059 = vunpack.c.h.b16 %v802
        %v2060 = vunpack.c.l.b16 %v803
        %v2061 = vunpack.c.h.b16 %v803
        %v2062 = vunpack.c.l.b16 %v804
        %v2063 = vunpack.c.h.b16 %v804
        %v2064 = vunpack.c.l.b16 %v805
        %v2065 = vunpack.c.h.b16 %v805
        %v2066 = vunpack.c.l.b16 %v806
        %v2067 = vunpack.c.h.b16 %v806
        %v2068 = vunpack.c.l.b16 %v807
        %v2069 = vunpack.c.h.b16 %v807
        %v2070 = vunpack.c.l.b16 %v808
        %v2071 = vunpack.c.h.b16 %v808
        %v2072 = vunpack.c.l.b16 %v809
        %v2073 = vunpack.c.h.b16 %v809
        %v2074 = vunpack.c.l.b16 %v810
        %v2075 = vunpack.c.h.b16 %v810
        %v2076 = vunpack.c.l.b16 %v811
        %v2077 = vunpack.c.h.b16 %v811
        %v2078 = vunpack.c.l.b16 %v812
        %v2079 = vunpack.c.h.b16 %v812
        %v2080 = vunpack.c.l.b16 %v813
        %v2081 = vunpack.c.h.b16 %v813
        %v2082 = vunpack.c.l.b16 %v814
        %v2083 = vunpack.c.h.b16 %v814
        %v2084 = vunpack.c.l.b16 %v815
        %v2085 = vunpack.c.h.b16 %v815
        %v2086 = vunpack.c.l.b16 %v816
        %v2087 = vunpack.c.h.b16 %v816
        %v2088 = vunpack.c.l.b16 %v817
        %v2089 = vunpack.c.h.b16 %v817
        %v2090 = vunpack.c.l.b16 %v818
        %v2091 = vunpack.c.h.b16 %v818
        %v2092 = vunpack.c.l.b16 %v819
        %v2093 = vunpack.c.h.b16 %v819
        %v2094 = vunpack.c.l.b16 %v820
        %v2095 = vunpack.c.h.b16 %v820
        %v2096 = vunpack.c.l.b16 %v821
        %v2097 = vunpack.c.h.b16 %v821
        %v2098 = vunpack.c.l.b16 %v822
        %v2099 = vunpack.c.h.b16 %v822
        %v2100 = vunpack.c.l.b16 %v823
        %v2101 = vunpack.c.h.b16 %v823
        %v2102 = vunpack.c.l.b16 %v824
        %v2103 = vunpack.c.h.b16 %v824
        %v2104 = vunpack.c.l.b16 %v825
        %v2105 = vunpack.c.h.b16 %v825
        %v2106 = vunpack.c.l.b16 %v826
        %v2107 = vunpack.c.h.b16 %v826
        %v2108 = vunpack.c.l.b16 %v827
        %v2109 = vunpack.c.h.b16 %v827
        %v2110 = vunpack.c.l.b16 %v828
        %v2111 = vunpack.c.h.b16 %v828
        %v2112 = vunpack.c.l.b16 %v829
        %v2113 = vunpack.c.h.b16 %v829
        %v2114 = vunpack.c.l.b16 %v830
        %v2115 = vunpack.c.h.b16 %v830
        %v2116 = vunpack.c.l.b16 %v831
        %v2117 = vunpack.c.h.b16 %v831
        %v2118 = vunpack.c.l.b16 %v832
        %v2119 = vunpack.c.h.b16 %v832
        %v2120 = vunpack.c.l.b16 %v833
        %v2121 = vunpack.c.h.b16 %v833
        %v2122 = vunpack.c.l.b16 %v834
        %v2123 = vunpack.c.h.b16 %v834
        %v2124 = vunpack.c.l.b16 %v835
        %v2125 = vunpack.c.h.b16 %v835
        %v2126 = vunpack.c.l.b16 %v836
        %v2127 = vunpack.c.h.b16 %v836
        %v2128 = vunpack.c.l.b16 %v837
        %v2129 = vunpack.c.h.b16 %v837
        %v2130 = vunpack.c.l.b16 %v838
        %v2131 = vunpack.c.h.b16 %v838
        %v2132 = vunpack.c.l.b16 %v839
        %v2133 = vunpack.c.h.b16 %v839
        %v2134 = vunpack.c.l.b16 %v840
        %v2135 = vunpack.c.h.b16 %v840
        %v2136 = vunpack.c.l.b16 %v841
        %v2137 = vunpack.c.h.b16 %v841
        %v2138 = vunpack.c.l.b16 %v842
        %v2139 = vunpack.c.h.b16 %v842
        %v2140 = vunpack.c.l.b16 %v843
        %v2141 = vunpack.c.h.b16 %v843
        %v2142 = vunpack.c.l.b16 %v844
        %v2143 = vunpack.c.h.b16 %v844
        %v2144 = vunpack.c.l.b16 %v845
        %v2145 = vunpack.c.h.b16 %v845
        %v2146 = vunpack.c.l.b16 %v846
        %v2147 = vunpack.c.h.b16 %v846
        %v2148 = vunpack.c.l.b16 %v847
        %v2149 = vunpack.c.h.b16 %v847
        %v2150 = vunpack.c.l.b16 %v848
        %v2151 = vunpack.c.h.b16 %v848
        %v2152 = vunpack.c.l.b16 %v849
        %v2153 = vunpack.c.h.b16 %v849
        %v2154 = vpack.c.b16 %v2034, %v2026
        %v2155 = vpack.c.b16 %v2035, %v2027
        %v2156 = vpack.c.b16 %v2036, %v2028
        %v2157 = vpack.c.b16 %v2037, %v2029
        %v2158 = vpack.c.b16 %v2038, %v2030
        %v2159 = vpack.c.b16 %v2039, %v2031
        %v2160 = vpack.c.b16 %v2040, %v2032
        %v2161 = vpack.c.b16 %v2041, %v2033
        %v2162 = vpack.c.b16 %v2050, %v2042
        %v2163 = vpack.c.b16 %v2051, %v2043
        %v2164 = vpack.c.b16 %v2052, %v2044
        %v2165 = vpack.c.b16 %v2053, %v2045
        %v2166 = vpack.c.b16 %v2054, %v2046
        %v2167 = vpack.c.b16 %v2055, %v2047
        %v2168 = vpack.c.b16 %v2056, %v2048
        %v2169 = vpack.c.b16 %v2057, %v2049
        %v2170 = vpack.c.b16 %v2066, %v2058
        %v2171 = vpack.c.b16 %v2067, %v2059
        %v2172 = vpack.c.b16 %v2068, %v2060
        %v2173 = vpack.c.b16 %v2069, %v2061
        %v2174 = vpack.c.b16 %v2070, %v2062
        %v2175 = vpack.c.b16 %v2071, %v2063
        %v2176 = vpack.c.b16 %v2072, %v2064
        %v2177 = vpack.c.b16 %v2073, %v2065
        %v2178 = vpack.c.b16 %v2082, %v2074
        %v2179 = vpack.c.b16 %v2083, %v2075
        %v2180 = vpack.c.b16 %v2084, %v2076
        %v2181 = vpack.c.b16 %v2085, %v2077
        %v2182 = vpack.c.b16 %v2086, %v2078
        %v2183 = vpack.c.b16 %v2087, %v2079
        %v2184 = vpack.c.b16 %v2088, %v2080
        %v2185 = vpack.c.b16 %v2089, %v2081
        %v2186 = vpack.c.b16 %v2098, %v2090
        %v2187 = vpack.c.b16 %v2099, %v2091
        %v2188 = vpack.c.b16 %v2100, %v2092
        %v2189 = vpack.c.b16 %v2101, %v2093
        %v2190 = vpack.c.b16 %v2102, %v2094
        %v2191 = vpack.c.b16 %v2103, %v2095
        %v2192 = vpack.c.b16 %v2104, %v2096
        %v2193 = vpack.c.b16 %v2105, %v2097
        %v2194 = vpack.c.b16 %v2114, %v2106
        %v2195 = vpack.c.b16 %v2115, %v2107
        %v2196 = vpack.c.b16 %v2116, %v2108
        %v2197 = vpack.c.b16 %v2117, %v2109
        %v2198 = vpack.c.b16 %v2118, %v2110
        %v2199 = vpack.c.b16 %v2119, %v2111
        %v2200 = vpack.c.b16 %v2120, %v2112
        %v2201 = vpack.c.b16 %v2121, %v2113
        %v2202 = vpack.c.b16 %v2130, %v2122
        %v2203 = vpack.c.b16 %v2131, %v2123
        %v2204 = vpack.c.b16 %v2132, %v2124
        %v2205 = vpack.c.b16 %v2133, %v2125
        %v2206 = vpack.c.b16 %v2134, %v2126
        %v2207 = vpack.c.b16 %v2135, %v2127
        %v2208 = vpack.c.b16 %v2136, %v2128
        %v2209 = vpack.c.b16 %v2137, %v2129
        %v2210 = vpack.c.b16 %v2146, %v2138
        %v2211 = vpack.c.b16 %v2147, %v2139
        %v2212 = vpack.c.b16 %v2148, %v2140
        %v2213 = vpack.c.b16 %v2149, %v2141
        %v2214 = vpack.c.b16 %v2150, %v2142
        %v2215 = vpack.c.b16 %v2151, %v2143
        %v2216 = vpack.c.b16 %v2152, %v2144
        %v2217 = vpack.c.b16 %v2153, %v2145
        %2282 = vmatprep.subr.bf16.mxu0 %v2155
        %2283 = vmatpush1.bf16.msra.mxu0 %v2154
        %2284 = vmatprep.subr.bf16.mxu0 %v2163
        %2285 = vmatpush1.bf16.msra.mxu0 %v2162
        %2286 = vmatprep.subr.bf16.mxu0 %v2171
        %2287 = vmatpush1.bf16.msra.mxu0 %v2170
        %2288 = vmatprep.subr.bf16.mxu0 %v2179
        %2289 = vmatpush1.bf16.msra.mxu0 %v2178
        %2290 = vmatprep.subr.bf16.mxu0 %v2187
        %2291 = vmatpush1.bf16.msra.mxu0 %v2186
        %2292 = vmatprep.subr.bf16.mxu0 %v2195
        %2293 = vmatpush1.bf16.msra.mxu0 %v2194
        %2294 = vmatprep.subr.bf16.mxu0 %v2203
        %2295 = vmatpush1.bf16.msra.mxu0 %v2202
        %2296 = vmatprep.subr.bf16.mxu0 %v2211
        %2297 = vmatpush1.bf16.msra.mxu0 %v2210
        %2298 = vmatprep.subr.bf16.mxu0 0
        %2299 = vmatpush1.bf16.msra.mxu0 0
        %2300 = vmatprep.subr.bf16.mxu0 0
        %2301 = vmatpush1.bf16.msra.mxu0 0
        %2302 = vmatprep.subr.bf16.mxu0 0
        %2303 = vmatpush1.bf16.msra.mxu0 0
        %2304 = vmatprep.subr.bf16.mxu0 0
        %2305 = vmatpush1.bf16.msra.mxu0 0
        %2306 = vmatprep.subr.bf16.mxu0 0
        %2307 = vmatpush1.bf16.msra.mxu0 0
        %2308 = vmatprep.subr.bf16.mxu0 0
        %2309 = vmatpush1.bf16.msra.mxu0 0
        %2310 = vmatprep.subr.bf16.mxu0 0
        %2311 = vmatpush1.bf16.msra.mxu0 0
        %2312 = vmatprep.subr.bf16.mxu0 0
        %2313 = vmatpush1.bf16.msra.mxu0 0
        %2314 = vmatprep.mubr.bf16.mxu0 0
        %2315 = vmatmul.mubr.bf16.gmra.mrb[0].mxu0 %v1905
        %v2316 = vpop.f32.mrb[0].mxu0
        %v2317 = vadd.f32 %v1925, %v2316
        %v2318 = vpop.f32.mrb[0].mxu0
        %v2319 = vadd.f32 %v1929, %v2318
        %v2320 = vpop.f32.mrb[0].mxu0
        %v2321 = vadd.f32 %v1925, %v2320
        %v2322 = vpop.f32.mrb[0].mxu0
        %v2323 = vadd.f32 %v1929, %v2322
        %2324 = vmatprep.mubr.bf16.mxu0 0
        %2325 = vmatmul.mubr.bf16.gmra.mrb[0].mxu0 %v1906
        %v2326 = vpop.f32.mrb[0].mxu0
        %v2327 = vadd.f32 %v1925, %v2326
        %v2328 = vpop.f32.mrb[0].mxu0
        %v2329 = vadd.f32 %v1929, %v2328
        %v2330 = vpop.f32.mrb[0].mxu0
        %v2331 = vadd.f32 %v1925, %v2330
        %v2332 = vpop.f32.mrb[0].mxu0
        %v2333 = vadd.f32 %v1929, %v2332
        %2334 = vmatprep.mubr.bf16.mxu0 0
        %2335 = vmatmul.mubr.bf16.gmra.mrb[0].mxu0 %v1907
        %v2336 = vpop.f32.mrb[0].mxu0
        %v2337 = vadd.f32 %v1925, %v2336
        %v2338 = vpop.f32.mrb[0].mxu0
        %v2339 = vadd.f32 %v1929, %v2338
        %v2340 = vpop.f32.mrb[0].mxu0
        %v2341 = vadd.f32 %v1925, %v2340
        %v2342 = vpop.f32.mrb[0].mxu0
        %v2343 = vadd.f32 %v1929, %v2342
        %2344 = vmatprep.mubr.bf16.mxu0 0
        %2345 = vmatmul.mubr.bf16.gmra.mrb[0].mxu0 %v1908
        %v2346 = vpop.f32.mrb[0].mxu0
        %v2347 = vadd.f32 %v1925, %v2346
        %v2348 = vpop.f32.mrb[0].mxu0
        %v2349 = vadd.f32 %v1929, %v2348
        %v2350 = vpop.f32.mrb[0].mxu0
        %v2351 = vadd.f32 %v1925, %v2350
        %v2352 = vpop.f32.mrb[0].mxu0
        %v2353 = vadd.f32 %v1929, %v2352
        %2354 = vmatprep.mubr.bf16.mxu0 0
        %2355 = vmatmul.mubr.bf16.gmra.mrb[0].mxu0 %v1909
        %v2356 = vpop.f32.mrb[0].mxu0
        %v2357 = vadd.f32 %v1925, %v2356
        %v2358 = vpop.f32.mrb[0].mxu0
        %v2359 = vadd.f32 %v1929, %v2358
        %v2360 = vpop.f32.mrb[0].mxu0
        %v2361 = vadd.f32 %v1925, %v2360
        %v2362 = vpop.f32.mrb[0].mxu0
        %v2363 = vadd.f32 %v1929, %v2362
        %2364 = vmatprep.mubr.bf16.mxu0 0
        %2365 = vmatmul.mubr.bf16.gmra.mrb[0].mxu0 %v1910
        %v2366 = vpop.f32.mrb[0].mxu0
        %v2367 = vadd.f32 %v1925, %v2366
        %v2368 = vpop.f32.mrb[0].mxu0
        %v2369 = vadd.f32 %v1929, %v2368
        %v2370 = vpop.f32.mrb[0].mxu0
        %v2371 = vadd.f32 %v1925, %v2370
        %v2372 = vpop.f32.mrb[0].mxu0
        %v2373 = vadd.f32 %v1929, %v2372
        %2374 = vmatprep.mubr.bf16.mxu0 0
        %2375 = vmatmul.mubr.bf16.gmra.mrb[0].mxu0 %v1911
        %v2376 = vpop.f32.mrb[0].mxu0
        %v2377 = vadd.f32 %v1925, %v2376
        %v2378 = vpop.f32.mrb[0].mxu0
        %v2379 = vadd.f32 %v1929, %v2378
        %v2380 = vpop.f32.mrb[0].mxu0
        %v2381 = vadd.f32 %v1925, %v2380
        %v2382 = vpop.f32.mrb[0].mxu0
        %v2383 = vadd.f32 %v1929, %v2382
        %2384 = vmatprep.mubr.bf16.mxu0 0
        %2385 = vmatmul.mubr.bf16.gmra.mrb[0].mxu0 %v1912
        %v2386 = vpop.f32.mrb[0].mxu0
        %v2387 = vadd.f32 %v1925, %v2386
        %v2388 = vpop.f32.mrb[0].mxu0
        %v2389 = vadd.f32 %v1929, %v2388
        %v2390 = vpop.f32.mrb[0].mxu0
        %v2391 = vadd.f32 %v1925, %v2390
        %v2392 = vpop.f32.mrb[0].mxu0
        %v2393 = vadd.f32 %v1929, %v2392
        %2394 = vmatprep.mubr.bf16.mxu0 0
        %2395 = vmatmul.mubr.bf16.gmra.mrb[0].mxu0 %v1913
        %v2396 = vpop.f32.mrb[0].mxu0
        %v2397 = vadd.f32 %v1925, %v2396
        %v2398 = vpop.f32.mrb[0].mxu0
        %v2399 = vadd.f32 %v1929, %v2398
        %v2400 = vpop.f32.mrb[0].mxu0
        %v2401 = vadd.f32 %v1925, %v2400
        %v2402 = vpop.f32.mrb[0].mxu0
        %v2403 = vadd.f32 %v1929, %v2402
        %2404 = vmatprep.mubr.bf16.mxu0 0
        %2405 = vmatmul.mubr.bf16.gmra.mrb[0].mxu0 %v1914
        %v2406 = vpop.f32.mrb[0].mxu0
        %v2407 = vadd.f32 %v1925, %v2406
        %v2408 = vpop.f32.mrb[0].mxu0
        %v2409 = vadd.f32 %v1929, %v2408
        %v2410 = vpop.f32.mrb[0].mxu0
        %v2411 = vadd.f32 %v1925, %v2410
        %v2412 = vpop.f32.mrb[0].mxu0
        %v2413 = vadd.f32 %v1929, %v2412
        %2414 = vmatprep.mubr.bf16.mxu0 0
        %2415 = vmatmul.mubr.bf16.gmra.mrb[0].mxu0 %v1915
        %v2416 = vpop.f32.mrb[0].mxu0
        %v2417 = vadd.f32 %v1925, %v2416
        %v2418 = vpop.f32.mrb[0].mxu0
        %v2419 = vadd.f32 %v1929, %v2418
        %v2420 = vpop.f32.mrb[0].mxu0
        %v2421 = vadd.f32 %v1925, %v2420
        %v2422 = vpop.f32.mrb[0].mxu0
        %v2423 = vadd.f32 %v1929, %v2422
        %2424 = vmatprep.mubr.bf16.mxu0 0
        %2425 = vmatmul.mubr.bf16.gmra.mrb[0].mxu0 %v1916
        %v2426 = vpop.f32.mrb[0].mxu0
        %v2427 = vadd.f32 %v1925, %v2426
        %v2428 = vpop.f32.mrb[0].mxu0
        %v2429 = vadd.f32 %v1929, %v2428
        %v2430 = vpop.f32.mrb[0].mxu0
        %v2431 = vadd.f32 %v1925, %v2430
        %v2432 = vpop.f32.mrb[0].mxu0
        %v2433 = vadd.f32 %v1929, %v2432
        %2434 = vmatprep.mubr.bf16.mxu0 0
        %2435 = vmatmul.mubr.bf16.gmra.mrb[0].mxu0 %v1917
        %v2436 = vpop.f32.mrb[0].mxu0
        %v2437 = vadd.f32 %v1925, %v2436
        %v2438 = vpop.f32.mrb[0].mxu0
        %v2439 = vadd.f32 %v1929, %v2438
        %v2440 = vpop.f32.mrb[0].mxu0
        %v2441 = vadd.f32 %v1925, %v2440
        %v2442 = vpop.f32.mrb[0].mxu0
        %v2443 = vadd.f32 %v1929, %v2442
        %2444 = vmatprep.mubr.bf16.mxu0 0
        %2445 = vmatmul.mubr.bf16.gmra.mrb[0].mxu0 %v1918
        %v2446 = vpop.f32.mrb[0].mxu0
        %v2447 = vadd.f32 %v1925, %v2446
        %v2448 = vpop.f32.mrb[0].mxu0
        %v2449 = vadd.f32 %v1929, %v2448
        %v2450 = vpop.f32.mrb[0].mxu0
        %v2451 = vadd.f32 %v1925, %v2450
        %v2452 = vpop.f32.mrb[0].mxu0
        %v2453 = vadd.f32 %v1929, %v2452
        %2454 = vmatprep.mubr.bf16.mxu0 0
        %2455 = vmatmul.mubr.bf16.gmra.mrb[0].mxu0 %v1919
        %v2456 = vpop.f32.mrb[0].mxu0
        %v2457 = vadd.f32 %v1925, %v2456
        %v2458 = vpop.f32.mrb[0].mxu0
        %v2459 = vadd.f32 %v1929, %v2458
        %v2460 = vpop.f32.mrb[0].mxu0
        %v2461 = vadd.f32 %v1925, %v2460
        %v2462 = vpop.f32.mrb[0].mxu0
        %v2463 = vadd.f32 %v1929, %v2462
        %2464 = vmatprep.mubr.bf16.mxu0 0
        %2465 = vmatmul.mubr.bf16.gmra.mrb[0].mxu0 %v1920
        %v2466 = vpop.f32.mrb[0].mxu0
        %v2467 = vadd.f32 %v1925, %v2466
        %v2468 = vpop.f32.mrb[0].mxu0
        %v2469 = vadd.f32 %v1929, %v2468
        %v2470 = vpop.f32.mrb[0].mxu0
        %v2471 = vadd.f32 %v1925, %v2470
        %v2472 = vpop.f32.mrb[0].mxu0
        %v2473 = vadd.f32 %v1929, %v2472
        %2474 = vdwg.mxu0
        %2475 = vmatprep.subr.bf16.mxu0 %v2157
        %2476 = vmatpush1.bf16.msra.mxu0 %v2156
        %2477 = vmatprep.subr.bf16.mxu0 %v2165
        %2478 = vmatpush1.bf16.msra.mxu0 %v2164
        %2479 = vmatprep.subr.bf16.mxu0 %v2173
        %2480 = vmatpush1.bf16.msra.mxu0 %v2172
        %2481 = vmatprep.subr.bf16.mxu0 %v2181
        %2482 = vmatpush1.bf16.msra.mxu0 %v2180
        %2483 = vmatprep.subr.bf16.mxu0 %v2189
        %2484 = vmatpush1.bf16.msra.mxu0 %v2188
        %2485 = vmatprep.subr.bf16.mxu0 %v2197
        %2486 = vmatpush1.bf16.msra.mxu0 %v2196
        %2487 = vmatprep.subr.bf16.mxu0 %v2205
        %2488 = vmatpush1.bf16.msra.mxu0 %v2204
        %2489 = vmatprep.subr.bf16.mxu0 %v2213
        %2490 = vmatpush1.bf16.msra.mxu0 %v2212
        %2491 = vmatprep.subr.bf16.mxu0 0
        %2492 = vmatpush1.bf16.msra.mxu0 0
        %2493 = vmatprep.subr.bf16.mxu0 0
        %2494 = vmatpush1.bf16.msra.mxu0 0
        %2495 = vmatprep.subr.bf16.mxu0 0
        %2496 = vmatpush1.bf16.msra.mxu0 0
        %2497 = vmatprep.subr.bf16.mxu0 0
        %2498 = vmatpush1.bf16.msra.mxu0 0
        %2499 = vmatprep.subr.bf16.mxu0 0
        %2500 = vmatpush1.bf16.msra.mxu0 0
        %2501 = vmatprep.subr.bf16.mxu0 0
        %2502 = vmatpush1.bf16.msra.mxu0 0
        %2503 = vmatprep.subr.bf16.mxu0 0
        %2504 = vmatpush1.bf16.msra.mxu0 0
        %2505 = vmatprep.subr.bf16.mxu0 0
        %2506 = vmatpush1.bf16.msra.mxu0 0
        %2507 = vmatprep.mubr.bf16.mxu0 0
        %2508 = vmatmul.mubr.bf16.gmra.mrb[0].mxu0 %v1905
        %v2509 = vpop.f32.mrb[0].mxu0
        %v2510 = vadd.f32 %v1933, %v2509
        %v2511 = vpop.f32.mrb[0].mxu0
        %v2512 = vadd.f32 %v1937, %v2511
        %v2513 = vpop.f32.mrb[0].mxu0
        %v2514 = vadd.f32 %v1933, %v2513
        %v2515 = vpop.f32.mrb[0].mxu0
        %v2516 = vadd.f32 %v1937, %v2515
        %2517 = vmatprep.mubr.bf16.mxu0 0
        %2518 = vmatmul.mubr.bf16.gmra.mrb[0].mxu0 %v1906
        %v2519 = vpop.f32.mrb[0].mxu0
        %v2520 = vadd.f32 %v1933, %v2519
        %v2521 = vpop.f32.mrb[0].mxu0
        %v2522 = vadd.f32 %v1937, %v2521
        %v2523 = vpop.f32.mrb[0].mxu0
        %v2524 = vadd.f32 %v1933, %v2523
        %v2525 = vpop.f32.mrb[0].mxu0
        %v2526 = vadd.f32 %v1937, %v2525
        %2527 = vmatprep.mubr.bf16.mxu0 0
        %2528 = vmatmul.mubr.bf16.gmra.mrb[0].mxu0 %v1907
        %v2529 = vpop.f32.mrb[0].mxu0
        %v2530 = vadd.f32 %v1933, %v2529
        %v2531 = vpop.f32.mrb[0].mxu0
        %v2532 = vadd.f32 %v1937, %v2531
        %v2533 = vpop.f32.mrb[0].mxu0
        %v2534 = vadd.f32 %v1933, %v2533
        %v2535 = vpop.f32.mrb[0].mxu0
        %v2536 = vadd.f32 %v1937, %v2535
        %2537 = vmatprep.mubr.bf16.mxu0 0
        %2538 = vmatmul.mubr.bf16.gmra.mrb[0].mxu0 %v1908
        %v2539 = vpop.f32.mrb[0].mxu0
        %v2540 = vadd.f32 %v1933, %v2539
        %v2541 = vpop.f32.mrb[0].mxu0
        %v2542 = vadd.f32 %v1937, %v2541
        %v2543 = vpop.f32.mrb[0].mxu0
        %v2544 = vadd.f32 %v1933, %v2543
        %v2545 = vpop.f32.mrb[0].mxu0
        %v2546 = vadd.f32 %v1937, %v2545
        %2547 = vmatprep.mubr.bf16.mxu0 0
        %2548 = vmatmul.mubr.bf16.gmra.mrb[0].mxu0 %v1909
        %v2549 = vpop.f32.mrb[0].mxu0
        %v2550 = vadd.f32 %v1933, %v2549
        %v2551 = vpop.f32.mrb[0].mxu0
        %v2552 = vadd.f32 %v1937, %v2551
        %v2553 = vpop.f32.mrb[0].mxu0
        %v2554 = vadd.f32 %v1933, %v2553
        %v2555 = vpop.f32.mrb[0].mxu0
        %v2556 = vadd.f32 %v1937, %v2555
        %2557 = vmatprep.mubr.bf16.mxu0 0
        %2558 = vmatmul.mubr.bf16.gmra.mrb[0].mxu0 %v1910
        %v2559 = vpop.f32.mrb[0].mxu0
        %v2560 = vadd.f32 %v1933, %v2559
        %v2561 = vpop.f32.mrb[0].mxu0
        %v2562 = vadd.f32 %v1937, %v2561
        %v2563 = vpop.f32.mrb[0].mxu0
        %v2564 = vadd.f32 %v1933, %v2563
        %v2565 = vpop.f32.mrb[0].mxu0
        %v2566 = vadd.f32 %v1937, %v2565
        %2567 = vmatprep.mubr.bf16.mxu0 0
        %2568 = vmatmul.mubr.bf16.gmra.mrb[0].mxu0 %v1911
        %v2569 = vpop.f32.mrb[0].mxu0
        %v2570 = vadd.f32 %v1933, %v2569
        %v2571 = vpop.f32.mrb[0].mxu0
        %v2572 = vadd.f32 %v1937, %v2571
        %v2573 = vpop.f32.mrb[0].mxu0
        %v2574 = vadd.f32 %v1933, %v2573
        %v2575 = vpop.f32.mrb[0].mxu0
        %v2576 = vadd.f32 %v1937, %v2575
        %2577 = vmatprep.mubr.bf16.mxu0 0
        %2578 = vmatmul.mubr.bf16.gmra.mrb[0].mxu0 %v1912
        %v2579 = vpop.f32.mrb[0].mxu0
        %v2580 = vadd.f32 %v1933, %v2579
        %v2581 = vpop.f32.mrb[0].mxu0
        %v2582 = vadd.f32 %v1937, %v2581
        %v2583 = vpop.f32.mrb[0].mxu0
        %v2584 = vadd.f32 %v1933, %v2583
        %v2585 = vpop.f32.mrb[0].mxu0
        %v2586 = vadd.f32 %v1937, %v2585
        %2587 = vmatprep.mubr.bf16.mxu0 0
        %2588 = vmatmul.mubr.bf16.gmra.mrb[0].mxu0 %v1913
        %v2589 = vpop.f32.mrb[0].mxu0
        %v2590 = vadd.f32 %v1933, %v2589
        %v2591 = vpop.f32.mrb[0].mxu0
        %v2592 = vadd.f32 %v1937, %v2591
        %v2593 = vpop.f32.mrb[0].mxu0
        %v2594 = vadd.f32 %v1933, %v2593
        %v2595 = vpop.f32.mrb[0].mxu0
        %v2596 = vadd.f32 %v1937, %v2595
        %2597 = vmatprep.mubr.bf16.mxu0 0
        %2598 = vmatmul.mubr.bf16.gmra.mrb[0].mxu0 %v1914
        %v2599 = vpop.f32.mrb[0].mxu0
        %v2600 = vadd.f32 %v1933, %v2599
        %v2601 = vpop.f32.mrb[0].mxu0
        %v2602 = vadd.f32 %v1937, %v2601
        %v2603 = vpop.f32.mrb[0].mxu0
        %v2604 = vadd.f32 %v1933, %v2603
        %v2605 = vpop.f32.mrb[0].mxu0
        %v2606 = vadd.f32 %v1937, %v2605
        %2607 = vmatprep.mubr.bf16.mxu0 0
        %2608 = vmatmul.mubr.bf16.gmra.mrb[0].mxu0 %v1915
        %v2609 = vpop.f32.mrb[0].mxu0
        %v2610 = vadd.f32 %v1933, %v2609
        %v2611 = vpop.f32.mrb[0].mxu0
        %v2612 = vadd.f32 %v1937, %v2611
        %v2613 = vpop.f32.mrb[0].mxu0
        %v2614 = vadd.f32 %v1933, %v2613
        %v2615 = vpop.f32.mrb[0].mxu0
        %v2616 = vadd.f32 %v1937, %v2615
        %2617 = vmatprep.mubr.bf16.mxu0 0
        %2618 = vmatmul.mubr.bf16.gmra.mrb[0].mxu0 %v1916
        %v2619 = vpop.f32.mrb[0].mxu0
        %v2620 = vadd.f32 %v1933, %v2619
        %v2621 = vpop.f32.mrb[0].mxu0
        %v2622 = vadd.f32 %v1937, %v2621
        %v2623 = vpop.f32.mrb[0].mxu0
        %v2624 = vadd.f32 %v1933, %v2623
        %v2625 = vpop.f32.mrb[0].mxu0
        %v2626 = vadd.f32 %v1937, %v2625
        %2627 = vmatprep.mubr.bf16.mxu0 0
        %2628 = vmatmul.mubr.bf16.gmra.mrb[0].mxu0 %v1917
        %v2629 = vpop.f32.mrb[0].mxu0
        %v2630 = vadd.f32 %v1933, %v2629
        %v2631 = vpop.f32.mrb[0].mxu0
        %v2632 = vadd.f32 %v1937, %v2631
        %v2633 = vpop.f32.mrb[0].mxu0
        %v2634 = vadd.f32 %v1933, %v2633
        %v2635 = vpop.f32.mrb[0].mxu0
        %v2636 = vadd.f32 %v1937, %v2635
        %2637 = vmatprep.mubr.bf16.mxu0 0
        %2638 = vmatmul.mubr.bf16.gmra.mrb[0].mxu0 %v1918
        %v2639 = vpop.f32.mrb[0].mxu0
        %v2640 = vadd.f32 %v1933, %v2639
        %v2641 = vpop.f32.mrb[0].mxu0
        %v2642 = vadd.f32 %v1937, %v2641
        %v2643 = vpop.f32.mrb[0].mxu0
        %v2644 = vadd.f32 %v1933, %v2643
        %v2645 = vpop.f32.mrb[0].mxu0
        %v2646 = vadd.f32 %v1937, %v2645
        %2647 = vmatprep.mubr.bf16.mxu0 0
        %2648 = vmatmul.mubr.bf16.gmra.mrb[0].mxu0 %v1919
        %v2649 = vpop.f32.mrb[0].mxu0
        %v2650 = vadd.f32 %v1933, %v2649
        %v2651 = vpop.f32.mrb[0].mxu0
        %v2652 = vadd.f32 %v1937, %v2651
        %v2653 = vpop.f32.mrb[0].mxu0
        %v2654 = vadd.f32 %v1933, %v2653
        %v2655 = vpop.f32.mrb[0].mxu0
        %v2656 = vadd.f32 %v1937, %v2655
        %2657 = vmatprep.mubr.bf16.mxu0 0
        %2658 = vmatmul.mubr.bf16.gmra.mrb[0].mxu0 %v1920
        %v2659 = vpop.f32.mrb[0].mxu0
        %v2660 = vadd.f32 %v1933, %v2659
        %v2661 = vpop.f32.mrb[0].mxu0
        %v2662 = vadd.f32 %v1937, %v2661
        %v2663 = vpop.f32.mrb[0].mxu0
        %v2664 = vadd.f32 %v1933, %v2663
        %v2665 = vpop.f32.mrb[0].mxu0
        %v2666 = vadd.f32 %v1937, %v2665
        %2667 = vdwg.mxu0
        %2668 = vmatprep.subr.bf16.mxu0 %v2159
        %2669 = vmatpush1.bf16.msra.mxu0 %v2158
        %2670 = vmatprep.subr.bf16.mxu0 %v2167
        %2671 = vmatpush1.bf16.msra.mxu0 %v2166
        %2672 = vmatprep.subr.bf16.mxu0 %v2175
        %2673 = vmatpush1.bf16.msra.mxu0 %v2174
        %2674 = vmatprep.subr.bf16.mxu0 %v2183
        %2675 = vmatpush1.bf16.msra.mxu0 %v2182
        %2676 = vmatprep.subr.bf16.mxu0 %v2191
        %2677 = vmatpush1.bf16.msra.mxu0 %v2190
        %2678 = vmatprep.subr.bf16.mxu0 %v2199
        %2679 = vmatpush1.bf16.msra.mxu0 %v2198
        %2680 = vmatprep.subr.bf16.mxu0 %v2207
        %2681 = vmatpush1.bf16.msra.mxu0 %v2206
        %2682 = vmatprep.subr.bf16.mxu0 %v2215
        %2683 = vmatpush1.bf16.msra.mxu0 %v2214
        %2684 = vmatprep.subr.bf16.mxu0 0
        %2685 = vmatpush1.bf16.msra.mxu0 0
        %2686 = vmatprep.subr.bf16.mxu0 0
        %2687 = vmatpush1.bf16.msra.mxu0 0
        %2688 = vmatprep.subr.bf16.mxu0 0
        %2689 = vmatpush1.bf16.msra.mxu0 0
        %2690 = vmatprep.subr.bf16.mxu0 0
        %2691 = vmatpush1.bf16.msra.mxu0 0
        %2692 = vmatprep.subr.bf16.mxu0 0
        %2693 = vmatpush1.bf16.msra.mxu0 0
        %2694 = vmatprep.subr.bf16.mxu0 0
        %2695 = vmatpush1.bf16.msra.mxu0 0
        %2696 = vmatprep.subr.bf16.mxu0 0
        %2697 = vmatpush1.bf16.msra.mxu0 0
        %2698 = vmatprep.subr.bf16.mxu0 0
        %2699 = vmatpush1.bf16.msra.mxu0 0
        %2700 = vmatprep.mubr.bf16.mxu0 0
        %2701 = vmatmul.mubr.bf16.gmra.mrb[0].mxu0 %v1905
        %v2702 = vpop.f32.mrb[0].mxu0
        %v2703 = vadd.f32 %v1941, %v2702
        %v2704 = vpop.f32.mrb[0].mxu0
        %v2705 = vadd.f32 %v1945, %v2704
        %v2706 = vpop.f32.mrb[0].mxu0
        %v2707 = vadd.f32 %v1941, %v2706
        %v2708 = vpop.f32.mrb[0].mxu0
        %v2709 = vadd.f32 %v1945, %v2708
        %2710 = vmatprep.mubr.bf16.mxu0 0
        %2711 = vmatmul.mubr.bf16.gmra.mrb[0].mxu0 %v1906
        %v2712 = vpop.f32.mrb[0].mxu0
        %v2713 = vadd.f32 %v1941, %v2712
        %v2714 = vpop.f32.mrb[0].mxu0
        %v2715 = vadd.f32 %v1945, %v2714
        %v2716 = vpop.f32.mrb[0].mxu0
        %v2717 = vadd.f32 %v1941, %v2716
        %v2718 = vpop.f32.mrb[0].mxu0
        %v2719 = vadd.f32 %v1945, %v2718
        %2720 = vmatprep.mubr.bf16.mxu0 0
        %2721 = vmatmul.mubr.bf16.gmra.mrb[0].mxu0 %v1907
        %v2722 = vpop.f32.mrb[0].mxu0
        %v2723 = vadd.f32 %v1941, %v2722
        %v2724 = vpop.f32.mrb[0].mxu0
        %v2725 = vadd.f32 %v1945, %v2724
        %v2726 = vpop.f32.mrb[0].mxu0
        %v2727 = vadd.f32 %v1941, %v2726
        %v2728 = vpop.f32.mrb[0].mxu0
        %v2729 = vadd.f32 %v1945, %v2728
        %2730 = vmatprep.mubr.bf16.mxu0 0
        %2731 = vmatmul.mubr.bf16.gmra.mrb[0].mxu0 %v1908
        %v2732 = vpop.f32.mrb[0].mxu0
        %v2733 = vadd.f32 %v1941, %v2732
        %v2734 = vpop.f32.mrb[0].mxu0
        %v2735 = vadd.f32 %v1945, %v2734
        %v2736 = vpop.f32.mrb[0].mxu0
        %v2737 = vadd.f32 %v1941, %v2736
        %v2738 = vpop.f32.mrb[0].mxu0
        %v2739 = vadd.f32 %v1945, %v2738
        %2740 = vmatprep.mubr.bf16.mxu0 0
        %2741 = vmatmul.mubr.bf16.gmra.mrb[0].mxu0 %v1909
        %v2742 = vpop.f32.mrb[0].mxu0
        %v2743 = vadd.f32 %v1941, %v2742
        %v2744 = vpop.f32.mrb[0].mxu0
        %v2745 = vadd.f32 %v1945, %v2744
        %v2746 = vpop.f32.mrb[0].mxu0
        %v2747 = vadd.f32 %v1941, %v2746
        %v2748 = vpop.f32.mrb[0].mxu0
        %v2749 = vadd.f32 %v1945, %v2748
        %2750 = vmatprep.mubr.bf16.mxu0 0
        %2751 = vmatmul.mubr.bf16.gmra.mrb[0].mxu0 %v1910
        %v2752 = vpop.f32.mrb[0].mxu0
        %v2753 = vadd.f32 %v1941, %v2752
        %v2754 = vpop.f32.mrb[0].mxu0
        %v2755 = vadd.f32 %v1945, %v2754
        %v2756 = vpop.f32.mrb[0].mxu0
        %v2757 = vadd.f32 %v1941, %v2756
        %v2758 = vpop.f32.mrb[0].mxu0
        %v2759 = vadd.f32 %v1945, %v2758
        %2760 = vmatprep.mubr.bf16.mxu0 0
        %2761 = vmatmul.mubr.bf16.gmra.mrb[0].mxu0 %v1911
        %v2762 = vpop.f32.mrb[0].mxu0
        %v2763 = vadd.f32 %v1941, %v2762
        %v2764 = vpop.f32.mrb[0].mxu0
        %v2765 = vadd.f32 %v1945, %v2764
        %v2766 = vpop.f32.mrb[0].mxu0
        %v2767 = vadd.f32 %v1941, %v2766
        %v2768 = vpop.f32.mrb[0].mxu0
        %v2769 = vadd.f32 %v1945, %v2768
        %2770 = vmatprep.mubr.bf16.mxu0 0
        %2771 = vmatmul.mubr.bf16.gmra.mrb[0].mxu0 %v1912
        %v2772 = vpop.f32.mrb[0].mxu0
        %v2773 = vadd.f32 %v1941, %v2772
        %v2774 = vpop.f32.mrb[0].mxu0
        %v2775 = vadd.f32 %v1945, %v2774
        %v2776 = vpop.f32.mrb[0].mxu0
        %v2777 = vadd.f32 %v1941, %v2776
        %v2778 = vpop.f32.mrb[0].mxu0
        %v2779 = vadd.f32 %v1945, %v2778
        %2780 = vmatprep.mubr.bf16.mxu0 0
        %2781 = vmatmul.mubr.bf16.gmra.mrb[0].mxu0 %v1913
        %v2782 = vpop.f32.mrb[0].mxu0
        %v2783 = vadd.f32 %v1941, %v2782
        %v2784 = vpop.f32.mrb[0].mxu0
        %v2785 = vadd.f32 %v1945, %v2784
        %v2786 = vpop.f32.mrb[0].mxu0
        %v2787 = vadd.f32 %v1941, %v2786
        %v2788 = vpop.f32.mrb[0].mxu0
        %v2789 = vadd.f32 %v1945, %v2788
        %2790 = vmatprep.mubr.bf16.mxu0 0
        %2791 = vmatmul.mubr.bf16.gmra.mrb[0].mxu0 %v1914
        %v2792 = vpop.f32.mrb[0].mxu0
        %v2793 = vadd.f32 %v1941, %v2792
        %v2794 = vpop.f32.mrb[0].mxu0
        %v2795 = vadd.f32 %v1945, %v2794
        %v2796 = vpop.f32.mrb[0].mxu0
        %v2797 = vadd.f32 %v1941, %v2796
        %v2798 = vpop.f32.mrb[0].mxu0
        %v2799 = vadd.f32 %v1945, %v2798
        %2800 = vmatprep.mubr.bf16.mxu0 0
        %2801 = vmatmul.mubr.bf16.gmra.mrb[0].mxu0 %v1915
        %v2802 = vpop.f32.mrb[0].mxu0
        %v2803 = vadd.f32 %v1941, %v2802
        %v2804 = vpop.f32.mrb[0].mxu0
        %v2805 = vadd.f32 %v1945, %v2804
        %v2806 = vpop.f32.mrb[0].mxu0
        %v2807 = vadd.f32 %v1941, %v2806
        %v2808 = vpop.f32.mrb[0].mxu0
        %v2809 = vadd.f32 %v1945, %v2808
        %2810 = vmatprep.mubr.bf16.mxu0 0
        %2811 = vmatmul.mubr.bf16.gmra.mrb[0].mxu0 %v1916
        %v2812 = vpop.f32.mrb[0].mxu0
        %v2813 = vadd.f32 %v1941, %v2812
        %v2814 = vpop.f32.mrb[0].mxu0
        %v2815 = vadd.f32 %v1945, %v2814
        %v2816 = vpop.f32.mrb[0].mxu0
        %v2817 = vadd.f32 %v1941, %v2816
        %v2818 = vpop.f32.mrb[0].mxu0
        %v2819 = vadd.f32 %v1945, %v2818
        %2820 = vmatprep.mubr.bf16.mxu0 0
        %2821 = vmatmul.mubr.bf16.gmra.mrb[0].mxu0 %v1917
        %v2822 = vpop.f32.mrb[0].mxu0
        %v2823 = vadd.f32 %v1941, %v2822
        %v2824 = vpop.f32.mrb[0].mxu0
        %v2825 = vadd.f32 %v1945, %v2824
        %v2826 = vpop.f32.mrb[0].mxu0
        %v2827 = vadd.f32 %v1941, %v2826
        %v2828 = vpop.f32.mrb[0].mxu0
        %v2829 = vadd.f32 %v1945, %v2828
        %2830 = vmatprep.mubr.bf16.mxu0 0
        %2831 = vmatmul.mubr.bf16.gmra.mrb[0].mxu0 %v1918
        %v2832 = vpop.f32.mrb[0].mxu0
        %v2833 = vadd.f32 %v1941, %v2832
        %v2834 = vpop.f32.mrb[0].mxu0
        %v2835 = vadd.f32 %v1945, %v2834
        %v2836 = vpop.f32.mrb[0].mxu0
        %v2837 = vadd.f32 %v1941, %v2836
        %v2838 = vpop.f32.mrb[0].mxu0
        %v2839 = vadd.f32 %v1945, %v2838
        %2840 = vmatprep.mubr.bf16.mxu0 0
        %2841 = vmatmul.mubr.bf16.gmra.mrb[0].mxu0 %v1919
        %v2842 = vpop.f32.mrb[0].mxu0
        %v2843 = vadd.f32 %v1941, %v2842
        %v2844 = vpop.f32.mrb[0].mxu0
        %v2845 = vadd.f32 %v1945, %v2844
        %v2846 = vpop.f32.mrb[0].mxu0
        %v2847 = vadd.f32 %v1941, %v2846
        %v2848 = vpop.f32.mrb[0].mxu0
        %v2849 = vadd.f32 %v1945, %v2848
        %2850 = vmatprep.mubr.bf16.mxu0 0
        %2851 = vmatmul.mubr.bf16.gmra.mrb[0].mxu0 %v1920
        %v2852 = vpop.f32.mrb[0].mxu0
        %v2853 = vadd.f32 %v1941, %v2852
        %v2854 = vpop.f32.mrb[0].mxu0
        %v2855 = vadd.f32 %v1945, %v2854
        %v2856 = vpop.f32.mrb[0].mxu0
        %v2857 = vadd.f32 %v1941, %v2856
        %v2858 = vpop.f32.mrb[0].mxu0
        %v2859 = vadd.f32 %v1945, %v2858
        %2860 = vdwg.mxu0
        %2861 = vmatprep.subr.bf16.mxu0 %v2161
        %2862 = vmatpush1.bf16.msra.mxu0 %v2160
        %2863 = vmatprep.subr.bf16.mxu0 %v2169
        %2864 = vmatpush1.bf16.msra.mxu0 %v2168
        %2865 = vmatprep.subr.bf16.mxu0 %v2177
        %2866 = vmatpush1.bf16.msra.mxu0 %v2176
        %2867 = vmatprep.subr.bf16.mxu0 %v2185
        %2868 = vmatpush1.bf16.msra.mxu0 %v2184
        %2869 = vmatprep.subr.bf16.mxu0 %v2193
        %2870 = vmatpush1.bf16.msra.mxu0 %v2192
        %2871 = vmatprep.subr.bf16.mxu0 %v2201
        %2872 = vmatpush1.bf16.msra.mxu0 %v2200
        %2873 = vmatprep.subr.bf16.mxu0 %v2209
        %2874 = vmatpush1.bf16.msra.mxu0 %v2208
        %2875 = vmatprep.subr.bf16.mxu0 %v2217
        %2876 = vmatpush1.bf16.msra.mxu0 %v2216
        %2877 = vmatprep.subr.bf16.mxu0 0
        %2878 = vmatpush1.bf16.msra.mxu0 0
        %2879 = vmatprep.subr.bf16.mxu0 0
        %2880 = vmatpush1.bf16.msra.mxu0 0
        %2881 = vmatprep.subr.bf16.mxu0 0
        %2882 = vmatpush1.bf16.msra.mxu0 0
        %2883 = vmatprep.subr.bf16.mxu0 0
        %2884 = vmatpush1.bf16.msra.mxu0 0
        %2885 = vmatprep.subr.bf16.mxu0 0
        %2886 = vmatpush1.bf16.msra.mxu0 0
        %2887 = vmatprep.subr.bf16.mxu0 0
        %2888 = vmatpush1.bf16.msra.mxu0 0
        %2889 = vmatprep.subr.bf16.mxu0 0
        %2890 = vmatpush1.bf16.msra.mxu0 0
        %2891 = vmatprep.subr.bf16.mxu0 0
        %2892 = vmatpush1.bf16.msra.mxu0 0
        %2893 = vmatprep.mubr.bf16.mxu0 0
        %2894 = vmatmul.mubr.bf16.gmra.mrb[0].mxu0 %v1905
        %v2895 = vpop.f32.mrb[0].mxu0
        %v2896 = vadd.f32 %v1949, %v2895
        %v2897 = vpop.f32.mrb[0].mxu0
        %v2898 = vadd.f32 %v1953, %v2897
        %v2899 = vpop.f32.mrb[0].mxu0
        %v2900 = vadd.f32 %v1949, %v2899
        %v2901 = vpop.f32.mrb[0].mxu0
        %v2902 = vadd.f32 %v1953, %v2901
        %2903 = vmatprep.mubr.bf16.mxu0 0
        %2904 = vmatmul.mubr.bf16.gmra.mrb[0].mxu0 %v1906
        %v2905 = vpop.f32.mrb[0].mxu0
        %v2906 = vadd.f32 %v1949, %v2905
        %v2907 = vpop.f32.mrb[0].mxu0
        %v2908 = vadd.f32 %v1953, %v2907
        %v2909 = vpop.f32.mrb[0].mxu0
        %v2910 = vadd.f32 %v1949, %v2909
        %v2911 = vpop.f32.mrb[0].mxu0
        %v2912 = vadd.f32 %v1953, %v2911
        %2913 = vmatprep.mubr.bf16.mxu0 0
        %2914 = vmatmul.mubr.bf16.gmra.mrb[0].mxu0 %v1907
        %v2915 = vpop.f32.mrb[0].mxu0
        %v2916 = vadd.f32 %v1949, %v2915
        %v2917 = vpop.f32.mrb[0].mxu0
        %v2918 = vadd.f32 %v1953, %v2917
        %v2919 = vpop.f32.mrb[0].mxu0
        %v2920 = vadd.f32 %v1949, %v2919
        %v2921 = vpop.f32.mrb[0].mxu0
        %v2922 = vadd.f32 %v1953, %v2921
        %2923 = vmatprep.mubr.bf16.mxu0 0
        %2924 = vmatmul.mubr.bf16.gmra.mrb[0].mxu0 %v1908
        %v2925 = vpop.f32.mrb[0].mxu0
        %v2926 = vadd.f32 %v1949, %v2925
        %v2927 = vpop.f32.mrb[0].mxu0
        %v2928 = vadd.f32 %v1953, %v2927
        %v2929 = vpop.f32.mrb[0].mxu0
        %v2930 = vadd.f32 %v1949, %v2929
        %v2931 = vpop.f32.mrb[0].mxu0
        %v2932 = vadd.f32 %v1953, %v2931
        %2933 = vmatprep.mubr.bf16.mxu0 0
        %2934 = vmatmul.mubr.bf16.gmra.mrb[0].mxu0 %v1909
        %v2935 = vpop.f32.mrb[0].mxu0
        %v2936 = vadd.f32 %v1949, %v2935
        %v2937 = vpop.f32.mrb[0].mxu0
        %v2938 = vadd.f32 %v1953, %v2937
        %v2939 = vpop.f32.mrb[0].mxu0
        %v2940 = vadd.f32 %v1949, %v2939
        %v2941 = vpop.f32.mrb[0].mxu0
        %v2942 = vadd.f32 %v1953, %v2941
        %2943 = vmatprep.mubr.bf16.mxu0 0
        %2944 = vmatmul.mubr.bf16.gmra.mrb[0].mxu0 %v1910
        %v2945 = vpop.f32.mrb[0].mxu0
        %v2946 = vadd.f32 %v1949, %v2945
        %v2947 = vpop.f32.mrb[0].mxu0
        %v2948 = vadd.f32 %v1953, %v2947
        %v2949 = vpop.f32.mrb[0].mxu0
        %v2950 = vadd.f32 %v1949, %v2949
        %v2951 = vpop.f32.mrb[0].mxu0
        %v2952 = vadd.f32 %v1953, %v2951
        %2953 = vmatprep.mubr.bf16.mxu0 0
        %2954 = vmatmul.mubr.bf16.gmra.mrb[0].mxu0 %v1911
        %v2955 = vpop.f32.mrb[0].mxu0
        %v2956 = vadd.f32 %v1949, %v2955
        %v2957 = vpop.f32.mrb[0].mxu0
        %v2958 = vadd.f32 %v1953, %v2957
        %v2959 = vpop.f32.mrb[0].mxu0
        %v2960 = vadd.f32 %v1949, %v2959
        %v2961 = vpop.f32.mrb[0].mxu0
        %v2962 = vadd.f32 %v1953, %v2961
        %2963 = vmatprep.mubr.bf16.mxu0 0
        %2964 = vmatmul.mubr.bf16.gmra.mrb[0].mxu0 %v1912
        %v2965 = vpop.f32.mrb[0].mxu0
        %v2966 = vadd.f32 %v1949, %v2965
        %v2967 = vpop.f32.mrb[0].mxu0
        %v2968 = vadd.f32 %v1953, %v2967
        %v2969 = vpop.f32.mrb[0].mxu0
        %v2970 = vadd.f32 %v1949, %v2969
        %v2971 = vpop.f32.mrb[0].mxu0
        %v2972 = vadd.f32 %v1953, %v2971
        %2973 = vmatprep.mubr.bf16.mxu0 0
        %2974 = vmatmul.mubr.bf16.gmra.mrb[0].mxu0 %v1913
        %v2975 = vpop.f32.mrb[0].mxu0
        %v2976 = vadd.f32 %v1949, %v2975
        %v2977 = vpop.f32.mrb[0].mxu0
        %v2978 = vadd.f32 %v1953, %v2977
        %v2979 = vpop.f32.mrb[0].mxu0
        %v2980 = vadd.f32 %v1949, %v2979
        %v2981 = vpop.f32.mrb[0].mxu0
        %v2982 = vadd.f32 %v1953, %v2981
        %2983 = vmatprep.mubr.bf16.mxu0 0
        %2984 = vmatmul.mubr.bf16.gmra.mrb[0].mxu0 %v1914
        %v2985 = vpop.f32.mrb[0].mxu0
        %v2986 = vadd.f32 %v1949, %v2985
        %v2987 = vpop.f32.mrb[0].mxu0
        %v2988 = vadd.f32 %v1953, %v2987
        %v2989 = vpop.f32.mrb[0].mxu0
        %v2990 = vadd.f32 %v1949, %v2989
        %v2991 = vpop.f32.mrb[0].mxu0
        %v2992 = vadd.f32 %v1953, %v2991
        %2993 = vmatprep.mubr.bf16.mxu0 0
        %2994 = vmatmul.mubr.bf16.gmra.mrb[0].mxu0 %v1915
        %v2995 = vpop.f32.mrb[0].mxu0
        %v2996 = vadd.f32 %v1949, %v2995
        %v2997 = vpop.f32.mrb[0].mxu0
        %v2998 = vadd.f32 %v1953, %v2997
        %v2999 = vpop.f32.mrb[0].mxu0
        %v3000 = vadd.f32 %v1949, %v2999
        %v3001 = vpop.f32.mrb[0].mxu0
        %v3002 = vadd.f32 %v1953, %v3001
        %3003 = vmatprep.mubr.bf16.mxu0 0
        %3004 = vmatmul.mubr.bf16.gmra.mrb[0].mxu0 %v1916
        %v3005 = vpop.f32.mrb[0].mxu0
        %v3006 = vadd.f32 %v1949, %v3005
        %v3007 = vpop.f32.mrb[0].mxu0
        %v3008 = vadd.f32 %v1953, %v3007
        %v3009 = vpop.f32.mrb[0].mxu0
        %v3010 = vadd.f32 %v1949, %v3009
        %v3011 = vpop.f32.mrb[0].mxu0
        %v3012 = vadd.f32 %v1953, %v3011
        %3013 = vmatprep.mubr.bf16.mxu0 0
        %3014 = vmatmul.mubr.bf16.gmra.mrb[0].mxu0 %v1917
        %v3015 = vpop.f32.mrb[0].mxu0
        %v3016 = vadd.f32 %v1949, %v3015
        %v3017 = vpop.f32.mrb[0].mxu0
        %v3018 = vadd.f32 %v1953, %v3017
        %v3019 = vpop.f32.mrb[0].mxu0
        %v3020 = vadd.f32 %v1949, %v3019
        %v3021 = vpop.f32.mrb[0].mxu0
        %v3022 = vadd.f32 %v1953, %v3021
        %3023 = vmatprep.mubr.bf16.mxu0 0
        %3024 = vmatmul.mubr.bf16.gmra.mrb[0].mxu0 %v1918
        %v3025 = vpop.f32.mrb[0].mxu0
        %v3026 = vadd.f32 %v1949, %v3025
        %v3027 = vpop.f32.mrb[0].mxu0
        %v3028 = vadd.f32 %v1953, %v3027
        %v3029 = vpop.f32.mrb[0].mxu0
        %v3030 = vadd.f32 %v1949, %v3029
        %v3031 = vpop.f32.mrb[0].mxu0
        %v3032 = vadd.f32 %v1953, %v3031
        %3033 = vmatprep.mubr.bf16.mxu0 0
        %3034 = vmatmul.mubr.bf16.gmra.mrb[0].mxu0 %v1919
        %v3035 = vpop.f32.mrb[0].mxu0
        %v3036 = vadd.f32 %v1949, %v3035
        %v3037 = vpop.f32.mrb[0].mxu0
        %v3038 = vadd.f32 %v1953, %v3037
        %v3039 = vpop.f32.mrb[0].mxu0
        %v3040 = vadd.f32 %v1949, %v3039
        %v3041 = vpop.f32.mrb[0].mxu0
        %v3042 = vadd.f32 %v1953, %v3041
        %3043 = vmatprep.mubr.bf16.mxu0 0
        %3044 = vmatmul.mubr.bf16.gmra.mrb[0].mxu0 %v1920
        %v3045 = vpop.f32.mrb[0].mxu0
        %v3046 = vadd.f32 %v1949, %v3045
        %v3047 = vpop.f32.mrb[0].mxu0
        %v3048 = vadd.f32 %v1953, %v3047
        %v3049 = vpop.f32.mrb[0].mxu0
        %v3050 = vadd.f32 %v1949, %v3049
        %v3051 = vpop.f32.mrb[0].mxu0
        %v3052 = vadd.f32 %v1953, %v3051
        %3053 = vdwg.mxu0
        %v3054 = vmax.f32 %v2317, 0.0
        %v3055 = vmax.f32 %v2319, 0.0
        %v3056 = vmax.f32 %v2510, 0.0
        %v3057 = vmax.f32 %v2512, 0.0
        %v3058 = vmax.f32 %v2703, 0.0
        %v3059 = vmax.f32 %v2705, 0.0
        %v3060 = vmax.f32 %v2896, 0.0
        %v3061 = vmax.f32 %v2898, 0.0
        %v3062 = vmax.f32 %v2321, 0.0
        %v3063 = vmax.f32 %v2323, 0.0
        %v3064 = vmax.f32 %v2514, 0.0
        %v3065 = vmax.f32 %v2516, 0.0
        %v3066 = vmax.f32 %v2707, 0.0
        %v3067 = vmax.f32 %v2709, 0.0
        %v3068 = vmax.f32 %v2900, 0.0
        %v3069 = vmax.f32 %v2902, 0.0
        %v3070 = vmax.f32 %v2327, 0.0
        %v3071 = vmax.f32 %v2329, 0.0
        %v3072 = vmax.f32 %v2520, 0.0
        %v3073 = vmax.f32 %v2522, 0.0
        %v3074 = vmax.f32 %v2713, 0.0
        %v3075 = vmax.f32 %v2715, 0.0
        %v3076 = vmax.f32 %v2906, 0.0
        %v3077 = vmax.f32 %v2908, 0.0
        %v3078 = vmax.f32 %v2331, 0.0
        %v3079 = vmax.f32 %v2333, 0.0
        %v3080 = vmax.f32 %v2524, 0.0
        %v3081 = vmax.f32 %v2526, 0.0
        %v3082 = vmax.f32 %v2717, 0.0
        %v3083 = vmax.f32 %v2719, 0.0
        %v3084 = vmax.f32 %v2910, 0.0
        %v3085 = vmax.f32 %v2912, 0.0
        %v3086 = vmax.f32 %v2337, 0.0
        %v3087 = vmax.f32 %v2339, 0.0
        %v3088 = vmax.f32 %v2530, 0.0
        %v3089 = vmax.f32 %v2532, 0.0
        %v3090 = vmax.f32 %v2723, 0.0
        %v3091 = vmax.f32 %v2725, 0.0
        %v3092 = vmax.f32 %v2916, 0.0
        %v3093 = vmax.f32 %v2918, 0.0
        %v3094 = vmax.f32 %v2341, 0.0
        %v3095 = vmax.f32 %v2343, 0.0
        %v3096 = vmax.f32 %v2534, 0.0
        %v3097 = vmax.f32 %v2536, 0.0
        %v3098 = vmax.f32 %v2727, 0.0
        %v3099 = vmax.f32 %v2729, 0.0
        %v3100 = vmax.f32 %v2920, 0.0
        %v3101 = vmax.f32 %v2922, 0.0
        %v3102 = vmax.f32 %v2347, 0.0
        %v3103 = vmax.f32 %v2349, 0.0
        %v3104 = vmax.f32 %v2540, 0.0
        %v3105 = vmax.f32 %v2542, 0.0
        %v3106 = vmax.f32 %v2733, 0.0
        %v3107 = vmax.f32 %v2735, 0.0
        %v3108 = vmax.f32 %v2926, 0.0
        %v3109 = vmax.f32 %v2928, 0.0
        %v3110 = vmax.f32 %v2351, 0.0
        %v3111 = vmax.f32 %v2353, 0.0
        %v3112 = vmax.f32 %v2544, 0.0
        %v3113 = vmax.f32 %v2546, 0.0
        %v3114 = vmax.f32 %v2737, 0.0
        %v3115 = vmax.f32 %v2739, 0.0
        %v3116 = vmax.f32 %v2930, 0.0
        %v3117 = vmax.f32 %v2932, 0.0
        %v3118 = vmax.f32 %v2357, 0.0
        %v3119 = vmax.f32 %v2359, 0.0
        %v3120 = vmax.f32 %v2550, 0.0
        %v3121 = vmax.f32 %v2552, 0.0
        %v3122 = vmax.f32 %v2743, 0.0
        %v3123 = vmax.f32 %v2745, 0.0
        %v3124 = vmax.f32 %v2936, 0.0
        %v3125 = vmax.f32 %v2938, 0.0
        %v3126 = vmax.f32 %v2361, 0.0
        %v3127 = vmax.f32 %v2363, 0.0
        %v3128 = vmax.f32 %v2554, 0.0
        %v3129 = vmax.f32 %v2556, 0.0
        %v3130 = vmax.f32 %v2747, 0.0
        %v3131 = vmax.f32 %v2749, 0.0
        %v3132 = vmax.f32 %v2940, 0.0
        %v3133 = vmax.f32 %v2942, 0.0
        %v3134 = vmax.f32 %v2367, 0.0
        %v3135 = vmax.f32 %v2369, 0.0
        %v3136 = vmax.f32 %v2560, 0.0
        %v3137 = vmax.f32 %v2562, 0.0
        %v3138 = vmax.f32 %v2753, 0.0
        %v3139 = vmax.f32 %v2755, 0.0
        %v3140 = vmax.f32 %v2946, 0.0
        %v3141 = vmax.f32 %v2948, 0.0
        %v3142 = vmax.f32 %v2371, 0.0
        %v3143 = vmax.f32 %v2373, 0.0
        %v3144 = vmax.f32 %v2564, 0.0
        %v3145 = vmax.f32 %v2566, 0.0
        %v3146 = vmax.f32 %v2757, 0.0
        %v3147 = vmax.f32 %v2759, 0.0
        %v3148 = vmax.f32 %v2950, 0.0
        %v3149 = vmax.f32 %v2952, 0.0
        %v3150 = vmax.f32 %v2377, 0.0
        %v3151 = vmax.f32 %v2379, 0.0
        %v3152 = vmax.f32 %v2570, 0.0
        %v3153 = vmax.f32 %v2572, 0.0
        %v3154 = vmax.f32 %v2763, 0.0
        %v3155 = vmax.f32 %v2765, 0.0
        %v3156 = vmax.f32 %v2956, 0.0
        %v3157 = vmax.f32 %v2958, 0.0
        %v3158 = vmax.f32 %v2381, 0.0
        %v3159 = vmax.f32 %v2383, 0.0
        %v3160 = vmax.f32 %v2574, 0.0
        %v3161 = vmax.f32 %v2576, 0.0
        %v3162 = vmax.f32 %v2767, 0.0
        %v3163 = vmax.f32 %v2769, 0.0
        %v3164 = vmax.f32 %v2960, 0.0
        %v3165 = vmax.f32 %v2962, 0.0
        %v3166 = vmax.f32 %v2387, 0.0
        %v3167 = vmax.f32 %v2389, 0.0
        %v3168 = vmax.f32 %v2580, 0.0
        %v3169 = vmax.f32 %v2582, 0.0
        %v3170 = vmax.f32 %v2773, 0.0
        %v3171 = vmax.f32 %v2775, 0.0
        %v3172 = vmax.f32 %v2966, 0.0
        %v3173 = vmax.f32 %v2968, 0.0
        %v3174 = vmax.f32 %v2391, 0.0
        %v3175 = vmax.f32 %v2393, 0.0
        %v3176 = vmax.f32 %v2584, 0.0
        %v3177 = vmax.f32 %v2586, 0.0
        %v3178 = vmax.f32 %v2777, 0.0
        %v3179 = vmax.f32 %v2779, 0.0
        %v3180 = vmax.f32 %v2970, 0.0
        %v3181 = vmax.f32 %v2972, 0.0
        %v3182 = vmax.f32 %v2397, 0.0
        %v3183 = vmax.f32 %v2399, 0.0
        %v3184 = vmax.f32 %v2590, 0.0
        %v3185 = vmax.f32 %v2592, 0.0
        %v3186 = vmax.f32 %v2783, 0.0
        %v3187 = vmax.f32 %v2785, 0.0
        %v3188 = vmax.f32 %v2976, 0.0
        %v3189 = vmax.f32 %v2978, 0.0
        %v3190 = vmax.f32 %v2401, 0.0
        %v3191 = vmax.f32 %v2403, 0.0
        %v3192 = vmax.f32 %v2594, 0.0
        %v3193 = vmax.f32 %v2596, 0.0
        %v3194 = vmax.f32 %v2787, 0.0
        %v3195 = vmax.f32 %v2789, 0.0
        %v3196 = vmax.f32 %v2980, 0.0
        %v3197 = vmax.f32 %v2982, 0.0
        %v3198 = vmax.f32 %v2407, 0.0
        %v3199 = vmax.f32 %v2409, 0.0
        %v3200 = vmax.f32 %v2600, 0.0
        %v3201 = vmax.f32 %v2602, 0.0
        %v3202 = vmax.f32 %v2793, 0.0
        %v3203 = vmax.f32 %v2795, 0.0
        %v3204 = vmax.f32 %v2986, 0.0
        %v3205 = vmax.f32 %v2988, 0.0
        %v3206 = vmax.f32 %v2411, 0.0
        %v3207 = vmax.f32 %v2413, 0.0
        %v3208 = vmax.f32 %v2604, 0.0
        %v3209 = vmax.f32 %v2606, 0.0
        %v3210 = vmax.f32 %v2797, 0.0
        %v3211 = vmax.f32 %v2799, 0.0
        %v3212 = vmax.f32 %v2990, 0.0
        %v3213 = vmax.f32 %v2992, 0.0
        %v3214 = vmax.f32 %v2417, 0.0
        %v3215 = vmax.f32 %v2419, 0.0
        %v3216 = vmax.f32 %v2610, 0.0
        %v3217 = vmax.f32 %v2612, 0.0
        %v3218 = vmax.f32 %v2803, 0.0
        %v3219 = vmax.f32 %v2805, 0.0
        %v3220 = vmax.f32 %v2996, 0.0
        %v3221 = vmax.f32 %v2998, 0.0
        %v3222 = vmax.f32 %v2421, 0.0
        %v3223 = vmax.f32 %v2423, 0.0
        %v3224 = vmax.f32 %v2614, 0.0
        %v3225 = vmax.f32 %v2616, 0.0
        %v3226 = vmax.f32 %v2807, 0.0
        %v3227 = vmax.f32 %v2809, 0.0
        %v3228 = vmax.f32 %v3000, 0.0
        %v3229 = vmax.f32 %v3002, 0.0
        %v3230 = vmax.f32 %v2427, 0.0
        %v3231 = vmax.f32 %v2429, 0.0
        %v3232 = vmax.f32 %v2620, 0.0
        %v3233 = vmax.f32 %v2622, 0.0
        %v3234 = vmax.f32 %v2813, 0.0
        %v3235 = vmax.f32 %v2815, 0.0
        %v3236 = vmax.f32 %v3006, 0.0
        %v3237 = vmax.f32 %v3008, 0.0
        %v3238 = vmax.f32 %v2431, 0.0
        %v3239 = vmax.f32 %v2433, 0.0
        %v3240 = vmax.f32 %v2624, 0.0
        %v3241 = vmax.f32 %v2626, 0.0
        %v3242 = vmax.f32 %v2817, 0.0
        %v3243 = vmax.f32 %v2819, 0.0
        %v3244 = vmax.f32 %v3010, 0.0
        %v3245 = vmax.f32 %v3012, 0.0
        %v3246 = vmax.f32 %v2437, 0.0
        %v3247 = vmax.f32 %v2439, 0.0
        %v3248 = vmax.f32 %v2630, 0.0
        %v3249 = vmax.f32 %v2632, 0.0
        %v3250 = vmax.f32 %v2823, 0.0
        %v3251 = vmax.f32 %v2825, 0.0
        %v3252 = vmax.f32 %v3016, 0.0
        %v3253 = vmax.f32 %v3018, 0.0
        %v3254 = vmax.f32 %v2441, 0.0
        %v3255 = vmax.f32 %v2443, 0.0
        %v3256 = vmax.f32 %v2634, 0.0
        %v3257 = vmax.f32 %v2636, 0.0
        %v3258 = vmax.f32 %v2827, 0.0
        %v3259 = vmax.f32 %v2829, 0.0
        %v3260 = vmax.f32 %v3020, 0.0
        %v3261 = vmax.f32 %v3022, 0.0
        %v3262 = vmax.f32 %v2447, 0.0
        %v3263 = vmax.f32 %v2449, 0.0
        %v3264 = vmax.f32 %v2640, 0.0
        %v3265 = vmax.f32 %v2642, 0.0
        %v3266 = vmax.f32 %v2833, 0.0
        %v3267 = vmax.f32 %v2835, 0.0
        %v3268 = vmax.f32 %v3026, 0.0
        %v3269 = vmax.f32 %v3028, 0.0
        %v3270 = vmax.f32 %v2451, 0.0
        %v3271 = vmax.f32 %v2453, 0.0
        %v3272 = vmax.f32 %v2644, 0.0
        %v3273 = vmax.f32 %v2646, 0.0
        %v3274 = vmax.f32 %v2837, 0.0
        %v3275 = vmax.f32 %v2839, 0.0
        %v3276 = vmax.f32 %v3030, 0.0
        %v3277 = vmax.f32 %v3032, 0.0
        %v3278 = vmax.f32 %v2457, 0.0
        %v3279 = vmax.f32 %v2459, 0.0
        %v3280 = vmax.f32 %v2650, 0.0
        %v3281 = vmax.f32 %v2652, 0.0
        %v3282 = vmax.f32 %v2843, 0.0
        %v3283 = vmax.f32 %v2845, 0.0
        %v3284 = vmax.f32 %v3036, 0.0
        %v3285 = vmax.f32 %v3038, 0.0
        %v3286 = vmax.f32 %v2461, 0.0
        %v3287 = vmax.f32 %v2463, 0.0
        %v3288 = vmax.f32 %v2654, 0.0
        %v3289 = vmax.f32 %v2656, 0.0
        %v3290 = vmax.f32 %v2847, 0.0
        %v3291 = vmax.f32 %v2849, 0.0
        %v3292 = vmax.f32 %v3040, 0.0
        %v3293 = vmax.f32 %v3042, 0.0
        %v3294 = vmax.f32 %v2467, 0.0
        %v3295 = vmax.f32 %v2469, 0.0
        %v3296 = vmax.f32 %v2660, 0.0
        %v3297 = vmax.f32 %v2662, 0.0
        %v3298 = vmax.f32 %v2853, 0.0
        %v3299 = vmax.f32 %v2855, 0.0
        %v3300 = vmax.f32 %v3046, 0.0
        %v3301 = vmax.f32 %v3048, 0.0
        %v3302 = vmax.f32 %v2471, 0.0
        %v3303 = vmax.f32 %v2473, 0.0
        %v3304 = vmax.f32 %v2664, 0.0
        %v3305 = vmax.f32 %v2666, 0.0
        %v3306 = vmax.f32 %v2857, 0.0
        %v3307 = vmax.f32 %v2859, 0.0
        %v3308 = vmax.f32 %v3050, 0.0
        %v3309 = vmax.f32 %v3052, 0.0
        %v3310 = vmax.f32 %v3054, %v3062
        %v3311 = vmax.f32 %v3310, %v3070
        %v3312 = vmax.f32 %v3311, %v3078
        %v3313 = vmax.f32 %v3312, %v3086
        %v3314 = vmax.f32 %v3313, %v3094
        %v3315 = vmax.f32 %v3314, %v3102
        %v3316 = vmax.f32 %v3315, %v3110
        %v3317 = vmax.f32 %v3316, %v3118
        %v3318 = vmax.f32 %v3317, %v3126
        %v3319 = vmax.f32 %v3318, %v3134
        %v3320 = vmax.f32 %v3319, %v3142
        %v3321 = vmax.f32 %v3320, %v3150
        %v3322 = vmax.f32 %v3321, %v3158
        %v3323 = vmax.f32 %v3322, %v3166
        %v3324 = vmax.f32 %v3323, %v3174
        %v3325 = vmax.f32 %v3324, %v3182
        %v3326 = vmax.f32 %v3325, %v3190
        %v3327 = vmax.f32 %v3326, %v3198
        %v3328 = vmax.f32 %v3327, %v3206
        %v3329 = vmax.f32 %v3328, %v3214
        %v3330 = vmax.f32 %v3329, %v3222
        %v3331 = vmax.f32 %v3330, %v3230
        %v3332 = vmax.f32 %v3331, %v3238
        %v3333 = vmax.f32 %v3332, %v3246
        %v3334 = vmax.f32 %v3333, %v3254
        %v3335 = vmax.f32 %v3334, %v3262
        %v3336 = vmax.f32 %v3335, %v3270
        %v3337 = vmax.f32 %v3336, %v3278
        %v3338 = vmax.f32 %v3337, %v3286
        %v3339 = vmax.f32 %v3338, %v3294
        %v3340 = vmax.f32 %v3339, %v3302
        %v3341 = vrot.slane %v3340, 4
        %v3342 = vmax.f32 %v3340, %v3341
        %v3343 = vrot.slane %v3342, 2
        %v3344 = vmax.f32 %v3342, %v3343
        %v3345 = vrot.slane %v3344, 1
        %v3346 = vmax.f32 %v3344, %v3345
        %v3347 = vmax.f32 %v3055, %v3063
        %v3348 = vmax.f32 %v3347, %v3071
        %v3349 = vmax.f32 %v3348, %v3079
        %v3350 = vmax.f32 %v3349, %v3087
        %v3351 = vmax.f32 %v3350, %v3095
        %v3352 = vmax.f32 %v3351, %v3103
        %v3353 = vmax.f32 %v3352, %v3111
        %v3354 = vmax.f32 %v3353, %v3119
        %v3355 = vmax.f32 %v3354, %v3127
        %v3356 = vmax.f32 %v3355, %v3135
        %v3357 = vmax.f32 %v3356, %v3143
        %v3358 = vmax.f32 %v3357, %v3151
        %v3359 = vmax.f32 %v3358, %v3159
        %v3360 = vmax.f32 %v3359, %v3167
        %v3361 = vmax.f32 %v3360, %v3175
        %v3362 = vmax.f32 %v3361, %v3183
        %v3363 = vmax.f32 %v3362, %v3191
        %v3364 = vmax.f32 %v3363, %v3199
        %v3365 = vmax.f32 %v3364, %v3207
        %v3366 = vmax.f32 %v3365, %v3215
        %v3367 = vmax.f32 %v3366, %v3223
        %v3368 = vmax.f32 %v3367, %v3231
        %v3369 = vmax.f32 %v3368, %v3239
        %v3370 = vmax.f32 %v3369, %v3247
        %v3371 = vmax.f32 %v3370, %v3255
        %v3372 = vmax.f32 %v3371, %v3263
        %v3373 = vmax.f32 %v3372, %v3271
        %v3374 = vmax.f32 %v3373, %v3279
        %v3375 = vmax.f32 %v3374, %v3287
        %v3376 = vmax.f32 %v3375, %v3295
        %v3377 = vmax.f32 %v3376, %v3303
        %v3378 = vrot.slane %v3377, 4
        %v3379 = vmax.f32 %v3377, %v3378
        %v3380 = vrot.slane %v3379, 2
        %v3381 = vmax.f32 %v3379, %v3380
        %v3382 = vrot.slane %v3381, 1
        %v3383 = vmax.f32 %v3381, %v3382
        %v3384 = vmax.f32 %v3056, %v3064
        %v3385 = vmax.f32 %v3384, %v3072
        %v3386 = vmax.f32 %v3385, %v3080
        %v3387 = vmax.f32 %v3386, %v3088
        %v3388 = vmax.f32 %v3387, %v3096
        %v3389 = vmax.f32 %v3388, %v3104
        %v3390 = vmax.f32 %v3389, %v3112
        %v3391 = vmax.f32 %v3390, %v3120
        %v3392 = vmax.f32 %v3391, %v3128
        %v3393 = vmax.f32 %v3392, %v3136
        %v3394 = vmax.f32 %v3393, %v3144
        %v3395 = vmax.f32 %v3394, %v3152
        %v3396 = vmax.f32 %v3395, %v3160
        %v3397 = vmax.f32 %v3396, %v3168
        %v3398 = vmax.f32 %v3397, %v3176
        %v3399 = vmax.f32 %v3398, %v3184
        %v3400 = vmax.f32 %v3399, %v3192
        %v3401 = vmax.f32 %v3400, %v3200
        %v3402 = vmax.f32 %v3401, %v3208
        %v3403 = vmax.f32 %v3402, %v3216
        %v3404 = vmax.f32 %v3403, %v3224
        %v3405 = vmax.f32 %v3404, %v3232
        %v3406 = vmax.f32 %v3405, %v3240
        %v3407 = vmax.f32 %v3406, %v3248
        %v3408 = vmax.f32 %v3407, %v3256
        %v3409 = vmax.f32 %v3408, %v3264
        %v3410 = vmax.f32 %v3409, %v3272
        %v3411 = vmax.f32 %v3410, %v3280
        %v3412 = vmax.f32 %v3411, %v3288
        %v3413 = vmax.f32 %v3412, %v3296
        %v3414 = vmax.f32 %v3413, %v3304
        %v3415 = vrot.slane %v3414, 4
        %v3416 = vmax.f32 %v3414, %v3415
        %v3417 = vrot.slane %v3416, 2
        %v3418 = vmax.f32 %v3416, %v3417
        %v3419 = vrot.slane %v3418, 1
        %v3420 = vmax.f32 %v3418, %v3419
        %v3421 = vmax.f32 %v3057, %v3065
        %v3422 = vmax.f32 %v3421, %v3073
        %v3423 = vmax.f32 %v3422, %v3081
        %v3424 = vmax.f32 %v3423, %v3089
        %v3425 = vmax.f32 %v3424, %v3097
        %v3426 = vmax.f32 %v3425, %v3105
        %v3427 = vmax.f32 %v3426, %v3113
        %v3428 = vmax.f32 %v3427, %v3121
        %v3429 = vmax.f32 %v3428, %v3129
        %v3430 = vmax.f32 %v3429, %v3137
        %v3431 = vmax.f32 %v3430, %v3145
        %v3432 = vmax.f32 %v3431, %v3153
        %v3433 = vmax.f32 %v3432, %v3161
        %v3434 = vmax.f32 %v3433, %v3169
        %v3435 = vmax.f32 %v3434, %v3177
        %v3436 = vmax.f32 %v3435, %v3185
        %v3437 = vmax.f32 %v3436, %v3193
        %v3438 = vmax.f32 %v3437, %v3201
        %v3439 = vmax.f32 %v3438, %v3209
        %v3440 = vmax.f32 %v3439, %v3217
        %v3441 = vmax.f32 %v3440, %v3225
        %v3442 = vmax.f32 %v3441, %v3233
        %v3443 = vmax.f32 %v3442, %v3241
        %v3444 = vmax.f32 %v3443, %v3249
        %v3445 = vmax.f32 %v3444, %v3257
        %v3446 = vmax.f32 %v3445, %v3265
        %v3447 = vmax.f32 %v3446, %v3273
        %v3448 = vmax.f32 %v3447, %v3281
        %v3449 = vmax.f32 %v3448, %v3289
        %v3450 = vmax.f32 %v3449, %v3297
        %v3451 = vmax.f32 %v3450, %v3305
        %v3452 = vrot.slane %v3451, 4
        %v3453 = vmax.f32 %v3451, %v3452
        %v3454 = vrot.slane %v3453, 2
        %v3455 = vmax.f32 %v3453, %v3454
        %v3456 = vrot.slane %v3455, 1
        %v3457 = vmax.f32 %v3455, %v3456
        %v3458 = vmax.f32 %v3058, %v3066
        %v3459 = vmax.f32 %v3458, %v3074
        %v3460 = vmax.f32 %v3459, %v3082
        %v3461 = vmax.f32 %v3460, %v3090
        %v3462 = vmax.f32 %v3461, %v3098
        %v3463 = vmax.f32 %v3462, %v3106
        %v3464 = vmax.f32 %v3463, %v3114
        %v3465 = vmax.f32 %v3464, %v3122
        %v3466 = vmax.f32 %v3465, %v3130
        %v3467 = vmax.f32 %v3466, %v3138
        %v3468 = vmax.f32 %v3467, %v3146
        %v3469 = vmax.f32 %v3468, %v3154
        %v3470 = vmax.f32 %v3469, %v3162
        %v3471 = vmax.f32 %v3470, %v3170
        %v3472 = vmax.f32 %v3471, %v3178
        %v3473 = vmax.f32 %v3472, %v3186
        %v3474 = vmax.f32 %v3473, %v3194
        %v3475 = vmax.f32 %v3474, %v3202
        %v3476 = vmax.f32 %v3475, %v3210
        %v3477 = vmax.f32 %v3476, %v3218
        %v3478 = vmax.f32 %v3477, %v3226
        %v3479 = vmax.f32 %v3478, %v3234
        %v3480 = vmax.f32 %v3479, %v3242
        %v3481 = vmax.f32 %v3480, %v3250
        %v3482 = vmax.f32 %v3481, %v3258
        %v3483 = vmax.f32 %v3482, %v3266
        %v3484 = vmax.f32 %v3483, %v3274
        %v3485 = vmax.f32 %v3484, %v3282
        %v3486 = vmax.f32 %v3485, %v3290
        %v3487 = vmax.f32 %v3486, %v3298
        %v3488 = vmax.f32 %v3487, %v3306
        %v3489 = vrot.slane %v3488, 4
        %v3490 = vmax.f32 %v3488, %v3489
        %v3491 = vrot.slane %v3490, 2
        %v3492 = vmax.f32 %v3490, %v3491
        %v3493 = vrot.slane %v3492, 1
        %v3494 = vmax.f32 %v3492, %v3493
        %v3495 = vmax.f32 %v3059, %v3067
        %v3496 = vmax.f32 %v3495, %v3075
        %v3497 = vmax.f32 %v3496, %v3083
        %v3498 = vmax.f32 %v3497, %v3091
        %v3499 = vmax.f32 %v3498, %v3099
        %v3500 = vmax.f32 %v3499, %v3107
        %v3501 = vmax.f32 %v3500, %v3115
        %v3502 = vmax.f32 %v3501, %v3123
        %v3503 = vmax.f32 %v3502, %v3131
        %v3504 = vmax.f32 %v3503, %v3139
        %v3505 = vmax.f32 %v3504, %v3147
        %v3506 = vmax.f32 %v3505, %v3155
        %v3507 = vmax.f32 %v3506, %v3163
        %v3508 = vmax.f32 %v3507, %v3171
        %v3509 = vmax.f32 %v3508, %v3179
        %v3510 = vmax.f32 %v3509, %v3187
        %v3511 = vmax.f32 %v3510, %v3195
        %v3512 = vmax.f32 %v3511, %v3203
        %v3513 = vmax.f32 %v3512, %v3211
        %v3514 = vmax.f32 %v3513, %v3219
        %v3515 = vmax.f32 %v3514, %v3227
        %v3516 = vmax.f32 %v3515, %v3235
        %v3517 = vmax.f32 %v3516, %v3243
        %v3518 = vmax.f32 %v3517, %v3251
        %v3519 = vmax.f32 %v3518, %v3259
        %v3520 = vmax.f32 %v3519, %v3267
        %v3521 = vmax.f32 %v3520, %v3275
        %v3522 = vmax.f32 %v3521, %v3283
        %v3523 = vmax.f32 %v3522, %v3291
        %v3524 = vmax.f32 %v3523, %v3299
        %v3525 = vmax.f32 %v3524, %v3307
        %v3526 = vrot.slane %v3525, 4
        %v3527 = vmax.f32 %v3525, %v3526
        %v3528 = vrot.slane %v3527, 2
        %v3529 = vmax.f32 %v3527, %v3528
        %v3530 = vrot.slane %v3529, 1
        %v3531 = vmax.f32 %v3529, %v3530
        %v3532 = vmax.f32 %v3060, %v3068
        %v3533 = vmax.f32 %v3532, %v3076
        %v3534 = vmax.f32 %v3533, %v3084
        %v3535 = vmax.f32 %v3534, %v3092
        %v3536 = vmax.f32 %v3535, %v3100
        %v3537 = vmax.f32 %v3536, %v3108
        %v3538 = vmax.f32 %v3537, %v3116
        %v3539 = vmax.f32 %v3538, %v3124
        %v3540 = vmax.f32 %v3539, %v3132
        %v3541 = vmax.f32 %v3540, %v3140
        %v3542 = vmax.f32 %v3541, %v3148
        %v3543 = vmax.f32 %v3542, %v3156
        %v3544 = vmax.f32 %v3543, %v3164
        %v3545 = vmax.f32 %v3544, %v3172
        %v3546 = vmax.f32 %v3545, %v3180
        %v3547 = vmax.f32 %v3546, %v3188
        %v3548 = vmax.f32 %v3547, %v3196
        %v3549 = vmax.f32 %v3548, %v3204
        %v3550 = vmax.f32 %v3549, %v3212
        %v3551 = vmax.f32 %v3550, %v3220
        %v3552 = vmax.f32 %v3551, %v3228
        %v3553 = vmax.f32 %v3552, %v3236
        %v3554 = vmax.f32 %v3553, %v3244
        %v3555 = vmax.f32 %v3554, %v3252
        %v3556 = vmax.f32 %v3555, %v3260
        %v3557 = vmax.f32 %v3556, %v3268
        %v3558 = vmax.f32 %v3557, %v3276
        %v3559 = vmax.f32 %v3558, %v3284
        %v3560 = vmax.f32 %v3559, %v3292
        %v3561 = vmax.f32 %v3560, %v3300
        %v3562 = vmax.f32 %v3561, %v3308
        %v3563 = vrot.slane %v3562, 4
        %v3564 = vmax.f32 %v3562, %v3563
        %v3565 = vrot.slane %v3564, 2
        %v3566 = vmax.f32 %v3564, %v3565
        %v3567 = vrot.slane %v3566, 1
        %v3568 = vmax.f32 %v3566, %v3567
        %v3569 = vmax.f32 %v3061, %v3069
        %v3570 = vmax.f32 %v3569, %v3077
        %v3571 = vmax.f32 %v3570, %v3085
        %v3572 = vmax.f32 %v3571, %v3093
        %v3573 = vmax.f32 %v3572, %v3101
        %v3574 = vmax.f32 %v3573, %v3109
        %v3575 = vmax.f32 %v3574, %v3117
        %v3576 = vmax.f32 %v3575, %v3125
        %v3577 = vmax.f32 %v3576, %v3133
        %v3578 = vmax.f32 %v3577, %v3141
        %v3579 = vmax.f32 %v3578, %v3149
        %v3580 = vmax.f32 %v3579, %v3157
        %v3581 = vmax.f32 %v3580, %v3165
        %v3582 = vmax.f32 %v3581, %v3173
        %v3583 = vmax.f32 %v3582, %v3181
        %v3584 = vmax.f32 %v3583, %v3189
        %v3585 = vmax.f32 %v3584, %v3197
        %v3586 = vmax.f32 %v3585, %v3205
        %v3587 = vmax.f32 %v3586, %v3213
        %v3588 = vmax.f32 %v3587, %v3221
        %v3589 = vmax.f32 %v3588, %v3229
        %v3590 = vmax.f32 %v3589, %v3237
        %v3591 = vmax.f32 %v3590, %v3245
        %v3592 = vmax.f32 %v3591, %v3253
        %v3593 = vmax.f32 %v3592, %v3261
        %v3594 = vmax.f32 %v3593, %v3269
        %v3595 = vmax.f32 %v3594, %v3277
        %v3596 = vmax.f32 %v3595, %v3285
        %v3597 = vmax.f32 %v3596, %v3293
        %v3598 = vmax.f32 %v3597, %v3301
        %v3599 = vmax.f32 %v3598, %v3309
        %v3600 = vrot.slane %v3599, 4
        %v3601 = vmax.f32 %v3599, %v3600
        %v3602 = vrot.slane %v3601, 2
        %v3603 = vmax.f32 %v3601, %v3602
        %v3604 = vrot.slane %v3603, 1
        %v3605 = vmax.f32 %v3603, %v3604
        %v3606 = vpack.c.bf16 %v3346, %v3346
        %v3607 = vpack.c.bf16 %v3383, %v3383
        %v3608 = vpack.c.bf16 %v3420, %v3420
        %v3609 = vpack.c.bf16 %v3457, %v3457
        %v3610 = vpack.c.bf16 %v3494, %v3494
        %v3611 = vpack.c.bf16 %v3531, %v3531
        %v3612 = vpack.c.bf16 %v3568, %v3568
        %v3613 = vpack.c.bf16 %v3605, %v3605
        %v3614 = vld [vmem:[#allocation11] sm:$0xff]
        %v3615 = vld [vmem:[#allocation11 + $0x8] sm:$0xff]
        %v3616 = vld [vmem:[#allocation11 + $0x10] sm:$0xff]
        %v3617 = vld [vmem:[#allocation11 + $0x18] sm:$0xff]
        %v3618 = vld [vmem:[#allocation11 + $0x20] sm:$0xff]
        %v3619 = vld [vmem:[#allocation11 + $0x28] sm:$0xff]
        %v3620 = vld [vmem:[#allocation11 + $0x30] sm:$0xff]
        %v3621 = vld [vmem:[#allocation11 + $0x38] sm:$0xff]
        %v3622 = vld [vmem:[#allocation11 + $0x40] sm:$0xff]
        %v3623 = vld [vmem:[#allocation11 + $0x48] sm:$0xff]
        %v3624 = vld [vmem:[#allocation11 + $0x50] sm:$0xff]
        %v3625 = vld [vmem:[#allocation11 + $0x58] sm:$0xff]
        %v3626 = vld [vmem:[#allocation11 + $0x60] sm:$0xff]
        %v3627 = vld [vmem:[#allocation11 + $0x68] sm:$0xff]
        %v3628 = vld [vmem:[#allocation11 + $0x70] sm:$0xff]
        %v3629 = vld [vmem:[#allocation11 + $0x78] sm:$0xff]
        %v3630 = vld [vmem:[#allocation11 + $0x80] sm:$0xff]
        %v3631 = vld [vmem:[#allocation11 + $0x88] sm:$0xff]
        %v3632 = vld [vmem:[#allocation11 + $0x90] sm:$0xff]
        %v3633 = vld [vmem:[#allocation11 + $0x98] sm:$0xff]
        %v3634 = vld [vmem:[#allocation11 + $0xa0] sm:$0xff]
        %v3635 = vld [vmem:[#allocation11 + $0xa8] sm:$0xff]
        %v3636 = vld [vmem:[#allocation11 + $0xb0] sm:$0xff]
        %v3637 = vld [vmem:[#allocation11 + $0xb8] sm:$0xff]
        %v3638 = vld [vmem:[#allocation11 + $0xc0] sm:$0xff]
        %v3639 = vld [vmem:[#allocation11 + $0xc8] sm:$0xff]
        %v3640 = vld [vmem:[#allocation11 + $0xd0] sm:$0xff]
        %v3641 = vld [vmem:[#allocation11 + $0xd8] sm:$0xff]
        %v3642 = vld [vmem:[#allocation11 + $0xe0] sm:$0xff]
        %v3643 = vld [vmem:[#allocation11 + $0xe8] sm:$0xff]
        %v3644 = vld [vmem:[#allocation11 + $0xf0] sm:$0xff]
        %v3645 = vld [vmem:[#allocation11 + $0xf8] sm:$0xff]
        %v3646 = vld [vmem:[#allocation11 + $0x100] sm:$0xff]
        %v3647 = vld [vmem:[#allocation11 + $0x108] sm:$0xff]
        %v3648 = vld [vmem:[#allocation11 + $0x110] sm:$0xff]
        %v3649 = vld [vmem:[#allocation11 + $0x118] sm:$0xff]
        %v3650 = vld [vmem:[#allocation11 + $0x120] sm:$0xff]
        %v3651 = vld [vmem:[#allocation11 + $0x128] sm:$0xff]
        %v3652 = vld [vmem:[#allocation11 + $0x130] sm:$0xff]
        %v3653 = vld [vmem:[#allocation11 + $0x138] sm:$0xff]
        %v3654 = vld [vmem:[#allocation11 + $0x140] sm:$0xff]
        %v3655 = vld [vmem:[#allocation11 + $0x148] sm:$0xff]
        %v3656 = vld [vmem:[#allocation11 + $0x150] sm:$0xff]
        %v3657 = vld [vmem:[#allocation11 + $0x158] sm:$0xff]
        %v3658 = vld [vmem:[#allocation11 + $0x160] sm:$0xff]
        %v3659 = vld [vmem:[#allocation11 + $0x168] sm:$0xff]
        %v3660 = vld [vmem:[#allocation11 + $0x170] sm:$0xff]
        %v3661 = vld [vmem:[#allocation11 + $0x178] sm:$0xff]
        %v3662 = vld [vmem:[#allocation11 + $0x180] sm:$0xff]
        %v3663 = vld [vmem:[#allocation11 + $0x188] sm:$0xff]
        %v3664 = vld [vmem:[#allocation11 + $0x190] sm:$0xff]
        %v3665 = vld [vmem:[#allocation11 + $0x198] sm:$0xff]
        %v3666 = vld [vmem:[#allocation11 + $0x1a0] sm:$0xff]
        %v3667 = vld [vmem:[#allocation11 + $0x1a8] sm:$0xff]
        %v3668 = vld [vmem:[#allocation11 + $0x1b0] sm:$0xff]
        %v3669 = vld [vmem:[#allocation11 + $0x1b8] sm:$0xff]
        %v3670 = vld [vmem:[#allocation11 + $0x1c0] sm:$0xff]
        %v3671 = vld [vmem:[#allocation11 + $0x1c8] sm:$0xff]
        %v3672 = vld [vmem:[#allocation11 + $0x1d0] sm:$0xff]
        %v3673 = vld [vmem:[#allocation11 + $0x1d8] sm:$0xff]
        %v3674 = vld [vmem:[#allocation11 + $0x1e0] sm:$0xff]
        %v3675 = vld [vmem:[#allocation11 + $0x1e8] sm:$0xff]
        %v3676 = vld [vmem:[#allocation11 + $0x1f0] sm:$0xff]
        %v3677 = vld [vmem:[#allocation11 + $0x1f8] sm:$0xff]
        %v3678 = vld [vmem:[#allocation11 + $0x200] sm:$0xff]
        %v3679 = vld [vmem:[#allocation11 + $0x208] sm:$0xff]
        %v3680 = vld [vmem:[#allocation11 + $0x210] sm:$0xff]
        %v3681 = vld [vmem:[#allocation11 + $0x218] sm:$0xff]
        %v3682 = vld [vmem:[#allocation11 + $0x220] sm:$0xff]
        %v3683 = vld [vmem:[#allocation11 + $0x228] sm:$0xff]
        %v3684 = vld [vmem:[#allocation11 + $0x230] sm:$0xff]
        %v3685 = vld [vmem:[#allocation11 + $0x238] sm:$0xff]
        %v3686 = vld [vmem:[#allocation11 + $0x240] sm:$0xff]
        %v3687 = vld [vmem:[#allocation11 + $0x248] sm:$0xff]
        %v3688 = vld [vmem:[#allocation11 + $0x250] sm:$0xff]
        %v3689 = vld [vmem:[#allocation11 + $0x258] sm:$0xff]
        %v3690 = vld [vmem:[#allocation11 + $0x260] sm:$0xff]
        %v3691 = vld [vmem:[#allocation11 + $0x268] sm:$0xff]
        %v3692 = vld [vmem:[#allocation11 + $0x270] sm:$0xff]
        %v3693 = vld [vmem:[#allocation11 + $0x278] sm:$0xff]
        %v3694 = vld [vmem:[#allocation11 + $0x280] sm:$0xff]
        %v3695 = vld [vmem:[#allocation11 + $0x288] sm:$0xff]
        %v3696 = vld [vmem:[#allocation11 + $0x290] sm:$0xff]
        %v3697 = vld [vmem:[#allocation11 + $0x298] sm:$0xff]
        %v3698 = vld [vmem:[#allocation11 + $0x2a0] sm:$0xff]
        %v3699 = vld [vmem:[#allocation11 + $0x2a8] sm:$0xff]
        %v3700 = vld [vmem:[#allocation11 + $0x2b0] sm:$0xff]
        %v3701 = vld [vmem:[#allocation11 + $0x2b8] sm:$0xff]
        %v3702 = vld [vmem:[#allocation11 + $0x2c0] sm:$0xff]
        %v3703 = vld [vmem:[#allocation11 + $0x2c8] sm:$0xff]
        %v3704 = vld [vmem:[#allocation11 + $0x2d0] sm:$0xff]
        %v3705 = vld [vmem:[#allocation11 + $0x2d8] sm:$0xff]
        %v3706 = vld [vmem:[#allocation11 + $0x2e0] sm:$0xff]
        %v3707 = vld [vmem:[#allocation11 + $0x2e8] sm:$0xff]
        %v3708 = vld [vmem:[#allocation11 + $0x2f0] sm:$0xff]
        %v3709 = vld [vmem:[#allocation11 + $0x2f8] sm:$0xff]
        %v3710 = vld [vmem:[#allocation11 + $0x300] sm:$0xff]
        %v3711 = vld [vmem:[#allocation11 + $0x308] sm:$0xff]
        %v3712 = vld [vmem:[#allocation11 + $0x310] sm:$0xff]
        %v3713 = vld [vmem:[#allocation11 + $0x318] sm:$0xff]
        %v3714 = vld [vmem:[#allocation11 + $0x320] sm:$0xff]
        %v3715 = vld [vmem:[#allocation11 + $0x328] sm:$0xff]
        %v3716 = vld [vmem:[#allocation11 + $0x330] sm:$0xff]
        %v3717 = vld [vmem:[#allocation11 + $0x338] sm:$0xff]
        %v3718 = vld [vmem:[#allocation11 + $0x340] sm:$0xff]
        %v3719 = vld [vmem:[#allocation11 + $0x348] sm:$0xff]
        %v3720 = vld [vmem:[#allocation11 + $0x350] sm:$0xff]
        %v3721 = vld [vmem:[#allocation11 + $0x358] sm:$0xff]
        %v3722 = vld [vmem:[#allocation11 + $0x360] sm:$0xff]
        %v3723 = vld [vmem:[#allocation11 + $0x368] sm:$0xff]
        %v3724 = vld [vmem:[#allocation11 + $0x370] sm:$0xff]
        %v3725 = vld [vmem:[#allocation11 + $0x378] sm:$0xff]
        %v3726 = vld [vmem:[#allocation11 + $0x380] sm:$0xff]
        %v3727 = vld [vmem:[#allocation11 + $0x388] sm:$0xff]
        %v3728 = vld [vmem:[#allocation11 + $0x390] sm:$0xff]
        %v3729 = vld [vmem:[#allocation11 + $0x398] sm:$0xff]
        %v3730 = vld [vmem:[#allocation11 + $0x3a0] sm:$0xff]
        %v3731 = vld [vmem:[#allocation11 + $0x3a8] sm:$0xff]
        %v3732 = vld [vmem:[#allocation11 + $0x3b0] sm:$0xff]
        %v3733 = vld [vmem:[#allocation11 + $0x3b8] sm:$0xff]
        %v3734 = vld [vmem:[#allocation11 + $0x3c0] sm:$0xff]
        %v3735 = vld [vmem:[#allocation11 + $0x3c8] sm:$0xff]
        %v3736 = vld [vmem:[#allocation11 + $0x3d0] sm:$0xff]
        %v3737 = vld [vmem:[#allocation11 + $0x3d8] sm:$0xff]
        %v3738 = vld [vmem:[#allocation11 + $0x3e0] sm:$0xff]
        %v3739 = vld [vmem:[#allocation11 + $0x3e8] sm:$0xff]
        %v3740 = vld [vmem:[#allocation11 + $0x3f0] sm:$0xff]
        %v3741 = vld [vmem:[#allocation11 + $0x3f8] sm:$0xff]
        %v3742 = vld [vmem:[#allocation11 + $0x400] sm:$0xff]
        %v3743 = vld [vmem:[#allocation11 + $0x408] sm:$0xff]
        %v3744 = vld [vmem:[#allocation11 + $0x410] sm:$0xff]
        %v3745 = vld [vmem:[#allocation11 + $0x418] sm:$0xff]
        %v3746 = vld [vmem:[#allocation11 + $0x420] sm:$0xff]
        %v3747 = vld [vmem:[#allocation11 + $0x428] sm:$0xff]
        %v3748 = vld [vmem:[#allocation11 + $0x430] sm:$0xff]
        %v3749 = vld [vmem:[#allocation11 + $0x438] sm:$0xff]
        %v3750 = vld [vmem:[#allocation11 + $0x440] sm:$0xff]
        %v3751 = vld [vmem:[#allocation11 + $0x448] sm:$0xff]
        %v3752 = vld [vmem:[#allocation11 + $0x450] sm:$0xff]
        %v3753 = vld [vmem:[#allocation11 + $0x458] sm:$0xff]
        %v3754 = vld [vmem:[#allocation11 + $0x460] sm:$0xff]
        %v3755 = vld [vmem:[#allocation11 + $0x468] sm:$0xff]
        %v3756 = vld [vmem:[#allocation11 + $0x470] sm:$0xff]
        %v3757 = vld [vmem:[#allocation11 + $0x478] sm:$0xff]
        %v3758 = vld [vmem:[#allocation11 + $0x480] sm:$0xff]
        %v3759 = vld [vmem:[#allocation11 + $0x488] sm:$0xff]
        %v3760 = vld [vmem:[#allocation11 + $0x490] sm:$0xff]
        %v3761 = vld [vmem:[#allocation11 + $0x498] sm:$0xff]
        %v3762 = vld [vmem:[#allocation11 + $0x4a0] sm:$0xff]
        %v3763 = vld [vmem:[#allocation11 + $0x4a8] sm:$0xff]
        %v3764 = vld [vmem:[#allocation11 + $0x4b0] sm:$0xff]
        %v3765 = vld [vmem:[#allocation11 + $0x4b8] sm:$0xff]
        %v3766 = vld [vmem:[#allocation11 + $0x4c0] sm:$0xff]
        %v3767 = vld [vmem:[#allocation11 + $0x4c8] sm:$0xff]
        %v3768 = vld [vmem:[#allocation11 + $0x4d0] sm:$0xff]
        %v3769 = vld [vmem:[#allocation11 + $0x4d8] sm:$0xff]
        %v3770 = vld [vmem:[#allocation11 + $0x4e0] sm:$0xff]
        %v3771 = vld [vmem:[#allocation11 + $0x4e8] sm:$0xff]
        %v3772 = vld [vmem:[#allocation11 + $0x4f0] sm:$0xff]
        %v3773 = vld [vmem:[#allocation11 + $0x4f8] sm:$0xff]
        %v3774 = vld [vmem:[#allocation11 + $0x500] sm:$0xff]
        %v3775 = vld [vmem:[#allocation11 + $0x508] sm:$0xff]
        %v3776 = vld [vmem:[#allocation11 + $0x510] sm:$0xff]
        %v3777 = vld [vmem:[#allocation11 + $0x518] sm:$0xff]
        %v3778 = vld [vmem:[#allocation11 + $0x520] sm:$0xff]
        %v3779 = vld [vmem:[#allocation11 + $0x528] sm:$0xff]
        %v3780 = vld [vmem:[#allocation11 + $0x530] sm:$0xff]
        %v3781 = vld [vmem:[#allocation11 + $0x538] sm:$0xff]
        %v3782 = vld [vmem:[#allocation11 + $0x540] sm:$0xff]
        %v3783 = vld [vmem:[#allocation11 + $0x548] sm:$0xff]
        %v3784 = vld [vmem:[#allocation11 + $0x550] sm:$0xff]
        %v3785 = vld [vmem:[#allocation11 + $0x558] sm:$0xff]
        %v3786 = vld [vmem:[#allocation11 + $0x560] sm:$0xff]
        %v3787 = vld [vmem:[#allocation11 + $0x568] sm:$0xff]
        %v3788 = vld [vmem:[#allocation11 + $0x570] sm:$0xff]
        %v3789 = vld [vmem:[#allocation11 + $0x578] sm:$0xff]
        %v3790 = vld [vmem:[#allocation11 + $0x580] sm:$0xff]
        %v3791 = vld [vmem:[#allocation11 + $0x588] sm:$0xff]
        %v3792 = vld [vmem:[#allocation11 + $0x590] sm:$0xff]
        %v3793 = vld [vmem:[#allocation11 + $0x598] sm:$0xff]
        %v3794 = vld [vmem:[#allocation11 + $0x5a0] sm:$0xff]
        %v3795 = vld [vmem:[#allocation11 + $0x5a8] sm:$0xff]
        %v3796 = vld [vmem:[#allocation11 + $0x5b0] sm:$0xff]
        %v3797 = vld [vmem:[#allocation11 + $0x5b8] sm:$0xff]
        %v3798 = vld [vmem:[#allocation11 + $0x5c0] sm:$0xff]
        %v3799 = vld [vmem:[#allocation11 + $0x5c8] sm:$0xff]
        %v3800 = vld [vmem:[#allocation11 + $0x5d0] sm:$0xff]
        %v3801 = vld [vmem:[#allocation11 + $0x5d8] sm:$0xff]
        %v3802 = vld [vmem:[#allocation11 + $0x5e0] sm:$0xff]
        %v3803 = vld [vmem:[#allocation11 + $0x5e8] sm:$0xff]
        %v3804 = vld [vmem:[#allocation11 + $0x5f0] sm:$0xff]
        %v3805 = vld [vmem:[#allocation11 + $0x5f8] sm:$0xff]
        %v3806 = vld [vmem:[#allocation11 + $0x600] sm:$0xff]
        %v3807 = vld [vmem:[#allocation11 + $0x608] sm:$0xff]
        %v3808 = vld [vmem:[#allocation11 + $0x610] sm:$0xff]
        %v3809 = vld [vmem:[#allocation11 + $0x618] sm:$0xff]
        %v3810 = vld [vmem:[#allocation11 + $0x620] sm:$0xff]
        %v3811 = vld [vmem:[#allocation11 + $0x628] sm:$0xff]
        %v3812 = vld [vmem:[#allocation11 + $0x630] sm:$0xff]
        %v3813 = vld [vmem:[#allocation11 + $0x638] sm:$0xff]
        %v3814 = vld [vmem:[#allocation11 + $0x640] sm:$0xff]
        %v3815 = vld [vmem:[#allocation11 + $0x648] sm:$0xff]
        %v3816 = vld [vmem:[#allocation11 + $0x650] sm:$0xff]
        %v3817 = vld [vmem:[#allocation11 + $0x658] sm:$0xff]
        %v3818 = vld [vmem:[#allocation11 + $0x660] sm:$0xff]
        %v3819 = vld [vmem:[#allocation11 + $0x668] sm:$0xff]
        %v3820 = vld [vmem:[#allocation11 + $0x670] sm:$0xff]
        %v3821 = vld [vmem:[#allocation11 + $0x678] sm:$0xff]
        %v3822 = vld [vmem:[#allocation11 + $0x680] sm:$0xff]
        %v3823 = vld [vmem:[#allocation11 + $0x688] sm:$0xff]
        %v3824 = vld [vmem:[#allocation11 + $0x690] sm:$0xff]
        %v3825 = vld [vmem:[#allocation11 + $0x698] sm:$0xff]
        %v3826 = vld [vmem:[#allocation11 + $0x6a0] sm:$0xff]
        %v3827 = vld [vmem:[#allocation11 + $0x6a8] sm:$0xff]
        %v3828 = vld [vmem:[#allocation11 + $0x6b0] sm:$0xff]
        %v3829 = vld [vmem:[#allocation11 + $0x6b8] sm:$0xff]
        %v3830 = vld [vmem:[#allocation11 + $0x6c0] sm:$0xff]
        %v3831 = vld [vmem:[#allocation11 + $0x6c8] sm:$0xff]
        %v3832 = vld [vmem:[#allocation11 + $0x6d0] sm:$0xff]
        %v3833 = vld [vmem:[#allocation11 + $0x6d8] sm:$0xff]
        %v3834 = vld [vmem:[#allocation11 + $0x6e0] sm:$0xff]
        %v3835 = vld [vmem:[#allocation11 + $0x6e8] sm:$0xff]
        %v3836 = vld [vmem:[#allocation11 + $0x6f0] sm:$0xff]
        %v3837 = vld [vmem:[#allocation11 + $0x6f8] sm:$0xff]
        %v3838 = vld [vmem:[#allocation11 + $0x700] sm:$0xff]
        %v3839 = vld [vmem:[#allocation11 + $0x708] sm:$0xff]
        %v3840 = vld [vmem:[#allocation11 + $0x710] sm:$0xff]
        %v3841 = vld [vmem:[#allocation11 + $0x718] sm:$0xff]
        %v3842 = vld [vmem:[#allocation11 + $0x720] sm:$0xff]
        %v3843 = vld [vmem:[#allocation11 + $0x728] sm:$0xff]
        %v3844 = vld [vmem:[#allocation11 + $0x730] sm:$0xff]
        %v3845 = vld [vmem:[#allocation11 + $0x738] sm:$0xff]
        %v3846 = vld [vmem:[#allocation11 + $0x740] sm:$0xff]
        %v3847 = vld [vmem:[#allocation11 + $0x748] sm:$0xff]
        %v3848 = vld [vmem:[#allocation11 + $0x750] sm:$0xff]
        %v3849 = vld [vmem:[#allocation11 + $0x758] sm:$0xff]
        %v3850 = vld [vmem:[#allocation11 + $0x760] sm:$0xff]
        %v3851 = vld [vmem:[#allocation11 + $0x768] sm:$0xff]
        %v3852 = vld [vmem:[#allocation11 + $0x770] sm:$0xff]
        %v3853 = vld [vmem:[#allocation11 + $0x778] sm:$0xff]
        %v3854 = vld [vmem:[#allocation11 + $0x780] sm:$0xff]
        %v3855 = vld [vmem:[#allocation11 + $0x788] sm:$0xff]
        %v3856 = vld [vmem:[#allocation11 + $0x790] sm:$0xff]
        %v3857 = vld [vmem:[#allocation11 + $0x798] sm:$0xff]
        %v3858 = vld [vmem:[#allocation11 + $0x7a0] sm:$0xff]
        %v3859 = vld [vmem:[#allocation11 + $0x7a8] sm:$0xff]
        %v3860 = vld [vmem:[#allocation11 + $0x7b0] sm:$0xff]
        %v3861 = vld [vmem:[#allocation11 + $0x7b8] sm:$0xff]
        %v3862 = vld [vmem:[#allocation11 + $0x7c0] sm:$0xff]
        %v3863 = vld [vmem:[#allocation11 + $0x7c8] sm:$0xff]
        %v3864 = vld [vmem:[#allocation11 + $0x7d0] sm:$0xff]
        %v3865 = vld [vmem:[#allocation11 + $0x7d8] sm:$0xff]
        %v3866 = vld [vmem:[#allocation11 + $0x7e0] sm:$0xff]
        %v3867 = vld [vmem:[#allocation11 + $0x7e8] sm:$0xff]
        %v3868 = vld [vmem:[#allocation11 + $0x7f0] sm:$0xff]
        %v3869 = vld [vmem:[#allocation11 + $0x7f8] sm:$0xff]
        %v3870 = vld [vmem:[#allocation13] sm:$0xf]
        %v3872 = vlaneseq
        %v3873 = vshrl.u32 %v3872, 7
        %v3874 = vsub.s32 0, %v3873
        %v3875 = vrot.slane %v3870, %v3874
        %v3876 = vlaneseq
        %v3877 = vshrl.u32 %v3876, 7
        %v3878 = vsub.s32 1, %v3877
        %v3879 = vrot.slane %v3870, %v3878
        %v3880 = vlaneseq
        %v3881 = vshrl.u32 %v3880, 7
        %v3882 = vsub.s32 2, %v3881
        %v3883 = vrot.slane %v3870, %v3882
        %v3884 = vlaneseq
        %v3885 = vshrl.u32 %v3884, 7
        %v3886 = vsub.s32 3, %v3885
        %v3887 = vrot.slane %v3870, %v3886
        %v4148 = vunpack.c.l.b16 %v3614
        %v4149 = vunpack.c.h.b16 %v3614
        %v4150 = vunpack.c.l.b16 %v3615
        %v4151 = vunpack.c.h.b16 %v3615
        %v4152 = vunpack.c.l.b16 %v3616
        %v4153 = vunpack.c.h.b16 %v3616
        %v4154 = vunpack.c.l.b16 %v3617
        %v4155 = vunpack.c.h.b16 %v3617
        %v4156 = vunpack.c.l.b16 %v3618
        %v4157 = vunpack.c.h.b16 %v3618
        %v4158 = vunpack.c.l.b16 %v3619
        %v4159 = vunpack.c.h.b16 %v3619
        %v4160 = vunpack.c.l.b16 %v3620
        %v4161 = vunpack.c.h.b16 %v3620
        %v4162 = vunpack.c.l.b16 %v3621
        %v4163 = vunpack.c.h.b16 %v3621
        %v4164 = vunpack.c.l.b16 %v3622
        %v4165 = vunpack.c.h.b16 %v3622
        %v4166 = vunpack.c.l.b16 %v3623
        %v4167 = vunpack.c.h.b16 %v3623
        %v4168 = vunpack.c.l.b16 %v3624
        %v4169 = vunpack.c.h.b16 %v3624
        %v4170 = vunpack.c.l.b16 %v3625
        %v4171 = vunpack.c.h.b16 %v3625
        %v4172 = vunpack.c.l.b16 %v3626
        %v4173 = vunpack.c.h.b16 %v3626
        %v4174 = vunpack.c.l.b16 %v3627
        %v4175 = vunpack.c.h.b16 %v3627
        %v4176 = vunpack.c.l.b16 %v3628
        %v4177 = vunpack.c.h.b16 %v3628
        %v4178 = vunpack.c.l.b16 %v3629
        %v4179 = vunpack.c.h.b16 %v3629
        %v4180 = vunpack.c.l.b16 %v3630
        %v4181 = vunpack.c.h.b16 %v3630
        %v4182 = vunpack.c.l.b16 %v3631
        %v4183 = vunpack.c.h.b16 %v3631
        %v4184 = vunpack.c.l.b16 %v3632
        %v4185 = vunpack.c.h.b16 %v3632
        %v4186 = vunpack.c.l.b16 %v3633
        %v4187 = vunpack.c.h.b16 %v3633
        %v4188 = vunpack.c.l.b16 %v3634
        %v4189 = vunpack.c.h.b16 %v3634
        %v4190 = vunpack.c.l.b16 %v3635
        %v4191 = vunpack.c.h.b16 %v3635
        %v4192 = vunpack.c.l.b16 %v3636
        %v4193 = vunpack.c.h.b16 %v3636
        %v4194 = vunpack.c.l.b16 %v3637
        %v4195 = vunpack.c.h.b16 %v3637
        %v4196 = vunpack.c.l.b16 %v3638
        %v4197 = vunpack.c.h.b16 %v3638
        %v4198 = vunpack.c.l.b16 %v3639
        %v4199 = vunpack.c.h.b16 %v3639
        %v4200 = vunpack.c.l.b16 %v3640
        %v4201 = vunpack.c.h.b16 %v3640
        %v4202 = vunpack.c.l.b16 %v3641
        %v4203 = vunpack.c.h.b16 %v3641
        %v4204 = vunpack.c.l.b16 %v3642
        %v4205 = vunpack.c.h.b16 %v3642
        %v4206 = vunpack.c.l.b16 %v3643
        %v4207 = vunpack.c.h.b16 %v3643
        %v4208 = vunpack.c.l.b16 %v3644
        %v4209 = vunpack.c.h.b16 %v3644
        %v4210 = vunpack.c.l.b16 %v3645
        %v4211 = vunpack.c.h.b16 %v3645
        %v4212 = vunpack.c.l.b16 %v3646
        %v4213 = vunpack.c.h.b16 %v3646
        %v4214 = vunpack.c.l.b16 %v3647
        %v4215 = vunpack.c.h.b16 %v3647
        %v4216 = vunpack.c.l.b16 %v3648
        %v4217 = vunpack.c.h.b16 %v3648
        %v4218 = vunpack.c.l.b16 %v3649
        %v4219 = vunpack.c.h.b16 %v3649
        %v4220 = vunpack.c.l.b16 %v3650
        %v4221 = vunpack.c.h.b16 %v3650
        %v4222 = vunpack.c.l.b16 %v3651
        %v4223 = vunpack.c.h.b16 %v3651
        %v4224 = vunpack.c.l.b16 %v3652
        %v4225 = vunpack.c.h.b16 %v3652
        %v4226 = vunpack.c.l.b16 %v3653
        %v4227 = vunpack.c.h.b16 %v3653
        %v4228 = vunpack.c.l.b16 %v3654
        %v4229 = vunpack.c.h.b16 %v3654
        %v4230 = vunpack.c.l.b16 %v3655
        %v4231 = vunpack.c.h.b16 %v3655
        %v4232 = vunpack.c.l.b16 %v3656
        %v4233 = vunpack.c.h.b16 %v3656
        %v4234 = vunpack.c.l.b16 %v3657
        %v4235 = vunpack.c.h.b16 %v3657
        %v4236 = vunpack.c.l.b16 %v3658
        %v4237 = vunpack.c.h.b16 %v3658
        %v4238 = vunpack.c.l.b16 %v3659
        %v4239 = vunpack.c.h.b16 %v3659
        %v4240 = vunpack.c.l.b16 %v3660
        %v4241 = vunpack.c.h.b16 %v3660
        %v4242 = vunpack.c.l.b16 %v3661
        %v4243 = vunpack.c.h.b16 %v3661
        %v4244 = vunpack.c.l.b16 %v3662
        %v4245 = vunpack.c.h.b16 %v3662
        %v4246 = vunpack.c.l.b16 %v3663
        %v4247 = vunpack.c.h.b16 %v3663
        %v4248 = vunpack.c.l.b16 %v3664
        %v4249 = vunpack.c.h.b16 %v3664
        %v4250 = vunpack.c.l.b16 %v3665
        %v4251 = vunpack.c.h.b16 %v3665
        %v4252 = vunpack.c.l.b16 %v3666
        %v4253 = vunpack.c.h.b16 %v3666
        %v4254 = vunpack.c.l.b16 %v3667
        %v4255 = vunpack.c.h.b16 %v3667
        %v4256 = vunpack.c.l.b16 %v3668
        %v4257 = vunpack.c.h.b16 %v3668
        %v4258 = vunpack.c.l.b16 %v3669
        %v4259 = vunpack.c.h.b16 %v3669
        %v4260 = vunpack.c.l.b16 %v3670
        %v4261 = vunpack.c.h.b16 %v3670
        %v4262 = vunpack.c.l.b16 %v3671
        %v4263 = vunpack.c.h.b16 %v3671
        %v4264 = vunpack.c.l.b16 %v3672
        %v4265 = vunpack.c.h.b16 %v3672
        %v4266 = vunpack.c.l.b16 %v3673
        %v4267 = vunpack.c.h.b16 %v3673
        %v4268 = vunpack.c.l.b16 %v3674
        %v4269 = vunpack.c.h.b16 %v3674
        %v4270 = vunpack.c.l.b16 %v3675
        %v4271 = vunpack.c.h.b16 %v3675
        %v4272 = vunpack.c.l.b16 %v3676
        %v4273 = vunpack.c.h.b16 %v3676
        %v4274 = vunpack.c.l.b16 %v3677
        %v4275 = vunpack.c.h.b16 %v3677
        %v4276 = vunpack.c.l.b16 %v3678
        %v4277 = vunpack.c.h.b16 %v3678
        %v4278 = vunpack.c.l.b16 %v3679
        %v4279 = vunpack.c.h.b16 %v3679
        %v4280 = vunpack.c.l.b16 %v3680
        %v4281 = vunpack.c.h.b16 %v3680
        %v4282 = vunpack.c.l.b16 %v3681
        %v4283 = vunpack.c.h.b16 %v3681
        %v4284 = vunpack.c.l.b16 %v3682
        %v4285 = vunpack.c.h.b16 %v3682
        %v4286 = vunpack.c.l.b16 %v3683
        %v4287 = vunpack.c.h.b16 %v3683
        %v4288 = vunpack.c.l.b16 %v3684
        %v4289 = vunpack.c.h.b16 %v3684
        %v4290 = vunpack.c.l.b16 %v3685
        %v4291 = vunpack.c.h.b16 %v3685
        %v4292 = vunpack.c.l.b16 %v3686
        %v4293 = vunpack.c.h.b16 %v3686
        %v4294 = vunpack.c.l.b16 %v3687
        %v4295 = vunpack.c.h.b16 %v3687
        %v4296 = vunpack.c.l.b16 %v3688
        %v4297 = vunpack.c.h.b16 %v3688
        %v4298 = vunpack.c.l.b16 %v3689
        %v4299 = vunpack.c.h.b16 %v3689
        %v4300 = vunpack.c.l.b16 %v3690
        %v4301 = vunpack.c.h.b16 %v3690
        %v4302 = vunpack.c.l.b16 %v3691
        %v4303 = vunpack.c.h.b16 %v3691
        %v4304 = vunpack.c.l.b16 %v3692
        %v4305 = vunpack.c.h.b16 %v3692
        %v4306 = vunpack.c.l.b16 %v3693
        %v4307 = vunpack.c.h.b16 %v3693
        %v4308 = vunpack.c.l.b16 %v3694
        %v4309 = vunpack.c.h.b16 %v3694
        %v4310 = vunpack.c.l.b16 %v3695
        %v4311 = vunpack.c.h.b16 %v3695
        %v4312 = vunpack.c.l.b16 %v3696
        %v4313 = vunpack.c.h.b16 %v3696
        %v4314 = vunpack.c.l.b16 %v3697
        %v4315 = vunpack.c.h.b16 %v3697
        %v4316 = vunpack.c.l.b16 %v3698
        %v4317 = vunpack.c.h.b16 %v3698
        %v4318 = vunpack.c.l.b16 %v3699
        %v4319 = vunpack.c.h.b16 %v3699
        %v4320 = vunpack.c.l.b16 %v3700
        %v4321 = vunpack.c.h.b16 %v3700
        %v4322 = vunpack.c.l.b16 %v3701
        %v4323 = vunpack.c.h.b16 %v3701
        %v4324 = vunpack.c.l.b16 %v3702
        %v4325 = vunpack.c.h.b16 %v3702
        %v4326 = vunpack.c.l.b16 %v3703
        %v4327 = vunpack.c.h.b16 %v3703
        %v4328 = vunpack.c.l.b16 %v3704
        %v4329 = vunpack.c.h.b16 %v3704
        %v4330 = vunpack.c.l.b16 %v3705
        %v4331 = vunpack.c.h.b16 %v3705
        %v4332 = vunpack.c.l.b16 %v3706
        %v4333 = vunpack.c.h.b16 %v3706
        %v4334 = vunpack.c.l.b16 %v3707
        %v4335 = vunpack.c.h.b16 %v3707
        %v4336 = vunpack.c.l.b16 %v3708
        %v4337 = vunpack.c.h.b16 %v3708
        %v4338 = vunpack.c.l.b16 %v3709
        %v4339 = vunpack.c.h.b16 %v3709
        %v4340 = vunpack.c.l.b16 %v3710
        %v4341 = vunpack.c.h.b16 %v3710
        %v4342 = vunpack.c.l.b16 %v3711
        %v4343 = vunpack.c.h.b16 %v3711
        %v4344 = vunpack.c.l.b16 %v3712
        %v4345 = vunpack.c.h.b16 %v3712
        %v4346 = vunpack.c.l.b16 %v3713
        %v4347 = vunpack.c.h.b16 %v3713
        %v4348 = vunpack.c.l.b16 %v3714
        %v4349 = vunpack.c.h.b16 %v3714
        %v4350 = vunpack.c.l.b16 %v3715
        %v4351 = vunpack.c.h.b16 %v3715
        %v4352 = vunpack.c.l.b16 %v3716
        %v4353 = vunpack.c.h.b16 %v3716
        %v4354 = vunpack.c.l.b16 %v3717
        %v4355 = vunpack.c.h.b16 %v3717
        %v4356 = vunpack.c.l.b16 %v3718
        %v4357 = vunpack.c.h.b16 %v3718
        %v4358 = vunpack.c.l.b16 %v3719
        %v4359 = vunpack.c.h.b16 %v3719
        %v4360 = vunpack.c.l.b16 %v3720
        %v4361 = vunpack.c.h.b16 %v3720
        %v4362 = vunpack.c.l.b16 %v3721
        %v4363 = vunpack.c.h.b16 %v3721
        %v4364 = vunpack.c.l.b16 %v3722
        %v4365 = vunpack.c.h.b16 %v3722
        %v4366 = vunpack.c.l.b16 %v3723
        %v4367 = vunpack.c.h.b16 %v3723
        %v4368 = vunpack.c.l.b16 %v3724
        %v4369 = vunpack.c.h.b16 %v3724
        %v4370 = vunpack.c.l.b16 %v3725
        %v4371 = vunpack.c.h.b16 %v3725
        %v4372 = vunpack.c.l.b16 %v3726
        %v4373 = vunpack.c.h.b16 %v3726
        %v4374 = vunpack.c.l.b16 %v3727
        %v4375 = vunpack.c.h.b16 %v3727
        %v4376 = vunpack.c.l.b16 %v3728
        %v4377 = vunpack.c.h.b16 %v3728
        %v4378 = vunpack.c.l.b16 %v3729
        %v4379 = vunpack.c.h.b16 %v3729
        %v4380 = vunpack.c.l.b16 %v3730
        %v4381 = vunpack.c.h.b16 %v3730
        %v4382 = vunpack.c.l.b16 %v3731
        %v4383 = vunpack.c.h.b16 %v3731
        %v4384 = vunpack.c.l.b16 %v3732
        %v4385 = vunpack.c.h.b16 %v3732
        %v4386 = vunpack.c.l.b16 %v3733
        %v4387 = vunpack.c.h.b16 %v3733
        %v4388 = vunpack.c.l.b16 %v3734
        %v4389 = vunpack.c.h.b16 %v3734
        %v4390 = vunpack.c.l.b16 %v3735
        %v4391 = vunpack.c.h.b16 %v3735
        %v4392 = vunpack.c.l.b16 %v3736
        %v4393 = vunpack.c.h.b16 %v3736
        %v4394 = vunpack.c.l.b16 %v3737
        %v4395 = vunpack.c.h.b16 %v3737
        %v4396 = vunpack.c.l.b16 %v3738
        %v4397 = vunpack.c.h.b16 %v3738
        %v4398 = vunpack.c.l.b16 %v3739
        %v4399 = vunpack.c.h.b16 %v3739
        %v4400 = vunpack.c.l.b16 %v3740
        %v4401 = vunpack.c.h.b16 %v3740
        %v4402 = vunpack.c.l.b16 %v3741
        %v4403 = vunpack.c.h.b16 %v3741
        %v4404 = vunpack.c.l.b16 %v3742
        %v4405 = vunpack.c.h.b16 %v3742
        %v4406 = vunpack.c.l.b16 %v3743
        %v4407 = vunpack.c.h.b16 %v3743
        %v4408 = vunpack.c.l.b16 %v3744
        %v4409 = vunpack.c.h.b16 %v3744
        %v4410 = vunpack.c.l.b16 %v3745
        %v4411 = vunpack.c.h.b16 %v3745
        %v4412 = vunpack.c.l.b16 %v3746
        %v4413 = vunpack.c.h.b16 %v3746
        %v4414 = vunpack.c.l.b16 %v3747
        %v4415 = vunpack.c.h.b16 %v3747
        %v4416 = vunpack.c.l.b16 %v3748
        %v4417 = vunpack.c.h.b16 %v3748
        %v4418 = vunpack.c.l.b16 %v3749
        %v4419 = vunpack.c.h.b16 %v3749
        %v4420 = vunpack.c.l.b16 %v3750
        %v4421 = vunpack.c.h.b16 %v3750
        %v4422 = vunpack.c.l.b16 %v3751
        %v4423 = vunpack.c.h.b16 %v3751
        %v4424 = vunpack.c.l.b16 %v3752
        %v4425 = vunpack.c.h.b16 %v3752
        %v4426 = vunpack.c.l.b16 %v3753
        %v4427 = vunpack.c.h.b16 %v3753
        %v4428 = vunpack.c.l.b16 %v3754
        %v4429 = vunpack.c.h.b16 %v3754
        %v4430 = vunpack.c.l.b16 %v3755
        %v4431 = vunpack.c.h.b16 %v3755
        %v4432 = vunpack.c.l.b16 %v3756
        %v4433 = vunpack.c.h.b16 %v3756
        %v4434 = vunpack.c.l.b16 %v3757
        %v4435 = vunpack.c.h.b16 %v3757
        %v4436 = vunpack.c.l.b16 %v3758
        %v4437 = vunpack.c.h.b16 %v3758
        %v4438 = vunpack.c.l.b16 %v3759
        %v4439 = vunpack.c.h.b16 %v3759
        %v4440 = vunpack.c.l.b16 %v3760
        %v4441 = vunpack.c.h.b16 %v3760
        %v4442 = vunpack.c.l.b16 %v3761
        %v4443 = vunpack.c.h.b16 %v3761
        %v4444 = vunpack.c.l.b16 %v3762
        %v4445 = vunpack.c.h.b16 %v3762
        %v4446 = vunpack.c.l.b16 %v3763
        %v4447 = vunpack.c.h.b16 %v3763
        %v4448 = vunpack.c.l.b16 %v3764
        %v4449 = vunpack.c.h.b16 %v3764
        %v4450 = vunpack.c.l.b16 %v3765
        %v4451 = vunpack.c.h.b16 %v3765
        %v4452 = vunpack.c.l.b16 %v3766
        %v4453 = vunpack.c.h.b16 %v3766
        %v4454 = vunpack.c.l.b16 %v3767
        %v4455 = vunpack.c.h.b16 %v3767
        %v4456 = vunpack.c.l.b16 %v3768
        %v4457 = vunpack.c.h.b16 %v3768
        %v4458 = vunpack.c.l.b16 %v3769
        %v4459 = vunpack.c.h.b16 %v3769
        %v4460 = vunpack.c.l.b16 %v3770
        %v4461 = vunpack.c.h.b16 %v3770
        %v4462 = vunpack.c.l.b16 %v3771
        %v4463 = vunpack.c.h.b16 %v3771
        %v4464 = vunpack.c.l.b16 %v3772
        %v4465 = vunpack.c.h.b16 %v3772
        %v4466 = vunpack.c.l.b16 %v3773
        %v4467 = vunpack.c.h.b16 %v3773
        %v4468 = vunpack.c.l.b16 %v3774
        %v4469 = vunpack.c.h.b16 %v3774
        %v4470 = vunpack.c.l.b16 %v3775
        %v4471 = vunpack.c.h.b16 %v3775
        %v4472 = vunpack.c.l.b16 %v3776
        %v4473 = vunpack.c.h.b16 %v3776
        %v4474 = vunpack.c.l.b16 %v3777
        %v4475 = vunpack.c.h.b16 %v3777
        %v4476 = vunpack.c.l.b16 %v3778
        %v4477 = vunpack.c.h.b16 %v3778
        %v4478 = vunpack.c.l.b16 %v3779
        %v4479 = vunpack.c.h.b16 %v3779
        %v4480 = vunpack.c.l.b16 %v3780
        %v4481 = vunpack.c.h.b16 %v3780
        %v4482 = vunpack.c.l.b16 %v3781
        %v4483 = vunpack.c.h.b16 %v3781
        %v4484 = vunpack.c.l.b16 %v3782
        %v4485 = vunpack.c.h.b16 %v3782
        %v4486 = vunpack.c.l.b16 %v3783
        %v4487 = vunpack.c.h.b16 %v3783
        %v4488 = vunpack.c.l.b16 %v3784
        %v4489 = vunpack.c.h.b16 %v3784
        %v4490 = vunpack.c.l.b16 %v3785
        %v4491 = vunpack.c.h.b16 %v3785
        %v4492 = vunpack.c.l.b16 %v3786
        %v4493 = vunpack.c.h.b16 %v3786
        %v4494 = vunpack.c.l.b16 %v3787
        %v4495 = vunpack.c.h.b16 %v3787
        %v4496 = vunpack.c.l.b16 %v3788
        %v4497 = vunpack.c.h.b16 %v3788
        %v4498 = vunpack.c.l.b16 %v3789
        %v4499 = vunpack.c.h.b16 %v3789
        %v4500 = vunpack.c.l.b16 %v3790
        %v4501 = vunpack.c.h.b16 %v3790
        %v4502 = vunpack.c.l.b16 %v3791
        %v4503 = vunpack.c.h.b16 %v3791
        %v4504 = vunpack.c.l.b16 %v3792
        %v4505 = vunpack.c.h.b16 %v3792
        %v4506 = vunpack.c.l.b16 %v3793
        %v4507 = vunpack.c.h.b16 %v3793
        %v4508 = vunpack.c.l.b16 %v3794
        %v4509 = vunpack.c.h.b16 %v3794
        %v4510 = vunpack.c.l.b16 %v3795
        %v4511 = vunpack.c.h.b16 %v3795
        %v4512 = vunpack.c.l.b16 %v3796
        %v4513 = vunpack.c.h.b16 %v3796
        %v4514 = vunpack.c.l.b16 %v3797
        %v4515 = vunpack.c.h.b16 %v3797
        %v4516 = vunpack.c.l.b16 %v3798
        %v4517 = vunpack.c.h.b16 %v3798
        %v4518 = vunpack.c.l.b16 %v3799
        %v4519 = vunpack.c.h.b16 %v3799
        %v4520 = vunpack.c.l.b16 %v3800
        %v4521 = vunpack.c.h.b16 %v3800
        %v4522 = vunpack.c.l.b16 %v3801
        %v4523 = vunpack.c.h.b16 %v3801
        %v4524 = vunpack.c.l.b16 %v3802
        %v4525 = vunpack.c.h.b16 %v3802
        %v4526 = vunpack.c.l.b16 %v3803
        %v4527 = vunpack.c.h.b16 %v3803
        %v4528 = vunpack.c.l.b16 %v3804
        %v4529 = vunpack.c.h.b16 %v3804
        %v4530 = vunpack.c.l.b16 %v3805
        %v4531 = vunpack.c.h.b16 %v3805
        %v4532 = vunpack.c.l.b16 %v3806
        %v4533 = vunpack.c.h.b16 %v3806
        %v4534 = vunpack.c.l.b16 %v3807
        %v4535 = vunpack.c.h.b16 %v3807
        %v4536 = vunpack.c.l.b16 %v3808
        %v4537 = vunpack.c.h.b16 %v3808
        %v4538 = vunpack.c.l.b16 %v3809
        %v4539 = vunpack.c.h.b16 %v3809
        %v4540 = vunpack.c.l.b16 %v3810
        %v4541 = vunpack.c.h.b16 %v3810
        %v4542 = vunpack.c.l.b16 %v3811
        %v4543 = vunpack.c.h.b16 %v3811
        %v4544 = vunpack.c.l.b16 %v3812
        %v4545 = vunpack.c.h.b16 %v3812
        %v4546 = vunpack.c.l.b16 %v3813
        %v4547 = vunpack.c.h.b16 %v3813
        %v4548 = vunpack.c.l.b16 %v3814
        %v4549 = vunpack.c.h.b16 %v3814
        %v4550 = vunpack.c.l.b16 %v3815
        %v4551 = vunpack.c.h.b16 %v3815
        %v4552 = vunpack.c.l.b16 %v3816
        %v4553 = vunpack.c.h.b16 %v3816
        %v4554 = vunpack.c.l.b16 %v3817
        %v4555 = vunpack.c.h.b16 %v3817
        %v4556 = vunpack.c.l.b16 %v3818
        %v4557 = vunpack.c.h.b16 %v3818
        %v4558 = vunpack.c.l.b16 %v3819
        %v4559 = vunpack.c.h.b16 %v3819
        %v4560 = vunpack.c.l.b16 %v3820
        %v4561 = vunpack.c.h.b16 %v3820
        %v4562 = vunpack.c.l.b16 %v3821
        %v4563 = vunpack.c.h.b16 %v3821
        %v4564 = vunpack.c.l.b16 %v3822
        %v4565 = vunpack.c.h.b16 %v3822
        %v4566 = vunpack.c.l.b16 %v3823
        %v4567 = vunpack.c.h.b16 %v3823
        %v4568 = vunpack.c.l.b16 %v3824
        %v4569 = vunpack.c.h.b16 %v3824
        %v4570 = vunpack.c.l.b16 %v3825
        %v4571 = vunpack.c.h.b16 %v3825
        %v4572 = vunpack.c.l.b16 %v3826
        %v4573 = vunpack.c.h.b16 %v3826
        %v4574 = vunpack.c.l.b16 %v3827
        %v4575 = vunpack.c.h.b16 %v3827
        %v4576 = vunpack.c.l.b16 %v3828
        %v4577 = vunpack.c.h.b16 %v3828
        %v4578 = vunpack.c.l.b16 %v3829
        %v4579 = vunpack.c.h.b16 %v3829
        %v4580 = vunpack.c.l.b16 %v3830
        %v4581 = vunpack.c.h.b16 %v3830
        %v4582 = vunpack.c.l.b16 %v3831
        %v4583 = vunpack.c.h.b16 %v3831
        %v4584 = vunpack.c.l.b16 %v3832
        %v4585 = vunpack.c.h.b16 %v3832
        %v4586 = vunpack.c.l.b16 %v3833
        %v4587 = vunpack.c.h.b16 %v3833
        %v4588 = vunpack.c.l.b16 %v3834
        %v4589 = vunpack.c.h.b16 %v3834
        %v4590 = vunpack.c.l.b16 %v3835
        %v4591 = vunpack.c.h.b16 %v3835
        %v4592 = vunpack.c.l.b16 %v3836
        %v4593 = vunpack.c.h.b16 %v3836
        %v4594 = vunpack.c.l.b16 %v3837
        %v4595 = vunpack.c.h.b16 %v3837
        %v4596 = vunpack.c.l.b16 %v3838
        %v4597 = vunpack.c.h.b16 %v3838
        %v4598 = vunpack.c.l.b16 %v3839
        %v4599 = vunpack.c.h.b16 %v3839
        %v4600 = vunpack.c.l.b16 %v3840
        %v4601 = vunpack.c.h.b16 %v3840
        %v4602 = vunpack.c.l.b16 %v3841
        %v4603 = vunpack.c.h.b16 %v3841
        %v4604 = vunpack.c.l.b16 %v3842
        %v4605 = vunpack.c.h.b16 %v3842
        %v4606 = vunpack.c.l.b16 %v3843
        %v4607 = vunpack.c.h.b16 %v3843
        %v4608 = vunpack.c.l.b16 %v3844
        %v4609 = vunpack.c.h.b16 %v3844
        %v4610 = vunpack.c.l.b16 %v3845
        %v4611 = vunpack.c.h.b16 %v3845
        %v4612 = vunpack.c.l.b16 %v3846
        %v4613 = vunpack.c.h.b16 %v3846
        %v4614 = vunpack.c.l.b16 %v3847
        %v4615 = vunpack.c.h.b16 %v3847
        %v4616 = vunpack.c.l.b16 %v3848
        %v4617 = vunpack.c.h.b16 %v3848
        %v4618 = vunpack.c.l.b16 %v3849
        %v4619 = vunpack.c.h.b16 %v3849
        %v4620 = vunpack.c.l.b16 %v3850
        %v4621 = vunpack.c.h.b16 %v3850
        %v4622 = vunpack.c.l.b16 %v3851
        %v4623 = vunpack.c.h.b16 %v3851
        %v4624 = vunpack.c.l.b16 %v3852
        %v4625 = vunpack.c.h.b16 %v3852
        %v4626 = vunpack.c.l.b16 %v3853
        %v4627 = vunpack.c.h.b16 %v3853
        %v4628 = vunpack.c.l.b16 %v3854
        %v4629 = vunpack.c.h.b16 %v3854
        %v4630 = vunpack.c.l.b16 %v3855
        %v4631 = vunpack.c.h.b16 %v3855
        %v4632 = vunpack.c.l.b16 %v3856
        %v4633 = vunpack.c.h.b16 %v3856
        %v4634 = vunpack.c.l.b16 %v3857
        %v4635 = vunpack.c.h.b16 %v3857
        %v4636 = vunpack.c.l.b16 %v3858
        %v4637 = vunpack.c.h.b16 %v3858
        %v4638 = vunpack.c.l.b16 %v3859
        %v4639 = vunpack.c.h.b16 %v3859
        %v4640 = vunpack.c.l.b16 %v3860
        %v4641 = vunpack.c.h.b16 %v3860
        %v4642 = vunpack.c.l.b16 %v3861
        %v4643 = vunpack.c.h.b16 %v3861
        %v4644 = vunpack.c.l.b16 %v3862
        %v4645 = vunpack.c.h.b16 %v3862
        %v4646 = vunpack.c.l.b16 %v3863
        %v4647 = vunpack.c.h.b16 %v3863
        %v4648 = vunpack.c.l.b16 %v3864
        %v4649 = vunpack.c.h.b16 %v3864
        %v4650 = vunpack.c.l.b16 %v3865
        %v4651 = vunpack.c.h.b16 %v3865
        %v4652 = vunpack.c.l.b16 %v3866
        %v4653 = vunpack.c.h.b16 %v3866
        %v4654 = vunpack.c.l.b16 %v3867
        %v4655 = vunpack.c.h.b16 %v3867
        %v4656 = vunpack.c.l.b16 %v3868
        %v4657 = vunpack.c.h.b16 %v3868
        %v4658 = vunpack.c.l.b16 %v3869
        %v4659 = vunpack.c.h.b16 %v3869
        %v4660 = vpack.c.b16 %v4152, %v4148
        %v4661 = vpack.c.b16 %v4153, %v4149
        %v4662 = vpack.c.b16 %v4154, %v4150
        %v4663 = vpack.c.b16 %v4155, %v4151
        %v4664 = vpack.c.b16 %v4160, %v4156
        %v4665 = vpack.c.b16 %v4161, %v4157
        %v4666 = vpack.c.b16 %v4162, %v4158
        %v4667 = vpack.c.b16 %v4163, %v4159
        %v4668 = vpack.c.b16 %v4168, %v4164
        %v4669 = vpack.c.b16 %v4169, %v4165
        %v4670 = vpack.c.b16 %v4170, %v4166
        %v4671 = vpack.c.b16 %v4171, %v4167
        %v4672 = vpack.c.b16 %v4176, %v4172
        %v4673 = vpack.c.b16 %v4177, %v4173
        %v4674 = vpack.c.b16 %v4178, %v4174
        %v4675 = vpack.c.b16 %v4179, %v4175
        %v4676 = vpack.c.b16 %v4184, %v4180
        %v4677 = vpack.c.b16 %v4185, %v4181
        %v4678 = vpack.c.b16 %v4186, %v4182
        %v4679 = vpack.c.b16 %v4187, %v4183
        %v4680 = vpack.c.b16 %v4192, %v4188
        %v4681 = vpack.c.b16 %v4193, %v4189
        %v4682 = vpack.c.b16 %v4194, %v4190
        %v4683 = vpack.c.b16 %v4195, %v4191
        %v4684 = vpack.c.b16 %v4200, %v4196
        %v4685 = vpack.c.b16 %v4201, %v4197
        %v4686 = vpack.c.b16 %v4202, %v4198
        %v4687 = vpack.c.b16 %v4203, %v4199
        %v4688 = vpack.c.b16 %v4208, %v4204
        %v4689 = vpack.c.b16 %v4209, %v4205
        %v4690 = vpack.c.b16 %v4210, %v4206
        %v4691 = vpack.c.b16 %v4211, %v4207
        %v4692 = vpack.c.b16 %v4216, %v4212
        %v4693 = vpack.c.b16 %v4217, %v4213
        %v4694 = vpack.c.b16 %v4218, %v4214
        %v4695 = vpack.c.b16 %v4219, %v4215
        %v4696 = vpack.c.b16 %v4224, %v4220
        %v4697 = vpack.c.b16 %v4225, %v4221
        %v4698 = vpack.c.b16 %v4226, %v4222
        %v4699 = vpack.c.b16 %v4227, %v4223
        %v4700 = vpack.c.b16 %v4232, %v4228
        %v4701 = vpack.c.b16 %v4233, %v4229
        %v4702 = vpack.c.b16 %v4234, %v4230
        %v4703 = vpack.c.b16 %v4235, %v4231
        %v4704 = vpack.c.b16 %v4240, %v4236
        %v4705 = vpack.c.b16 %v4241, %v4237
        %v4706 = vpack.c.b16 %v4242, %v4238
        %v4707 = vpack.c.b16 %v4243, %v4239
        %v4708 = vpack.c.b16 %v4248, %v4244
        %v4709 = vpack.c.b16 %v4249, %v4245
        %v4710 = vpack.c.b16 %v4250, %v4246
        %v4711 = vpack.c.b16 %v4251, %v4247
        %v4712 = vpack.c.b16 %v4256, %v4252
        %v4713 = vpack.c.b16 %v4257, %v4253
        %v4714 = vpack.c.b16 %v4258, %v4254
        %v4715 = vpack.c.b16 %v4259, %v4255
        %v4716 = vpack.c.b16 %v4264, %v4260
        %v4717 = vpack.c.b16 %v4265, %v4261
        %v4718 = vpack.c.b16 %v4266, %v4262
        %v4719 = vpack.c.b16 %v4267, %v4263
        %v4720 = vpack.c.b16 %v4272, %v4268
        %v4721 = vpack.c.b16 %v4273, %v4269
        %v4722 = vpack.c.b16 %v4274, %v4270
        %v4723 = vpack.c.b16 %v4275, %v4271
        %v4724 = vpack.c.b16 %v4280, %v4276
        %v4725 = vpack.c.b16 %v4281, %v4277
        %v4726 = vpack.c.b16 %v4282, %v4278
        %v4727 = vpack.c.b16 %v4283, %v4279
        %v4728 = vpack.c.b16 %v4288, %v4284
        %v4729 = vpack.c.b16 %v4289, %v4285
        %v4730 = vpack.c.b16 %v4290, %v4286
        %v4731 = vpack.c.b16 %v4291, %v4287
        %v4732 = vpack.c.b16 %v4296, %v4292
        %v4733 = vpack.c.b16 %v4297, %v4293
        %v4734 = vpack.c.b16 %v4298, %v4294
        %v4735 = vpack.c.b16 %v4299, %v4295
        %v4736 = vpack.c.b16 %v4304, %v4300
        %v4737 = vpack.c.b16 %v4305, %v4301
        %v4738 = vpack.c.b16 %v4306, %v4302
        %v4739 = vpack.c.b16 %v4307, %v4303
        %v4740 = vpack.c.b16 %v4312, %v4308
        %v4741 = vpack.c.b16 %v4313, %v4309
        %v4742 = vpack.c.b16 %v4314, %v4310
        %v4743 = vpack.c.b16 %v4315, %v4311
        %v4744 = vpack.c.b16 %v4320, %v4316
        %v4745 = vpack.c.b16 %v4321, %v4317
        %v4746 = vpack.c.b16 %v4322, %v4318
        %v4747 = vpack.c.b16 %v4323, %v4319
        %v4748 = vpack.c.b16 %v4328, %v4324
        %v4749 = vpack.c.b16 %v4329, %v4325
        %v4750 = vpack.c.b16 %v4330, %v4326
        %v4751 = vpack.c.b16 %v4331, %v4327
        %v4752 = vpack.c.b16 %v4336, %v4332
        %v4753 = vpack.c.b16 %v4337, %v4333
        %v4754 = vpack.c.b16 %v4338, %v4334
        %v4755 = vpack.c.b16 %v4339, %v4335
        %v4756 = vpack.c.b16 %v4344, %v4340
        %v4757 = vpack.c.b16 %v4345, %v4341
        %v4758 = vpack.c.b16 %v4346, %v4342
        %v4759 = vpack.c.b16 %v4347, %v4343
        %v4760 = vpack.c.b16 %v4352, %v4348
        %v4761 = vpack.c.b16 %v4353, %v4349
        %v4762 = vpack.c.b16 %v4354, %v4350
        %v4763 = vpack.c.b16 %v4355, %v4351
        %v4764 = vpack.c.b16 %v4360, %v4356
        %v4765 = vpack.c.b16 %v4361, %v4357
        %v4766 = vpack.c.b16 %v4362, %v4358
        %v4767 = vpack.c.b16 %v4363, %v4359
        %v4768 = vpack.c.b16 %v4368, %v4364
        %v4769 = vpack.c.b16 %v4369, %v4365
        %v4770 = vpack.c.b16 %v4370, %v4366
        %v4771 = vpack.c.b16 %v4371, %v4367
        %v4772 = vpack.c.b16 %v4376, %v4372
        %v4773 = vpack.c.b16 %v4377, %v4373
        %v4774 = vpack.c.b16 %v4378, %v4374
        %v4775 = vpack.c.b16 %v4379, %v4375
        %v4776 = vpack.c.b16 %v4384, %v4380
        %v4777 = vpack.c.b16 %v4385, %v4381
        %v4778 = vpack.c.b16 %v4386, %v4382
        %v4779 = vpack.c.b16 %v4387, %v4383
        %v4780 = vpack.c.b16 %v4392, %v4388
        %v4781 = vpack.c.b16 %v4393, %v4389
        %v4782 = vpack.c.b16 %v4394, %v4390
        %v4783 = vpack.c.b16 %v4395, %v4391
        %v4784 = vpack.c.b16 %v4400, %v4396
        %v4785 = vpack.c.b16 %v4401, %v4397
        %v4786 = vpack.c.b16 %v4402, %v4398
        %v4787 = vpack.c.b16 %v4403, %v4399
        %v4788 = vpack.c.b16 %v4408, %v4404
        %v4789 = vpack.c.b16 %v4409, %v4405
        %v4790 = vpack.c.b16 %v4410, %v4406
        %v4791 = vpack.c.b16 %v4411, %v4407
        %v4792 = vpack.c.b16 %v4416, %v4412
        %v4793 = vpack.c.b16 %v4417, %v4413
        %v4794 = vpack.c.b16 %v4418, %v4414
        %v4795 = vpack.c.b16 %v4419, %v4415
        %v4796 = vpack.c.b16 %v4424, %v4420
        %v4797 = vpack.c.b16 %v4425, %v4421
        %v4798 = vpack.c.b16 %v4426, %v4422
        %v4799 = vpack.c.b16 %v4427, %v4423
        %v4800 = vpack.c.b16 %v4432, %v4428
        %v4801 = vpack.c.b16 %v4433, %v4429
        %v4802 = vpack.c.b16 %v4434, %v4430
        %v4803 = vpack.c.b16 %v4435, %v4431
        %v4804 = vpack.c.b16 %v4440, %v4436
        %v4805 = vpack.c.b16 %v4441, %v4437
        %v4806 = vpack.c.b16 %v4442, %v4438
        %v4807 = vpack.c.b16 %v4443, %v4439
        %v4808 = vpack.c.b16 %v4448, %v4444
        %v4809 = vpack.c.b16 %v4449, %v4445
        %v4810 = vpack.c.b16 %v4450, %v4446
        %v4811 = vpack.c.b16 %v4451, %v4447
        %v4812 = vpack.c.b16 %v4456, %v4452
        %v4813 = vpack.c.b16 %v4457, %v4453
        %v4814 = vpack.c.b16 %v4458, %v4454
        %v4815 = vpack.c.b16 %v4459, %v4455
        %v4816 = vpack.c.b16 %v4464, %v4460
        %v4817 = vpack.c.b16 %v4465, %v4461
        %v4818 = vpack.c.b16 %v4466, %v4462
        %v4819 = vpack.c.b16 %v4467, %v4463
        %v4820 = vpack.c.b16 %v4472, %v4468
        %v4821 = vpack.c.b16 %v4473, %v4469
        %v4822 = vpack.c.b16 %v4474, %v4470
        %v4823 = vpack.c.b16 %v4475, %v4471
        %v4824 = vpack.c.b16 %v4480, %v4476
        %v4825 = vpack.c.b16 %v4481, %v4477
        %v4826 = vpack.c.b16 %v4482, %v4478
        %v4827 = vpack.c.b16 %v4483, %v4479
        %v4828 = vpack.c.b16 %v4488, %v4484
        %v4829 = vpack.c.b16 %v4489, %v4485
        %v4830 = vpack.c.b16 %v4490, %v4486
        %v4831 = vpack.c.b16 %v4491, %v4487
        %v4832 = vpack.c.b16 %v4496, %v4492
        %v4833 = vpack.c.b16 %v4497, %v4493
        %v4834 = vpack.c.b16 %v4498, %v4494
        %v4835 = vpack.c.b16 %v4499, %v4495
        %v4836 = vpack.c.b16 %v4504, %v4500
        %v4837 = vpack.c.b16 %v4505, %v4501
        %v4838 = vpack.c.b16 %v4506, %v4502
        %v4839 = vpack.c.b16 %v4507, %v4503
        %v4840 = vpack.c.b16 %v4512, %v4508
        %v4841 = vpack.c.b16 %v4513, %v4509
        %v4842 = vpack.c.b16 %v4514, %v4510
        %v4843 = vpack.c.b16 %v4515, %v4511
        %v4844 = vpack.c.b16 %v4520, %v4516
        %v4845 = vpack.c.b16 %v4521, %v4517
        %v4846 = vpack.c.b16 %v4522, %v4518
        %v4847 = vpack.c.b16 %v4523, %v4519
        %v4848 = vpack.c.b16 %v4528, %v4524
        %v4849 = vpack.c.b16 %v4529, %v4525
        %v4850 = vpack.c.b16 %v4530, %v4526
        %v4851 = vpack.c.b16 %v4531, %v4527
        %v4852 = vpack.c.b16 %v4536, %v4532
        %v4853 = vpack.c.b16 %v4537, %v4533
        %v4854 = vpack.c.b16 %v4538, %v4534
        %v4855 = vpack.c.b16 %v4539, %v4535
        %v4856 = vpack.c.b16 %v4544, %v4540
        %v4857 = vpack.c.b16 %v4545, %v4541
        %v4858 = vpack.c.b16 %v4546, %v4542
        %v4859 = vpack.c.b16 %v4547, %v4543
        %v4860 = vpack.c.b16 %v4552, %v4548
        %v4861 = vpack.c.b16 %v4553, %v4549
        %v4862 = vpack.c.b16 %v4554, %v4550
        %v4863 = vpack.c.b16 %v4555, %v4551
        %v4864 = vpack.c.b16 %v4560, %v4556
        %v4865 = vpack.c.b16 %v4561, %v4557
        %v4866 = vpack.c.b16 %v4562, %v4558
        %v4867 = vpack.c.b16 %v4563, %v4559
        %v4868 = vpack.c.b16 %v4568, %v4564
        %v4869 = vpack.c.b16 %v4569, %v4565
        %v4870 = vpack.c.b16 %v4570, %v4566
        %v4871 = vpack.c.b16 %v4571, %v4567
        %v4872 = vpack.c.b16 %v4576, %v4572
        %v4873 = vpack.c.b16 %v4577, %v4573
        %v4874 = vpack.c.b16 %v4578, %v4574
        %v4875 = vpack.c.b16 %v4579, %v4575
        %v4876 = vpack.c.b16 %v4584, %v4580
        %v4877 = vpack.c.b16 %v4585, %v4581
        %v4878 = vpack.c.b16 %v4586, %v4582
        %v4879 = vpack.c.b16 %v4587, %v4583
        %v4880 = vpack.c.b16 %v4592, %v4588
        %v4881 = vpack.c.b16 %v4593, %v4589
        %v4882 = vpack.c.b16 %v4594, %v4590
        %v4883 = vpack.c.b16 %v4595, %v4591
        %v4884 = vpack.c.b16 %v4600, %v4596
        %v4885 = vpack.c.b16 %v4601, %v4597
        %v4886 = vpack.c.b16 %v4602, %v4598
        %v4887 = vpack.c.b16 %v4603, %v4599
        %v4888 = vpack.c.b16 %v4608, %v4604
        %v4889 = vpack.c.b16 %v4609, %v4605
        %v4890 = vpack.c.b16 %v4610, %v4606
        %v4891 = vpack.c.b16 %v4611, %v4607
        %v4892 = vpack.c.b16 %v4616, %v4612
        %v4893 = vpack.c.b16 %v4617, %v4613
        %v4894 = vpack.c.b16 %v4618, %v4614
        %v4895 = vpack.c.b16 %v4619, %v4615
        %v4896 = vpack.c.b16 %v4624, %v4620
        %v4897 = vpack.c.b16 %v4625, %v4621
        %v4898 = vpack.c.b16 %v4626, %v4622
        %v4899 = vpack.c.b16 %v4627, %v4623
        %v4900 = vpack.c.b16 %v4632, %v4628
        %v4901 = vpack.c.b16 %v4633, %v4629
        %v4902 = vpack.c.b16 %v4634, %v4630
        %v4903 = vpack.c.b16 %v4635, %v4631
        %v4904 = vpack.c.b16 %v4640, %v4636
        %v4905 = vpack.c.b16 %v4641, %v4637
        %v4906 = vpack.c.b16 %v4642, %v4638
        %v4907 = vpack.c.b16 %v4643, %v4639
        %v4908 = vpack.c.b16 %v4648, %v4644
        %v4909 = vpack.c.b16 %v4649, %v4645
        %v4910 = vpack.c.b16 %v4650, %v4646
        %v4911 = vpack.c.b16 %v4651, %v4647
        %v4912 = vpack.c.b16 %v4656, %v4652
        %v4913 = vpack.c.b16 %v4657, %v4653
        %v4914 = vpack.c.b16 %v4658, %v4654
        %v4915 = vpack.c.b16 %v4659, %v4655
        %5172 = vmatprep.subr.bf16.mxu0 %v4661
        %5173 = vmatpush1.bf16.msra.mxu0 %v4660
        %5174 = vmatprep.subr.bf16.mxu0 %v4665
        %5175 = vmatpush1.bf16.msra.mxu0 %v4664
        %5176 = vmatprep.subr.bf16.mxu0 %v4669
        %5177 = vmatpush1.bf16.msra.mxu0 %v4668
        %5178 = vmatprep.subr.bf16.mxu0 %v4673
        %5179 = vmatpush1.bf16.msra.mxu0 %v4672
        %5180 = vmatprep.subr.bf16.mxu0 %v4677
        %5181 = vmatpush1.bf16.msra.mxu0 %v4676
        %5182 = vmatprep.subr.bf16.mxu0 %v4681
        %5183 = vmatpush1.bf16.msra.mxu0 %v4680
        %5184 = vmatprep.subr.bf16.mxu0 %v4685
        %5185 = vmatpush1.bf16.msra.mxu0 %v4684
        %5186 = vmatprep.subr.bf16.mxu0 %v4689
        %5187 = vmatpush1.bf16.msra.mxu0 %v4688
        %5188 = vmatprep.subr.bf16.mxu0 %v4693
        %5189 = vmatpush1.bf16.msra.mxu0 %v4692
        %5190 = vmatprep.subr.bf16.mxu0 %v4697
        %5191 = vmatpush1.bf16.msra.mxu0 %v4696
        %5192 = vmatprep.subr.bf16.mxu0 %v4701
        %5193 = vmatpush1.bf16.msra.mxu0 %v4700
        %5194 = vmatprep.subr.bf16.mxu0 %v4705
        %5195 = vmatpush1.bf16.msra.mxu0 %v4704
        %5196 = vmatprep.subr.bf16.mxu0 %v4709
        %5197 = vmatpush1.bf16.msra.mxu0 %v4708
        %5198 = vmatprep.subr.bf16.mxu0 %v4713
        %5199 = vmatpush1.bf16.msra.mxu0 %v4712
        %5200 = vmatprep.subr.bf16.mxu0 %v4717
        %5201 = vmatpush1.bf16.msra.mxu0 %v4716
        %5202 = vmatprep.subr.bf16.mxu0 %v4721
        %5203 = vmatpush1.bf16.msra.mxu0 %v4720
        %5204 = vmatprep.mubr.bf16.mxu0 %v3607
        %5205 = vmatmul.mubr.bf16.gmra.mrb[0].mxu0 %v3606
        %v5206 = vpop.f32.mrb[0].mxu0
        %v5207 = vadd.f32 %v3875, %v5206
        %v5208 = vpop.f32.mrb[0].mxu0
        %v5209 = vadd.f32 %v3879, %v5208
        %v5210 = vpop.f32.mrb[0].mxu0
        %v5211 = vpop.f32.mrb[0].mxu0
        %5212 = vdwg.mxu0
        %5213 = vmatprep.subr.bf16.mxu0 %v4725
        %5214 = vmatpush1.bf16.msra.mxu0 %v4724
        %5215 = vmatprep.subr.bf16.mxu0 %v4729
        %5216 = vmatpush1.bf16.msra.mxu0 %v4728
        %5217 = vmatprep.subr.bf16.mxu0 %v4733
        %5218 = vmatpush1.bf16.msra.mxu0 %v4732
        %5219 = vmatprep.subr.bf16.mxu0 %v4737
        %5220 = vmatpush1.bf16.msra.mxu0 %v4736
        %5221 = vmatprep.subr.bf16.mxu0 %v4741
        %5222 = vmatpush1.bf16.msra.mxu0 %v4740
        %5223 = vmatprep.subr.bf16.mxu0 %v4745
        %5224 = vmatpush1.bf16.msra.mxu0 %v4744
        %5225 = vmatprep.subr.bf16.mxu0 %v4749
        %5226 = vmatpush1.bf16.msra.mxu0 %v4748
        %5227 = vmatprep.subr.bf16.mxu0 %v4753
        %5228 = vmatpush1.bf16.msra.mxu0 %v4752
        %5229 = vmatprep.subr.bf16.mxu0 %v4757
        %5230 = vmatpush1.bf16.msra.mxu0 %v4756
        %5231 = vmatprep.subr.bf16.mxu0 %v4761
        %5232 = vmatpush1.bf16.msra.mxu0 %v4760
        %5233 = vmatprep.subr.bf16.mxu0 %v4765
        %5234 = vmatpush1.bf16.msra.mxu0 %v4764
        %5235 = vmatprep.subr.bf16.mxu0 %v4769
        %5236 = vmatpush1.bf16.msra.mxu0 %v4768
        %5237 = vmatprep.subr.bf16.mxu0 %v4773
        %5238 = vmatpush1.bf16.msra.mxu0 %v4772
        %5239 = vmatprep.subr.bf16.mxu0 %v4777
        %5240 = vmatpush1.bf16.msra.mxu0 %v4776
        %5241 = vmatprep.subr.bf16.mxu0 %v4781
        %5242 = vmatpush1.bf16.msra.mxu0 %v4780
        %5243 = vmatprep.subr.bf16.mxu0 %v4785
        %5244 = vmatpush1.bf16.msra.mxu0 %v4784
        %5245 = vmatprep.mubr.bf16.mxu0 %v3609
        %5246 = vmatmul.mubr.bf16.gmra.mrb[0].mxu0 %v3608
        %v5247 = vpop.f32.mrb[0].mxu0
        %v5248 = vadd.f32 %v5207, %v5247
        %v5249 = vpop.f32.mrb[0].mxu0
        %v5250 = vadd.f32 %v5209, %v5249
        %v5251 = vpop.f32.mrb[0].mxu0
        %v5252 = vpop.f32.mrb[0].mxu0
        %5253 = vdwg.mxu0
        %5254 = vmatprep.subr.bf16.mxu0 %v4789
        %5255 = vmatpush1.bf16.msra.mxu0 %v4788
        %5256 = vmatprep.subr.bf16.mxu0 %v4793
        %5257 = vmatpush1.bf16.msra.mxu0 %v4792
        %5258 = vmatprep.subr.bf16.mxu0 %v4797
        %5259 = vmatpush1.bf16.msra.mxu0 %v4796
        %5260 = vmatprep.subr.bf16.mxu0 %v4801
        %5261 = vmatpush1.bf16.msra.mxu0 %v4800
        %5262 = vmatprep.subr.bf16.mxu0 %v4805
        %5263 = vmatpush1.bf16.msra.mxu0 %v4804
        %5264 = vmatprep.subr.bf16.mxu0 %v4809
        %5265 = vmatpush1.bf16.msra.mxu0 %v4808
        %5266 = vmatprep.subr.bf16.mxu0 %v4813
        %5267 = vmatpush1.bf16.msra.mxu0 %v4812
        %5268 = vmatprep.subr.bf16.mxu0 %v4817
        %5269 = vmatpush1.bf16.msra.mxu0 %v4816
        %5270 = vmatprep.subr.bf16.mxu0 %v4821
        %5271 = vmatpush1.bf16.msra.mxu0 %v4820
        %5272 = vmatprep.subr.bf16.mxu0 %v4825
        %5273 = vmatpush1.bf16.msra.mxu0 %v4824
        %5274 = vmatprep.subr.bf16.mxu0 %v4829
        %5275 = vmatpush1.bf16.msra.mxu0 %v4828
        %5276 = vmatprep.subr.bf16.mxu0 %v4833
        %5277 = vmatpush1.bf16.msra.mxu0 %v4832
        %5278 = vmatprep.subr.bf16.mxu0 %v4837
        %5279 = vmatpush1.bf16.msra.mxu0 %v4836
        %5280 = vmatprep.subr.bf16.mxu0 %v4841
        %5281 = vmatpush1.bf16.msra.mxu0 %v4840
        %5282 = vmatprep.subr.bf16.mxu0 %v4845
        %5283 = vmatpush1.bf16.msra.mxu0 %v4844
        %5284 = vmatprep.subr.bf16.mxu0 %v4849
        %5285 = vmatpush1.bf16.msra.mxu0 %v4848
        %5286 = vmatprep.mubr.bf16.mxu0 %v3611
        %5287 = vmatmul.mubr.bf16.gmra.mrb[0].mxu0 %v3610
        %v5288 = vpop.f32.mrb[0].mxu0
        %v5289 = vadd.f32 %v5248, %v5288
        %v5290 = vpop.f32.mrb[0].mxu0
        %v5291 = vadd.f32 %v5250, %v5290
        %v5292 = vpop.f32.mrb[0].mxu0
        %v5293 = vpop.f32.mrb[0].mxu0
        %5294 = vdwg.mxu0
        %5295 = vmatprep.subr.bf16.mxu0 %v4853
        %5296 = vmatpush1.bf16.msra.mxu0 %v4852
        %5297 = vmatprep.subr.bf16.mxu0 %v4857
        %5298 = vmatpush1.bf16.msra.mxu0 %v4856
        %5299 = vmatprep.subr.bf16.mxu0 %v4861
        %5300 = vmatpush1.bf16.msra.mxu0 %v4860
        %5301 = vmatprep.subr.bf16.mxu0 %v4865
        %5302 = vmatpush1.bf16.msra.mxu0 %v4864
        %5303 = vmatprep.subr.bf16.mxu0 %v4869
        %5304 = vmatpush1.bf16.msra.mxu0 %v4868
        %5305 = vmatprep.subr.bf16.mxu0 %v4873
        %5306 = vmatpush1.bf16.msra.mxu0 %v4872
        %5307 = vmatprep.subr.bf16.mxu0 %v4877
        %5308 = vmatpush1.bf16.msra.mxu0 %v4876
        %5309 = vmatprep.subr.bf16.mxu0 %v4881
        %5310 = vmatpush1.bf16.msra.mxu0 %v4880
        %5311 = vmatprep.subr.bf16.mxu0 %v4885
        %5312 = vmatpush1.bf16.msra.mxu0 %v4884
        %5313 = vmatprep.subr.bf16.mxu0 %v4889
        %5314 = vmatpush1.bf16.msra.mxu0 %v4888
        %5315 = vmatprep.subr.bf16.mxu0 %v4893
        %5316 = vmatpush1.bf16.msra.mxu0 %v4892
        %5317 = vmatprep.subr.bf16.mxu0 %v4897
        %5318 = vmatpush1.bf16.msra.mxu0 %v4896
        %5319 = vmatprep.subr.bf16.mxu0 %v4901
        %5320 = vmatpush1.bf16.msra.mxu0 %v4900
        %5321 = vmatprep.subr.bf16.mxu0 %v4905
        %5322 = vmatpush1.bf16.msra.mxu0 %v4904
        %5323 = vmatprep.subr.bf16.mxu0 %v4909
        %5324 = vmatpush1.bf16.msra.mxu0 %v4908
        %5325 = vmatprep.subr.bf16.mxu0 %v4913
        %5326 = vmatpush1.bf16.msra.mxu0 %v4912
        %5327 = vmatprep.mubr.bf16.mxu0 %v3613
        %5328 = vmatmul.mubr.bf16.gmra.mrb[0].mxu0 %v3612
        %v5329 = vpop.f32.mrb[0].mxu0
        %v5330 = vadd.f32 %v5289, %v5329
        %v5331 = vpop.f32.mrb[0].mxu0
        %v5332 = vadd.f32 %v5291, %v5331
        %v5333 = vpop.f32.mrb[0].mxu0
        %v5334 = vpop.f32.mrb[0].mxu0
        %5335 = vdwg.mxu0
        %5336 = vmatprep.subr.bf16.mxu0 %v4663
        %5337 = vmatpush1.bf16.msra.mxu0 %v4662
        %5338 = vmatprep.subr.bf16.mxu0 %v4667
        %5339 = vmatpush1.bf16.msra.mxu0 %v4666
        %5340 = vmatprep.subr.bf16.mxu0 %v4671
        %5341 = vmatpush1.bf16.msra.mxu0 %v4670
        %5342 = vmatprep.subr.bf16.mxu0 %v4675
        %5343 = vmatpush1.bf16.msra.mxu0 %v4674
        %5344 = vmatprep.subr.bf16.mxu0 %v4679
        %5345 = vmatpush1.bf16.msra.mxu0 %v4678
        %5346 = vmatprep.subr.bf16.mxu0 %v4683
        %5347 = vmatpush1.bf16.msra.mxu0 %v4682
        %5348 = vmatprep.subr.bf16.mxu0 %v4687
        %5349 = vmatpush1.bf16.msra.mxu0 %v4686
        %5350 = vmatprep.subr.bf16.mxu0 %v4691
        %5351 = vmatpush1.bf16.msra.mxu0 %v4690
        %5352 = vmatprep.subr.bf16.mxu0 %v4695
        %5353 = vmatpush1.bf16.msra.mxu0 %v4694
        %5354 = vmatprep.subr.bf16.mxu0 %v4699
        %5355 = vmatpush1.bf16.msra.mxu0 %v4698
        %5356 = vmatprep.subr.bf16.mxu0 %v4703
        %5357 = vmatpush1.bf16.msra.mxu0 %v4702
        %5358 = vmatprep.subr.bf16.mxu0 %v4707
        %5359 = vmatpush1.bf16.msra.mxu0 %v4706
        %5360 = vmatprep.subr.bf16.mxu0 %v4711
        %5361 = vmatpush1.bf16.msra.mxu0 %v4710
        %5362 = vmatprep.subr.bf16.mxu0 %v4715
        %5363 = vmatpush1.bf16.msra.mxu0 %v4714
        %5364 = vmatprep.subr.bf16.mxu0 %v4719
        %5365 = vmatpush1.bf16.msra.mxu0 %v4718
        %5366 = vmatprep.subr.bf16.mxu0 %v4723
        %5367 = vmatpush1.bf16.msra.mxu0 %v4722
        %5368 = vmatprep.mubr.bf16.mxu0 %v3607
        %5369 = vmatmul.mubr.bf16.gmra.mrb[0].mxu0 %v3606
        %v5370 = vpop.f32.mrb[0].mxu0
        %v5371 = vadd.f32 %v3883, %v5370
        %v5372 = vpop.f32.mrb[0].mxu0
        %v5373 = vadd.f32 %v3887, %v5372
        %v5374 = vpop.f32.mrb[0].mxu0
        %v5375 = vpop.f32.mrb[0].mxu0
        %5376 = vdwg.mxu0
        %5377 = vmatprep.subr.bf16.mxu0 %v4727
        %5378 = vmatpush1.bf16.msra.mxu0 %v4726
        %5379 = vmatprep.subr.bf16.mxu0 %v4731
        %5380 = vmatpush1.bf16.msra.mxu0 %v4730
        %5381 = vmatprep.subr.bf16.mxu0 %v4735
        %5382 = vmatpush1.bf16.msra.mxu0 %v4734
        %5383 = vmatprep.subr.bf16.mxu0 %v4739
        %5384 = vmatpush1.bf16.msra.mxu0 %v4738
        %5385 = vmatprep.subr.bf16.mxu0 %v4743
        %5386 = vmatpush1.bf16.msra.mxu0 %v4742
        %5387 = vmatprep.subr.bf16.mxu0 %v4747
        %5388 = vmatpush1.bf16.msra.mxu0 %v4746
        %5389 = vmatprep.subr.bf16.mxu0 %v4751
        %5390 = vmatpush1.bf16.msra.mxu0 %v4750
        %5391 = vmatprep.subr.bf16.mxu0 %v4755
        %5392 = vmatpush1.bf16.msra.mxu0 %v4754
        %5393 = vmatprep.subr.bf16.mxu0 %v4759
        %5394 = vmatpush1.bf16.msra.mxu0 %v4758
        %5395 = vmatprep.subr.bf16.mxu0 %v4763
        %5396 = vmatpush1.bf16.msra.mxu0 %v4762
        %5397 = vmatprep.subr.bf16.mxu0 %v4767
        %5398 = vmatpush1.bf16.msra.mxu0 %v4766
        %5399 = vmatprep.subr.bf16.mxu0 %v4771
        %5400 = vmatpush1.bf16.msra.mxu0 %v4770
        %5401 = vmatprep.subr.bf16.mxu0 %v4775
        %5402 = vmatpush1.bf16.msra.mxu0 %v4774
        %5403 = vmatprep.subr.bf16.mxu0 %v4779
        %5404 = vmatpush1.bf16.msra.mxu0 %v4778
        %5405 = vmatprep.subr.bf16.mxu0 %v4783
        %5406 = vmatpush1.bf16.msra.mxu0 %v4782
        %5407 = vmatprep.subr.bf16.mxu0 %v4787
        %5408 = vmatpush1.bf16.msra.mxu0 %v4786
        %5409 = vmatprep.mubr.bf16.mxu0 %v3609
        %5410 = vmatmul.mubr.bf16.gmra.mrb[0].mxu0 %v3608
        %v5411 = vpop.f32.mrb[0].mxu0
        %v5412 = vadd.f32 %v5371, %v5411
        %v5413 = vpop.f32.mrb[0].mxu0
        %v5414 = vadd.f32 %v5373, %v5413
        %v5415 = vpop.f32.mrb[0].mxu0
        %v5416 = vpop.f32.mrb[0].mxu0
        %5417 = vdwg.mxu0
        %5418 = vmatprep.subr.bf16.mxu0 %v4791
        %5419 = vmatpush1.bf16.msra.mxu0 %v4790
        %5420 = vmatprep.subr.bf16.mxu0 %v4795
        %5421 = vmatpush1.bf16.msra.mxu0 %v4794
        %5422 = vmatprep.subr.bf16.mxu0 %v4799
        %5423 = vmatpush1.bf16.msra.mxu0 %v4798
        %5424 = vmatprep.subr.bf16.mxu0 %v4803
        %5425 = vmatpush1.bf16.msra.mxu0 %v4802
        %5426 = vmatprep.subr.bf16.mxu0 %v4807
        %5427 = vmatpush1.bf16.msra.mxu0 %v4806
        %5428 = vmatprep.subr.bf16.mxu0 %v4811
        %5429 = vmatpush1.bf16.msra.mxu0 %v4810
        %5430 = vmatprep.subr.bf16.mxu0 %v4815
        %5431 = vmatpush1.bf16.msra.mxu0 %v4814
        %5432 = vmatprep.subr.bf16.mxu0 %v4819
        %5433 = vmatpush1.bf16.msra.mxu0 %v4818
        %5434 = vmatprep.subr.bf16.mxu0 %v4823
        %5435 = vmatpush1.bf16.msra.mxu0 %v4822
        %5436 = vmatprep.subr.bf16.mxu0 %v4827
        %5437 = vmatpush1.bf16.msra.mxu0 %v4826
        %5438 = vmatprep.subr.bf16.mxu0 %v4831
        %5439 = vmatpush1.bf16.msra.mxu0 %v4830
        %5440 = vmatprep.subr.bf16.mxu0 %v4835
        %5441 = vmatpush1.bf16.msra.mxu0 %v4834
        %5442 = vmatprep.subr.bf16.mxu0 %v4839
        %5443 = vmatpush1.bf16.msra.mxu0 %v4838
        %5444 = vmatprep.subr.bf16.mxu0 %v4843
        %5445 = vmatpush1.bf16.msra.mxu0 %v4842
        %5446 = vmatprep.subr.bf16.mxu0 %v4847
        %5447 = vmatpush1.bf16.msra.mxu0 %v4846
        %5448 = vmatprep.subr.bf16.mxu0 %v4851
        %5449 = vmatpush1.bf16.msra.mxu0 %v4850
        %5450 = vmatprep.mubr.bf16.mxu0 %v3611
        %5451 = vmatmul.mubr.bf16.gmra.mrb[0].mxu0 %v3610
        %v5452 = vpop.f32.mrb[0].mxu0
        %v5453 = vadd.f32 %v5412, %v5452
        %v5454 = vpop.f32.mrb[0].mxu0
        %v5455 = vadd.f32 %v5414, %v5454
        %v5456 = vpop.f32.mrb[0].mxu0
        %v5457 = vpop.f32.mrb[0].mxu0
        %5458 = vdwg.mxu0
        %5459 = vmatprep.subr.bf16.mxu0 %v4855
        %5460 = vmatpush1.bf16.msra.mxu0 %v4854
        %5461 = vmatprep.subr.bf16.mxu0 %v4859
        %5462 = vmatpush1.bf16.msra.mxu0 %v4858
        %5463 = vmatprep.subr.bf16.mxu0 %v4863
        %5464 = vmatpush1.bf16.msra.mxu0 %v4862
        %5465 = vmatprep.subr.bf16.mxu0 %v4867
        %5466 = vmatpush1.bf16.msra.mxu0 %v4866
        %5467 = vmatprep.subr.bf16.mxu0 %v4871
        %5468 = vmatpush1.bf16.msra.mxu0 %v4870
        %5469 = vmatprep.subr.bf16.mxu0 %v4875
        %5470 = vmatpush1.bf16.msra.mxu0 %v4874
        %5471 = vmatprep.subr.bf16.mxu0 %v4879
        %5472 = vmatpush1.bf16.msra.mxu0 %v4878
        %5473 = vmatprep.subr.bf16.mxu0 %v4883
        %5474 = vmatpush1.bf16.msra.mxu0 %v4882
        %5475 = vmatprep.subr.bf16.mxu0 %v4887
        %5476 = vmatpush1.bf16.msra.mxu0 %v4886
        %5477 = vmatprep.subr.bf16.mxu0 %v4891
        %5478 = vmatpush1.bf16.msra.mxu0 %v4890
        %5479 = vmatprep.subr.bf16.mxu0 %v4895
        %5480 = vmatpush1.bf16.msra.mxu0 %v4894
        %5481 = vmatprep.subr.bf16.mxu0 %v4899
        %5482 = vmatpush1.bf16.msra.mxu0 %v4898
        %5483 = vmatprep.subr.bf16.mxu0 %v4903
        %5484 = vmatpush1.bf16.msra.mxu0 %v4902
        %5485 = vmatprep.subr.bf16.mxu0 %v4907
        %5486 = vmatpush1.bf16.msra.mxu0 %v4906
        %5487 = vmatprep.subr.bf16.mxu0 %v4911
        %5488 = vmatpush1.bf16.msra.mxu0 %v4910
        %5489 = vmatprep.subr.bf16.mxu0 %v4915
        %5490 = vmatpush1.bf16.msra.mxu0 %v4914
        %5491 = vmatprep.mubr.bf16.mxu0 %v3613
        %5492 = vmatmul.mubr.bf16.gmra.mrb[0].mxu0 %v3612
        %v5493 = vpop.f32.mrb[0].mxu0
        %v5494 = vadd.f32 %v5453, %v5493
        %v5495 = vpop.f32.mrb[0].mxu0
        %v5496 = vadd.f32 %v5455, %v5495
        %v5497 = vpop.f32.mrb[0].mxu0
        %v5498 = vpop.f32.mrb[0].mxu0
        %5499 = vdwg.mxu0
        %v5500 = vmax.f32 %v5330, 0.0
        %v5501 = vmax.f32 %v5332, 0.0
        %v5502 = vmax.f32 %v5494, 0.0
        %v5503 = vmax.f32 %v5496, 0.0
        %v5504 = vpack.c.bf16 %v5500, %v5500
        %v5505 = vpack.c.bf16 %v5501, %v5501
        %v5506 = vpack.c.bf16 %v5502, %v5502
        %v5507 = vpack.c.bf16 %v5503, %v5503
        %v5508 = vld [vmem:[#allocation14] sm:$0xff]
        %v5509 = vld [vmem:[#allocation14 + $0x8] sm:$0xff]
        %v5510 = vld [vmem:[#allocation14 + $0x10] sm:$0xff]
        %v5511 = vld [vmem:[#allocation14 + $0x18] sm:$0xff]
        %v5512 = vld [vmem:[#allocation14 + $0x20] sm:$0xff]
        %v5513 = vld [vmem:[#allocation14 + $0x28] sm:$0xff]
        %v5514 = vld [vmem:[#allocation14 + $0x30] sm:$0xff]
        %v5515 = vld [vmem:[#allocation14 + $0x38] sm:$0xff]
        %v5516 = vld [vmem:[#allocation14 + $0x40] sm:$0xff]
        %v5517 = vld [vmem:[#allocation14 + $0x48] sm:$0xff]
        %v5518 = vld [vmem:[#allocation14 + $0x50] sm:$0xff]
        %v5519 = vld [vmem:[#allocation14 + $0x58] sm:$0xff]
        %v5520 = vld [vmem:[#allocation14 + $0x60] sm:$0xff]
        %v5521 = vld [vmem:[#allocation14 + $0x68] sm:$0xff]
        %v5522 = vld [vmem:[#allocation14 + $0x70] sm:$0xff]
        %v5523 = vld [vmem:[#allocation14 + $0x78] sm:$0xff]
        %v5524 = vld [vmem:[#allocation14 + $0x80] sm:$0xff]
        %v5525 = vld [vmem:[#allocation14 + $0x88] sm:$0xff]
        %v5526 = vld [vmem:[#allocation14 + $0x90] sm:$0xff]
        %v5527 = vld [vmem:[#allocation14 + $0x98] sm:$0xff]
        %v5528 = vld [vmem:[#allocation14 + $0xa0] sm:$0xff]
        %v5529 = vld [vmem:[#allocation14 + $0xa8] sm:$0xff]
        %v5530 = vld [vmem:[#allocation14 + $0xb0] sm:$0xff]
        %v5531 = vld [vmem:[#allocation14 + $0xb8] sm:$0xff]
        %v5532 = vld [vmem:[#allocation14 + $0xc0] sm:$0xff]
        %v5533 = vld [vmem:[#allocation14 + $0xc8] sm:$0xff]
        %v5534 = vld [vmem:[#allocation14 + $0xd0] sm:$0xff]
        %v5535 = vld [vmem:[#allocation14 + $0xd8] sm:$0xff]
        %v5536 = vld [vmem:[#allocation14 + $0xe0] sm:$0xff]
        %v5537 = vld [vmem:[#allocation14 + $0xe8] sm:$0xff]
        %v5538 = vld [vmem:[#allocation14 + $0xf0] sm:$0xff]
        %v5539 = vld [vmem:[#allocation14 + $0xf8] sm:$0xff]
        %v5540 = vld [vmem:[#allocation14 + $0x100] sm:$0xff]
        %v5541 = vld [vmem:[#allocation14 + $0x108] sm:$0xff]
        %v5542 = vld [vmem:[#allocation14 + $0x110] sm:$0xff]
        %v5543 = vld [vmem:[#allocation14 + $0x118] sm:$0xff]
        %v5544 = vld [vmem:[#allocation14 + $0x120] sm:$0xff]
        %v5545 = vld [vmem:[#allocation14 + $0x128] sm:$0xff]
        %v5546 = vld [vmem:[#allocation14 + $0x130] sm:$0xff]
        %v5547 = vld [vmem:[#allocation14 + $0x138] sm:$0xff]
        %v5548 = vld [vmem:[#allocation14 + $0x140] sm:$0xff]
        %v5549 = vld [vmem:[#allocation14 + $0x148] sm:$0xff]
        %v5550 = vld [vmem:[#allocation14 + $0x150] sm:$0xff]
        %v5551 = vld [vmem:[#allocation14 + $0x158] sm:$0xff]
        %v5552 = vld [vmem:[#allocation14 + $0x160] sm:$0xff]
        %v5553 = vld [vmem:[#allocation14 + $0x168] sm:$0xff]
        %v5554 = vld [vmem:[#allocation14 + $0x170] sm:$0xff]
        %v5555 = vld [vmem:[#allocation14 + $0x178] sm:$0xff]
        %v5556 = vld [vmem:[#allocation14 + $0x180] sm:$0xff]
        %v5557 = vld [vmem:[#allocation14 + $0x188] sm:$0xff]
        %v5558 = vld [vmem:[#allocation14 + $0x190] sm:$0xff]
        %v5559 = vld [vmem:[#allocation14 + $0x198] sm:$0xff]
        %v5560 = vld [vmem:[#allocation14 + $0x1a0] sm:$0xff]
        %v5561 = vld [vmem:[#allocation14 + $0x1a8] sm:$0xff]
        %v5562 = vld [vmem:[#allocation14 + $0x1b0] sm:$0xff]
        %v5563 = vld [vmem:[#allocation14 + $0x1b8] sm:$0xff]
        %v5564 = vld [vmem:[#allocation14 + $0x1c0] sm:$0xff]
        %v5565 = vld [vmem:[#allocation14 + $0x1c8] sm:$0xff]
        %v5566 = vld [vmem:[#allocation14 + $0x1d0] sm:$0xff]
        %v5567 = vld [vmem:[#allocation14 + $0x1d8] sm:$0xff]
        %v5568 = vld [vmem:[#allocation14 + $0x1e0] sm:$0xff]
        %v5569 = vld [vmem:[#allocation14 + $0x1e8] sm:$0xff]
        %v5570 = vld [vmem:[#allocation14 + $0x1f0] sm:$0xff]
        %v5571 = vld [vmem:[#allocation14 + $0x1f8] sm:$0xff]
        %v5572 = vld [vmem:[%s10] sm:$0x3]
        %v5574 = vlaneseq
        %v5575 = vshrl.u32 %v5574, 7
        %v5576 = vsub.s32 0, %v5575
        %v5577 = vrot.slane %v5572, %v5576
        %v5578 = vlaneseq
        %v5579 = vshrl.u32 %v5578, 7
        %v5580 = vsub.s32 1, %v5579
        %v5581 = vrot.slane %v5572, %v5580
        %v5648 = vunpack.c.l.b16 %v5508
        %v5649 = vunpack.c.h.b16 %v5508
        %v5650 = vunpack.c.l.b16 %v5509
        %v5651 = vunpack.c.h.b16 %v5509
        %v5652 = vunpack.c.l.b16 %v5510
        %v5653 = vunpack.c.h.b16 %v5510
        %v5654 = vunpack.c.l.b16 %v5511
        %v5655 = vunpack.c.h.b16 %v5511
        %v5656 = vunpack.c.l.b16 %v5512
        %v5657 = vunpack.c.h.b16 %v5512
        %v5658 = vunpack.c.l.b16 %v5513
        %v5659 = vunpack.c.h.b16 %v5513
        %v5660 = vunpack.c.l.b16 %v5514
        %v5661 = vunpack.c.h.b16 %v5514
        %v5662 = vunpack.c.l.b16 %v5515
        %v5663 = vunpack.c.h.b16 %v5515
        %v5664 = vunpack.c.l.b16 %v5516
        %v5665 = vunpack.c.h.b16 %v5516
        %v5666 = vunpack.c.l.b16 %v5517
        %v5667 = vunpack.c.h.b16 %v5517
        %v5668 = vunpack.c.l.b16 %v5518
        %v5669 = vunpack.c.h.b16 %v5518
        %v5670 = vunpack.c.l.b16 %v5519
        %v5671 = vunpack.c.h.b16 %v5519
        %v5672 = vunpack.c.l.b16 %v5520
        %v5673 = vunpack.c.h.b16 %v5520
        %v5674 = vunpack.c.l.b16 %v5521
        %v5675 = vunpack.c.h.b16 %v5521
        %v5676 = vunpack.c.l.b16 %v5522
        %v5677 = vunpack.c.h.b16 %v5522
        %v5678 = vunpack.c.l.b16 %v5523
        %v5679 = vunpack.c.h.b16 %v5523
        %v5680 = vunpack.c.l.b16 %v5524
        %v5681 = vunpack.c.h.b16 %v5524
        %v5682 = vunpack.c.l.b16 %v5525
        %v5683 = vunpack.c.h.b16 %v5525
        %v5684 = vunpack.c.l.b16 %v5526
        %v5685 = vunpack.c.h.b16 %v5526
        %v5686 = vunpack.c.l.b16 %v5527
        %v5687 = vunpack.c.h.b16 %v5527
        %v5688 = vunpack.c.l.b16 %v5528
        %v5689 = vunpack.c.h.b16 %v5528
        %v5690 = vunpack.c.l.b16 %v5529
        %v5691 = vunpack.c.h.b16 %v5529
        %v5692 = vunpack.c.l.b16 %v5530
        %v5693 = vunpack.c.h.b16 %v5530
        %v5694 = vunpack.c.l.b16 %v5531
        %v5695 = vunpack.c.h.b16 %v5531
        %v5696 = vunpack.c.l.b16 %v5532
        %v5697 = vunpack.c.h.b16 %v5532
        %v5698 = vunpack.c.l.b16 %v5533
        %v5699 = vunpack.c.h.b16 %v5533
        %v5700 = vunpack.c.l.b16 %v5534
        %v5701 = vunpack.c.h.b16 %v5534
        %v5702 = vunpack.c.l.b16 %v5535
        %v5703 = vunpack.c.h.b16 %v5535
        %v5704 = vunpack.c.l.b16 %v5536
        %v5705 = vunpack.c.h.b16 %v5536
        %v5706 = vunpack.c.l.b16 %v5537
        %v5707 = vunpack.c.h.b16 %v5537
        %v5708 = vunpack.c.l.b16 %v5538
        %v5709 = vunpack.c.h.b16 %v5538
        %v5710 = vunpack.c.l.b16 %v5539
        %v5711 = vunpack.c.h.b16 %v5539
        %v5712 = vunpack.c.l.b16 %v5540
        %v5713 = vunpack.c.h.b16 %v5540
        %v5714 = vunpack.c.l.b16 %v5541
        %v5715 = vunpack.c.h.b16 %v5541
        %v5716 = vunpack.c.l.b16 %v5542
        %v5717 = vunpack.c.h.b16 %v5542
        %v5718 = vunpack.c.l.b16 %v5543
        %v5719 = vunpack.c.h.b16 %v5543
        %v5720 = vunpack.c.l.b16 %v5544
        %v5721 = vunpack.c.h.b16 %v5544
        %v5722 = vunpack.c.l.b16 %v5545
        %v5723 = vunpack.c.h.b16 %v5545
        %v5724 = vunpack.c.l.b16 %v5546
        %v5725 = vunpack.c.h.b16 %v5546
        %v5726 = vunpack.c.l.b16 %v5547
        %v5727 = vunpack.c.h.b16 %v5547
        %v5728 = vunpack.c.l.b16 %v5548
        %v5729 = vunpack.c.h.b16 %v5548
        %v5730 = vunpack.c.l.b16 %v5549
        %v5731 = vunpack.c.h.b16 %v5549
        %v5732 = vunpack.c.l.b16 %v5550
        %v5733 = vunpack.c.h.b16 %v5550
        %v5734 = vunpack.c.l.b16 %v5551
        %v5735 = vunpack.c.h.b16 %v5551
        %v5736 = vunpack.c.l.b16 %v5552
        %v5737 = vunpack.c.h.b16 %v5552
        %v5738 = vunpack.c.l.b16 %v5553
        %v5739 = vunpack.c.h.b16 %v5553
        %v5740 = vunpack.c.l.b16 %v5554
        %v5741 = vunpack.c.h.b16 %v5554
        %v5742 = vunpack.c.l.b16 %v5555
        %v5743 = vunpack.c.h.b16 %v5555
        %v5744 = vunpack.c.l.b16 %v5556
        %v5745 = vunpack.c.h.b16 %v5556
        %v5746 = vunpack.c.l.b16 %v5557
        %v5747 = vunpack.c.h.b16 %v5557
        %v5748 = vunpack.c.l.b16 %v5558
        %v5749 = vunpack.c.h.b16 %v5558
        %v5750 = vunpack.c.l.b16 %v5559
        %v5751 = vunpack.c.h.b16 %v5559
        %v5752 = vunpack.c.l.b16 %v5560
        %v5753 = vunpack.c.h.b16 %v5560
        %v5754 = vunpack.c.l.b16 %v5561
        %v5755 = vunpack.c.h.b16 %v5561
        %v5756 = vunpack.c.l.b16 %v5562
        %v5757 = vunpack.c.h.b16 %v5562
        %v5758 = vunpack.c.l.b16 %v5563
        %v5759 = vunpack.c.h.b16 %v5563
        %v5760 = vunpack.c.l.b16 %v5564
        %v5761 = vunpack.c.h.b16 %v5564
        %v5762 = vunpack.c.l.b16 %v5565
        %v5763 = vunpack.c.h.b16 %v5565
        %v5764 = vunpack.c.l.b16 %v5566
        %v5765 = vunpack.c.h.b16 %v5566
        %v5766 = vunpack.c.l.b16 %v5567
        %v5767 = vunpack.c.h.b16 %v5567
        %v5768 = vunpack.c.l.b16 %v5568
        %v5769 = vunpack.c.h.b16 %v5568
        %v5770 = vunpack.c.l.b16 %v5569
        %v5771 = vunpack.c.h.b16 %v5569
        %v5772 = vunpack.c.l.b16 %v5570
        %v5773 = vunpack.c.h.b16 %v5570
        %v5774 = vunpack.c.l.b16 %v5571
        %v5775 = vunpack.c.h.b16 %v5571
        %v5776 = vpack.c.b16 %v5650, %v5648
        %v5777 = vpack.c.b16 %v5651, %v5649
        %v5778 = vpack.c.b16 %v5654, %v5652
        %v5779 = vpack.c.b16 %v5655, %v5653
        %v5780 = vpack.c.b16 %v5658, %v5656
        %v5781 = vpack.c.b16 %v5659, %v5657
        %v5782 = vpack.c.b16 %v5662, %v5660
        %v5783 = vpack.c.b16 %v5663, %v5661
        %v5784 = vpack.c.b16 %v5666, %v5664
        %v5785 = vpack.c.b16 %v5667, %v5665
        %v5786 = vpack.c.b16 %v5670, %v5668
        %v5787 = vpack.c.b16 %v5671, %v5669
        %v5788 = vpack.c.b16 %v5674, %v5672
        %v5789 = vpack.c.b16 %v5675, %v5673
        %v5790 = vpack.c.b16 %v5678, %v5676
        %v5791 = vpack.c.b16 %v5679, %v5677
        %v5792 = vpack.c.b16 %v5682, %v5680
        %v5793 = vpack.c.b16 %v5683, %v5681
        %v5794 = vpack.c.b16 %v5686, %v5684
        %v5795 = vpack.c.b16 %v5687, %v5685
        %v5796 = vpack.c.b16 %v5690, %v5688
        %v5797 = vpack.c.b16 %v5691, %v5689
        %v5798 = vpack.c.b16 %v5694, %v5692
        %v5799 = vpack.c.b16 %v5695, %v5693
        %v5800 = vpack.c.b16 %v5698, %v5696
        %v5801 = vpack.c.b16 %v5699, %v5697
        %v5802 = vpack.c.b16 %v5702, %v5700
        %v5803 = vpack.c.b16 %v5703, %v5701
        %v5804 = vpack.c.b16 %v5706, %v5704
        %v5805 = vpack.c.b16 %v5707, %v5705
        %v5806 = vpack.c.b16 %v5710, %v5708
        %v5807 = vpack.c.b16 %v5711, %v5709
        %v5808 = vpack.c.b16 %v5714, %v5712
        %v5809 = vpack.c.b16 %v5715, %v5713
        %v5810 = vpack.c.b16 %v5718, %v5716
        %v5811 = vpack.c.b16 %v5719, %v5717
        %v5812 = vpack.c.b16 %v5722, %v5720
        %v5813 = vpack.c.b16 %v5723, %v5721
        %v5814 = vpack.c.b16 %v5726, %v5724
        %v5815 = vpack.c.b16 %v5727, %v5725
        %v5816 = vpack.c.b16 %v5730, %v5728
        %v5817 = vpack.c.b16 %v5731, %v5729
        %v5818 = vpack.c.b16 %v5734, %v5732
        %v5819 = vpack.c.b16 %v5735, %v5733
        %v5820 = vpack.c.b16 %v5738, %v5736
        %v5821 = vpack.c.b16 %v5739, %v5737
        %v5822 = vpack.c.b16 %v5742, %v5740
        %v5823 = vpack.c.b16 %v5743, %v5741
        %v5824 = vpack.c.b16 %v5746, %v5744
        %v5825 = vpack.c.b16 %v5747, %v5745
        %v5826 = vpack.c.b16 %v5750, %v5748
        %v5827 = vpack.c.b16 %v5751, %v5749
        %v5828 = vpack.c.b16 %v5754, %v5752
        %v5829 = vpack.c.b16 %v5755, %v5753
        %v5830 = vpack.c.b16 %v5758, %v5756
        %v5831 = vpack.c.b16 %v5759, %v5757
        %v5832 = vpack.c.b16 %v5762, %v5760
        %v5833 = vpack.c.b16 %v5763, %v5761
        %v5834 = vpack.c.b16 %v5766, %v5764
        %v5835 = vpack.c.b16 %v5767, %v5765
        %v5836 = vpack.c.b16 %v5770, %v5768
        %v5837 = vpack.c.b16 %v5771, %v5769
        %v5838 = vpack.c.b16 %v5774, %v5772
        %v5839 = vpack.c.b16 %v5775, %v5773
        %5904 = vmatprep.subr.bf16.mxu0 %v5777
        %5905 = vmatpush1.bf16.msra.mxu0 %v5776
        %5906 = vmatprep.subr.bf16.mxu0 %v5779
        %5907 = vmatpush1.bf16.msra.mxu0 %v5778
        %5908 = vmatprep.subr.bf16.mxu0 %v5781
        %5909 = vmatpush1.bf16.msra.mxu0 %v5780
        %5910 = vmatprep.subr.bf16.mxu0 %v5783
        %5911 = vmatpush1.bf16.msra.mxu0 %v5782
        %5912 = vmatprep.subr.bf16.mxu0 %v5785
        %5913 = vmatpush1.bf16.msra.mxu0 %v5784
        %5914 = vmatprep.subr.bf16.mxu0 %v5787
        %5915 = vmatpush1.bf16.msra.mxu0 %v5786
        %5916 = vmatprep.subr.bf16.mxu0 %v5789
        %5917 = vmatpush1.bf16.msra.mxu0 %v5788
        %5918 = vmatprep.subr.bf16.mxu0 %v5791
        %5919 = vmatpush1.bf16.msra.mxu0 %v5790
        %5920 = vmatprep.subr.bf16.mxu0 %v5793
        %5921 = vmatpush1.bf16.msra.mxu0 %v5792
        %5922 = vmatprep.subr.bf16.mxu0 %v5795
        %5923 = vmatpush1.bf16.msra.mxu0 %v5794
        %5924 = vmatprep.subr.bf16.mxu0 %v5797
        %5925 = vmatpush1.bf16.msra.mxu0 %v5796
        %5926 = vmatprep.subr.bf16.mxu0 %v5799
        %5927 = vmatpush1.bf16.msra.mxu0 %v5798
        %5928 = vmatprep.subr.bf16.mxu0 %v5801
        %5929 = vmatpush1.bf16.msra.mxu0 %v5800
        %5930 = vmatprep.subr.bf16.mxu0 %v5803
        %5931 = vmatpush1.bf16.msra.mxu0 %v5802
        %5932 = vmatprep.subr.bf16.mxu0 %v5805
        %5933 = vmatpush1.bf16.msra.mxu0 %v5804
        %5934 = vmatprep.subr.bf16.mxu0 %v5807
        %5935 = vmatpush1.bf16.msra.mxu0 %v5806
        %5936 = vmatprep.mubr.bf16.mxu0 %v5505
        %5937 = vmatmul.mubr.bf16.gmra.mrb[0].mxu0 %v5504
        %v5938 = vpop.f32.mrb[0].mxu0
        %v5939 = vadd.f32 %v5577, %v5938
        %v5940 = vpop.f32.mrb[0].mxu0
        %v5941 = vadd.f32 %v5581, %v5940
        %v5942 = vpop.f32.mrb[0].mxu0
        %v5943 = vpop.f32.mrb[0].mxu0
        %5944 = vdwg.mxu0
        %5945 = vmatprep.subr.bf16.mxu0 %v5809
        %5946 = vmatpush1.bf16.msra.mxu0 %v5808
        %5947 = vmatprep.subr.bf16.mxu0 %v5811
        %5948 = vmatpush1.bf16.msra.mxu0 %v5810
        %5949 = vmatprep.subr.bf16.mxu0 %v5813
        %5950 = vmatpush1.bf16.msra.mxu0 %v5812
        %5951 = vmatprep.subr.bf16.mxu0 %v5815
        %5952 = vmatpush1.bf16.msra.mxu0 %v5814
        %5953 = vmatprep.subr.bf16.mxu0 %v5817
        %5954 = vmatpush1.bf16.msra.mxu0 %v5816
        %5955 = vmatprep.subr.bf16.mxu0 %v5819
        %5956 = vmatpush1.bf16.msra.mxu0 %v5818
        %5957 = vmatprep.subr.bf16.mxu0 %v5821
        %5958 = vmatpush1.bf16.msra.mxu0 %v5820
        %5959 = vmatprep.subr.bf16.mxu0 %v5823
        %5960 = vmatpush1.bf16.msra.mxu0 %v5822
        %5961 = vmatprep.subr.bf16.mxu0 %v5825
        %5962 = vmatpush1.bf16.msra.mxu0 %v5824
        %5963 = vmatprep.subr.bf16.mxu0 %v5827
        %5964 = vmatpush1.bf16.msra.mxu0 %v5826
        %5965 = vmatprep.subr.bf16.mxu0 %v5829
        %5966 = vmatpush1.bf16.msra.mxu0 %v5828
        %5967 = vmatprep.subr.bf16.mxu0 %v5831
        %5968 = vmatpush1.bf16.msra.mxu0 %v5830
        %5969 = vmatprep.subr.bf16.mxu0 %v5833
        %5970 = vmatpush1.bf16.msra.mxu0 %v5832
        %5971 = vmatprep.subr.bf16.mxu0 %v5835
        %5972 = vmatpush1.bf16.msra.mxu0 %v5834
        %5973 = vmatprep.subr.bf16.mxu0 %v5837
        %5974 = vmatpush1.bf16.msra.mxu0 %v5836
        %5975 = vmatprep.subr.bf16.mxu0 %v5839
        %5976 = vmatpush1.bf16.msra.mxu0 %v5838
        %5977 = vmatprep.mubr.bf16.mxu0 %v5507
        %5978 = vmatmul.mubr.bf16.gmra.mrb[0].mxu0 %v5506
        %v5979 = vpop.f32.mrb[0].mxu0
        %v5980 = vadd.f32 %v5939, %v5979
        %v5981 = vpop.f32.mrb[0].mxu0
        %v5982 = vadd.f32 %v5941, %v5981
        %v5983 = vpop.f32.mrb[0].mxu0
        %v5984 = vpop.f32.mrb[0].mxu0
        %5985 = vdwg.mxu0
        %v5986 = vmax.f32 %v5980, 0.0
        %v5987 = vmax.f32 %v5982, 0.0
        %v5988 = vpack.c.bf16 %v5986, %v5986
        %v5989 = vpack.c.bf16 %v5987, %v5987
        %v5990 = vld [vmem:[#allocation16] sm:$0xf]
        %v5991 = vld [vmem:[#allocation16 + $0x4] sm:$0xf]
        %v5992 = vld [vmem:[#allocation16 + $0x8] sm:$0xf]
        %v5993 = vld [vmem:[#allocation16 + $0xc] sm:$0xf]
        %v5994 = vld [vmem:[#allocation16 + $0x10] sm:$0xf]
        %v5995 = vld [vmem:[#allocation16 + $0x14] sm:$0xf]
        %v5996 = vld [vmem:[#allocation16 + $0x18] sm:$0xf]
        %v5997 = vld [vmem:[#allocation16 + $0x1c] sm:$0xf]
        %v5998 = vld [vmem:[#allocation16 + $0x20] sm:$0xf]
        %v5999 = vld [vmem:[#allocation16 + $0x24] sm:$0xf]
        %v6000 = vld [vmem:[#allocation16 + $0x28] sm:$0xf]
        %v6001 = vld [vmem:[#allocation16 + $0x2c] sm:$0xf]
        %v6002 = vld [vmem:[#allocation16 + $0x30] sm:$0xf]
        %v6003 = vld [vmem:[#allocation16 + $0x34] sm:$0xf]
        %v6004 = vld [vmem:[#allocation16 + $0x38] sm:$0xf]
        %v6005 = vld [vmem:[#allocation16 + $0x3c] sm:$0xf]
        %v6006 = vld [vmem:[#allocation16 + $0x40] sm:$0xf]
        %v6007 = vld [vmem:[#allocation16 + $0x44] sm:$0xf]
        %v6008 = vld [vmem:[#allocation16 + $0x48] sm:$0xf]
        %v6009 = vld [vmem:[#allocation16 + $0x4c] sm:$0xf]
        %v6010 = vld [vmem:[#allocation16 + $0x50] sm:$0xf]
        %v6011 = vld [vmem:[#allocation16 + $0x54] sm:$0xf]
        %v6012 = vld [vmem:[#allocation16 + $0x58] sm:$0xf]
        %v6013 = vld [vmem:[#allocation16 + $0x5c] sm:$0xf]
        %v6014 = vld [vmem:[#allocation16 + $0x60] sm:$0xf]
        %v6015 = vld [vmem:[#allocation16 + $0x64] sm:$0xf]
        %v6016 = vld [vmem:[#allocation16 + $0x68] sm:$0xf]
        %v6017 = vld [vmem:[#allocation16 + $0x6c] sm:$0xf]
        %v6018 = vld [vmem:[#allocation16 + $0x70] sm:$0xf]
        %v6019 = vld [vmem:[#allocation16 + $0x74] sm:$0xf]
        %v6020 = vld [vmem:[#allocation16 + $0x78] sm:$0xf]
        %v6021 = vld [vmem:[#allocation16 + $0x7c] sm:$0xf]
        %v6022 = vld [vmem:[%s12] sm:$0x1]
        %v6024 = vlaneseq
        %v6025 = vshrl.u32 %v6024, 7
        %v6026 = vsub.s32 0, %v6025
        %v6027 = vrot.slane %v6022, %v6026
        %v6061 = vunpack.c.l.b16 %v5990
        %v6062 = vunpack.c.l.b16 %v5991
        %v6063 = vunpack.c.l.b16 %v5992
        %v6064 = vunpack.c.l.b16 %v5993
        %v6065 = vunpack.c.l.b16 %v5994
        %v6066 = vunpack.c.l.b16 %v5995
        %v6067 = vunpack.c.l.b16 %v5996
        %v6068 = vunpack.c.l.b16 %v5997
        %v6069 = vunpack.c.l.b16 %v5998
        %v6070 = vunpack.c.l.b16 %v5999
        %v6071 = vunpack.c.l.b16 %v6000
        %v6072 = vunpack.c.l.b16 %v6001
        %v6073 = vunpack.c.l.b16 %v6002
        %v6074 = vunpack.c.l.b16 %v6003
        %v6075 = vunpack.c.l.b16 %v6004
        %v6076 = vunpack.c.l.b16 %v6005
        %v6077 = vunpack.c.l.b16 %v6006
        %v6078 = vunpack.c.l.b16 %v6007
        %v6079 = vunpack.c.l.b16 %v6008
        %v6080 = vunpack.c.l.b16 %v6009
        %v6081 = vunpack.c.l.b16 %v6010
        %v6082 = vunpack.c.l.b16 %v6011
        %v6083 = vunpack.c.l.b16 %v6012
        %v6084 = vunpack.c.l.b16 %v6013
        %v6085 = vunpack.c.l.b16 %v6014
        %v6086 = vunpack.c.l.b16 %v6015
        %v6087 = vunpack.c.l.b16 %v6016
        %v6088 = vunpack.c.l.b16 %v6017
        %v6089 = vunpack.c.l.b16 %v6018
        %v6090 = vunpack.c.l.b16 %v6019
        %v6091 = vunpack.c.l.b16 %v6020
        %v6092 = vunpack.c.l.b16 %v6021
        %v6093 = vpack.c.b16 %v6062, %v6061
        %v6094 = vpack.c.b16 %v6064, %v6063
        %v6095 = vpack.c.b16 %v6066, %v6065
        %v6096 = vpack.c.b16 %v6068, %v6067
        %v6097 = vpack.c.b16 %v6070, %v6069
        %v6098 = vpack.c.b16 %v6072, %v6071
        %v6099 = vpack.c.b16 %v6074, %v6073
        %v6100 = vpack.c.b16 %v6076, %v6075
        %v6101 = vpack.c.b16 %v6078, %v6077
        %v6102 = vpack.c.b16 %v6080, %v6079
        %v6103 = vpack.c.b16 %v6082, %v6081
        %v6104 = vpack.c.b16 %v6084, %v6083
        %v6105 = vpack.c.b16 %v6086, %v6085
        %v6106 = vpack.c.b16 %v6088, %v6087
        %v6107 = vpack.c.b16 %v6090, %v6089
        %v6108 = vpack.c.b16 %v6092, %v6091
        %6125 = vmatprep.subr.bf16.mxu0 0
        %6126 = vmatpush1.bf16.msra.mxu0 %v6093
        %6127 = vmatprep.subr.bf16.mxu0 0
        %6128 = vmatpush1.bf16.msra.mxu0 %v6094
        %6129 = vmatprep.subr.bf16.mxu0 0
        %6130 = vmatpush1.bf16.msra.mxu0 %v6095
        %6131 = vmatprep.subr.bf16.mxu0 0
        %6132 = vmatpush1.bf16.msra.mxu0 %v6096
        %6133 = vmatprep.subr.bf16.mxu0 0
        %6134 = vmatpush1.bf16.msra.mxu0 %v6097
        %6135 = vmatprep.subr.bf16.mxu0 0
        %6136 = vmatpush1.bf16.msra.mxu0 %v6098
        %6137 = vmatprep.subr.bf16.mxu0 0
        %6138 = vmatpush1.bf16.msra.mxu0 %v6099
        %6139 = vmatprep.subr.bf16.mxu0 0
        %6140 = vmatpush1.bf16.msra.mxu0 %v6100
        %6141 = vmatprep.subr.bf16.mxu0 0
        %6142 = vmatpush1.bf16.msra.mxu0 %v6101
        %6143 = vmatprep.subr.bf16.mxu0 0
        %6144 = vmatpush1.bf16.msra.mxu0 %v6102
        %6145 = vmatprep.subr.bf16.mxu0 0
        %6146 = vmatpush1.bf16.msra.mxu0 %v6103
        %6147 = vmatprep.subr.bf16.mxu0 0
        %6148 = vmatpush1.bf16.msra.mxu0 %v6104
        %6149 = vmatprep.subr.bf16.mxu0 0
        %6150 = vmatpush1.bf16.msra.mxu0 %v6105
        %6151 = vmatprep.subr.bf16.mxu0 0
        %6152 = vmatpush1.bf16.msra.mxu0 %v6106
        %6153 = vmatprep.subr.bf16.mxu0 0
        %6154 = vmatpush1.bf16.msra.mxu0 %v6107
        %6155 = vmatprep.subr.bf16.mxu0 0
        %6156 = vmatpush1.bf16.msra.mxu0 %v6108
        %6157 = vmatprep.mubr.bf16.mxu0 %v5989
        %6158 = vmatmul.mubr.bf16.gmra.mrb[0].mxu0 %v5988
        %v6159 = vpop.f32.mrb[0].mxu0
        %v6160 = vadd.f32 %v6027, %v6159
        %v6161 = vpop.f32.mrb[0].mxu0
        %v6162 = vpop.f32.mrb[0].mxu0
        %v6163 = vpop.f32.mrb[0].mxu0
        %6164 = vdwg.mxu0
        %6165 = vst [vmem:[%s768] sm:$0x1] %v6160
        %6167 = vset.pattern.permute.xlu0 0
        %6168 = vperm.xlu0 %6167, %v6160
        %v6169 = vpop.permute.xlu0 %6168
        %v6171 = vmul.f32 %v6169, %v851
        %6172 = vset.pattern.permute.xlu0 1
        %6173 = vperm.xlu0 %6172, %v6160
        %v6174 = vpop.permute.xlu0 %6173
        %v6177 = vrot.slane %v851, 1
        %v6179 = vmul.f32 %v6174, %v6177
        %v6180 = vadd.f32 %v6171, %v6179
        %6181 = vset.pattern.permute.xlu0 2
        %6182 = vperm.xlu0 %6181, %v6160
        %v6183 = vpop.permute.xlu0 %6182
        %v6185 = vrot.slane %v851, 2
        %v6187 = vmul.f32 %v6183, %v6185
        %v6188 = vadd.f32 %v6180, %v6187
        %6189 = vset.pattern.permute.xlu0 3
        %6190 = vperm.xlu0 %6189, %v6160
        %v6191 = vpop.permute.xlu0 %6190
        %v6193 = vmul.f32 %v6191, %v851
        %6194 = vset.pattern.permute.xlu0 4
        %6195 = vperm.xlu0 %6194, %v6160
        %v6196 = vpop.permute.xlu0 %6195
        %v6198 = vmul.f32 %v6196, %v6177
        %v6199 = vadd.f32 %v6193, %v6198
        %6200 = vset.pattern.permute.xlu0 5
        %6201 = vperm.xlu0 %6200, %v6160
        %v6202 = vpop.permute.xlu0 %6201
        %v6204 = vmul.f32 %v6202, %v6185
        %v6205 = vadd.f32 %v6199, %v6204
        %6206 = vset.pattern.permute.xlu0 6
        %6207 = vperm.xlu0 %6206, %v6160
        %v6208 = vpop.permute.xlu0 %6207
        %v6210 = vmul.f32 %v6208, %v851
        %6211 = vset.pattern.permute.xlu0 7
        %6212 = vperm.xlu0 %6211, %v6160
        %v6213 = vpop.permute.xlu0 %6212
        %v6215 = vmul.f32 %v6213, %v6177
        %v6216 = vadd.f32 %v6210, %v6215
        %6217 = vset.pattern.permute.xlu0 8
        %6218 = vperm.xlu0 %6217, %v6160
        %v6219 = vpop.permute.xlu0 %6218
        %v6221 = vmul.f32 %v6219, %v6185
        %v6222 = vadd.f32 %v6216, %v6221
        %v6223 = vld [vmem:[%s773] sm:$0xff]
        %v6224 = vld [vmem:[%s773 + $0x8] sm:$0xff]
        %v6225 = vld [vmem:[%s773 + $0x10] sm:$0xff]
        %v6226 = vld [vmem:[%s773 + $0x18] sm:$0xff]
        %v6227 = vld [vmem:[%s773 + $0x20] sm:$0xff]
        %v6228 = vld [vmem:[%s773 + $0x28] sm:$0xff]
        %v6229 = vld [vmem:[%s773 + $0x30] sm:$0xff]
        %v6230 = vld [vmem:[%s773 + $0x38] sm:$0xff]
        %v6231 = vld [vmem:[%s773 + $0x40] sm:$0xff]
        %v6232 = vld [vmem:[%s773 + $0x48] sm:$0xff]
        %v6233 = vld [vmem:[%s773 + $0x50] sm:$0xff]
        %v6234 = vld [vmem:[%s773 + $0x58] sm:$0xff]
        %v6235 = vld [vmem:[%s773 + $0x60] sm:$0xff]
        %v6236 = vld [vmem:[%s773 + $0x68] sm:$0xff]
        %v6237 = vld [vmem:[%s773 + $0x70] sm:$0xff]
        %v6238 = vld [vmem:[%s773 + $0x78] sm:$0xff]
        %v6239 = vld [vmem:[%s773 + $0x80] sm:$0xff]
        %v6240 = vld [vmem:[%s773 + $0x88] sm:$0xff]
        %v6241 = vld [vmem:[%s773 + $0x90] sm:$0xff]
        %v6242 = vld [vmem:[%s773 + $0x98] sm:$0xff]
        %v6243 = vld [vmem:[%s773 + $0xa0] sm:$0xff]
        %v6244 = vld [vmem:[%s773 + $0xa8] sm:$0xff]
        %v6245 = vld [vmem:[%s773 + $0xb0] sm:$0xff]
        %v6246 = vld [vmem:[%s773 + $0xb8] sm:$0xff]
        %v6247 = vld [vmem:[%s773 + $0xc0] sm:$0xff]
        %v6248 = vld [vmem:[%s773 + $0xc8] sm:$0xff]
        %v6249 = vld [vmem:[%s773 + $0xd0] sm:$0xff]
        %v6250 = vld [vmem:[%s773 + $0xd8] sm:$0xff]
        %v6251 = vld [vmem:[%s773 + $0xe0] sm:$0xff]
        %v6252 = vld [vmem:[%s773 + $0xe8] sm:$0xff]
        %v6253 = vld [vmem:[%s773 + $0xf0] sm:$0xff]
        %v6254 = vld [vmem:[%s773 + $0xf8] sm:$0xff]
        %6256 = vset.pattern.permute.xlu0 0
        %6257 = vperm.xlu0 %6256, %v6223
        %v6258 = vpop.permute.xlu0 %6257
        %6261 = vset.pattern.permute.xlu0 0
        %6262 = vperm.xlu0 %6261, %v6224
        %v6263 = vpop.permute.xlu0 %6262
        %6266 = vset.pattern.permute.xlu0 0
        %6267 = vperm.xlu0 %6266, %v6225
        %v6268 = vpop.permute.xlu0 %6267
        %6271 = vset.pattern.permute.xlu0 0
        %6272 = vperm.xlu0 %6271, %v6226
        %v6273 = vpop.permute.xlu0 %6272
        %6276 = vset.pattern.permute.xlu0 0
        %6277 = vperm.xlu0 %6276, %v6227
        %v6278 = vpop.permute.xlu0 %6277
        %6281 = vset.pattern.permute.xlu0 0
        %6282 = vperm.xlu0 %6281, %v6228
        %v6283 = vpop.permute.xlu0 %6282
        %6286 = vset.pattern.permute.xlu0 0
        %6287 = vperm.xlu0 %6286, %v6229
        %v6288 = vpop.permute.xlu0 %6287
        %6291 = vset.pattern.permute.xlu0 0
        %6292 = vperm.xlu0 %6291, %v6230
        %v6293 = vpop.permute.xlu0 %6292
        %6296 = vset.pattern.permute.xlu0 0
        %6297 = vperm.xlu0 %6296, %v6231
        %v6298 = vpop.permute.xlu0 %6297
        %6301 = vset.pattern.permute.xlu0 0
        %6302 = vperm.xlu0 %6301, %v6232
        %v6303 = vpop.permute.xlu0 %6302
        %6306 = vset.pattern.permute.xlu0 0
        %6307 = vperm.xlu0 %6306, %v6233
        %v6308 = vpop.permute.xlu0 %6307
        %6311 = vset.pattern.permute.xlu0 0
        %6312 = vperm.xlu0 %6311, %v6234
        %v6313 = vpop.permute.xlu0 %6312
        %6316 = vset.pattern.permute.xlu0 0
        %6317 = vperm.xlu0 %6316, %v6235
        %v6318 = vpop.permute.xlu0 %6317
        %6321 = vset.pattern.permute.xlu0 0
        %6322 = vperm.xlu0 %6321, %v6236
        %v6323 = vpop.permute.xlu0 %6322
        %6326 = vset.pattern.permute.xlu0 0
        %6327 = vperm.xlu0 %6326, %v6237
        %v6328 = vpop.permute.xlu0 %6327
        %6331 = vset.pattern.permute.xlu0 0
        %6332 = vperm.xlu0 %6331, %v6238
        %v6333 = vpop.permute.xlu0 %6332
        %6336 = vset.pattern.permute.xlu0 0
        %6337 = vperm.xlu0 %6336, %v6239
        %v6338 = vpop.permute.xlu0 %6337
        %6341 = vset.pattern.permute.xlu0 0
        %6342 = vperm.xlu0 %6341, %v6240
        %v6343 = vpop.permute.xlu0 %6342
        %6346 = vset.pattern.permute.xlu0 0
        %6347 = vperm.xlu0 %6346, %v6241
        %v6348 = vpop.permute.xlu0 %6347
        %6351 = vset.pattern.permute.xlu0 0
        %6352 = vperm.xlu0 %6351, %v6242
        %v6353 = vpop.permute.xlu0 %6352
        %6356 = vset.pattern.permute.xlu0 0
        %6357 = vperm.xlu0 %6356, %v6243
        %v6358 = vpop.permute.xlu0 %6357
        %6361 = vset.pattern.permute.xlu0 0
        %6362 = vperm.xlu0 %6361, %v6244
        %v6363 = vpop.permute.xlu0 %6362
        %6366 = vset.pattern.permute.xlu0 0
        %6367 = vperm.xlu0 %6366, %v6245
        %v6368 = vpop.permute.xlu0 %6367
        %6371 = vset.pattern.permute.xlu0 0
        %6372 = vperm.xlu0 %6371, %v6246
        %v6373 = vpop.permute.xlu0 %6372
        %6376 = vset.pattern.permute.xlu0 0
        %6377 = vperm.xlu0 %6376, %v6247
        %v6378 = vpop.permute.xlu0 %6377
        %6381 = vset.pattern.permute.xlu0 0
        %6382 = vperm.xlu0 %6381, %v6248
        %v6383 = vpop.permute.xlu0 %6382
        %6386 = vset.pattern.permute.xlu0 0
        %6387 = vperm.xlu0 %6386, %v6249
        %v6388 = vpop.permute.xlu0 %6387
        %6391 = vset.pattern.permute.xlu0 0
        %6392 = vperm.xlu0 %6391, %v6250
        %v6393 = vpop.permute.xlu0 %6392
        %6396 = vset.pattern.permute.xlu0 0
        %6397 = vperm.xlu0 %6396, %v6251
        %v6398 = vpop.permute.xlu0 %6397
        %6401 = vset.pattern.permute.xlu0 0
        %6402 = vperm.xlu0 %6401, %v6252
        %v6403 = vpop.permute.xlu0 %6402
        %6406 = vset.pattern.permute.xlu0 0
        %6407 = vperm.xlu0 %6406, %v6253
        %v6408 = vpop.permute.xlu0 %6407
        %6411 = vset.pattern.permute.xlu0 0
        %6412 = vperm.xlu0 %6411, %v6254
        %v6413 = vpop.permute.xlu0 %6412
        %v6415 = vlaneseq
        %v6416 = vshrl.u32 %v6415, 7
        %v6417 = vsub.s32 0, %v6416
        %v6418 = vrot.slane %v6188, %v6417
        %v6419 = vmul.f32 %v6258, %v6418
        %v6420 = vmul.f32 %v6263, %v6418
        %v6421 = vmul.f32 %v6268, %v6418
        %v6422 = vmul.f32 %v6273, %v6418
        %v6423 = vmul.f32 %v6278, %v6418
        %v6424 = vmul.f32 %v6283, %v6418
        %v6425 = vmul.f32 %v6288, %v6418
        %v6426 = vmul.f32 %v6293, %v6418
        %v6427 = vmul.f32 %v6298, %v6418
        %v6428 = vmul.f32 %v6303, %v6418
        %v6429 = vmul.f32 %v6308, %v6418
        %v6430 = vmul.f32 %v6313, %v6418
        %v6431 = vmul.f32 %v6318, %v6418
        %v6432 = vmul.f32 %v6323, %v6418
        %v6433 = vmul.f32 %v6328, %v6418
        %v6434 = vmul.f32 %v6333, %v6418
        %v6435 = vmul.f32 %v6338, %v6418
        %v6436 = vmul.f32 %v6343, %v6418
        %v6437 = vmul.f32 %v6348, %v6418
        %v6438 = vmul.f32 %v6353, %v6418
        %v6439 = vmul.f32 %v6358, %v6418
        %v6440 = vmul.f32 %v6363, %v6418
        %v6441 = vmul.f32 %v6368, %v6418
        %v6442 = vmul.f32 %v6373, %v6418
        %v6443 = vmul.f32 %v6378, %v6418
        %v6444 = vmul.f32 %v6383, %v6418
        %v6445 = vmul.f32 %v6388, %v6418
        %v6446 = vmul.f32 %v6393, %v6418
        %v6447 = vmul.f32 %v6398, %v6418
        %v6448 = vmul.f32 %v6403, %v6418
        %v6449 = vmul.f32 %v6408, %v6418
        %v6450 = vmul.f32 %v6413, %v6418
        %6451 = vset.pattern.permute.xlu0 1
        %6452 = vperm.xlu0 %6451, %v6223
        %v6453 = vpop.permute.xlu0 %6452
        %6455 = vset.pattern.permute.xlu0 1
        %6456 = vperm.xlu0 %6455, %v6224
        %v6457 = vpop.permute.xlu0 %6456
        %6459 = vset.pattern.permute.xlu0 1
        %6460 = vperm.xlu0 %6459, %v6225
        %v6461 = vpop.permute.xlu0 %6460
        %6463 = vset.pattern.permute.xlu0 1
        %6464 = vperm.xlu0 %6463, %v6226
        %v6465 = vpop.permute.xlu0 %6464
        %6467 = vset.pattern.permute.xlu0 1
        %6468 = vperm.xlu0 %6467, %v6227
        %v6469 = vpop.permute.xlu0 %6468
        %6471 = vset.pattern.permute.xlu0 1
        %6472 = vperm.xlu0 %6471, %v6228
        %v6473 = vpop.permute.xlu0 %6472
        %6475 = vset.pattern.permute.xlu0 1
        %6476 = vperm.xlu0 %6475, %v6229
        %v6477 = vpop.permute.xlu0 %6476
        %6479 = vset.pattern.permute.xlu0 1
        %6480 = vperm.xlu0 %6479, %v6230
        %v6481 = vpop.permute.xlu0 %6480
        %6483 = vset.pattern.permute.xlu0 1
        %6484 = vperm.xlu0 %6483, %v6231
        %v6485 = vpop.permute.xlu0 %6484
        %6487 = vset.pattern.permute.xlu0 1
        %6488 = vperm.xlu0 %6487, %v6232
        %v6489 = vpop.permute.xlu0 %6488
        %6491 = vset.pattern.permute.xlu0 1
        %6492 = vperm.xlu0 %6491, %v6233
        %v6493 = vpop.permute.xlu0 %6492
        %6495 = vset.pattern.permute.xlu0 1
        %6496 = vperm.xlu0 %6495, %v6234
        %v6497 = vpop.permute.xlu0 %6496
        %6499 = vset.pattern.permute.xlu0 1
        %6500 = vperm.xlu0 %6499, %v6235
        %v6501 = vpop.permute.xlu0 %6500
        %6503 = vset.pattern.permute.xlu0 1
        %6504 = vperm.xlu0 %6503, %v6236
        %v6505 = vpop.permute.xlu0 %6504
        %6507 = vset.pattern.permute.xlu0 1
        %6508 = vperm.xlu0 %6507, %v6237
        %v6509 = vpop.permute.xlu0 %6508
        %6511 = vset.pattern.permute.xlu0 1
        %6512 = vperm.xlu0 %6511, %v6238
        %v6513 = vpop.permute.xlu0 %6512
        %6515 = vset.pattern.permute.xlu0 1
        %6516 = vperm.xlu0 %6515, %v6239
        %v6517 = vpop.permute.xlu0 %6516
        %6519 = vset.pattern.permute.xlu0 1
        %6520 = vperm.xlu0 %6519, %v6240
        %v6521 = vpop.permute.xlu0 %6520
        %6523 = vset.pattern.permute.xlu0 1
        %6524 = vperm.xlu0 %6523, %v6241
        %v6525 = vpop.permute.xlu0 %6524
        %6527 = vset.pattern.permute.xlu0 1
        %6528 = vperm.xlu0 %6527, %v6242
        %v6529 = vpop.permute.xlu0 %6528
        %6531 = vset.pattern.permute.xlu0 1
        %6532 = vperm.xlu0 %6531, %v6243
        %v6533 = vpop.permute.xlu0 %6532
        %6535 = vset.pattern.permute.xlu0 1
        %6536 = vperm.xlu0 %6535, %v6244
        %v6537 = vpop.permute.xlu0 %6536
        %6539 = vset.pattern.permute.xlu0 1
        %6540 = vperm.xlu0 %6539, %v6245
        %v6541 = vpop.permute.xlu0 %6540
        %6543 = vset.pattern.permute.xlu0 1
        %6544 = vperm.xlu0 %6543, %v6246
        %v6545 = vpop.permute.xlu0 %6544
        %6547 = vset.pattern.permute.xlu0 1
        %6548 = vperm.xlu0 %6547, %v6247
        %v6549 = vpop.permute.xlu0 %6548
        %6551 = vset.pattern.permute.xlu0 1
        %6552 = vperm.xlu0 %6551, %v6248
        %v6553 = vpop.permute.xlu0 %6552
        %6555 = vset.pattern.permute.xlu0 1
        %6556 = vperm.xlu0 %6555, %v6249
        %v6557 = vpop.permute.xlu0 %6556
        %6559 = vset.pattern.permute.xlu0 1
        %6560 = vperm.xlu0 %6559, %v6250
        %v6561 = vpop.permute.xlu0 %6560
        %6563 = vset.pattern.permute.xlu0 1
        %6564 = vperm.xlu0 %6563, %v6251
        %v6565 = vpop.permute.xlu0 %6564
        %6567 = vset.pattern.permute.xlu0 1
        %6568 = vperm.xlu0 %6567, %v6252
        %v6569 = vpop.permute.xlu0 %6568
        %6571 = vset.pattern.permute.xlu0 1
        %6572 = vperm.xlu0 %6571, %v6253
        %v6573 = vpop.permute.xlu0 %6572
        %6575 = vset.pattern.permute.xlu0 1
        %6576 = vperm.xlu0 %6575, %v6254
        %v6577 = vpop.permute.xlu0 %6576
        %v6579 = vlaneseq
        %v6580 = vshrl.u32 %v6579, 7
        %v6581 = vsub.s32 0, %v6580
        %v6582 = vrot.slane %v6205, %v6581
        %v6583 = vmul.f32 %v6453, %v6582
        %v6584 = vmul.f32 %v6457, %v6582
        %v6585 = vmul.f32 %v6461, %v6582
        %v6586 = vmul.f32 %v6465, %v6582
        %v6587 = vmul.f32 %v6469, %v6582
        %v6588 = vmul.f32 %v6473, %v6582
        %v6589 = vmul.f32 %v6477, %v6582
        %v6590 = vmul.f32 %v6481, %v6582
        %v6591 = vmul.f32 %v6485, %v6582
        %v6592 = vmul.f32 %v6489, %v6582
        %v6593 = vmul.f32 %v6493, %v6582
        %v6594 = vmul.f32 %v6497, %v6582
        %v6595 = vmul.f32 %v6501, %v6582
        %v6596 = vmul.f32 %v6505, %v6582
        %v6597 = vmul.f32 %v6509, %v6582
        %v6598 = vmul.f32 %v6513, %v6582
        %v6599 = vmul.f32 %v6517, %v6582
        %v6600 = vmul.f32 %v6521, %v6582
        %v6601 = vmul.f32 %v6525, %v6582
        %v6602 = vmul.f32 %v6529, %v6582
        %v6603 = vmul.f32 %v6533, %v6582
        %v6604 = vmul.f32 %v6537, %v6582
        %v6605 = vmul.f32 %v6541, %v6582
        %v6606 = vmul.f32 %v6545, %v6582
        %v6607 = vmul.f32 %v6549, %v6582
        %v6608 = vmul.f32 %v6553, %v6582
        %v6609 = vmul.f32 %v6557, %v6582
        %v6610 = vmul.f32 %v6561, %v6582
        %v6611 = vmul.f32 %v6565, %v6582
        %v6612 = vmul.f32 %v6569, %v6582
        %v6613 = vmul.f32 %v6573, %v6582
        %v6614 = vmul.f32 %v6577, %v6582
        %v6615 = vadd.f32 %v6419, %v6583
        %v6616 = vadd.f32 %v6420, %v6584
        %v6617 = vadd.f32 %v6421, %v6585
        %v6618 = vadd.f32 %v6422, %v6586
        %v6619 = vadd.f32 %v6423, %v6587
        %v6620 = vadd.f32 %v6424, %v6588
        %v6621 = vadd.f32 %v6425, %v6589
        %v6622 = vadd.f32 %v6426, %v6590
        %v6623 = vadd.f32 %v6427, %v6591
        %v6624 = vadd.f32 %v6428, %v6592
        %v6625 = vadd.f32 %v6429, %v6593
        %v6626 = vadd.f32 %v6430, %v6594
        %v6627 = vadd.f32 %v6431, %v6595
        %v6628 = vadd.f32 %v6432, %v6596
        %v6629 = vadd.f32 %v6433, %v6597
        %v6630 = vadd.f32 %v6434, %v6598
        %v6631 = vadd.f32 %v6435, %v6599
        %v6632 = vadd.f32 %v6436, %v6600
        %v6633 = vadd.f32 %v6437, %v6601
        %v6634 = vadd.f32 %v6438, %v6602
        %v6635 = vadd.f32 %v6439, %v6603
        %v6636 = vadd.f32 %v6440, %v6604
        %v6637 = vadd.f32 %v6441, %v6605
        %v6638 = vadd.f32 %v6442, %v6606
        %v6639 = vadd.f32 %v6443, %v6607
        %v6640 = vadd.f32 %v6444, %v6608
        %v6641 = vadd.f32 %v6445, %v6609
        %v6642 = vadd.f32 %v6446, %v6610
        %v6643 = vadd.f32 %v6447, %v6611
        %v6644 = vadd.f32 %v6448, %v6612
        %v6645 = vadd.f32 %v6449, %v6613
        %v6646 = vadd.f32 %v6450, %v6614
        %6647 = vset.pattern.permute.xlu0 2
        %6648 = vperm.xlu0 %6647, %v6223
        %v6649 = vpop.permute.xlu0 %6648
        %6651 = vset.pattern.permute.xlu0 2
        %6652 = vperm.xlu0 %6651, %v6224
        %v6653 = vpop.permute.xlu0 %6652
        %6655 = vset.pattern.permute.xlu0 2
        %6656 = vperm.xlu0 %6655, %v6225
        %v6657 = vpop.permute.xlu0 %6656
        %6659 = vset.pattern.permute.xlu0 2
        %6660 = vperm.xlu0 %6659, %v6226
        %v6661 = vpop.permute.xlu0 %6660
        %6663 = vset.pattern.permute.xlu0 2
        %6664 = vperm.xlu0 %6663, %v6227
        %v6665 = vpop.permute.xlu0 %6664
        %6667 = vset.pattern.permute.xlu0 2
        %6668 = vperm.xlu0 %6667, %v6228
        %v6669 = vpop.permute.xlu0 %6668
        %6671 = vset.pattern.permute.xlu0 2
        %6672 = vperm.xlu0 %6671, %v6229
        %v6673 = vpop.permute.xlu0 %6672
        %6675 = vset.pattern.permute.xlu0 2
        %6676 = vperm.xlu0 %6675, %v6230
        %v6677 = vpop.permute.xlu0 %6676
        %6679 = vset.pattern.permute.xlu0 2
        %6680 = vperm.xlu0 %6679, %v6231
        %v6681 = vpop.permute.xlu0 %6680
        %6683 = vset.pattern.permute.xlu0 2
        %6684 = vperm.xlu0 %6683, %v6232
        %v6685 = vpop.permute.xlu0 %6684
        %6687 = vset.pattern.permute.xlu0 2
        %6688 = vperm.xlu0 %6687, %v6233
        %v6689 = vpop.permute.xlu0 %6688
        %6691 = vset.pattern.permute.xlu0 2
        %6692 = vperm.xlu0 %6691, %v6234
        %v6693 = vpop.permute.xlu0 %6692
        %6695 = vset.pattern.permute.xlu0 2
        %6696 = vperm.xlu0 %6695, %v6235
        %v6697 = vpop.permute.xlu0 %6696
        %6699 = vset.pattern.permute.xlu0 2
        %6700 = vperm.xlu0 %6699, %v6236
        %v6701 = vpop.permute.xlu0 %6700
        %6703 = vset.pattern.permute.xlu0 2
        %6704 = vperm.xlu0 %6703, %v6237
        %v6705 = vpop.permute.xlu0 %6704
        %6707 = vset.pattern.permute.xlu0 2
        %6708 = vperm.xlu0 %6707, %v6238
        %v6709 = vpop.permute.xlu0 %6708
        %6711 = vset.pattern.permute.xlu0 2
        %6712 = vperm.xlu0 %6711, %v6239
        %v6713 = vpop.permute.xlu0 %6712
        %6715 = vset.pattern.permute.xlu0 2
        %6716 = vperm.xlu0 %6715, %v6240
        %v6717 = vpop.permute.xlu0 %6716
        %6719 = vset.pattern.permute.xlu0 2
        %6720 = vperm.xlu0 %6719, %v6241
        %v6721 = vpop.permute.xlu0 %6720
        %6723 = vset.pattern.permute.xlu0 2
        %6724 = vperm.xlu0 %6723, %v6242
        %v6725 = vpop.permute.xlu0 %6724
        %6727 = vset.pattern.permute.xlu0 2
        %6728 = vperm.xlu0 %6727, %v6243
        %v6729 = vpop.permute.xlu0 %6728
        %6731 = vset.pattern.permute.xlu0 2
        %6732 = vperm.xlu0 %6731, %v6244
        %v6733 = vpop.permute.xlu0 %6732
        %6735 = vset.pattern.permute.xlu0 2
        %6736 = vperm.xlu0 %6735, %v6245
        %v6737 = vpop.permute.xlu0 %6736
        %6739 = vset.pattern.permute.xlu0 2
        %6740 = vperm.xlu0 %6739, %v6246
        %v6741 = vpop.permute.xlu0 %6740
        %6743 = vset.pattern.permute.xlu0 2
        %6744 = vperm.xlu0 %6743, %v6247
        %v6745 = vpop.permute.xlu0 %6744
        %6747 = vset.pattern.permute.xlu0 2
        %6748 = vperm.xlu0 %6747, %v6248
        %v6749 = vpop.permute.xlu0 %6748
        %6751 = vset.pattern.permute.xlu0 2
        %6752 = vperm.xlu0 %6751, %v6249
        %v6753 = vpop.permute.xlu0 %6752
        %6755 = vset.pattern.permute.xlu0 2
        %6756 = vperm.xlu0 %6755, %v6250
        %v6757 = vpop.permute.xlu0 %6756
        %6759 = vset.pattern.permute.xlu0 2
        %6760 = vperm.xlu0 %6759, %v6251
        %v6761 = vpop.permute.xlu0 %6760
        %6763 = vset.pattern.permute.xlu0 2
        %6764 = vperm.xlu0 %6763, %v6252
        %v6765 = vpop.permute.xlu0 %6764
        %6767 = vset.pattern.permute.xlu0 2
        %6768 = vperm.xlu0 %6767, %v6253
        %v6769 = vpop.permute.xlu0 %6768
        %6771 = vset.pattern.permute.xlu0 2
        %6772 = vperm.xlu0 %6771, %v6254
        %v6773 = vpop.permute.xlu0 %6772
        %v6775 = vlaneseq
        %v6776 = vshrl.u32 %v6775, 7
        %v6777 = vsub.s32 0, %v6776
        %v6778 = vrot.slane %v6222, %v6777
        %v6779 = vmul.f32 %v6649, %v6778
        %v6780 = vmul.f32 %v6653, %v6778
        %v6781 = vmul.f32 %v6657, %v6778
        %v6782 = vmul.f32 %v6661, %v6778
        %v6783 = vmul.f32 %v6665, %v6778
        %v6784 = vmul.f32 %v6669, %v6778
        %v6785 = vmul.f32 %v6673, %v6778
        %v6786 = vmul.f32 %v6677, %v6778
        %v6787 = vmul.f32 %v6681, %v6778
        %v6788 = vmul.f32 %v6685, %v6778
        %v6789 = vmul.f32 %v6689, %v6778
        %v6790 = vmul.f32 %v6693, %v6778
        %v6791 = vmul.f32 %v6697, %v6778
        %v6792 = vmul.f32 %v6701, %v6778
        %v6793 = vmul.f32 %v6705, %v6778
        %v6794 = vmul.f32 %v6709, %v6778
        %v6795 = vmul.f32 %v6713, %v6778
        %v6796 = vmul.f32 %v6717, %v6778
        %v6797 = vmul.f32 %v6721, %v6778
        %v6798 = vmul.f32 %v6725, %v6778
        %v6799 = vmul.f32 %v6729, %v6778
        %v6800 = vmul.f32 %v6733, %v6778
        %v6801 = vmul.f32 %v6737, %v6778
        %v6802 = vmul.f32 %v6741, %v6778
        %v6803 = vmul.f32 %v6745, %v6778
        %v6804 = vmul.f32 %v6749, %v6778
        %v6805 = vmul.f32 %v6753, %v6778
        %v6806 = vmul.f32 %v6757, %v6778
        %v6807 = vmul.f32 %v6761, %v6778
        %v6808 = vmul.f32 %v6765, %v6778
        %v6809 = vmul.f32 %v6769, %v6778
        %v6810 = vmul.f32 %v6773, %v6778
        %v6811 = vadd.f32 %v6615, %v6779
        %v6812 = vadd.f32 %v6616, %v6780
        %v6813 = vadd.f32 %v6617, %v6781
        %v6814 = vadd.f32 %v6618, %v6782
        %v6815 = vadd.f32 %v6619, %v6783
        %v6816 = vadd.f32 %v6620, %v6784
        %v6817 = vadd.f32 %v6621, %v6785
        %v6818 = vadd.f32 %v6622, %v6786
        %v6819 = vadd.f32 %v6623, %v6787
        %v6820 = vadd.f32 %v6624, %v6788
        %v6821 = vadd.f32 %v6625, %v6789
        %v6822 = vadd.f32 %v6626, %v6790
        %v6823 = vadd.f32 %v6627, %v6791
        %v6824 = vadd.f32 %v6628, %v6792
        %v6825 = vadd.f32 %v6629, %v6793
        %v6826 = vadd.f32 %v6630, %v6794
        %v6827 = vadd.f32 %v6631, %v6795
        %v6828 = vadd.f32 %v6632, %v6796
        %v6829 = vadd.f32 %v6633, %v6797
        %v6830 = vadd.f32 %v6634, %v6798
        %v6831 = vadd.f32 %v6635, %v6799
        %v6832 = vadd.f32 %v6636, %v6800
        %v6833 = vadd.f32 %v6637, %v6801
        %v6834 = vadd.f32 %v6638, %v6802
        %v6835 = vadd.f32 %v6639, %v6803
        %v6836 = vadd.f32 %v6640, %v6804
        %v6837 = vadd.f32 %v6641, %v6805
        %v6838 = vadd.f32 %v6642, %v6806
        %v6839 = vadd.f32 %v6643, %v6807
        %v6840 = vadd.f32 %v6644, %v6808
        %v6841 = vadd.f32 %v6645, %v6809
        %v6842 = vadd.f32 %v6646, %v6810
        %v6844 = vlaneseq
        %v6845 = vshrl.u32 %v6844, 7
        %v6846 = vsub.s32 0, %v6845
        %v6847 = vrot.slane %v852, %v6846
        %v6849 = vadd.f32 %v6811, %v6847
        %v6850 = vadd.f32 %v6812, %v6847
        %v6851 = vadd.f32 %v6813, %v6847
        %v6852 = vadd.f32 %v6814, %v6847
        %v6853 = vadd.f32 %v6815, %v6847
        %v6854 = vadd.f32 %v6816, %v6847
        %v6855 = vadd.f32 %v6817, %v6847
        %v6856 = vadd.f32 %v6818, %v6847
        %v6857 = vadd.f32 %v6819, %v6847
        %v6858 = vadd.f32 %v6820, %v6847
        %v6859 = vadd.f32 %v6821, %v6847
        %v6860 = vadd.f32 %v6822, %v6847
        %v6861 = vadd.f32 %v6823, %v6847
        %v6862 = vadd.f32 %v6824, %v6847
        %v6863 = vadd.f32 %v6825, %v6847
        %v6864 = vadd.f32 %v6826, %v6847
        %v6865 = vadd.f32 %v6827, %v6847
        %v6866 = vadd.f32 %v6828, %v6847
        %v6867 = vadd.f32 %v6829, %v6847
        %v6868 = vadd.f32 %v6830, %v6847
        %v6869 = vadd.f32 %v6831, %v6847
        %v6870 = vadd.f32 %v6832, %v6847
        %v6871 = vadd.f32 %v6833, %v6847
        %v6872 = vadd.f32 %v6834, %v6847
        %v6873 = vadd.f32 %v6835, %v6847
        %v6874 = vadd.f32 %v6836, %v6847
        %v6875 = vadd.f32 %v6837, %v6847
        %v6876 = vadd.f32 %v6838, %v6847
        %v6877 = vadd.f32 %v6839, %v6847
        %v6878 = vadd.f32 %v6840, %v6847
        %v6879 = vadd.f32 %v6841, %v6847
        %v6880 = vadd.f32 %v6842, %v6847
        %v6881 = vmax.f32 %v6849, 0.0
        %v6882 = vmax.f32 %v6850, 0.0
        %v6883 = vmax.f32 %v6851, 0.0
        %v6884 = vmax.f32 %v6852, 0.0
        %v6885 = vmax.f32 %v6853, 0.0
        %v6886 = vmax.f32 %v6854, 0.0
        %v6887 = vmax.f32 %v6855, 0.0
        %v6888 = vmax.f32 %v6856, 0.0
        %v6889 = vmax.f32 %v6857, 0.0
        %v6890 = vmax.f32 %v6858, 0.0
        %v6891 = vmax.f32 %v6859, 0.0
        %v6892 = vmax.f32 %v6860, 0.0
        %v6893 = vmax.f32 %v6861, 0.0
        %v6894 = vmax.f32 %v6862, 0.0
        %v6895 = vmax.f32 %v6863, 0.0
        %v6896 = vmax.f32 %v6864, 0.0
        %v6897 = vmax.f32 %v6865, 0.0
        %v6898 = vmax.f32 %v6866, 0.0
        %v6899 = vmax.f32 %v6867, 0.0
        %v6900 = vmax.f32 %v6868, 0.0
        %v6901 = vmax.f32 %v6869, 0.0
        %v6902 = vmax.f32 %v6870, 0.0
        %v6903 = vmax.f32 %v6871, 0.0
        %v6904 = vmax.f32 %v6872, 0.0
        %v6905 = vmax.f32 %v6873, 0.0
        %v6906 = vmax.f32 %v6874, 0.0
        %v6907 = vmax.f32 %v6875, 0.0
        %v6908 = vmax.f32 %v6876, 0.0
        %v6909 = vmax.f32 %v6877, 0.0
        %v6910 = vmax.f32 %v6878, 0.0
        %v6911 = vmax.f32 %v6879, 0.0
        %v6912 = vmax.f32 %v6880, 0.0
        %v6913 = vpack.c.bf16 %v6882, %v6881
        %v6914 = vpack.c.bf16 %v6884, %v6883
        %v6915 = vpack.c.bf16 %v6886, %v6885
        %v6916 = vpack.c.bf16 %v6888, %v6887
        %v6917 = vpack.c.bf16 %v6890, %v6889
        %v6918 = vpack.c.bf16 %v6892, %v6891
        %v6919 = vpack.c.bf16 %v6894, %v6893
        %v6920 = vpack.c.bf16 %v6896, %v6895
        %v6921 = vpack.c.bf16 %v6898, %v6897
        %v6922 = vpack.c.bf16 %v6900, %v6899
        %v6923 = vpack.c.bf16 %v6902, %v6901
        %v6924 = vpack.c.bf16 %v6904, %v6903
        %v6925 = vpack.c.bf16 %v6906, %v6905
        %v6926 = vpack.c.bf16 %v6908, %v6907
        %v6927 = vpack.c.bf16 %v6910, %v6909
        %v6928 = vpack.c.bf16 %v6912, %v6911
        %v6930 = vlaneseq
        %v6931 = vshrl.u32 %v6930, 7
        %v6932 = vsub.s32 0, %v6931
        %v6933 = vrot.slane %v861, %v6932
        %v6943 = vunpack.c.l.b16 %v853
        %v6944 = vunpack.c.l.b16 %v854
        %v6945 = vunpack.c.l.b16 %v855
        %v6946 = vunpack.c.l.b16 %v856
        %v6947 = vunpack.c.l.b16 %v857
        %v6948 = vunpack.c.l.b16 %v858
        %v6949 = vunpack.c.l.b16 %v859
        %v6950 = vunpack.c.l.b16 %v860
        %v6951 = vpack.c.b16 %v6944, %v6943
        %v6952 = vpack.c.b16 %v6946, %v6945
        %v6953 = vpack.c.b16 %v6948, %v6947
        %v6954 = vpack.c.b16 %v6950, %v6949
        %v6960 = vsel %vm1663, %v6913, 0
        %v6963 = vsel %vm1663, %v6914, 0
        %v6966 = vsel %vm1663, %v6915, 0
        %v6969 = vsel %vm1663, %v6916, 0
        %v6972 = vsel %vm1663, %v6917, 0
        %v6975 = vsel %vm1663, %v6918, 0
        %v6978 = vsel %vm1663, %v6919, 0
        %v6981 = vsel %vm1663, %v6920, 0
        %v6984 = vsel %vm1663, %v6921, 0
        %v6987 = vsel %vm1663, %v6922, 0
        %v6990 = vsel %vm1663, %v6923, 0
        %v6993 = vsel %vm1663, %v6924, 0
        %v6996 = vsel %vm1663, %v6925, 0
        %v6999 = vsel %vm1663, %v6926, 0
        %v7002 = vsel %vm1663, %v6927, 0
        %v7005 = vsel %vm1663, %v6928, 0
        %7007 = vmatprep.subr.bf16.mxu0 0
        %7008 = vmatpush1.bf16.msra.mxu0 %v6951
        %7009 = vmatprep.subr.bf16.mxu0 0
        %7010 = vmatpush1.bf16.msra.mxu0 %v6952
        %7011 = vmatprep.subr.bf16.mxu0 0
        %7012 = vmatpush1.bf16.msra.mxu0 %v6953
        %7013 = vmatprep.subr.bf16.mxu0 0
        %7014 = vmatpush1.bf16.msra.mxu0 %v6954
        %7015 = vmatprep.subr.bf16.mxu0 0
        %7016 = vmatpush1.bf16.msra.mxu0 0
        %7017 = vmatprep.subr.bf16.mxu0 0
        %7018 = vmatpush1.bf16.msra.mxu0 0
        %7019 = vmatprep.subr.bf16.mxu0 0
        %7020 = vmatpush1.bf16.msra.mxu0 0
        %7021 = vmatprep.subr.bf16.mxu0 0
        %7022 = vmatpush1.bf16.msra.mxu0 0
        %7023 = vmatprep.subr.bf16.mxu0 0
        %7024 = vmatpush1.bf16.msra.mxu0 0
        %7025 = vmatprep.subr.bf16.mxu0 0
        %7026 = vmatpush1.bf16.msra.mxu0 0
        %7027 = vmatprep.subr.bf16.mxu0 0
        %7028 = vmatpush1.bf16.msra.mxu0 0
        %7029 = vmatprep.subr.bf16.mxu0 0
        %7030 = vmatpush1.bf16.msra.mxu0 0
        %7031 = vmatprep.subr.bf16.mxu0 0
        %7032 = vmatpush1.bf16.msra.mxu0 0
        %7033 = vmatprep.subr.bf16.mxu0 0
        %7034 = vmatpush1.bf16.msra.mxu0 0
        %7035 = vmatprep.subr.bf16.mxu0 0
        %7036 = vmatpush1.bf16.msra.mxu0 0
        %7037 = vmatprep.subr.bf16.mxu0 0
        %7038 = vmatpush1.bf16.msra.mxu0 0
        %7039 = vmatprep.mubr.bf16.mxu0 0
        %7040 = vmatmul.mubr.bf16.gmra.mrb[0].mxu0 %v6960
        %v7041 = vpop.f32.mrb[0].mxu0
        %v7042 = vadd.f32 %v6933, %v7041
        %v7043 = vpop.f32.mrb[0].mxu0
        %v7044 = vpop.f32.mrb[0].mxu0
        %v7045 = vadd.f32 %v6933, %v7044
        %v7046 = vpop.f32.mrb[0].mxu0
        %7047 = vmatprep.mubr.bf16.mxu0 0
        %7048 = vmatmul.mubr.bf16.gmra.mrb[0].mxu0 %v6963
        %v7049 = vpop.f32.mrb[0].mxu0
        %v7050 = vadd.f32 %v6933, %v7049
        %v7051 = vpop.f32.mrb[0].mxu0
        %v7052 = vpop.f32.mrb[0].mxu0
        %v7053 = vadd.f32 %v6933, %v7052
        %v7054 = vpop.f32.mrb[0].mxu0
        %7055 = vmatprep.mubr.bf16.mxu0 0
        %7056 = vmatmul.mubr.bf16.gmra.mrb[0].mxu0 %v6966
        %v7057 = vpop.f32.mrb[0].mxu0
        %v7058 = vadd.f32 %v6933, %v7057
        %v7059 = vpop.f32.mrb[0].mxu0
        %v7060 = vpop.f32.mrb[0].mxu0
        %v7061 = vadd.f32 %v6933, %v7060
        %v7062 = vpop.f32.mrb[0].mxu0
        %7063 = vmatprep.mubr.bf16.mxu0 0
        %7064 = vmatmul.mubr.bf16.gmra.mrb[0].mxu0 %v6969
        %v7065 = vpop.f32.mrb[0].mxu0
        %v7066 = vadd.f32 %v6933, %v7065
        %v7067 = vpop.f32.mrb[0].mxu0
        %v7068 = vpop.f32.mrb[0].mxu0
        %v7069 = vadd.f32 %v6933, %v7068
        %v7070 = vpop.f32.mrb[0].mxu0
        %7071 = vmatprep.mubr.bf16.mxu0 0
        %7072 = vmatmul.mubr.bf16.gmra.mrb[0].mxu0 %v6972
        %v7073 = vpop.f32.mrb[0].mxu0
        %v7074 = vadd.f32 %v6933, %v7073
        %v7075 = vpop.f32.mrb[0].mxu0
        %v7076 = vpop.f32.mrb[0].mxu0
        %v7077 = vadd.f32 %v6933, %v7076
        %v7078 = vpop.f32.mrb[0].mxu0
        %7079 = vmatprep.mubr.bf16.mxu0 0
        %7080 = vmatmul.mubr.bf16.gmra.mrb[0].mxu0 %v6975
        %v7081 = vpop.f32.mrb[0].mxu0
        %v7082 = vadd.f32 %v6933, %v7081
        %v7083 = vpop.f32.mrb[0].mxu0
        %v7084 = vpop.f32.mrb[0].mxu0
        %v7085 = vadd.f32 %v6933, %v7084
        %v7086 = vpop.f32.mrb[0].mxu0
        %7087 = vmatprep.mubr.bf16.mxu0 0
        %7088 = vmatmul.mubr.bf16.gmra.mrb[0].mxu0 %v6978
        %v7089 = vpop.f32.mrb[0].mxu0
        %v7090 = vadd.f32 %v6933, %v7089
        %v7091 = vpop.f32.mrb[0].mxu0
        %v7092 = vpop.f32.mrb[0].mxu0
        %v7093 = vadd.f32 %v6933, %v7092
        %v7094 = vpop.f32.mrb[0].mxu0
        %7095 = vmatprep.mubr.bf16.mxu0 0
        %7096 = vmatmul.mubr.bf16.gmra.mrb[0].mxu0 %v6981
        %v7097 = vpop.f32.mrb[0].mxu0
        %v7098 = vadd.f32 %v6933, %v7097
        %v7099 = vpop.f32.mrb[0].mxu0
        %v7100 = vpop.f32.mrb[0].mxu0
        %v7101 = vadd.f32 %v6933, %v7100
        %v7102 = vpop.f32.mrb[0].mxu0
        %7103 = vmatprep.mubr.bf16.mxu0 0
        %7104 = vmatmul.mubr.bf16.gmra.mrb[0].mxu0 %v6984
        %v7105 = vpop.f32.mrb[0].mxu0
        %v7106 = vadd.f32 %v6933, %v7105
        %v7107 = vpop.f32.mrb[0].mxu0
        %v7108 = vpop.f32.mrb[0].mxu0
        %v7109 = vadd.f32 %v6933, %v7108
        %v7110 = vpop.f32.mrb[0].mxu0
        %7111 = vmatprep.mubr.bf16.mxu0 0
        %7112 = vmatmul.mubr.bf16.gmra.mrb[0].mxu0 %v6987
        %v7113 = vpop.f32.mrb[0].mxu0
        %v7114 = vadd.f32 %v6933, %v7113
        %v7115 = vpop.f32.mrb[0].mxu0
        %v7116 = vpop.f32.mrb[0].mxu0
        %v7117 = vadd.f32 %v6933, %v7116
        %v7118 = vpop.f32.mrb[0].mxu0
        %7119 = vmatprep.mubr.bf16.mxu0 0
        %7120 = vmatmul.mubr.bf16.gmra.mrb[0].mxu0 %v6990
        %v7121 = vpop.f32.mrb[0].mxu0
        %v7122 = vadd.f32 %v6933, %v7121
        %v7123 = vpop.f32.mrb[0].mxu0
        %v7124 = vpop.f32.mrb[0].mxu0
        %v7125 = vadd.f32 %v6933, %v7124
        %v7126 = vpop.f32.mrb[0].mxu0
        %7127 = vmatprep.mubr.bf16.mxu0 0
        %7128 = vmatmul.mubr.bf16.gmra.mrb[0].mxu0 %v6993
        %v7129 = vpop.f32.mrb[0].mxu0
        %v7130 = vadd.f32 %v6933, %v7129
        %v7131 = vpop.f32.mrb[0].mxu0
        %v7132 = vpop.f32.mrb[0].mxu0
        %v7133 = vadd.f32 %v6933, %v7132
        %v7134 = vpop.f32.mrb[0].mxu0
        %7135 = vmatprep.mubr.bf16.mxu0 0
        %7136 = vmatmul.mubr.bf16.gmra.mrb[0].mxu0 %v6996
        %v7137 = vpop.f32.mrb[0].mxu0
        %v7138 = vadd.f32 %v6933, %v7137
        %v7139 = vpop.f32.mrb[0].mxu0
        %v7140 = vpop.f32.mrb[0].mxu0
        %v7141 = vadd.f32 %v6933, %v7140
        %v7142 = vpop.f32.mrb[0].mxu0
        %7143 = vmatprep.mubr.bf16.mxu0 0
        %7144 = vmatmul.mubr.bf16.gmra.mrb[0].mxu0 %v6999
        %v7145 = vpop.f32.mrb[0].mxu0
        %v7146 = vadd.f32 %v6933, %v7145
        %v7147 = vpop.f32.mrb[0].mxu0
        %v7148 = vpop.f32.mrb[0].mxu0
        %v7149 = vadd.f32 %v6933, %v7148
        %v7150 = vpop.f32.mrb[0].mxu0
        %7151 = vmatprep.mubr.bf16.mxu0 0
        %7152 = vmatmul.mubr.bf16.gmra.mrb[0].mxu0 %v7002
        %v7153 = vpop.f32.mrb[0].mxu0
        %v7154 = vadd.f32 %v6933, %v7153
        %v7155 = vpop.f32.mrb[0].mxu0
        %v7156 = vpop.f32.mrb[0].mxu0
        %v7157 = vadd.f32 %v6933, %v7156
        %v7158 = vpop.f32.mrb[0].mxu0
        %7159 = vmatprep.mubr.bf16.mxu0 0
        %7160 = vmatmul.mubr.bf16.gmra.mrb[0].mxu0 %v7005
        %v7161 = vpop.f32.mrb[0].mxu0
        %v7162 = vadd.f32 %v6933, %v7161
        %v7163 = vpop.f32.mrb[0].mxu0
        %v7164 = vpop.f32.mrb[0].mxu0
        %v7165 = vadd.f32 %v6933, %v7164
        %v7166 = vpop.f32.mrb[0].mxu0
        %7167 = vdwg.mxu0
        %v7168 = vmax.f32 %v7042, 0.0
        %v7169 = vmax.f32 %v7045, 0.0
        %v7170 = vmax.f32 %v7050, 0.0
        %v7171 = vmax.f32 %v7053, 0.0
        %v7172 = vmax.f32 %v7058, 0.0
        %v7173 = vmax.f32 %v7061, 0.0
        %v7174 = vmax.f32 %v7066, 0.0
        %v7175 = vmax.f32 %v7069, 0.0
        %v7176 = vmax.f32 %v7074, 0.0
        %v7177 = vmax.f32 %v7077, 0.0
        %v7178 = vmax.f32 %v7082, 0.0
        %v7179 = vmax.f32 %v7085, 0.0
        %v7180 = vmax.f32 %v7090, 0.0
        %v7181 = vmax.f32 %v7093, 0.0
        %v7182 = vmax.f32 %v7098, 0.0
        %v7183 = vmax.f32 %v7101, 0.0
        %v7184 = vmax.f32 %v7106, 0.0
        %v7185 = vmax.f32 %v7109, 0.0
        %v7186 = vmax.f32 %v7114, 0.0
        %v7187 = vmax.f32 %v7117, 0.0
        %v7188 = vmax.f32 %v7122, 0.0
        %v7189 = vmax.f32 %v7125, 0.0
        %v7190 = vmax.f32 %v7130, 0.0
        %v7191 = vmax.f32 %v7133, 0.0
        %v7192 = vmax.f32 %v7138, 0.0
        %v7193 = vmax.f32 %v7141, 0.0
        %v7194 = vmax.f32 %v7146, 0.0
        %v7195 = vmax.f32 %v7149, 0.0
        %v7196 = vmax.f32 %v7154, 0.0
        %v7197 = vmax.f32 %v7157, 0.0
        %v7198 = vmax.f32 %v7162, 0.0
        %v7199 = vmax.f32 %v7165, 0.0
        %v7200 = vpack.c.bf16 %v7169, %v7168
        %v7201 = vpack.c.bf16 %v7171, %v7170
        %v7202 = vpack.c.bf16 %v7173, %v7172
        %v7203 = vpack.c.bf16 %v7175, %v7174
        %v7204 = vpack.c.bf16 %v7177, %v7176
        %v7205 = vpack.c.bf16 %v7179, %v7178
        %v7206 = vpack.c.bf16 %v7181, %v7180
        %v7207 = vpack.c.bf16 %v7183, %v7182
        %v7208 = vpack.c.bf16 %v7185, %v7184
        %v7209 = vpack.c.bf16 %v7187, %v7186
        %v7210 = vpack.c.bf16 %v7189, %v7188
        %v7211 = vpack.c.bf16 %v7191, %v7190
        %v7212 = vpack.c.bf16 %v7193, %v7192
        %v7213 = vpack.c.bf16 %v7195, %v7194
        %v7214 = vpack.c.bf16 %v7197, %v7196
        %v7215 = vpack.c.bf16 %v7199, %v7198
        %v7217 = vlaneseq
        %v7218 = vshrl.u32 %v7217, 7
        %v7219 = vsub.s32 0, %v7218
        %v7220 = vrot.slane %v926, %v7219
        %v7221 = vlaneseq
        %v7222 = vshrl.u32 %v7221, 7
        %v7223 = vsub.s32 1, %v7222
        %v7224 = vrot.slane %v926, %v7223
        %v7225 = vlaneseq
        %v7226 = vshrl.u32 %v7225, 7
        %v7227 = vsub.s32 2, %v7226
        %v7228 = vrot.slane %v926, %v7227
        %v7229 = vlaneseq
        %v7230 = vshrl.u32 %v7229, 7
        %v7231 = vsub.s32 3, %v7230
        %v7232 = vrot.slane %v926, %v7231
        %v7233 = vlaneseq
        %v7234 = vshrl.u32 %v7233, 7
        %v7235 = vsub.s32 4, %v7234
        %v7236 = vrot.slane %v926, %v7235
        %v7237 = vlaneseq
        %v7238 = vshrl.u32 %v7237, 7
        %v7239 = vsub.s32 5, %v7238
        %v7240 = vrot.slane %v926, %v7239
        %v7241 = vlaneseq
        %v7242 = vshrl.u32 %v7241, 7
        %v7243 = vsub.s32 6, %v7242
        %v7244 = vrot.slane %v926, %v7243
        %v7245 = vlaneseq
        %v7246 = vshrl.u32 %v7245, 7
        %v7247 = vsub.s32 7, %v7246
        %v7248 = vrot.slane %v926, %v7247
        %v7321 = vunpack.c.l.b16 %v862
        %v7322 = vunpack.c.h.b16 %v862
        %v7323 = vunpack.c.l.b16 %v863
        %v7324 = vunpack.c.h.b16 %v863
        %v7325 = vunpack.c.l.b16 %v864
        %v7326 = vunpack.c.h.b16 %v864
        %v7327 = vunpack.c.l.b16 %v865
        %v7328 = vunpack.c.h.b16 %v865
        %v7329 = vunpack.c.l.b16 %v866
        %v7330 = vunpack.c.h.b16 %v866
        %v7331 = vunpack.c.l.b16 %v867
        %v7332 = vunpack.c.h.b16 %v867
        %v7333 = vunpack.c.l.b16 %v868
        %v7334 = vunpack.c.h.b16 %v868
        %v7335 = vunpack.c.l.b16 %v869
        %v7336 = vunpack.c.h.b16 %v869
        %v7337 = vunpack.c.l.b16 %v870
        %v7338 = vunpack.c.h.b16 %v870
        %v7339 = vunpack.c.l.b16 %v871
        %v7340 = vunpack.c.h.b16 %v871
        %v7341 = vunpack.c.l.b16 %v872
        %v7342 = vunpack.c.h.b16 %v872
        %v7343 = vunpack.c.l.b16 %v873
        %v7344 = vunpack.c.h.b16 %v873
        %v7345 = vunpack.c.l.b16 %v874
        %v7346 = vunpack.c.h.b16 %v874
        %v7347 = vunpack.c.l.b16 %v875
        %v7348 = vunpack.c.h.b16 %v875
        %v7349 = vunpack.c.l.b16 %v876
        %v7350 = vunpack.c.h.b16 %v876
        %v7351 = vunpack.c.l.b16 %v877
        %v7352 = vunpack.c.h.b16 %v877
        %v7353 = vunpack.c.l.b16 %v878
        %v7354 = vunpack.c.h.b16 %v878
        %v7355 = vunpack.c.l.b16 %v879
        %v7356 = vunpack.c.h.b16 %v879
        %v7357 = vunpack.c.l.b16 %v880
        %v7358 = vunpack.c.h.b16 %v880
        %v7359 = vunpack.c.l.b16 %v881
        %v7360 = vunpack.c.h.b16 %v881
        %v7361 = vunpack.c.l.b16 %v882
        %v7362 = vunpack.c.h.b16 %v882
        %v7363 = vunpack.c.l.b16 %v883
        %v7364 = vunpack.c.h.b16 %v883
        %v7365 = vunpack.c.l.b16 %v884
        %v7366 = vunpack.c.h.b16 %v884
        %v7367 = vunpack.c.l.b16 %v885
        %v7368 = vunpack.c.h.b16 %v885
        %v7369 = vunpack.c.l.b16 %v886
        %v7370 = vunpack.c.h.b16 %v886
        %v7371 = vunpack.c.l.b16 %v887
        %v7372 = vunpack.c.h.b16 %v887
        %v7373 = vunpack.c.l.b16 %v888
        %v7374 = vunpack.c.h.b16 %v888
        %v7375 = vunpack.c.l.b16 %v889
        %v7376 = vunpack.c.h.b16 %v889
        %v7377 = vunpack.c.l.b16 %v890
        %v7378 = vunpack.c.h.b16 %v890
        %v7379 = vunpack.c.l.b16 %v891
        %v7380 = vunpack.c.h.b16 %v891
        %v7381 = vunpack.c.l.b16 %v892
        %v7382 = vunpack.c.h.b16 %v892
        %v7383 = vunpack.c.l.b16 %v893
        %v7384 = vunpack.c.h.b16 %v893
        %v7385 = vunpack.c.l.b16 %v894
        %v7386 = vunpack.c.h.b16 %v894
        %v7387 = vunpack.c.l.b16 %v895
        %v7388 = vunpack.c.h.b16 %v895
        %v7389 = vunpack.c.l.b16 %v896
        %v7390 = vunpack.c.h.b16 %v896
        %v7391 = vunpack.c.l.b16 %v897
        %v7392 = vunpack.c.h.b16 %v897
        %v7393 = vunpack.c.l.b16 %v898
        %v7394 = vunpack.c.h.b16 %v898
        %v7395 = vunpack.c.l.b16 %v899
        %v7396 = vunpack.c.h.b16 %v899
        %v7397 = vunpack.c.l.b16 %v900
        %v7398 = vunpack.c.h.b16 %v900
        %v7399 = vunpack.c.l.b16 %v901
        %v7400 = vunpack.c.h.b16 %v901
        %v7401 = vunpack.c.l.b16 %v902
        %v7402 = vunpack.c.h.b16 %v902
        %v7403 = vunpack.c.l.b16 %v903
        %v7404 = vunpack.c.h.b16 %v903
        %v7405 = vunpack.c.l.b16 %v904
        %v7406 = vunpack.c.h.b16 %v904
        %v7407 = vunpack.c.l.b16 %v905
        %v7408 = vunpack.c.h.b16 %v905
        %v7409 = vunpack.c.l.b16 %v906
        %v7410 = vunpack.c.h.b16 %v906
        %v7411 = vunpack.c.l.b16 %v907
        %v7412 = vunpack.c.h.b16 %v907
        %v7413 = vunpack.c.l.b16 %v908
        %v7414 = vunpack.c.h.b16 %v908
        %v7415 = vunpack.c.l.b16 %v909
        %v7416 = vunpack.c.h.b16 %v909
        %v7417 = vunpack.c.l.b16 %v910
        %v7418 = vunpack.c.h.b16 %v910
        %v7419 = vunpack.c.l.b16 %v911
        %v7420 = vunpack.c.h.b16 %v911
        %v7421 = vunpack.c.l.b16 %v912
        %v7422 = vunpack.c.h.b16 %v912
        %v7423 = vunpack.c.l.b16 %v913
        %v7424 = vunpack.c.h.b16 %v913
        %v7425 = vunpack.c.l.b16 %v914
        %v7426 = vunpack.c.h.b16 %v914
        %v7427 = vunpack.c.l.b16 %v915
        %v7428 = vunpack.c.h.b16 %v915
        %v7429 = vunpack.c.l.b16 %v916
        %v7430 = vunpack.c.h.b16 %v916
        %v7431 = vunpack.c.l.b16 %v917
        %v7432 = vunpack.c.h.b16 %v917
        %v7433 = vunpack.c.l.b16 %v918
        %v7434 = vunpack.c.h.b16 %v918
        %v7435 = vunpack.c.l.b16 %v919
        %v7436 = vunpack.c.h.b16 %v919
        %v7437 = vunpack.c.l.b16 %v920
        %v7438 = vunpack.c.h.b16 %v920
        %v7439 = vunpack.c.l.b16 %v921
        %v7440 = vunpack.c.h.b16 %v921
        %v7441 = vunpack.c.l.b16 %v922
        %v7442 = vunpack.c.h.b16 %v922
        %v7443 = vunpack.c.l.b16 %v923
        %v7444 = vunpack.c.h.b16 %v923
        %v7445 = vunpack.c.l.b16 %v924
        %v7446 = vunpack.c.h.b16 %v924
        %v7447 = vunpack.c.l.b16 %v925
        %v7448 = vunpack.c.h.b16 %v925
        %v7449 = vpack.c.b16 %v7329, %v7321
        %v7450 = vpack.c.b16 %v7330, %v7322
        %v7451 = vpack.c.b16 %v7331, %v7323
        %v7452 = vpack.c.b16 %v7332, %v7324
        %v7453 = vpack.c.b16 %v7333, %v7325
        %v7454 = vpack.c.b16 %v7334, %v7326
        %v7455 = vpack.c.b16 %v7335, %v7327
        %v7456 = vpack.c.b16 %v7336, %v7328
        %v7457 = vpack.c.b16 %v7345, %v7337
        %v7458 = vpack.c.b16 %v7346, %v7338
        %v7459 = vpack.c.b16 %v7347, %v7339
        %v7460 = vpack.c.b16 %v7348, %v7340
        %v7461 = vpack.c.b16 %v7349, %v7341
        %v7462 = vpack.c.b16 %v7350, %v7342
        %v7463 = vpack.c.b16 %v7351, %v7343
        %v7464 = vpack.c.b16 %v7352, %v7344
        %v7465 = vpack.c.b16 %v7361, %v7353
        %v7466 = vpack.c.b16 %v7362, %v7354
        %v7467 = vpack.c.b16 %v7363, %v7355
        %v7468 = vpack.c.b16 %v7364, %v7356
        %v7469 = vpack.c.b16 %v7365, %v7357
        %v7470 = vpack.c.b16 %v7366, %v7358
        %v7471 = vpack.c.b16 %v7367, %v7359
        %v7472 = vpack.c.b16 %v7368, %v7360
        %v7473 = vpack.c.b16 %v7377, %v7369
        %v7474 = vpack.c.b16 %v7378, %v7370
        %v7475 = vpack.c.b16 %v7379, %v7371
        %v7476 = vpack.c.b16 %v7380, %v7372
        %v7477 = vpack.c.b16 %v7381, %v7373
        %v7478 = vpack.c.b16 %v7382, %v7374
        %v7479 = vpack.c.b16 %v7383, %v7375
        %v7480 = vpack.c.b16 %v7384, %v7376
        %v7481 = vpack.c.b16 %v7393, %v7385
        %v7482 = vpack.c.b16 %v7394, %v7386
        %v7483 = vpack.c.b16 %v7395, %v7387
        %v7484 = vpack.c.b16 %v7396, %v7388
        %v7485 = vpack.c.b16 %v7397, %v7389
        %v7486 = vpack.c.b16 %v7398, %v7390
        %v7487 = vpack.c.b16 %v7399, %v7391
        %v7488 = vpack.c.b16 %v7400, %v7392
        %v7489 = vpack.c.b16 %v7409, %v7401
        %v7490 = vpack.c.b16 %v7410, %v7402
        %v7491 = vpack.c.b16 %v7411, %v7403
        %v7492 = vpack.c.b16 %v7412, %v7404
        %v7493 = vpack.c.b16 %v7413, %v7405
        %v7494 = vpack.c.b16 %v7414, %v7406
        %v7495 = vpack.c.b16 %v7415, %v7407
        %v7496 = vpack.c.b16 %v7416, %v7408
        %v7497 = vpack.c.b16 %v7425, %v7417
        %v7498 = vpack.c.b16 %v7426, %v7418
        %v7499 = vpack.c.b16 %v7427, %v7419
        %v7500 = vpack.c.b16 %v7428, %v7420
        %v7501 = vpack.c.b16 %v7429, %v7421
        %v7502 = vpack.c.b16 %v7430, %v7422
        %v7503 = vpack.c.b16 %v7431, %v7423
        %v7504 = vpack.c.b16 %v7432, %v7424
        %v7505 = vpack.c.b16 %v7441, %v7433
        %v7506 = vpack.c.b16 %v7442, %v7434
        %v7507 = vpack.c.b16 %v7443, %v7435
        %v7508 = vpack.c.b16 %v7444, %v7436
        %v7509 = vpack.c.b16 %v7445, %v7437
        %v7510 = vpack.c.b16 %v7446, %v7438
        %v7511 = vpack.c.b16 %v7447, %v7439
        %v7512 = vpack.c.b16 %v7448, %v7440
        %7577 = vmatprep.subr.bf16.mxu0 %v7450
        %7578 = vmatpush1.bf16.msra.mxu0 %v7449
        %7579 = vmatprep.subr.bf16.mxu0 %v7458
        %7580 = vmatpush1.bf16.msra.mxu0 %v7457
        %7581 = vmatprep.subr.bf16.mxu0 %v7466
        %7582 = vmatpush1.bf16.msra.mxu0 %v7465
        %7583 = vmatprep.subr.bf16.mxu0 %v7474
        %7584 = vmatpush1.bf16.msra.mxu0 %v7473
        %7585 = vmatprep.subr.bf16.mxu0 %v7482
        %7586 = vmatpush1.bf16.msra.mxu0 %v7481
        %7587 = vmatprep.subr.bf16.mxu0 %v7490
        %7588 = vmatpush1.bf16.msra.mxu0 %v7489
        %7589 = vmatprep.subr.bf16.mxu0 %v7498
        %7590 = vmatpush1.bf16.msra.mxu0 %v7497
        %7591 = vmatprep.subr.bf16.mxu0 %v7506
        %7592 = vmatpush1.bf16.msra.mxu0 %v7505
        %7593 = vmatprep.subr.bf16.mxu0 0
        %7594 = vmatpush1.bf16.msra.mxu0 0
        %7595 = vmatprep.subr.bf16.mxu0 0
        %7596 = vmatpush1.bf16.msra.mxu0 0
        %7597 = vmatprep.subr.bf16.mxu0 0
        %7598 = vmatpush1.bf16.msra.mxu0 0
        %7599 = vmatprep.subr.bf16.mxu0 0
        %7600 = vmatpush1.bf16.msra.mxu0 0
        %7601 = vmatprep.subr.bf16.mxu0 0
        %7602 = vmatpush1.bf16.msra.mxu0 0
        %7603 = vmatprep.subr.bf16.mxu0 0
        %7604 = vmatpush1.bf16.msra.mxu0 0
        %7605 = vmatprep.subr.bf16.mxu0 0
        %7606 = vmatpush1.bf16.msra.mxu0 0
        %7607 = vmatprep.subr.bf16.mxu0 0
        %7608 = vmatpush1.bf16.msra.mxu0 0
        %7609 = vmatprep.mubr.bf16.mxu0 0
        %7610 = vmatmul.mubr.bf16.gmra.mrb[0].mxu0 %v7200
        %v7611 = vpop.f32.mrb[0].mxu0
        %v7612 = vadd.f32 %v7220, %v7611
        %v7613 = vpop.f32.mrb[0].mxu0
        %v7614 = vadd.f32 %v7224, %v7613
        %v7615 = vpop.f32.mrb[0].mxu0
        %v7616 = vadd.f32 %v7220, %v7615
        %v7617 = vpop.f32.mrb[0].mxu0
        %v7618 = vadd.f32 %v7224, %v7617
        %7619 = vmatprep.mubr.bf16.mxu0 0
        %7620 = vmatmul.mubr.bf16.gmra.mrb[0].mxu0 %v7201
        %v7621 = vpop.f32.mrb[0].mxu0
        %v7622 = vadd.f32 %v7220, %v7621
        %v7623 = vpop.f32.mrb[0].mxu0
        %v7624 = vadd.f32 %v7224, %v7623
        %v7625 = vpop.f32.mrb[0].mxu0
        %v7626 = vadd.f32 %v7220, %v7625
        %v7627 = vpop.f32.mrb[0].mxu0
        %v7628 = vadd.f32 %v7224, %v7627
        %7629 = vmatprep.mubr.bf16.mxu0 0
        %7630 = vmatmul.mubr.bf16.gmra.mrb[0].mxu0 %v7202
        %v7631 = vpop.f32.mrb[0].mxu0
        %v7632 = vadd.f32 %v7220, %v7631
        %v7633 = vpop.f32.mrb[0].mxu0
        %v7634 = vadd.f32 %v7224, %v7633
        %v7635 = vpop.f32.mrb[0].mxu0
        %v7636 = vadd.f32 %v7220, %v7635
        %v7637 = vpop.f32.mrb[0].mxu0
        %v7638 = vadd.f32 %v7224, %v7637
        %7639 = vmatprep.mubr.bf16.mxu0 0
        %7640 = vmatmul.mubr.bf16.gmra.mrb[0].mxu0 %v7203
        %v7641 = vpop.f32.mrb[0].mxu0
        %v7642 = vadd.f32 %v7220, %v7641
        %v7643 = vpop.f32.mrb[0].mxu0
        %v7644 = vadd.f32 %v7224, %v7643
        %v7645 = vpop.f32.mrb[0].mxu0
        %v7646 = vadd.f32 %v7220, %v7645
        %v7647 = vpop.f32.mrb[0].mxu0
        %v7648 = vadd.f32 %v7224, %v7647
        %7649 = vmatprep.mubr.bf16.mxu0 0
        %7650 = vmatmul.mubr.bf16.gmra.mrb[0].mxu0 %v7204
        %v7651 = vpop.f32.mrb[0].mxu0
        %v7652 = vadd.f32 %v7220, %v7651
        %v7653 = vpop.f32.mrb[0].mxu0
        %v7654 = vadd.f32 %v7224, %v7653
        %v7655 = vpop.f32.mrb[0].mxu0
        %v7656 = vadd.f32 %v7220, %v7655
        %v7657 = vpop.f32.mrb[0].mxu0
        %v7658 = vadd.f32 %v7224, %v7657
        %7659 = vmatprep.mubr.bf16.mxu0 0
        %7660 = vmatmul.mubr.bf16.gmra.mrb[0].mxu0 %v7205
        %v7661 = vpop.f32.mrb[0].mxu0
        %v7662 = vadd.f32 %v7220, %v7661
        %v7663 = vpop.f32.mrb[0].mxu0
        %v7664 = vadd.f32 %v7224, %v7663
        %v7665 = vpop.f32.mrb[0].mxu0
        %v7666 = vadd.f32 %v7220, %v7665
        %v7667 = vpop.f32.mrb[0].mxu0
        %v7668 = vadd.f32 %v7224, %v7667
        %7669 = vmatprep.mubr.bf16.mxu0 0
        %7670 = vmatmul.mubr.bf16.gmra.mrb[0].mxu0 %v7206
        %v7671 = vpop.f32.mrb[0].mxu0
        %v7672 = vadd.f32 %v7220, %v7671
        %v7673 = vpop.f32.mrb[0].mxu0
        %v7674 = vadd.f32 %v7224, %v7673
        %v7675 = vpop.f32.mrb[0].mxu0
        %v7676 = vadd.f32 %v7220, %v7675
        %v7677 = vpop.f32.mrb[0].mxu0
        %v7678 = vadd.f32 %v7224, %v7677
        %7679 = vmatprep.mubr.bf16.mxu0 0
        %7680 = vmatmul.mubr.bf16.gmra.mrb[0].mxu0 %v7207
        %v7681 = vpop.f32.mrb[0].mxu0
        %v7682 = vadd.f32 %v7220, %v7681
        %v7683 = vpop.f32.mrb[0].mxu0
        %v7684 = vadd.f32 %v7224, %v7683
        %v7685 = vpop.f32.mrb[0].mxu0
        %v7686 = vadd.f32 %v7220, %v7685
        %v7687 = vpop.f32.mrb[0].mxu0
        %v7688 = vadd.f32 %v7224, %v7687
        %7689 = vmatprep.mubr.bf16.mxu0 0
        %7690 = vmatmul.mubr.bf16.gmra.mrb[0].mxu0 %v7208
        %v7691 = vpop.f32.mrb[0].mxu0
        %v7692 = vadd.f32 %v7220, %v7691
        %v7693 = vpop.f32.mrb[0].mxu0
        %v7694 = vadd.f32 %v7224, %v7693
        %v7695 = vpop.f32.mrb[0].mxu0
        %v7696 = vadd.f32 %v7220, %v7695
        %v7697 = vpop.f32.mrb[0].mxu0
        %v7698 = vadd.f32 %v7224, %v7697
        %7699 = vmatprep.mubr.bf16.mxu0 0
        %7700 = vmatmul.mubr.bf16.gmra.mrb[0].mxu0 %v7209
        %v7701 = vpop.f32.mrb[0].mxu0
        %v7702 = vadd.f32 %v7220, %v7701
        %v7703 = vpop.f32.mrb[0].mxu0
        %v7704 = vadd.f32 %v7224, %v7703
        %v7705 = vpop.f32.mrb[0].mxu0
        %v7706 = vadd.f32 %v7220, %v7705
        %v7707 = vpop.f32.mrb[0].mxu0
        %v7708 = vadd.f32 %v7224, %v7707
        %7709 = vmatprep.mubr.bf16.mxu0 0
        %7710 = vmatmul.mubr.bf16.gmra.mrb[0].mxu0 %v7210
        %v7711 = vpop.f32.mrb[0].mxu0
        %v7712 = vadd.f32 %v7220, %v7711
        %v7713 = vpop.f32.mrb[0].mxu0
        %v7714 = vadd.f32 %v7224, %v7713
        %v7715 = vpop.f32.mrb[0].mxu0
        %v7716 = vadd.f32 %v7220, %v7715
        %v7717 = vpop.f32.mrb[0].mxu0
        %v7718 = vadd.f32 %v7224, %v7717
        %7719 = vmatprep.mubr.bf16.mxu0 0
        %7720 = vmatmul.mubr.bf16.gmra.mrb[0].mxu0 %v7211
        %v7721 = vpop.f32.mrb[0].mxu0
        %v7722 = vadd.f32 %v7220, %v7721
        %v7723 = vpop.f32.mrb[0].mxu0
        %v7724 = vadd.f32 %v7224, %v7723
        %v7725 = vpop.f32.mrb[0].mxu0
        %v7726 = vadd.f32 %v7220, %v7725
        %v7727 = vpop.f32.mrb[0].mxu0
        %v7728 = vadd.f32 %v7224, %v7727
        %7729 = vmatprep.mubr.bf16.mxu0 0
        %7730 = vmatmul.mubr.bf16.gmra.mrb[0].mxu0 %v7212
        %v7731 = vpop.f32.mrb[0].mxu0
        %v7732 = vadd.f32 %v7220, %v7731
        %v7733 = vpop.f32.mrb[0].mxu0
        %v7734 = vadd.f32 %v7224, %v7733
        %v7735 = vpop.f32.mrb[0].mxu0
        %v7736 = vadd.f32 %v7220, %v7735
        %v7737 = vpop.f32.mrb[0].mxu0
        %v7738 = vadd.f32 %v7224, %v7737
        %7739 = vmatprep.mubr.bf16.mxu0 0
        %7740 = vmatmul.mubr.bf16.gmra.mrb[0].mxu0 %v7213
        %v7741 = vpop.f32.mrb[0].mxu0
        %v7742 = vadd.f32 %v7220, %v7741
        %v7743 = vpop.f32.mrb[0].mxu0
        %v7744 = vadd.f32 %v7224, %v7743
        %v7745 = vpop.f32.mrb[0].mxu0
        %v7746 = vadd.f32 %v7220, %v7745
        %v7747 = vpop.f32.mrb[0].mxu0
        %v7748 = vadd.f32 %v7224, %v7747
        %7749 = vmatprep.mubr.bf16.mxu0 0
        %7750 = vmatmul.mubr.bf16.gmra.mrb[0].mxu0 %v7214
        %v7751 = vpop.f32.mrb[0].mxu0
        %v7752 = vadd.f32 %v7220, %v7751
        %v7753 = vpop.f32.mrb[0].mxu0
        %v7754 = vadd.f32 %v7224, %v7753
        %v7755 = vpop.f32.mrb[0].mxu0
        %v7756 = vadd.f32 %v7220, %v7755
        %v7757 = vpop.f32.mrb[0].mxu0
        %v7758 = vadd.f32 %v7224, %v7757
        %7759 = vmatprep.mubr.bf16.mxu0 0
        %7760 = vmatmul.mubr.bf16.gmra.mrb[0].mxu0 %v7215
        %v7761 = vpop.f32.mrb[0].mxu0
        %v7762 = vadd.f32 %v7220, %v7761
        %v7763 = vpop.f32.mrb[0].mxu0
        %v7764 = vadd.f32 %v7224, %v7763
        %v7765 = vpop.f32.mrb[0].mxu0
        %v7766 = vadd.f32 %v7220, %v7765
        %v7767 = vpop.f32.mrb[0].mxu0
        %v7768 = vadd.f32 %v7224, %v7767
        %7769 = vdwg.mxu0
        %7770 = vmatprep.subr.bf16.mxu0 %v7452
        %7771 = vmatpush1.bf16.msra.mxu0 %v7451
        %7772 = vmatprep.subr.bf16.mxu0 %v7460
        %7773 = vmatpush1.bf16.msra.mxu0 %v7459
        %7774 = vmatprep.subr.bf16.mxu0 %v7468
        %7775 = vmatpush1.bf16.msra.mxu0 %v7467
        %7776 = vmatprep.subr.bf16.mxu0 %v7476
        %7777 = vmatpush1.bf16.msra.mxu0 %v7475
        %7778 = vmatprep.subr.bf16.mxu0 %v7484
        %7779 = vmatpush1.bf16.msra.mxu0 %v7483
        %7780 = vmatprep.subr.bf16.mxu0 %v7492
        %7781 = vmatpush1.bf16.msra.mxu0 %v7491
        %7782 = vmatprep.subr.bf16.mxu0 %v7500
        %7783 = vmatpush1.bf16.msra.mxu0 %v7499
        %7784 = vmatprep.subr.bf16.mxu0 %v7508
        %7785 = vmatpush1.bf16.msra.mxu0 %v7507
        %7786 = vmatprep.subr.bf16.mxu0 0
        %7787 = vmatpush1.bf16.msra.mxu0 0
        %7788 = vmatprep.subr.bf16.mxu0 0
        %7789 = vmatpush1.bf16.msra.mxu0 0
        %7790 = vmatprep.subr.bf16.mxu0 0
        %7791 = vmatpush1.bf16.msra.mxu0 0
        %7792 = vmatprep.subr.bf16.mxu0 0
        %7793 = vmatpush1.bf16.msra.mxu0 0
        %7794 = vmatprep.subr.bf16.mxu0 0
        %7795 = vmatpush1.bf16.msra.mxu0 0
        %7796 = vmatprep.subr.bf16.mxu0 0
        %7797 = vmatpush1.bf16.msra.mxu0 0
        %7798 = vmatprep.subr.bf16.mxu0 0
        %7799 = vmatpush1.bf16.msra.mxu0 0
        %7800 = vmatprep.subr.bf16.mxu0 0
        %7801 = vmatpush1.bf16.msra.mxu0 0
        %7802 = vmatprep.mubr.bf16.mxu0 0
        %7803 = vmatmul.mubr.bf16.gmra.mrb[0].mxu0 %v7200
        %v7804 = vpop.f32.mrb[0].mxu0
        %v7805 = vadd.f32 %v7228, %v7804
        %v7806 = vpop.f32.mrb[0].mxu0
        %v7807 = vadd.f32 %v7232, %v7806
        %v7808 = vpop.f32.mrb[0].mxu0
        %v7809 = vadd.f32 %v7228, %v7808
        %v7810 = vpop.f32.mrb[0].mxu0
        %v7811 = vadd.f32 %v7232, %v7810
        %7812 = vmatprep.mubr.bf16.mxu0 0
        %7813 = vmatmul.mubr.bf16.gmra.mrb[0].mxu0 %v7201
        %v7814 = vpop.f32.mrb[0].mxu0
        %v7815 = vadd.f32 %v7228, %v7814
        %v7816 = vpop.f32.mrb[0].mxu0
        %v7817 = vadd.f32 %v7232, %v7816
        %v7818 = vpop.f32.mrb[0].mxu0
        %v7819 = vadd.f32 %v7228, %v7818
        %v7820 = vpop.f32.mrb[0].mxu0
        %v7821 = vadd.f32 %v7232, %v7820
        %7822 = vmatprep.mubr.bf16.mxu0 0
        %7823 = vmatmul.mubr.bf16.gmra.mrb[0].mxu0 %v7202
        %v7824 = vpop.f32.mrb[0].mxu0
        %v7825 = vadd.f32 %v7228, %v7824
        %v7826 = vpop.f32.mrb[0].mxu0
        %v7827 = vadd.f32 %v7232, %v7826
        %v7828 = vpop.f32.mrb[0].mxu0
        %v7829 = vadd.f32 %v7228, %v7828
        %v7830 = vpop.f32.mrb[0].mxu0
        %v7831 = vadd.f32 %v7232, %v7830
        %7832 = vmatprep.mubr.bf16.mxu0 0
        %7833 = vmatmul.mubr.bf16.gmra.mrb[0].mxu0 %v7203
        %v7834 = vpop.f32.mrb[0].mxu0
        %v7835 = vadd.f32 %v7228, %v7834
        %v7836 = vpop.f32.mrb[0].mxu0
        %v7837 = vadd.f32 %v7232, %v7836
        %v7838 = vpop.f32.mrb[0].mxu0
        %v7839 = vadd.f32 %v7228, %v7838
        %v7840 = vpop.f32.mrb[0].mxu0
        %v7841 = vadd.f32 %v7232, %v7840
        %7842 = vmatprep.mubr.bf16.mxu0 0
        %7843 = vmatmul.mubr.bf16.gmra.mrb[0].mxu0 %v7204
        %v7844 = vpop.f32.mrb[0].mxu0
        %v7845 = vadd.f32 %v7228, %v7844
        %v7846 = vpop.f32.mrb[0].mxu0
        %v7847 = vadd.f32 %v7232, %v7846
        %v7848 = vpop.f32.mrb[0].mxu0
        %v7849 = vadd.f32 %v7228, %v7848
        %v7850 = vpop.f32.mrb[0].mxu0
        %v7851 = vadd.f32 %v7232, %v7850
        %7852 = vmatprep.mubr.bf16.mxu0 0
        %7853 = vmatmul.mubr.bf16.gmra.mrb[0].mxu0 %v7205
        %v7854 = vpop.f32.mrb[0].mxu0
        %v7855 = vadd.f32 %v7228, %v7854
        %v7856 = vpop.f32.mrb[0].mxu0
        %v7857 = vadd.f32 %v7232, %v7856
        %v7858 = vpop.f32.mrb[0].mxu0
        %v7859 = vadd.f32 %v7228, %v7858
        %v7860 = vpop.f32.mrb[0].mxu0
        %v7861 = vadd.f32 %v7232, %v7860
        %7862 = vmatprep.mubr.bf16.mxu0 0
        %7863 = vmatmul.mubr.bf16.gmra.mrb[0].mxu0 %v7206
        %v7864 = vpop.f32.mrb[0].mxu0
        %v7865 = vadd.f32 %v7228, %v7864
        %v7866 = vpop.f32.mrb[0].mxu0
        %v7867 = vadd.f32 %v7232, %v7866
        %v7868 = vpop.f32.mrb[0].mxu0
        %v7869 = vadd.f32 %v7228, %v7868
        %v7870 = vpop.f32.mrb[0].mxu0
        %v7871 = vadd.f32 %v7232, %v7870
        %7872 = vmatprep.mubr.bf16.mxu0 0
        %7873 = vmatmul.mubr.bf16.gmra.mrb[0].mxu0 %v7207
        %v7874 = vpop.f32.mrb[0].mxu0
        %v7875 = vadd.f32 %v7228, %v7874
        %v7876 = vpop.f32.mrb[0].mxu0
        %v7877 = vadd.f32 %v7232, %v7876
        %v7878 = vpop.f32.mrb[0].mxu0
        %v7879 = vadd.f32 %v7228, %v7878
        %v7880 = vpop.f32.mrb[0].mxu0
        %v7881 = vadd.f32 %v7232, %v7880
        %7882 = vmatprep.mubr.bf16.mxu0 0
        %7883 = vmatmul.mubr.bf16.gmra.mrb[0].mxu0 %v7208
        %v7884 = vpop.f32.mrb[0].mxu0
        %v7885 = vadd.f32 %v7228, %v7884
        %v7886 = vpop.f32.mrb[0].mxu0
        %v7887 = vadd.f32 %v7232, %v7886
        %v7888 = vpop.f32.mrb[0].mxu0
        %v7889 = vadd.f32 %v7228, %v7888
        %v7890 = vpop.f32.mrb[0].mxu0
        %v7891 = vadd.f32 %v7232, %v7890
        %7892 = vmatprep.mubr.bf16.mxu0 0
        %7893 = vmatmul.mubr.bf16.gmra.mrb[0].mxu0 %v7209
        %v7894 = vpop.f32.mrb[0].mxu0
        %v7895 = vadd.f32 %v7228, %v7894
        %v7896 = vpop.f32.mrb[0].mxu0
        %v7897 = vadd.f32 %v7232, %v7896
        %v7898 = vpop.f32.mrb[0].mxu0
        %v7899 = vadd.f32 %v7228, %v7898
        %v7900 = vpop.f32.mrb[0].mxu0
        %v7901 = vadd.f32 %v7232, %v7900
        %7902 = vmatprep.mubr.bf16.mxu0 0
        %7903 = vmatmul.mubr.bf16.gmra.mrb[0].mxu0 %v7210
        %v7904 = vpop.f32.mrb[0].mxu0
        %v7905 = vadd.f32 %v7228, %v7904
        %v7906 = vpop.f32.mrb[0].mxu0
        %v7907 = vadd.f32 %v7232, %v7906
        %v7908 = vpop.f32.mrb[0].mxu0
        %v7909 = vadd.f32 %v7228, %v7908
        %v7910 = vpop.f32.mrb[0].mxu0
        %v7911 = vadd.f32 %v7232, %v7910
        %7912 = vmatprep.mubr.bf16.mxu0 0
        %7913 = vmatmul.mubr.bf16.gmra.mrb[0].mxu0 %v7211
        %v7914 = vpop.f32.mrb[0].mxu0
        %v7915 = vadd.f32 %v7228, %v7914
        %v7916 = vpop.f32.mrb[0].mxu0
        %v7917 = vadd.f32 %v7232, %v7916
        %v7918 = vpop.f32.mrb[0].mxu0
        %v7919 = vadd.f32 %v7228, %v7918
        %v7920 = vpop.f32.mrb[0].mxu0
        %v7921 = vadd.f32 %v7232, %v7920
        %7922 = vmatprep.mubr.bf16.mxu0 0
        %7923 = vmatmul.mubr.bf16.gmra.mrb[0].mxu0 %v7212
        %v7924 = vpop.f32.mrb[0].mxu0
        %v7925 = vadd.f32 %v7228, %v7924
        %v7926 = vpop.f32.mrb[0].mxu0
        %v7927 = vadd.f32 %v7232, %v7926
        %v7928 = vpop.f32.mrb[0].mxu0
        %v7929 = vadd.f32 %v7228, %v7928
        %v7930 = vpop.f32.mrb[0].mxu0
        %v7931 = vadd.f32 %v7232, %v7930
        %7932 = vmatprep.mubr.bf16.mxu0 0
        %7933 = vmatmul.mubr.bf16.gmra.mrb[0].mxu0 %v7213
        %v7934 = vpop.f32.mrb[0].mxu0
        %v7935 = vadd.f32 %v7228, %v7934
        %v7936 = vpop.f32.mrb[0].mxu0
        %v7937 = vadd.f32 %v7232, %v7936
        %v7938 = vpop.f32.mrb[0].mxu0
        %v7939 = vadd.f32 %v7228, %v7938
        %v7940 = vpop.f32.mrb[0].mxu0
        %v7941 = vadd.f32 %v7232, %v7940
        %7942 = vmatprep.mubr.bf16.mxu0 0
        %7943 = vmatmul.mubr.bf16.gmra.mrb[0].mxu0 %v7214
        %v7944 = vpop.f32.mrb[0].mxu0
        %v7945 = vadd.f32 %v7228, %v7944
        %v7946 = vpop.f32.mrb[0].mxu0
        %v7947 = vadd.f32 %v7232, %v7946
        %v7948 = vpop.f32.mrb[0].mxu0
        %v7949 = vadd.f32 %v7228, %v7948
        %v7950 = vpop.f32.mrb[0].mxu0
        %v7951 = vadd.f32 %v7232, %v7950
        %7952 = vmatprep.mubr.bf16.mxu0 0
        %7953 = vmatmul.mubr.bf16.gmra.mrb[0].mxu0 %v7215
        %v7954 = vpop.f32.mrb[0].mxu0
        %v7955 = vadd.f32 %v7228, %v7954
        %v7956 = vpop.f32.mrb[0].mxu0
        %v7957 = vadd.f32 %v7232, %v7956
        %v7958 = vpop.f32.mrb[0].mxu0
        %v7959 = vadd.f32 %v7228, %v7958
        %v7960 = vpop.f32.mrb[0].mxu0
        %v7961 = vadd.f32 %v7232, %v7960
        %7962 = vdwg.mxu0
        %7963 = vmatprep.subr.bf16.mxu0 %v7454
        %7964 = vmatpush1.bf16.msra.mxu0 %v7453
        %7965 = vmatprep.subr.bf16.mxu0 %v7462
        %7966 = vmatpush1.bf16.msra.mxu0 %v7461
        %7967 = vmatprep.subr.bf16.mxu0 %v7470
        %7968 = vmatpush1.bf16.msra.mxu0 %v7469
        %7969 = vmatprep.subr.bf16.mxu0 %v7478
        %7970 = vmatpush1.bf16.msra.mxu0 %v7477
        %7971 = vmatprep.subr.bf16.mxu0 %v7486
        %7972 = vmatpush1.bf16.msra.mxu0 %v7485
        %7973 = vmatprep.subr.bf16.mxu0 %v7494
        %7974 = vmatpush1.bf16.msra.mxu0 %v7493
        %7975 = vmatprep.subr.bf16.mxu0 %v7502
        %7976 = vmatpush1.bf16.msra.mxu0 %v7501
        %7977 = vmatprep.subr.bf16.mxu0 %v7510
        %7978 = vmatpush1.bf16.msra.mxu0 %v7509
        %7979 = vmatprep.subr.bf16.mxu0 0
        %7980 = vmatpush1.bf16.msra.mxu0 0
        %7981 = vmatprep.subr.bf16.mxu0 0
        %7982 = vmatpush1.bf16.msra.mxu0 0
        %7983 = vmatprep.subr.bf16.mxu0 0
        %7984 = vmatpush1.bf16.msra.mxu0 0
        %7985 = vmatprep.subr.bf16.mxu0 0
        %7986 = vmatpush1.bf16.msra.mxu0 0
        %7987 = vmatprep.subr.bf16.mxu0 0
        %7988 = vmatpush1.bf16.msra.mxu0 0
        %7989 = vmatprep.subr.bf16.mxu0 0
        %7990 = vmatpush1.bf16.msra.mxu0 0
        %7991 = vmatprep.subr.bf16.mxu0 0
        %7992 = vmatpush1.bf16.msra.mxu0 0
        %7993 = vmatprep.subr.bf16.mxu0 0
        %7994 = vmatpush1.bf16.msra.mxu0 0
        %7995 = vmatprep.mubr.bf16.mxu0 0
        %7996 = vmatmul.mubr.bf16.gmra.mrb[0].mxu0 %v7200
        %v7997 = vpop.f32.mrb[0].mxu0
        %v7998 = vadd.f32 %v7236, %v7997
        %v7999 = vpop.f32.mrb[0].mxu0
        %v8000 = vadd.f32 %v7240, %v7999
        %v8001 = vpop.f32.mrb[0].mxu0
        %v8002 = vadd.f32 %v7236, %v8001
        %v8003 = vpop.f32.mrb[0].mxu0
        %v8004 = vadd.f32 %v7240, %v8003
        %8005 = vmatprep.mubr.bf16.mxu0 0
        %8006 = vmatmul.mubr.bf16.gmra.mrb[0].mxu0 %v7201
        %v8007 = vpop.f32.mrb[0].mxu0
        %v8008 = vadd.f32 %v7236, %v8007
        %v8009 = vpop.f32.mrb[0].mxu0
        %v8010 = vadd.f32 %v7240, %v8009
        %v8011 = vpop.f32.mrb[0].mxu0
        %v8012 = vadd.f32 %v7236, %v8011
        %v8013 = vpop.f32.mrb[0].mxu0
        %v8014 = vadd.f32 %v7240, %v8013
        %8015 = vmatprep.mubr.bf16.mxu0 0
        %8016 = vmatmul.mubr.bf16.gmra.mrb[0].mxu0 %v7202
        %v8017 = vpop.f32.mrb[0].mxu0
        %v8018 = vadd.f32 %v7236, %v8017
        %v8019 = vpop.f32.mrb[0].mxu0
        %v8020 = vadd.f32 %v7240, %v8019
        %v8021 = vpop.f32.mrb[0].mxu0
        %v8022 = vadd.f32 %v7236, %v8021
        %v8023 = vpop.f32.mrb[0].mxu0
        %v8024 = vadd.f32 %v7240, %v8023
        %8025 = vmatprep.mubr.bf16.mxu0 0
        %8026 = vmatmul.mubr.bf16.gmra.mrb[0].mxu0 %v7203
        %v8027 = vpop.f32.mrb[0].mxu0
        %v8028 = vadd.f32 %v7236, %v8027
        %v8029 = vpop.f32.mrb[0].mxu0
        %v8030 = vadd.f32 %v7240, %v8029
        %v8031 = vpop.f32.mrb[0].mxu0
        %v8032 = vadd.f32 %v7236, %v8031
        %v8033 = vpop.f32.mrb[0].mxu0
        %v8034 = vadd.f32 %v7240, %v8033
        %8035 = vmatprep.mubr.bf16.mxu0 0
        %8036 = vmatmul.mubr.bf16.gmra.mrb[0].mxu0 %v7204
        %v8037 = vpop.f32.mrb[0].mxu0
        %v8038 = vadd.f32 %v7236, %v8037
        %v8039 = vpop.f32.mrb[0].mxu0
        %v8040 = vadd.f32 %v7240, %v8039
        %v8041 = vpop.f32.mrb[0].mxu0
        %v8042 = vadd.f32 %v7236, %v8041
        %v8043 = vpop.f32.mrb[0].mxu0
        %v8044 = vadd.f32 %v7240, %v8043
        %8045 = vmatprep.mubr.bf16.mxu0 0
        %8046 = vmatmul.mubr.bf16.gmra.mrb[0].mxu0 %v7205
        %v8047 = vpop.f32.mrb[0].mxu0
        %v8048 = vadd.f32 %v7236, %v8047
        %v8049 = vpop.f32.mrb[0].mxu0
        %v8050 = vadd.f32 %v7240, %v8049
        %v8051 = vpop.f32.mrb[0].mxu0
        %v8052 = vadd.f32 %v7236, %v8051
        %v8053 = vpop.f32.mrb[0].mxu0
        %v8054 = vadd.f32 %v7240, %v8053
        %8055 = vmatprep.mubr.bf16.mxu0 0
        %8056 = vmatmul.mubr.bf16.gmra.mrb[0].mxu0 %v7206
        %v8057 = vpop.f32.mrb[0].mxu0
        %v8058 = vadd.f32 %v7236, %v8057
        %v8059 = vpop.f32.mrb[0].mxu0
        %v8060 = vadd.f32 %v7240, %v8059
        %v8061 = vpop.f32.mrb[0].mxu0
        %v8062 = vadd.f32 %v7236, %v8061
        %v8063 = vpop.f32.mrb[0].mxu0
        %v8064 = vadd.f32 %v7240, %v8063
        %8065 = vmatprep.mubr.bf16.mxu0 0
        %8066 = vmatmul.mubr.bf16.gmra.mrb[0].mxu0 %v7207
        %v8067 = vpop.f32.mrb[0].mxu0
        %v8068 = vadd.f32 %v7236, %v8067
        %v8069 = vpop.f32.mrb[0].mxu0
        %v8070 = vadd.f32 %v7240, %v8069
        %v8071 = vpop.f32.mrb[0].mxu0
        %v8072 = vadd.f32 %v7236, %v8071
        %v8073 = vpop.f32.mrb[0].mxu0
        %v8074 = vadd.f32 %v7240, %v8073
        %8075 = vmatprep.mubr.bf16.mxu0 0
        %8076 = vmatmul.mubr.bf16.gmra.mrb[0].mxu0 %v7208
        %v8077 = vpop.f32.mrb[0].mxu0
        %v8078 = vadd.f32 %v7236, %v8077
        %v8079 = vpop.f32.mrb[0].mxu0
        %v8080 = vadd.f32 %v7240, %v8079
        %v8081 = vpop.f32.mrb[0].mxu0
        %v8082 = vadd.f32 %v7236, %v8081
        %v8083 = vpop.f32.mrb[0].mxu0
        %v8084 = vadd.f32 %v7240, %v8083
        %8085 = vmatprep.mubr.bf16.mxu0 0
        %8086 = vmatmul.mubr.bf16.gmra.mrb[0].mxu0 %v7209
        %v8087 = vpop.f32.mrb[0].mxu0
        %v8088 = vadd.f32 %v7236, %v8087
        %v8089 = vpop.f32.mrb[0].mxu0
        %v8090 = vadd.f32 %v7240, %v8089
        %v8091 = vpop.f32.mrb[0].mxu0
        %v8092 = vadd.f32 %v7236, %v8091
        %v8093 = vpop.f32.mrb[0].mxu0
        %v8094 = vadd.f32 %v7240, %v8093
        %8095 = vmatprep.mubr.bf16.mxu0 0
        %8096 = vmatmul.mubr.bf16.gmra.mrb[0].mxu0 %v7210
        %v8097 = vpop.f32.mrb[0].mxu0
        %v8098 = vadd.f32 %v7236, %v8097
        %v8099 = vpop.f32.mrb[0].mxu0
        %v8100 = vadd.f32 %v7240, %v8099
        %v8101 = vpop.f32.mrb[0].mxu0
        %v8102 = vadd.f32 %v7236, %v8101
        %v8103 = vpop.f32.mrb[0].mxu0
        %v8104 = vadd.f32 %v7240, %v8103
        %8105 = vmatprep.mubr.bf16.mxu0 0
        %8106 = vmatmul.mubr.bf16.gmra.mrb[0].mxu0 %v7211
        %v8107 = vpop.f32.mrb[0].mxu0
        %v8108 = vadd.f32 %v7236, %v8107
        %v8109 = vpop.f32.mrb[0].mxu0
        %v8110 = vadd.f32 %v7240, %v8109
        %v8111 = vpop.f32.mrb[0].mxu0
        %v8112 = vadd.f32 %v7236, %v8111
        %v8113 = vpop.f32.mrb[0].mxu0
        %v8114 = vadd.f32 %v7240, %v8113
        %8115 = vmatprep.mubr.bf16.mxu0 0
        %8116 = vmatmul.mubr.bf16.gmra.mrb[0].mxu0 %v7212
        %v8117 = vpop.f32.mrb[0].mxu0
        %v8118 = vadd.f32 %v7236, %v8117
        %v8119 = vpop.f32.mrb[0].mxu0
        %v8120 = vadd.f32 %v7240, %v8119
        %v8121 = vpop.f32.mrb[0].mxu0
        %v8122 = vadd.f32 %v7236, %v8121
        %v8123 = vpop.f32.mrb[0].mxu0
        %v8124 = vadd.f32 %v7240, %v8123
        %8125 = vmatprep.mubr.bf16.mxu0 0
        %8126 = vmatmul.mubr.bf16.gmra.mrb[0].mxu0 %v7213
        %v8127 = vpop.f32.mrb[0].mxu0
        %v8128 = vadd.f32 %v7236, %v8127
        %v8129 = vpop.f32.mrb[0].mxu0
        %v8130 = vadd.f32 %v7240, %v8129
        %v8131 = vpop.f32.mrb[0].mxu0
        %v8132 = vadd.f32 %v7236, %v8131
        %v8133 = vpop.f32.mrb[0].mxu0
        %v8134 = vadd.f32 %v7240, %v8133
        %8135 = vmatprep.mubr.bf16.mxu0 0
        %8136 = vmatmul.mubr.bf16.gmra.mrb[0].mxu0 %v7214
        %v8137 = vpop.f32.mrb[0].mxu0
        %v8138 = vadd.f32 %v7236, %v8137
        %v8139 = vpop.f32.mrb[0].mxu0
        %v8140 = vadd.f32 %v7240, %v8139
        %v8141 = vpop.f32.mrb[0].mxu0
        %v8142 = vadd.f32 %v7236, %v8141
        %v8143 = vpop.f32.mrb[0].mxu0
        %v8144 = vadd.f32 %v7240, %v8143
        %8145 = vmatprep.mubr.bf16.mxu0 0
        %8146 = vmatmul.mubr.bf16.gmra.mrb[0].mxu0 %v7215
        %v8147 = vpop.f32.mrb[0].mxu0
        %v8148 = vadd.f32 %v7236, %v8147
        %v8149 = vpop.f32.mrb[0].mxu0
        %v8150 = vadd.f32 %v7240, %v8149
        %v8151 = vpop.f32.mrb[0].mxu0
        %v8152 = vadd.f32 %v7236, %v8151
        %v8153 = vpop.f32.mrb[0].mxu0
        %v8154 = vadd.f32 %v7240, %v8153
        %8155 = vdwg.mxu0
        %8156 = vmatprep.subr.bf16.mxu0 %v7456
        %8157 = vmatpush1.bf16.msra.mxu0 %v7455
        %8158 = vmatprep.subr.bf16.mxu0 %v7464
        %8159 = vmatpush1.bf16.msra.mxu0 %v7463
        %8160 = vmatprep.subr.bf16.mxu0 %v7472
        %8161 = vmatpush1.bf16.msra.mxu0 %v7471
        %8162 = vmatprep.subr.bf16.mxu0 %v7480
        %8163 = vmatpush1.bf16.msra.mxu0 %v7479
        %8164 = vmatprep.subr.bf16.mxu0 %v7488
        %8165 = vmatpush1.bf16.msra.mxu0 %v7487
        %8166 = vmatprep.subr.bf16.mxu0 %v7496
        %8167 = vmatpush1.bf16.msra.mxu0 %v7495
        %8168 = vmatprep.subr.bf16.mxu0 %v7504
        %8169 = vmatpush1.bf16.msra.mxu0 %v7503
        %8170 = vmatprep.subr.bf16.mxu0 %v7512
        %8171 = vmatpush1.bf16.msra.mxu0 %v7511
        %8172 = vmatprep.subr.bf16.mxu0 0
        %8173 = vmatpush1.bf16.msra.mxu0 0
        %8174 = vmatprep.subr.bf16.mxu0 0
        %8175 = vmatpush1.bf16.msra.mxu0 0
        %8176 = vmatprep.subr.bf16.mxu0 0
        %8177 = vmatpush1.bf16.msra.mxu0 0
        %8178 = vmatprep.subr.bf16.mxu0 0
        %8179 = vmatpush1.bf16.msra.mxu0 0
        %8180 = vmatprep.subr.bf16.mxu0 0
        %8181 = vmatpush1.bf16.msra.mxu0 0
        %8182 = vmatprep.subr.bf16.mxu0 0
        %8183 = vmatpush1.bf16.msra.mxu0 0
        %8184 = vmatprep.subr.bf16.mxu0 0
        %8185 = vmatpush1.bf16.msra.mxu0 0
        %8186 = vmatprep.subr.bf16.mxu0 0
        %8187 = vmatpush1.bf16.msra.mxu0 0
        %8188 = vmatprep.mubr.bf16.mxu0 0
        %8189 = vmatmul.mubr.bf16.gmra.mrb[0].mxu0 %v7200
        %v8190 = vpop.f32.mrb[0].mxu0
        %v8191 = vadd.f32 %v7244, %v8190
        %v8192 = vpop.f32.mrb[0].mxu0
        %v8193 = vadd.f32 %v7248, %v8192
        %v8194 = vpop.f32.mrb[0].mxu0
        %v8195 = vadd.f32 %v7244, %v8194
        %v8196 = vpop.f32.mrb[0].mxu0
        %v8197 = vadd.f32 %v7248, %v8196
        %8198 = vmatprep.mubr.bf16.mxu0 0
        %8199 = vmatmul.mubr.bf16.gmra.mrb[0].mxu0 %v7201
        %v8200 = vpop.f32.mrb[0].mxu0
        %v8201 = vadd.f32 %v7244, %v8200
        %v8202 = vpop.f32.mrb[0].mxu0
        %v8203 = vadd.f32 %v7248, %v8202
        %v8204 = vpop.f32.mrb[0].mxu0
        %v8205 = vadd.f32 %v7244, %v8204
        %v8206 = vpop.f32.mrb[0].mxu0
        %v8207 = vadd.f32 %v7248, %v8206
        %8208 = vmatprep.mubr.bf16.mxu0 0
        %8209 = vmatmul.mubr.bf16.gmra.mrb[0].mxu0 %v7202
        %v8210 = vpop.f32.mrb[0].mxu0
        %v8211 = vadd.f32 %v7244, %v8210
        %v8212 = vpop.f32.mrb[0].mxu0
        %v8213 = vadd.f32 %v7248, %v8212
        %v8214 = vpop.f32.mrb[0].mxu0
        %v8215 = vadd.f32 %v7244, %v8214
        %v8216 = vpop.f32.mrb[0].mxu0
        %v8217 = vadd.f32 %v7248, %v8216
        %8218 = vmatprep.mubr.bf16.mxu0 0
        %8219 = vmatmul.mubr.bf16.gmra.mrb[0].mxu0 %v7203
        %v8220 = vpop.f32.mrb[0].mxu0
        %v8221 = vadd.f32 %v7244, %v8220
        %v8222 = vpop.f32.mrb[0].mxu0
        %v8223 = vadd.f32 %v7248, %v8222
        %v8224 = vpop.f32.mrb[0].mxu0
        %v8225 = vadd.f32 %v7244, %v8224
        %v8226 = vpop.f32.mrb[0].mxu0
        %v8227 = vadd.f32 %v7248, %v8226
        %8228 = vmatprep.mubr.bf16.mxu0 0
        %8229 = vmatmul.mubr.bf16.gmra.mrb[0].mxu0 %v7204
        %v8230 = vpop.f32.mrb[0].mxu0
        %v8231 = vadd.f32 %v7244, %v8230
        %v8232 = vpop.f32.mrb[0].mxu0
        %v8233 = vadd.f32 %v7248, %v8232
        %v8234 = vpop.f32.mrb[0].mxu0
        %v8235 = vadd.f32 %v7244, %v8234
        %v8236 = vpop.f32.mrb[0].mxu0
        %v8237 = vadd.f32 %v7248, %v8236
        %8238 = vmatprep.mubr.bf16.mxu0 0
        %8239 = vmatmul.mubr.bf16.gmra.mrb[0].mxu0 %v7205
        %v8240 = vpop.f32.mrb[0].mxu0
        %v8241 = vadd.f32 %v7244, %v8240
        %v8242 = vpop.f32.mrb[0].mxu0
        %v8243 = vadd.f32 %v7248, %v8242
        %v8244 = vpop.f32.mrb[0].mxu0
        %v8245 = vadd.f32 %v7244, %v8244
        %v8246 = vpop.f32.mrb[0].mxu0
        %v8247 = vadd.f32 %v7248, %v8246
        %8248 = vmatprep.mubr.bf16.mxu0 0
        %8249 = vmatmul.mubr.bf16.gmra.mrb[0].mxu0 %v7206
        %v8250 = vpop.f32.mrb[0].mxu0
        %v8251 = vadd.f32 %v7244, %v8250
        %v8252 = vpop.f32.mrb[0].mxu0
        %v8253 = vadd.f32 %v7248, %v8252
        %v8254 = vpop.f32.mrb[0].mxu0
        %v8255 = vadd.f32 %v7244, %v8254
        %v8256 = vpop.f32.mrb[0].mxu0
        %v8257 = vadd.f32 %v7248, %v8256
        %8258 = vmatprep.mubr.bf16.mxu0 0
        %8259 = vmatmul.mubr.bf16.gmra.mrb[0].mxu0 %v7207
        %v8260 = vpop.f32.mrb[0].mxu0
        %v8261 = vadd.f32 %v7244, %v8260
        %v8262 = vpop.f32.mrb[0].mxu0
        %v8263 = vadd.f32 %v7248, %v8262
        %v8264 = vpop.f32.mrb[0].mxu0
        %v8265 = vadd.f32 %v7244, %v8264
        %v8266 = vpop.f32.mrb[0].mxu0
        %v8267 = vadd.f32 %v7248, %v8266
        %8268 = vmatprep.mubr.bf16.mxu0 0
        %8269 = vmatmul.mubr.bf16.gmra.mrb[0].mxu0 %v7208
        %v8270 = vpop.f32.mrb[0].mxu0
        %v8271 = vadd.f32 %v7244, %v8270
        %v8272 = vpop.f32.mrb[0].mxu0
        %v8273 = vadd.f32 %v7248, %v8272
        %v8274 = vpop.f32.mrb[0].mxu0
        %v8275 = vadd.f32 %v7244, %v8274
        %v8276 = vpop.f32.mrb[0].mxu0
        %v8277 = vadd.f32 %v7248, %v8276
        %8278 = vmatprep.mubr.bf16.mxu0 0
        %8279 = vmatmul.mubr.bf16.gmra.mrb[0].mxu0 %v7209
        %v8280 = vpop.f32.mrb[0].mxu0
        %v8281 = vadd.f32 %v7244, %v8280
        %v8282 = vpop.f32.mrb[0].mxu0
        %v8283 = vadd.f32 %v7248, %v8282
        %v8284 = vpop.f32.mrb[0].mxu0
        %v8285 = vadd.f32 %v7244, %v8284
        %v8286 = vpop.f32.mrb[0].mxu0
        %v8287 = vadd.f32 %v7248, %v8286
        %8288 = vmatprep.mubr.bf16.mxu0 0
        %8289 = vmatmul.mubr.bf16.gmra.mrb[0].mxu0 %v7210
        %v8290 = vpop.f32.mrb[0].mxu0
        %v8291 = vadd.f32 %v7244, %v8290
        %v8292 = vpop.f32.mrb[0].mxu0
        %v8293 = vadd.f32 %v7248, %v8292
        %v8294 = vpop.f32.mrb[0].mxu0
        %v8295 = vadd.f32 %v7244, %v8294
        %v8296 = vpop.f32.mrb[0].mxu0
        %v8297 = vadd.f32 %v7248, %v8296
        %8298 = vmatprep.mubr.bf16.mxu0 0
        %8299 = vmatmul.mubr.bf16.gmra.mrb[0].mxu0 %v7211
        %v8300 = vpop.f32.mrb[0].mxu0
        %v8301 = vadd.f32 %v7244, %v8300
        %v8302 = vpop.f32.mrb[0].mxu0
        %v8303 = vadd.f32 %v7248, %v8302
        %v8304 = vpop.f32.mrb[0].mxu0
        %v8305 = vadd.f32 %v7244, %v8304
        %v8306 = vpop.f32.mrb[0].mxu0
        %v8307 = vadd.f32 %v7248, %v8306
        %8308 = vmatprep.mubr.bf16.mxu0 0
        %8309 = vmatmul.mubr.bf16.gmra.mrb[0].mxu0 %v7212
        %v8310 = vpop.f32.mrb[0].mxu0
        %v8311 = vadd.f32 %v7244, %v8310
        %v8312 = vpop.f32.mrb[0].mxu0
        %v8313 = vadd.f32 %v7248, %v8312
        %v8314 = vpop.f32.mrb[0].mxu0
        %v8315 = vadd.f32 %v7244, %v8314
        %v8316 = vpop.f32.mrb[0].mxu0
        %v8317 = vadd.f32 %v7248, %v8316
        %8318 = vmatprep.mubr.bf16.mxu0 0
        %8319 = vmatmul.mubr.bf16.gmra.mrb[0].mxu0 %v7213
        %v8320 = vpop.f32.mrb[0].mxu0
        %v8321 = vadd.f32 %v7244, %v8320
        %v8322 = vpop.f32.mrb[0].mxu0
        %v8323 = vadd.f32 %v7248, %v8322
        %v8324 = vpop.f32.mrb[0].mxu0
        %v8325 = vadd.f32 %v7244, %v8324
        %v8326 = vpop.f32.mrb[0].mxu0
        %v8327 = vadd.f32 %v7248, %v8326
        %8328 = vmatprep.mubr.bf16.mxu0 0
        %8329 = vmatmul.mubr.bf16.gmra.mrb[0].mxu0 %v7214
        %v8330 = vpop.f32.mrb[0].mxu0
        %v8331 = vadd.f32 %v7244, %v8330
        %v8332 = vpop.f32.mrb[0].mxu0
        %v8333 = vadd.f32 %v7248, %v8332
        %v8334 = vpop.f32.mrb[0].mxu0
        %v8335 = vadd.f32 %v7244, %v8334
        %v8336 = vpop.f32.mrb[0].mxu0
        %v8337 = vadd.f32 %v7248, %v8336
        %8338 = vmatprep.mubr.bf16.mxu0 0
        %8339 = vmatmul.mubr.bf16.gmra.mrb[0].mxu0 %v7215
        %v8340 = vpop.f32.mrb[0].mxu0
        %v8341 = vadd.f32 %v7244, %v8340
        %v8342 = vpop.f32.mrb[0].mxu0
        %v8343 = vadd.f32 %v7248, %v8342
        %v8344 = vpop.f32.mrb[0].mxu0
        %v8345 = vadd.f32 %v7244, %v8344
        %v8346 = vpop.f32.mrb[0].mxu0
        %v8347 = vadd.f32 %v7248, %v8346
        %8348 = vdwg.mxu0
        %v8349 = vmax.f32 %v7612, %v7616
        %v8350 = vmax.f32 %v8349, %v7622
        %v8351 = vmax.f32 %v8350, %v7626
        %v8352 = vmax.f32 %v8351, %v7632
        %v8353 = vmax.f32 %v8352, %v7636
        %v8354 = vmax.f32 %v8353, %v7642
        %v8355 = vmax.f32 %v8354, %v7646
        %v8356 = vmax.f32 %v8355, %v7652
        %v8357 = vmax.f32 %v8356, %v7656
        %v8358 = vmax.f32 %v8357, %v7662
        %v8359 = vmax.f32 %v8358, %v7666
        %v8360 = vmax.f32 %v8359, %v7672
        %v8361 = vmax.f32 %v8360, %v7676
        %v8362 = vmax.f32 %v8361, %v7682
        %v8363 = vmax.f32 %v8362, %v7686
        %v8364 = vmax.f32 %v8363, %v7692
        %v8365 = vmax.f32 %v8364, %v7696
        %v8366 = vmax.f32 %v8365, %v7702
        %v8367 = vmax.f32 %v8366, %v7706
        %v8368 = vmax.f32 %v8367, %v7712
        %v8369 = vmax.f32 %v8368, %v7716
        %v8370 = vmax.f32 %v8369, %v7722
        %v8371 = vmax.f32 %v8370, %v7726
        %v8372 = vmax.f32 %v8371, %v7732
        %v8373 = vmax.f32 %v8372, %v7736
        %v8374 = vmax.f32 %v8373, %v7742
        %v8375 = vmax.f32 %v8374, %v7746
        %v8376 = vmax.f32 %v8375, %v7752
        %v8377 = vmax.f32 %v8376, %v7756
        %v8378 = vmax.f32 %v8377, %v7762
        %v8379 = vmax.f32 %v8378, %v7766
        %v8380 = vrot.slane %v8379, 4
        %v8381 = vmax.f32 %v8379, %v8380
        %v8382 = vrot.slane %v8381, 2
        %v8383 = vmax.f32 %v8381, %v8382
        %v8384 = vrot.slane %v8383, 1
        %v8385 = vmax.f32 %v8383, %v8384
        %v8386 = vmax.f32 %v7614, %v7618
        %v8387 = vmax.f32 %v8386, %v7624
        %v8388 = vmax.f32 %v8387, %v7628
        %v8389 = vmax.f32 %v8388, %v7634
        %v8390 = vmax.f32 %v8389, %v7638
        %v8391 = vmax.f32 %v8390, %v7644
        %v8392 = vmax.f32 %v8391, %v7648
        %v8393 = vmax.f32 %v8392, %v7654
        %v8394 = vmax.f32 %v8393, %v7658
        %v8395 = vmax.f32 %v8394, %v7664
        %v8396 = vmax.f32 %v8395, %v7668
        %v8397 = vmax.f32 %v8396, %v7674
        %v8398 = vmax.f32 %v8397, %v7678
        %v8399 = vmax.f32 %v8398, %v7684
        %v8400 = vmax.f32 %v8399, %v7688
        %v8401 = vmax.f32 %v8400, %v7694
        %v8402 = vmax.f32 %v8401, %v7698
        %v8403 = vmax.f32 %v8402, %v7704
        %v8404 = vmax.f32 %v8403, %v7708
        %v8405 = vmax.f32 %v8404, %v7714
        %v8406 = vmax.f32 %v8405, %v7718
        %v8407 = vmax.f32 %v8406, %v7724
        %v8408 = vmax.f32 %v8407, %v7728
        %v8409 = vmax.f32 %v8408, %v7734
        %v8410 = vmax.f32 %v8409, %v7738
        %v8411 = vmax.f32 %v8410, %v7744
        %v8412 = vmax.f32 %v8411, %v7748
        %v8413 = vmax.f32 %v8412, %v7754
        %v8414 = vmax.f32 %v8413, %v7758
        %v8415 = vmax.f32 %v8414, %v7764
        %v8416 = vmax.f32 %v8415, %v7768
        %v8417 = vrot.slane %v8416, 4
        %v8418 = vmax.f32 %v8416, %v8417
        %v8419 = vrot.slane %v8418, 2
        %v8420 = vmax.f32 %v8418, %v8419
        %v8421 = vrot.slane %v8420, 1
        %v8422 = vmax.f32 %v8420, %v8421
        %v8423 = vmax.f32 %v7805, %v7809
        %v8424 = vmax.f32 %v8423, %v7815
        %v8425 = vmax.f32 %v8424, %v7819
        %v8426 = vmax.f32 %v8425, %v7825
        %v8427 = vmax.f32 %v8426, %v7829
        %v8428 = vmax.f32 %v8427, %v7835
        %v8429 = vmax.f32 %v8428, %v7839
        %v8430 = vmax.f32 %v8429, %v7845
        %v8431 = vmax.f32 %v8430, %v7849
        %v8432 = vmax.f32 %v8431, %v7855
        %v8433 = vmax.f32 %v8432, %v7859
        %v8434 = vmax.f32 %v8433, %v7865
        %v8435 = vmax.f32 %v8434, %v7869
        %v8436 = vmax.f32 %v8435, %v7875
        %v8437 = vmax.f32 %v8436, %v7879
        %v8438 = vmax.f32 %v8437, %v7885
        %v8439 = vmax.f32 %v8438, %v7889
        %v8440 = vmax.f32 %v8439, %v7895
        %v8441 = vmax.f32 %v8440, %v7899
        %v8442 = vmax.f32 %v8441, %v7905
        %v8443 = vmax.f32 %v8442, %v7909
        %v8444 = vmax.f32 %v8443, %v7915
        %v8445 = vmax.f32 %v8444, %v7919
        %v8446 = vmax.f32 %v8445, %v7925
        %v8447 = vmax.f32 %v8446, %v7929
        %v8448 = vmax.f32 %v8447, %v7935
        %v8449 = vmax.f32 %v8448, %v7939
        %v8450 = vmax.f32 %v8449, %v7945
        %v8451 = vmax.f32 %v8450, %v7949
        %v8452 = vmax.f32 %v8451, %v7955
        %v8453 = vmax.f32 %v8452, %v7959
        %v8454 = vrot.slane %v8453, 4
        %v8455 = vmax.f32 %v8453, %v8454
        %v8456 = vrot.slane %v8455, 2
        %v8457 = vmax.f32 %v8455, %v8456
        %v8458 = vrot.slane %v8457, 1
        %v8459 = vmax.f32 %v8457, %v8458
        %v8460 = vmax.f32 %v7807, %v7811
        %v8461 = vmax.f32 %v8460, %v7817
        %v8462 = vmax.f32 %v8461, %v7821
        %v8463 = vmax.f32 %v8462, %v7827
        %v8464 = vmax.f32 %v8463, %v7831
        %v8465 = vmax.f32 %v8464, %v7837
        %v8466 = vmax.f32 %v8465, %v7841
        %v8467 = vmax.f32 %v8466, %v7847
        %v8468 = vmax.f32 %v8467, %v7851
        %v8469 = vmax.f32 %v8468, %v7857
        %v8470 = vmax.f32 %v8469, %v7861
        %v8471 = vmax.f32 %v8470, %v7867
        %v8472 = vmax.f32 %v8471, %v7871
        %v8473 = vmax.f32 %v8472, %v7877
        %v8474 = vmax.f32 %v8473, %v7881
        %v8475 = vmax.f32 %v8474, %v7887
        %v8476 = vmax.f32 %v8475, %v7891
        %v8477 = vmax.f32 %v8476, %v7897
        %v8478 = vmax.f32 %v8477, %v7901
        %v8479 = vmax.f32 %v8478, %v7907
        %v8480 = vmax.f32 %v8479, %v7911
        %v8481 = vmax.f32 %v8480, %v7917
        %v8482 = vmax.f32 %v8481, %v7921
        %v8483 = vmax.f32 %v8482, %v7927
        %v8484 = vmax.f32 %v8483, %v7931
        %v8485 = vmax.f32 %v8484, %v7937
        %v8486 = vmax.f32 %v8485, %v7941
        %v8487 = vmax.f32 %v8486, %v7947
        %v8488 = vmax.f32 %v8487, %v7951
        %v8489 = vmax.f32 %v8488, %v7957
        %v8490 = vmax.f32 %v8489, %v7961
        %v8491 = vrot.slane %v8490, 4
        %v8492 = vmax.f32 %v8490, %v8491
        %v8493 = vrot.slane %v8492, 2
        %v8494 = vmax.f32 %v8492, %v8493
        %v8495 = vrot.slane %v8494, 1
        %v8496 = vmax.f32 %v8494, %v8495
        %v8497 = vmax.f32 %v7998, %v8002
        %v8498 = vmax.f32 %v8497, %v8008
        %v8499 = vmax.f32 %v8498, %v8012
        %v8500 = vmax.f32 %v8499, %v8018
        %v8501 = vmax.f32 %v8500, %v8022
        %v8502 = vmax.f32 %v8501, %v8028
        %v8503 = vmax.f32 %v8502, %v8032
        %v8504 = vmax.f32 %v8503, %v8038
        %v8505 = vmax.f32 %v8504, %v8042
        %v8506 = vmax.f32 %v8505, %v8048
        %v8507 = vmax.f32 %v8506, %v8052
        %v8508 = vmax.f32 %v8507, %v8058
        %v8509 = vmax.f32 %v8508, %v8062
        %v8510 = vmax.f32 %v8509, %v8068
        %v8511 = vmax.f32 %v8510, %v8072
        %v8512 = vmax.f32 %v8511, %v8078
        %v8513 = vmax.f32 %v8512, %v8082
        %v8514 = vmax.f32 %v8513, %v8088
        %v8515 = vmax.f32 %v8514, %v8092
        %v8516 = vmax.f32 %v8515, %v8098
        %v8517 = vmax.f32 %v8516, %v8102
        %v8518 = vmax.f32 %v8517, %v8108
        %v8519 = vmax.f32 %v8518, %v8112
        %v8520 = vmax.f32 %v8519, %v8118
        %v8521 = vmax.f32 %v8520, %v8122
        %v8522 = vmax.f32 %v8521, %v8128
        %v8523 = vmax.f32 %v8522, %v8132
        %v8524 = vmax.f32 %v8523, %v8138
        %v8525 = vmax.f32 %v8524, %v8142
        %v8526 = vmax.f32 %v8525, %v8148
        %v8527 = vmax.f32 %v8526, %v8152
        %v8528 = vrot.slane %v8527, 4
        %v8529 = vmax.f32 %v8527, %v8528
        %v8530 = vrot.slane %v8529, 2
        %v8531 = vmax.f32 %v8529, %v8530
        %v8532 = vrot.slane %v8531, 1
        %v8533 = vmax.f32 %v8531, %v8532
        %v8534 = vmax.f32 %v8000, %v8004
        %v8535 = vmax.f32 %v8534, %v8010
        %v8536 = vmax.f32 %v8535, %v8014
        %v8537 = vmax.f32 %v8536, %v8020
        %v8538 = vmax.f32 %v8537, %v8024
        %v8539 = vmax.f32 %v8538, %v8030
        %v8540 = vmax.f32 %v8539, %v8034
        %v8541 = vmax.f32 %v8540, %v8040
        %v8542 = vmax.f32 %v8541, %v8044
        %v8543 = vmax.f32 %v8542, %v8050
        %v8544 = vmax.f32 %v8543, %v8054
        %v8545 = vmax.f32 %v8544, %v8060
        %v8546 = vmax.f32 %v8545, %v8064
        %v8547 = vmax.f32 %v8546, %v8070
        %v8548 = vmax.f32 %v8547, %v8074
        %v8549 = vmax.f32 %v8548, %v8080
        %v8550 = vmax.f32 %v8549, %v8084
        %v8551 = vmax.f32 %v8550, %v8090
        %v8552 = vmax.f32 %v8551, %v8094
        %v8553 = vmax.f32 %v8552, %v8100
        %v8554 = vmax.f32 %v8553, %v8104
        %v8555 = vmax.f32 %v8554, %v8110
        %v8556 = vmax.f32 %v8555, %v8114
        %v8557 = vmax.f32 %v8556, %v8120
        %v8558 = vmax.f32 %v8557, %v8124
        %v8559 = vmax.f32 %v8558, %v8130
        %v8560 = vmax.f32 %v8559, %v8134
        %v8561 = vmax.f32 %v8560, %v8140
        %v8562 = vmax.f32 %v8561, %v8144
        %v8563 = vmax.f32 %v8562, %v8150
        %v8564 = vmax.f32 %v8563, %v8154
        %v8565 = vrot.slane %v8564, 4
        %v8566 = vmax.f32 %v8564, %v8565
        %v8567 = vrot.slane %v8566, 2
        %v8568 = vmax.f32 %v8566, %v8567
        %v8569 = vrot.slane %v8568, 1
        %v8570 = vmax.f32 %v8568, %v8569
        %v8571 = vmax.f32 %v8191, %v8195
        %v8572 = vmax.f32 %v8571, %v8201
        %v8573 = vmax.f32 %v8572, %v8205
        %v8574 = vmax.f32 %v8573, %v8211
        %v8575 = vmax.f32 %v8574, %v8215
        %v8576 = vmax.f32 %v8575, %v8221
        %v8577 = vmax.f32 %v8576, %v8225
        %v8578 = vmax.f32 %v8577, %v8231
        %v8579 = vmax.f32 %v8578, %v8235
        %v8580 = vmax.f32 %v8579, %v8241
        %v8581 = vmax.f32 %v8580, %v8245
        %v8582 = vmax.f32 %v8581, %v8251
        %v8583 = vmax.f32 %v8582, %v8255
        %v8584 = vmax.f32 %v8583, %v8261
        %v8585 = vmax.f32 %v8584, %v8265
        %v8586 = vmax.f32 %v8585, %v8271
        %v8587 = vmax.f32 %v8586, %v8275
        %v8588 = vmax.f32 %v8587, %v8281
        %v8589 = vmax.f32 %v8588, %v8285
        %v8590 = vmax.f32 %v8589, %v8291
        %v8591 = vmax.f32 %v8590, %v8295
        %v8592 = vmax.f32 %v8591, %v8301
        %v8593 = vmax.f32 %v8592, %v8305
        %v8594 = vmax.f32 %v8593, %v8311
        %v8595 = vmax.f32 %v8594, %v8315
        %v8596 = vmax.f32 %v8595, %v8321
        %v8597 = vmax.f32 %v8596, %v8325
        %v8598 = vmax.f32 %v8597, %v8331
        %v8599 = vmax.f32 %v8598, %v8335
        %v8600 = vmax.f32 %v8599, %v8341
        %v8601 = vmax.f32 %v8600, %v8345
        %v8602 = vrot.slane %v8601, 4
        %v8603 = vmax.f32 %v8601, %v8602
        %v8604 = vrot.slane %v8603, 2
        %v8605 = vmax.f32 %v8603, %v8604
        %v8606 = vrot.slane %v8605, 1
        %v8607 = vmax.f32 %v8605, %v8606
        %v8608 = vmax.f32 %v8193, %v8197
        %v8609 = vmax.f32 %v8608, %v8203
        %v8610 = vmax.f32 %v8609, %v8207
        %v8611 = vmax.f32 %v8610, %v8213
        %v8612 = vmax.f32 %v8611, %v8217
        %v8613 = vmax.f32 %v8612, %v8223
        %v8614 = vmax.f32 %v8613, %v8227
        %v8615 = vmax.f32 %v8614, %v8233
        %v8616 = vmax.f32 %v8615, %v8237
        %v8617 = vmax.f32 %v8616, %v8243
        %v8618 = vmax.f32 %v8617, %v8247
        %v8619 = vmax.f32 %v8618, %v8253
        %v8620 = vmax.f32 %v8619, %v8257
        %v8621 = vmax.f32 %v8620, %v8263
        %v8622 = vmax.f32 %v8621, %v8267
        %v8623 = vmax.f32 %v8622, %v8273
        %v8624 = vmax.f32 %v8623, %v8277
        %v8625 = vmax.f32 %v8624, %v8283
        %v8626 = vmax.f32 %v8625, %v8287
        %v8627 = vmax.f32 %v8626, %v8293
        %v8628 = vmax.f32 %v8627, %v8297
        %v8629 = vmax.f32 %v8628, %v8303
        %v8630 = vmax.f32 %v8629, %v8307
        %v8631 = vmax.f32 %v8630, %v8313
        %v8632 = vmax.f32 %v8631, %v8317
        %v8633 = vmax.f32 %v8632, %v8323
        %v8634 = vmax.f32 %v8633, %v8327
        %v8635 = vmax.f32 %v8634, %v8333
        %v8636 = vmax.f32 %v8635, %v8337
        %v8637 = vmax.f32 %v8636, %v8343
        %v8638 = vmax.f32 %v8637, %v8347
        %v8639 = vrot.slane %v8638, 4
        %v8640 = vmax.f32 %v8638, %v8639
        %v8641 = vrot.slane %v8640, 2
        %v8642 = vmax.f32 %v8640, %v8641
        %v8643 = vrot.slane %v8642, 1
        %v8644 = vmax.f32 %v8642, %v8643
        %v8653 = vcombine.low %v8385, %v8422
        %v8654 = vcombine.low %v8459, %v8496
        %v8655 = vcombine.low %v8533, %v8570
        %v8656 = vcombine.low %v8607, %v8644
        %v8658 = vunpack.c.l.s4 1966171168
        %v8659 = vunpack.c.0.s8 %v8658
        %v8660 = vlaneseq
        %v8661 = vshrl.u32 %v8660, 7
        %v8662 = vsub.s32 %v8659, %v8661
        %v8663 = vrot.slane %v8653, %v8662
        %v8665 = vunpack.c.l.s4 1966171168
        %v8666 = vunpack.c.0.s8 %v8665
        %v8667 = vlaneseq
        %v8668 = vshrl.u32 %v8667, 7
        %v8669 = vsub.s32 %v8666, %v8668
        %v8670 = vrot.slane %v8654, %v8669
        %v8672 = vunpack.c.l.s4 1966171168
        %v8673 = vunpack.c.0.s8 %v8672
        %v8674 = vlaneseq
        %v8675 = vshrl.u32 %v8674, 7
        %v8676 = vsub.s32 %v8673, %v8675
        %v8677 = vrot.slane %v8655, %v8676
        %v8679 = vunpack.c.l.s4 1966171168
        %v8680 = vunpack.c.0.s8 %v8679
        %v8681 = vlaneseq
        %v8682 = vshrl.u32 %v8681, 7
        %v8683 = vsub.s32 %v8680, %v8682
        %v8684 = vrot.slane %v8656, %v8683
        %v8685 = vcombine.low %v8663, %v8670
        %v8686 = vcombine.low %v8677, %v8684
        %v8688 = vunpack.c.l.s4 1966171168
        %v8689 = vunpack.c.0.s8 %v8688
        %v8690 = vlaneseq
        %v8691 = vshrl.u32 %v8690, 7
        %v8692 = vsub.s32 %v8689, %v8691
        %v8693 = vrot.slane %v8685, %v8692
        %v8695 = vunpack.c.l.s4 1966171168
        %v8696 = vunpack.c.0.s8 %v8695
        %v8697 = vlaneseq
        %v8698 = vshrl.u32 %v8697, 7
        %v8699 = vsub.s32 %v8696, %v8698
        %v8700 = vrot.slane %v8686, %v8699
        %v8701 = vcombine.low %v8693, %v8700
        %8703 = vst [vmem:[%s762] sm:$0xff] %v8701
        %s8704 = sand.u32 %s456, 1
        %s8705 = scalar_lea.sflag [#allocation4], %s8704
        %s8706 = sand.u32 %s456, 1
        %s8707 = smul.addr %s8706, 8
        %s8708 = scalar_lea.vmem [#allocation19], %s8707
        %s8709 = sand.u32 %s482, 1
        %s8710 = scalar_lea.sflag [#allocation21], %s8709
        %s8711 = sand.u32 %s482, 1
        %s8712 = scalar_lea.vmem [#allocation20], %s8711
        // Predicated region
        $region137: #{tpu_custom_call.1} parent=95 // pred_check
          %p8713 = pneg %p466
        $region138: #{tpu_custom_call.1} parent=95 // pred_check_branch
          %8715 = sbr.rel (%p8713) target = $region140
        $region139: #{tpu_custom_call.1} parent=95 // pred_region
          %s8717 = ssub.s32 128, 128
          %8718 = vsyncadd %s8705, %s8717
          %s8719 = smul.addr %s44, 8
          %s8720 = smul.addr %s8719, 16
          %s8721 = scalar_lea.hbm %s19, %s8720
          %s8723 = sshll.u32 %s8708, 4
          %s8724 = int_to_ptr.vmem [resolvable:$true] %s8723
          %8726 = dma.vmem_to_hbm [thread:$0]  %s8724, 128, %s8721, %s8705
        $region140: #{tpu_custom_call.1} parent=95 // pred_fallthru
          _
        // Predicated region
        $region141: #{tpu_custom_call.1} parent=95 // pred_check
          %p8727 = pneg %p492
        $region142: #{tpu_custom_call.1} parent=95 // pred_check_branch
          %8729 = sbr.rel (%p8727) target = $region144
        $region143: #{tpu_custom_call.1} parent=95 // pred_region
          %s8731 = ssub.s32 16, 16
          %8732 = vsyncadd %s8710, %s8731
          %s8733 = smul.addr %s44, 16
          %s8734 = scalar_lea.hbm %s20, %s8733
          %s8736 = sshll.u32 %s8712, 4
          %s8737 = int_to_ptr.vmem [resolvable:$true] %s8736
          %8739 = dma.vmem_to_hbm [thread:$0]  %s8737, 16, %s8734, %s8710
        $region144: #{tpu_custom_call.1} parent=95 // pred_fallthru
          _
      $region96: #{tpu_custom_call.1} parent=5 // pred_fallthru
        _
      %p8740 = scmp.le.s32.totalorder 2, %s39
      // Predicated region
      $region145: #{tpu_custom_call.1} parent=5 // pred_check
        %p8741 = pneg %p8740
      $region146: #{tpu_custom_call.1} parent=5 // pred_check_branch
        %8743 = sbr.rel (%p8741) target = $region148
      $region147: #{tpu_custom_call.1} parent=5 // pred_region
        %s8744 = ssub.s32 %s39, 2
        // Predicated region
        $region149: #{tpu_custom_call.1} parent=147 // pred_check
          %p8745 = pneg %p472
        $region150: #{tpu_custom_call.1} parent=147 // pred_check_branch
          %8747 = sbr.rel (%p8745) target = $region152
        $region151: #{tpu_custom_call.1} parent=147 // pred_region
          %s8748 = sand.u32 %s457, 1
          %s8749 = scalar_lea.sflag [#allocation4], %s8748
          %s8750 = sand.u32 %s457, 1
          %s8751 = smul.addr %s8750, 8
          %s8752 = scalar_lea.vmem [#allocation19], %s8751
          %8753 = dma.done %s8749, 128
        $region152: #{tpu_custom_call.1} parent=147 // pred_fallthru
          _
        // Predicated region
        $region153: #{tpu_custom_call.1} parent=147 // pred_check
          %p8754 = pneg %p498
        $region154: #{tpu_custom_call.1} parent=147 // pred_check_branch
          %8756 = sbr.rel (%p8754) target = $region156
        $region155: #{tpu_custom_call.1} parent=147 // pred_region
          %s8757 = sand.u32 %s483, 1
          %s8758 = scalar_lea.sflag [#allocation21], %s8757
          %s8759 = sand.u32 %s483, 1
          %s8760 = scalar_lea.vmem [#allocation20], %s8759
          %8761 = dma.done %s8758, 16
        $region156: #{tpu_custom_call.1} parent=147 // pred_fallthru
          _
      $region148: #{tpu_custom_call.1} parent=5 // pred_fallthru
        _
    $region6: #{tpu_custom_call.1} parent=1 // loop_footer
      %s43 = sadd.s32 1, %s39
    $region7: #{tpu_custom_call.1} parent=1 // loop_footer_branch
      %38 = sbr.rel target = $region3
    $region8: #{tpu_custom_call.1} parent=1 // loop_exit
      _
    %8762 = vsyncpa [#allocation3], 1
    %s8763 = scalar_lea.sflag [#allocation3], 1
    %8764 = vsyncpa %s8763, 1
    %8765 = vsyncpa [#allocation6], 1
    %8766 = vsyncpa [#allocation9], 1
    %8767 = vsyncpa [#allocation12], 1
    %8768 = vsyncpa [#allocation15], 1
    %8769 = vsyncpa [#allocation18], 1
    %8770 = vsyncpa [#allocation4], 1
    %s8771 = scalar_lea.sflag [#allocation4], 1
    %8772 = vsyncpa %s8771, 1
    %8773 = vsyncpa [#allocation21], 1
    %s8774 = scalar_lea.sflag [#allocation21], 1
    %8775 = vsyncpa %s8774, 1

</llo_original>
